<compile_context>
chip_gen: v7x
topology: tpu7x:2x2x1
jax: 0.10.0
libtpu: 0.0.40
codegen_flags: <defaults>
</compile_context>

<pallas_src>
import functools

import jax
import jax.numpy as jnp
from jax.experimental import pallas as pl
from jax.experimental.pallas import tpu as pltpu

_LANE = 128
_MAX_TR = 4096          # hard cap on rows per tile
_LOG_CLAMP = -100.0     # torch.nn.BCELoss clamps its log terms at -100
_TEMP_ROWS_F32 = 8      # budget for live (TR,128) f32 elementwise temporaries


def _round_up(x, m):
    return ((x + m - 1) // m) * m


def _vmem_info():
    """(tile byte budget, scoped vmem limit) derived from the running chip."""
    try:
        phys = int(pltpu.get_tpu_info().vmem_capacity_bytes)
    except Exception:  # pragma: no cover - conservative fallback
        phys = 64 << 20          # v7x per-core VMEM: smallest current generation
    tile_budget = min(phys // 3, 40 << 20)        # ~21 MiB on v7x, 40 MiB on v5e/v6e
    vmem_limit = int(min(phys * 3 // 4, 96 << 20))
    return tile_budget, vmem_limit


def _pick_tr(r_main, in_itemsizes, tile_budget):
    """Rows per tile from the VMEM budget (double-buffered inputs + f32 temps)."""
    per_row = 2 * _LANE * sum(in_itemsizes) + _TEMP_ROWS_F32 * _LANE * 4
    tr = max(8, min(_MAX_TR, (tile_budget // per_row) // 8 * 8))
    if r_main > 8:
        # Keep >=2 tiles so the "parallel" grid axis can use both v7x TensorCores.
        tr = min(tr, _round_up(pl.cdiv(r_main, 2), 8))
    return min(tr, _round_up(r_main, 8))


def _make_kernel(P, TR, R_main, nstat_pad, pos_weight):
    """Build the reduction kernel for a fixed (static) configuration."""
    nstat = 4 + 3 * P

    def kernel(label_ref, logits_ref, *rest):
        pred_refs = rest[:P]
        o_ref = rest[P]          # (1, nstat_pad, 128) per-tile partial sums

        # Row-validity mask (covers the last tile's row overrun; the lane tail
        # is handled in the wrapper, so no element-index math / no i32 overflow).
        rows = jax.lax.broadcasted_iota(jnp.int32, (TR, _LANE), 0)
        valid = (pl.program_id(0) * TR + rows) < R_main

        # Sublane (row) reduction on the otherwise-idle MXU; HIGHEST keeps the
        # f32 operands at f32 accuracy.  Row 0 of the (8,128) result is the sum.
        ones = jnp.ones((8, TR), jnp.float32)

        def msum(v):
            s = jnp.dot(ones, v, precision=jax.lax.Precision.HIGHEST,
                        preferred_element_type=jnp.float32)
            return s[0:1, :]

        # Neutral-fill invalid rows once per input stream (y->0, x->-100, p->0);
        # every downstream statistic then contributes ~0 on those rows, so no
        # per-statistic selects are needed before the reductions.
        y = jnp.where(valid, label_ref[...].astype(jnp.float32), 0.0)
        one_minus_y = 1.0 - y                      # hoisted, reused by all terms

        # Final logits: pos-weighted BCE-with-logits (stable softplus form).
        x = jnp.where(valid, logits_ref[...].astype(jnp.float32), _LOG_CLAMP)
        e = jnp.exp(-jnp.abs(x))                   # reused for softplus + sigmoid
        z = jnp.log1p(e)
        sp_pos = jnp.maximum(x, 0.0) + z           # softplus(x)  = -log(1 - sig)
        sp_neg = jnp.maximum(-x, 0.0) + z          # softplus(-x) = -log(sig)
        bcew = pos_weight * (y * sp_neg) + one_minus_y * sp_pos
        sig = jnp.where(x >= 0.0, 1.0, e) / (1.0 + e)

        parts = [msum(y), msum(bcew), msum(sig), msum(sig * y)]

        # Multi-scale probability predictions: BCE + dice statistics.
        for i in range(P):
            p = jnp.where(valid, pred_refs[i][...].astype(jnp.float32), 0.0)
            logp = jnp.maximum(jnp.log(p), _LOG_CLAMP)
            log1mp = jnp.maximum(jnp.log1p(-p), _LOG_CLAMP)
            bce = -(y * logp + one_minus_y * log1mp)
            parts += [msum(bce), msum(p), msum(p * y)]

        if nstat_pad > nstat:
            parts.append(jnp.zeros((nstat_pad - nstat, _LANE), jnp.float32))
        # Single lane/sublane-dense store of all partial rows for this tile.
        o_ref[0] = jnp.concatenate(parts, axis=0)

    return kernel


def _elem_stats(y, x, preds, pos_weight):
    """Plain-JAX statistics for the <128-element lane tail (same math as kernel)."""
    y = y.astype(jnp.float32)
    x = x.astype(jnp.float32)
    e = jnp.exp(-jnp.abs(x))
    z = jnp.log1p(e)
    sp_pos = jnp.maximum(x, 0.0) + z
    sp_neg = jnp.maximum(-x, 0.0) + z
    bcew = pos_weight * (y * sp_neg) + (1.0 - y) * sp_pos
    sig = jnp.where(x >= 0.0, 1.0, e) / (1.0 + e)
    stats = [jnp.sum(y), jnp.sum(bcew), jnp.sum(sig), jnp.sum(sig * y)]
    for p in preds:
        p = p.astype(jnp.float32)
        logp = jnp.maximum(jnp.log(p), _LOG_CLAMP)
        log1mp = jnp.maximum(jnp.log1p(-p), _LOG_CLAMP)
        bce = -(y * logp + (1.0 - y) * log1mp)
        stats += [jnp.sum(bce), jnp.sum(p), jnp.sum(p * y)]
    return jnp.stack(stats).astype(jnp.float32)


@functools.partial(jax.jit, static_argnames=("ep", "pos_weight"))
def segmentation_loss(predict_list, predict_out, label, ep=1e-6, pos_weight=5.0):
    """JAX/Pallas equivalent of SegmentationLoss.forward.

    predict_list: list of probability maps (already sigmoided), same shape as label.
    predict_out : logits, same shape as label.
    label       : targets in [0, 1].
    Returns a scalar float32 loss.
    """
    P = len(predict_list)
    assert P >= 1
    for p in predict_list:
        assert p.shape == label.shape, "each prediction must match label shape"
    assert predict_out.shape == label.shape

    M = label.size
    m_f = float(M)
    R_main = M // _LANE                 # full lane-dense rows handled by the kernel
    tail = M - R_main * _LANE           # <128-element remainder (plain JAX)

    nstat = 4 + 3 * P
    nstat_pad = _round_up(nstat, 8)

    label_flat = label.reshape(-1)
    logits_flat = predict_out.reshape(-1)
    preds_flat = [p.reshape(-1) for p in predict_list]

    if R_main > 0:
        tile_budget, vmem_limit = _vmem_info()
        itemsizes = ([label_flat.dtype.itemsize, logits_flat.dtype.itemsize]
                     + [p.dtype.itemsize for p in preds_flat])
        TR = _pick_tr(R_main, itemsizes, tile_budget)
        num_tiles = pl.cdiv(R_main, TR)

        def rows(flat):   # zero-copy prefix view as lane-dense (R_main, 128) rows
            return flat[: R_main * _LANE].reshape(R_main, _LANE)

        kernel = _make_kernel(P, TR, R_main, nstat_pad, float(pos_weight))
        row_spec = pl.BlockSpec((TR, _LANE), lambda r: (r, 0))

        partials = pl.pallas_call(
            kernel,
            out_shape=jax.ShapeDtypeStruct((num_tiles, nstat_pad, _LANE),
                                           jnp.float32),
            grid_spec=pltpu.PrefetchScalarGridSpec(
                num_scalar_prefetch=0,
                grid=(num_tiles,),
                in_specs=[row_spec] * (P + 2),
                out_specs=pl.BlockSpec((1, nstat_pad, _LANE), lambda r: (r, 0, 0)),
            ),
            compiler_params=pltpu.CompilerParams(
                dimension_semantics=("parallel",),
                vmem_limit_bytes=vmem_limit,
            ),
        )(rows(label_flat), rows(logits_flat), *[rows(p) for p in preds_flat])

        # Tiny final reduction of the per-tile lane-wise partials.
        stats = jnp.sum(partials[:, :nstat, :], axis=(0, 2))       # (nstat,)
    else:
        stats = jnp.zeros((nstat,), jnp.float32)

    if tail:
        off = R_main * _LANE
        stats = stats + _elem_stats(label_flat[off:], logits_flat[off:],
                                    [p[off:] for p in preds_flat],
                                    float(pos_weight))

    sum_y = stats[0]
    bcew_sum, sig_sum, sig_inter = stats[1], stats[2], stats[3]

    def dice_loss(inter, total_p):
        return 1.0 - (2.0 * inter + ep) / (total_p + sum_y + ep)

    loss_last = bcew_sum / m_f + dice_loss(sig_inter, sig_sum)

    loss_multi = jnp.float32(0.0)
    for i in range(P):
        w = 1.0 / (P - i)
        b = stats[4 + 3 * i]
        sp = stats[4 + 3 * i + 1]
        inter = stats[4 + 3 * i + 2]
        loss_multi = loss_multi + w * (b / m_f + dice_loss(inter, sp))

    return (loss_multi + loss_last).astype(jnp.float32)


def _reference_loss(predict_list, predict_out, label, ep=1e-6, pos_weight=5.0):
    """Pure-JAX reference mirroring the PyTorch module."""
    y = label.astype(jnp.float32)
    P = len(predict_list)

    def dice(p):
        inter = jnp.sum(p * y)
        union = jnp.sum(p) + jnp.sum(y)
        return 1.0 - (2.0 * inter + ep) / (union + ep)

    loss_multi = 0.0
    for i, p in enumerate(predict_list):
        p = p.astype(jnp.float32)
        logp = jnp.maximum(jnp.log(p), _LOG_CLAMP)
        log1mp = jnp.maximum(jnp.log1p(-p), _LOG_CLAMP)
        bce = jnp.mean(-(y * logp + (1.0 - y) * log1mp))
        loss_multi = loss_multi + (bce + dice(p)) / (P - i)

    x = predict_out.astype(jnp.float32)
    z = jnp.log1p(jnp.exp(-jnp.abs(x)))
    bcew = pos_weight * y * (jnp.maximum(-x, 0.0) + z) \
        + (1.0 - y) * (jnp.maximum(x, 0.0) + z)
    loss_last = jnp.mean(bcew) + dice(jax.nn.sigmoid(x))
    return loss_multi + loss_last


if __name__ == "__main__":
    P = 4
    keys = jax.random.split(jax.random.PRNGKey(0), 2 * (P + 2))

    # Case 1: element count divisible by 128 (pure kernel path, 2 tiles).
    B, C, H, W = 2, 4, 16, 16
    predict_list = [
        jax.nn.sigmoid(jax.random.normal(keys[i], (B, C, H, W), jnp.float32))
        for i in range(P)
    ]
    predict_out = jax.random.normal(keys[P], (B, C, H, W), jnp.float32)
    label = (jax.random.uniform(keys[P + 1], (B, C, H, W)) > 0.5).astype(jnp.float32)

    loss = jax.block_until_ready(segmentation_loss(predict_list, predict_out, label))
    ref = jax.block_until_ready(_reference_loss(predict_list, predict_out, label))
    assert jnp.allclose(loss, ref, rtol=2e-4, atol=1e-5), (loss, ref)

    # Case 2: ragged element count (kernel main body + plain-JAX lane tail).
    B2, C2, H2, W2 = 2, 1, 10, 16   # M = 320 -> 2 full rows + 64-element tail
    off = P + 2
    predict_list2 = [
        jax.nn.sigmoid(jax.random.normal(keys[off + i], (B2, C2, H2, W2), jnp.float32))
        for i in range(P)
    ]
    predict_out2 = jax.random.normal(keys[off + P], (B2, C2, H2, W2), jnp.float32)
    label2 = (jax.random.uniform(keys[off + P + 1], (B2, C2, H2, W2)) > 0.5).astype(
        jnp.float32)

    loss2 = jax.block_until_ready(
        segmentation_loss(predict_list2, predict_out2, label2))
    ref2 = jax.block_until_ready(
        _reference_loss(predict_list2, predict_out2, label2))
    assert jnp.allclose(loss2, ref2, rtol=2e-4, atol=1e-5), (loss2, ref2)

    print("KERNEL_OK")
</pallas_src>

<mosaic_0001>
module attributes {stable_mosaic.version = 11 : i64} {
  func.func @kernel(%arg0: i32, %arg1: memref<8x128xf32, #tpu.memory_space<vmem>>, %arg2: memref<8x128xf32, #tpu.memory_space<vmem>>, %arg3: memref<8x128xf32, #tpu.memory_space<vmem>>, %arg4: memref<8x128xf32, #tpu.memory_space<vmem>>, %arg5: memref<8x128xf32, #tpu.memory_space<vmem>>, %arg6: memref<8x128xf32, #tpu.memory_space<vmem>>, %arg7: memref<1x16x128xf32, #tpu.memory_space<vmem>>) attributes {dimension_semantics = [#tpu.dimension_semantics<parallel>], iteration_bounds = array<i64: 2>, scalar_prefetch = 0 : i64, scratch_operands = 0 : i64, tpu.core_type = #tpu.core_type<tc>, window_params = [{transform_indices = @transform_0, window_bounds = array<i64: 8, 128>}, {transform_indices = @transform_1, window_bounds = array<i64: 8, 128>}, {transform_indices = @transform_2, window_bounds = array<i64: 8, 128>}, {transform_indices = @transform_3, window_bounds = array<i64: 8, 128>}, {transform_indices = @transform_4, window_bounds = array<i64: 8, 128>}, {transform_indices = @transform_5, window_bounds = array<i64: 8, 128>}, {transform_indices = @transform_6, window_bounds = array<i64: 1, 16, 128>}]} {
    %0 = tpu.iota {dimensions = array<i32: 0>} : vector<8x128xi32>
    %c8_i32 = arith.constant 8 : i32
    %1 = arith.muli %arg0, %c8_i32 : i32
    %2 = vector.broadcast %1 : i32 to vector<8x128xi32>
    %3 = arith.addi %2, %0 : vector<8x128xi32>
    %c16_i32 = arith.constant 16 : i32
    %4 = vector.broadcast %c16_i32 : i32 to vector<8x128xi32>
    %5 = arith.cmpi slt, %3, %4 : vector<8x128xi32>
    %cst = arith.constant 1.000000e+00 : f32
    %6 = vector.broadcast %cst : f32 to vector<8x8xf32>
    %c0 = arith.constant 0 : index
    %c0_0 = arith.constant 0 : index
    %7 = vector.load %arg1[%c0, %c0_0] : memref<8x128xf32, #tpu.memory_space<vmem>>, vector<8x128xf32>
    %cst_1 = arith.constant 0.000000e+00 : f32
    %8 = vector.broadcast %cst_1 : f32 to vector<8x128xf32>
    %9 = arith.select %5, %7, %8 : vector<8x128xi1>, vector<8x128xf32>
    %cst_2 = arith.constant 1.000000e+00 : f32
    %10 = vector.broadcast %cst_2 : f32 to vector<8x128xf32>
    %11 = arith.subf %10, %9 : vector<8x128xf32>
    %c0_3 = arith.constant 0 : index
    %c0_4 = arith.constant 0 : index
    %12 = vector.load %arg2[%c0_3, %c0_4] : memref<8x128xf32, #tpu.memory_space<vmem>>, vector<8x128xf32>
    %cst_5 = arith.constant -1.000000e+02 : f32
    %13 = vector.broadcast %cst_5 : f32 to vector<8x128xf32>
    %14 = arith.select %5, %12, %13 : vector<8x128xi1>, vector<8x128xf32>
    %15 = math.absf %14 : vector<8x128xf32>
    %cst_6 = arith.constant 0.000000e+00 : f32
    %16 = vector.broadcast %cst_6 : f32 to vector<8x128xf32>
    %17 = arith.subf %16, %15 : vector<8x128xf32>
    %18 = math.exp %17 : vector<8x128xf32>
    %19 = math.log1p %18 : vector<8x128xf32>
    %cst_7 = arith.constant 0.000000e+00 : f32
    %20 = vector.broadcast %cst_7 : f32 to vector<8x128xf32>
    %21 = arith.maximumf %14, %20 : vector<8x128xf32>
    %22 = arith.addf %21, %19 : vector<8x128xf32>
    %cst_8 = arith.constant 0.000000e+00 : f32
    %23 = vector.broadcast %cst_8 : f32 to vector<8x128xf32>
    %24 = arith.subf %23, %14 : vector<8x128xf32>
    %cst_9 = arith.constant 0.000000e+00 : f32
    %25 = vector.broadcast %cst_9 : f32 to vector<8x128xf32>
    %26 = arith.maximumf %24, %25 : vector<8x128xf32>
    %27 = arith.addf %26, %19 : vector<8x128xf32>
    %28 = arith.mulf %9, %27 : vector<8x128xf32>
    %cst_10 = arith.constant 5.000000e+00 : f32
    %29 = vector.broadcast %cst_10 : f32 to vector<8x128xf32>
    %30 = arith.mulf %29, %28 : vector<8x128xf32>
    %31 = arith.mulf %11, %22 : vector<8x128xf32>
    %32 = arith.addf %30, %31 : vector<8x128xf32>
    %cst_11 = arith.constant 0.000000e+00 : f32
    %33 = vector.broadcast %cst_11 : f32 to vector<8x128xf32>
    %34 = arith.cmpf oge, %14, %33 : vector<8x128xf32>
    %cst_12 = arith.constant 1.000000e+00 : f32
    %35 = vector.broadcast %cst_12 : f32 to vector<8x128xf32>
    %36 = arith.select %34, %35, %18 : vector<8x128xi1>, vector<8x128xf32>
    %cst_13 = arith.constant 1.000000e+00 : f32
    %37 = vector.broadcast %cst_13 : f32 to vector<8x128xf32>
    %38 = arith.addf %37, %18 : vector<8x128xf32>
    %39 = arith.divf %36, %38 : vector<8x128xf32>
    %cst_14 = arith.constant dense<0.000000e+00> : vector<8x128xf32>
    %40 = tpu.matmul %6, %9, %cst_14 {dimension_numbers = #tpu.dot_dimension_numbers<[1], [0], [0], [1], [0, 0, 1, 1], [], []>, precision = #tpu.contract_precision<fp32>} : vector<8x8xf32>, vector<8x128xf32>, vector<8x128xf32> -> vector<8x128xf32>
    %41 = vector.extract_strided_slice %40 {offsets = [0, 0], sizes = [1, 128], strides = [1, 1]} : vector<8x128xf32> to vector<1x128xf32>
    %cst_15 = arith.constant dense<0.000000e+00> : vector<8x128xf32>
    %42 = tpu.matmul %6, %32, %cst_15 {dimension_numbers = #tpu.dot_dimension_numbers<[1], [0], [0], [1], [0, 0, 1, 1], [], []>, precision = #tpu.contract_precision<fp32>} : vector<8x8xf32>, vector<8x128xf32>, vector<8x128xf32> -> vector<8x128xf32>
    %43 = vector.extract_strided_slice %42 {offsets = [0, 0], sizes = [1, 128], strides = [1, 1]} : vector<8x128xf32> to vector<1x128xf32>
    %cst_16 = arith.constant dense<0.000000e+00> : vector<8x128xf32>
    %44 = tpu.matmul %6, %39, %cst_16 {dimension_numbers = #tpu.dot_dimension_numbers<[1], [0], [0], [1], [0, 0, 1, 1], [], []>, precision = #tpu.contract_precision<fp32>} : vector<8x8xf32>, vector<8x128xf32>, vector<8x128xf32> -> vector<8x128xf32>
    %45 = vector.extract_strided_slice %44 {offsets = [0, 0], sizes = [1, 128], strides = [1, 1]} : vector<8x128xf32> to vector<1x128xf32>
    %46 = arith.mulf %39, %9 : vector<8x128xf32>
    %cst_17 = arith.constant dense<0.000000e+00> : vector<8x128xf32>
    %47 = tpu.matmul %6, %46, %cst_17 {dimension_numbers = #tpu.dot_dimension_numbers<[1], [0], [0], [1], [0, 0, 1, 1], [], []>, precision = #tpu.contract_precision<fp32>} : vector<8x8xf32>, vector<8x128xf32>, vector<8x128xf32> -> vector<8x128xf32>
    %48 = vector.extract_strided_slice %47 {offsets = [0, 0], sizes = [1, 128], strides = [1, 1]} : vector<8x128xf32> to vector<1x128xf32>
    %c0_18 = arith.constant 0 : index
    %c0_19 = arith.constant 0 : index
    %49 = vector.load %arg3[%c0_18, %c0_19] : memref<8x128xf32, #tpu.memory_space<vmem>>, vector<8x128xf32>
    %cst_20 = arith.constant 0.000000e+00 : f32
    %50 = vector.broadcast %cst_20 : f32 to vector<8x128xf32>
    %51 = arith.select %5, %49, %50 : vector<8x128xi1>, vector<8x128xf32>
    %52 = math.log %51 : vector<8x128xf32>
    %cst_21 = arith.constant -1.000000e+02 : f32
    %53 = vector.broadcast %cst_21 : f32 to vector<8x128xf32>
    %54 = arith.maximumf %52, %53 : vector<8x128xf32>
    %cst_22 = arith.constant 0.000000e+00 : f32
    %55 = vector.broadcast %cst_22 : f32 to vector<8x128xf32>
    %56 = arith.subf %55, %51 : vector<8x128xf32>
    %57 = math.log1p %56 : vector<8x128xf32>
    %cst_23 = arith.constant -1.000000e+02 : f32
    %58 = vector.broadcast %cst_23 : f32 to vector<8x128xf32>
    %59 = arith.maximumf %57, %58 : vector<8x128xf32>
    %60 = arith.mulf %9, %54 : vector<8x128xf32>
    %61 = arith.mulf %11, %59 : vector<8x128xf32>
    %62 = arith.addf %60, %61 : vector<8x128xf32>
    %cst_24 = arith.constant 0.000000e+00 : f32
    %63 = vector.broadcast %cst_24 : f32 to vector<8x128xf32>
    %64 = arith.subf %63, %62 : vector<8x128xf32>
    %cst_25 = arith.constant dense<0.000000e+00> : vector<8x128xf32>
    %65 = tpu.matmul %6, %64, %cst_25 {dimension_numbers = #tpu.dot_dimension_numbers<[1], [0], [0], [1], [0, 0, 1, 1], [], []>, precision = #tpu.contract_precision<fp32>} : vector<8x8xf32>, vector<8x128xf32>, vector<8x128xf32> -> vector<8x128xf32>
    %66 = vector.extract_strided_slice %65 {offsets = [0, 0], sizes = [1, 128], strides = [1, 1]} : vector<8x128xf32> to vector<1x128xf32>
    %cst_26 = arith.constant dense<0.000000e+00> : vector<8x128xf32>
    %67 = tpu.matmul %6, %51, %cst_26 {dimension_numbers = #tpu.dot_dimension_numbers<[1], [0], [0], [1], [0, 0, 1, 1], [], []>, precision = #tpu.contract_precision<fp32>} : vector<8x8xf32>, vector<8x128xf32>, vector<8x128xf32> -> vector<8x128xf32>
    %68 = vector.extract_strided_slice %67 {offsets = [0, 0], sizes = [1, 128], strides = [1, 1]} : vector<8x128xf32> to vector<1x128xf32>
    %69 = arith.mulf %51, %9 : vector<8x128xf32>
    %cst_27 = arith.constant dense<0.000000e+00> : vector<8x128xf32>
    %70 = tpu.matmul %6, %69, %cst_27 {dimension_numbers = #tpu.dot_dimension_numbers<[1], [0], [0], [1], [0, 0, 1, 1], [], []>, precision = #tpu.contract_precision<fp32>} : vector<8x8xf32>, vector<8x128xf32>, vector<8x128xf32> -> vector<8x128xf32>
    %71 = vector.extract_strided_slice %70 {offsets = [0, 0], sizes = [1, 128], strides = [1, 1]} : vector<8x128xf32> to vector<1x128xf32>
    %c0_28 = arith.constant 0 : index
    %c0_29 = arith.constant 0 : index
    %72 = vector.load %arg4[%c0_28, %c0_29] : memref<8x128xf32, #tpu.memory_space<vmem>>, vector<8x128xf32>
    %cst_30 = arith.constant 0.000000e+00 : f32
    %73 = vector.broadcast %cst_30 : f32 to vector<8x128xf32>
    %74 = arith.select %5, %72, %73 : vector<8x128xi1>, vector<8x128xf32>
    %75 = math.log %74 : vector<8x128xf32>
    %cst_31 = arith.constant -1.000000e+02 : f32
    %76 = vector.broadcast %cst_31 : f32 to vector<8x128xf32>
    %77 = arith.maximumf %75, %76 : vector<8x128xf32>
    %cst_32 = arith.constant 0.000000e+00 : f32
    %78 = vector.broadcast %cst_32 : f32 to vector<8x128xf32>
    %79 = arith.subf %78, %74 : vector<8x128xf32>
    %80 = math.log1p %79 : vector<8x128xf32>
    %cst_33 = arith.constant -1.000000e+02 : f32
    %81 = vector.broadcast %cst_33 : f32 to vector<8x128xf32>
    %82 = arith.maximumf %80, %81 : vector<8x128xf32>
    %83 = arith.mulf %9, %77 : vector<8x128xf32>
    %84 = arith.mulf %11, %82 : vector<8x128xf32>
    %85 = arith.addf %83, %84 : vector<8x128xf32>
    %cst_34 = arith.constant 0.000000e+00 : f32
    %86 = vector.broadcast %cst_34 : f32 to vector<8x128xf32>
    %87 = arith.subf %86, %85 : vector<8x128xf32>
    %cst_35 = arith.constant dense<0.000000e+00> : vector<8x128xf32>
    %88 = tpu.matmul %6, %87, %cst_35 {dimension_numbers = #tpu.dot_dimension_numbers<[1], [0], [0], [1], [0, 0, 1, 1], [], []>, precision = #tpu.contract_precision<fp32>} : vector<8x8xf32>, vector<8x128xf32>, vector<8x128xf32> -> vector<8x128xf32>
    %89 = vector.extract_strided_slice %88 {offsets = [0, 0], sizes = [1, 128], strides = [1, 1]} : vector<8x128xf32> to vector<1x128xf32>
    %cst_36 = arith.constant dense<0.000000e+00> : vector<8x128xf32>
    %90 = tpu.matmul %6, %74, %cst_36 {dimension_numbers = #tpu.dot_dimension_numbers<[1], [0], [0], [1], [0, 0, 1, 1], [], []>, precision = #tpu.contract_precision<fp32>} : vector<8x8xf32>, vector<8x128xf32>, vector<8x128xf32> -> vector<8x128xf32>
    %91 = vector.extract_strided_slice %90 {offsets = [0, 0], sizes = [1, 128], strides = [1, 1]} : vector<8x128xf32> to vector<1x128xf32>
    %92 = arith.mulf %74, %9 : vector<8x128xf32>
    %cst_37 = arith.constant dense<0.000000e+00> : vector<8x128xf32>
    %93 = tpu.matmul %6, %92, %cst_37 {dimension_numbers = #tpu.dot_dimension_numbers<[1], [0], [0], [1], [0, 0, 1, 1], [], []>, precision = #tpu.contract_precision<fp32>} : vector<8x8xf32>, vector<8x128xf32>, vector<8x128xf32> -> vector<8x128xf32>
    %94 = vector.extract_strided_slice %93 {offsets = [0, 0], sizes = [1, 128], strides = [1, 1]} : vector<8x128xf32> to vector<1x128xf32>
    %c0_38 = arith.constant 0 : index
    %c0_39 = arith.constant 0 : index
    %95 = vector.load %arg5[%c0_38, %c0_39] : memref<8x128xf32, #tpu.memory_space<vmem>>, vector<8x128xf32>
    %cst_40 = arith.constant 0.000000e+00 : f32
    %96 = vector.broadcast %cst_40 : f32 to vector<8x128xf32>
    %97 = arith.select %5, %95, %96 : vector<8x128xi1>, vector<8x128xf32>
    %98 = math.log %97 : vector<8x128xf32>
    %cst_41 = arith.constant -1.000000e+02 : f32
    %99 = vector.broadcast %cst_41 : f32 to vector<8x128xf32>
    %100 = arith.maximumf %98, %99 : vector<8x128xf32>
    %cst_42 = arith.constant 0.000000e+00 : f32
    %101 = vector.broadcast %cst_42 : f32 to vector<8x128xf32>
    %102 = arith.subf %101, %97 : vector<8x128xf32>
    %103 = math.log1p %102 : vector<8x128xf32>
    %cst_43 = arith.constant -1.000000e+02 : f32
    %104 = vector.broadcast %cst_43 : f32 to vector<8x128xf32>
    %105 = arith.maximumf %103, %104 : vector<8x128xf32>
    %106 = arith.mulf %9, %100 : vector<8x128xf32>
    %107 = arith.mulf %11, %105 : vector<8x128xf32>
    %108 = arith.addf %106, %107 : vector<8x128xf32>
    %cst_44 = arith.constant 0.000000e+00 : f32
    %109 = vector.broadcast %cst_44 : f32 to vector<8x128xf32>
    %110 = arith.subf %109, %108 : vector<8x128xf32>
    %cst_45 = arith.constant dense<0.000000e+00> : vector<8x128xf32>
    %111 = tpu.matmul %6, %110, %cst_45 {dimension_numbers = #tpu.dot_dimension_numbers<[1], [0], [0], [1], [0, 0, 1, 1], [], []>, precision = #tpu.contract_precision<fp32>} : vector<8x8xf32>, vector<8x128xf32>, vector<8x128xf32> -> vector<8x128xf32>
    %112 = vector.extract_strided_slice %111 {offsets = [0, 0], sizes = [1, 128], strides = [1, 1]} : vector<8x128xf32> to vector<1x128xf32>
    %cst_46 = arith.constant dense<0.000000e+00> : vector<8x128xf32>
    %113 = tpu.matmul %6, %97, %cst_46 {dimension_numbers = #tpu.dot_dimension_numbers<[1], [0], [0], [1], [0, 0, 1, 1], [], []>, precision = #tpu.contract_precision<fp32>} : vector<8x8xf32>, vector<8x128xf32>, vector<8x128xf32> -> vector<8x128xf32>
    %114 = vector.extract_strided_slice %113 {offsets = [0, 0], sizes = [1, 128], strides = [1, 1]} : vector<8x128xf32> to vector<1x128xf32>
    %115 = arith.mulf %97, %9 : vector<8x128xf32>
    %cst_47 = arith.constant dense<0.000000e+00> : vector<8x128xf32>
    %116 = tpu.matmul %6, %115, %cst_47 {dimension_numbers = #tpu.dot_dimension_numbers<[1], [0], [0], [1], [0, 0, 1, 1], [], []>, precision = #tpu.contract_precision<fp32>} : vector<8x8xf32>, vector<8x128xf32>, vector<8x128xf32> -> vector<8x128xf32>
    %117 = vector.extract_strided_slice %116 {offsets = [0, 0], sizes = [1, 128], strides = [1, 1]} : vector<8x128xf32> to vector<1x128xf32>
    %c0_48 = arith.constant 0 : index
    %c0_49 = arith.constant 0 : index
    %118 = vector.load %arg6[%c0_48, %c0_49] : memref<8x128xf32, #tpu.memory_space<vmem>>, vector<8x128xf32>
    %cst_50 = arith.constant 0.000000e+00 : f32
    %119 = vector.broadcast %cst_50 : f32 to vector<8x128xf32>
    %120 = arith.select %5, %118, %119 : vector<8x128xi1>, vector<8x128xf32>
    %121 = math.log %120 : vector<8x128xf32>
    %cst_51 = arith.constant -1.000000e+02 : f32
    %122 = vector.broadcast %cst_51 : f32 to vector<8x128xf32>
    %123 = arith.maximumf %121, %122 : vector<8x128xf32>
    %cst_52 = arith.constant 0.000000e+00 : f32
    %124 = vector.broadcast %cst_52 : f32 to vector<8x128xf32>
    %125 = arith.subf %124, %120 : vector<8x128xf32>
    %126 = math.log1p %125 : vector<8x128xf32>
    %cst_53 = arith.constant -1.000000e+02 : f32
    %127 = vector.broadcast %cst_53 : f32 to vector<8x128xf32>
    %128 = arith.maximumf %126, %127 : vector<8x128xf32>
    %129 = arith.mulf %9, %123 : vector<8x128xf32>
    %130 = arith.mulf %11, %128 : vector<8x128xf32>
    %131 = arith.addf %129, %130 : vector<8x128xf32>
    %cst_54 = arith.constant 0.000000e+00 : f32
    %132 = vector.broadcast %cst_54 : f32 to vector<8x128xf32>
    %133 = arith.subf %132, %131 : vector<8x128xf32>
    %cst_55 = arith.constant dense<0.000000e+00> : vector<8x128xf32>
    %134 = tpu.matmul %6, %133, %cst_55 {dimension_numbers = #tpu.dot_dimension_numbers<[1], [0], [0], [1], [0, 0, 1, 1], [], []>, precision = #tpu.contract_precision<fp32>} : vector<8x8xf32>, vector<8x128xf32>, vector<8x128xf32> -> vector<8x128xf32>
    %135 = vector.extract_strided_slice %134 {offsets = [0, 0], sizes = [1, 128], strides = [1, 1]} : vector<8x128xf32> to vector<1x128xf32>
    %cst_56 = arith.constant dense<0.000000e+00> : vector<8x128xf32>
    %136 = tpu.matmul %6, %120, %cst_56 {dimension_numbers = #tpu.dot_dimension_numbers<[1], [0], [0], [1], [0, 0, 1, 1], [], []>, precision = #tpu.contract_precision<fp32>} : vector<8x8xf32>, vector<8x128xf32>, vector<8x128xf32> -> vector<8x128xf32>
    %137 = vector.extract_strided_slice %136 {offsets = [0, 0], sizes = [1, 128], strides = [1, 1]} : vector<8x128xf32> to vector<1x128xf32>
    %138 = arith.mulf %120, %9 : vector<8x128xf32>
    %cst_57 = arith.constant dense<0.000000e+00> : vector<8x128xf32>
    %139 = tpu.matmul %6, %138, %cst_57 {dimension_numbers = #tpu.dot_dimension_numbers<[1], [0], [0], [1], [0, 0, 1, 1], [], []>, precision = #tpu.contract_precision<fp32>} : vector<8x8xf32>, vector<8x128xf32>, vector<8x128xf32> -> vector<8x128xf32>
    %140 = vector.extract_strided_slice %139 {offsets = [0, 0], sizes = [1, 128], strides = [1, 1]} : vector<8x128xf32> to vector<1x128xf32>
    %141 = tpu.concatenate %41, %43, %45, %48, %66, %68, %71, %89, %91, %94, %112, %114, %117, %135, %137, %140 in 0 : vector<1x128xf32>, vector<1x128xf32>, vector<1x128xf32>, vector<1x128xf32>, vector<1x128xf32>, vector<1x128xf32>, vector<1x128xf32>, vector<1x128xf32>, vector<1x128xf32>, vector<1x128xf32>, vector<1x128xf32>, vector<1x128xf32>, vector<1x128xf32>, vector<1x128xf32>, vector<1x128xf32>, vector<1x128xf32> -> vector<16x128xf32>
    %c0_58 = arith.constant 0 : index
    %c0_59 = arith.constant 0 : index
    %c0_60 = arith.constant 0 : index
    %142 = vector.load %arg7[%c0_58, %c0_59, %c0_60] : memref<1x16x128xf32, #tpu.memory_space<vmem>>, vector<1x16x128xf32>
    %143 = vector.shape_cast %142 : vector<1x16x128xf32> to vector<16x128xf32>
    %144 = vector.shape_cast %141 : vector<16x128xf32> to vector<1x16x128xf32>
    tpu.vector_store %arg7[%c0_58, %c0_59, %c0_60], %144 {strides = array<i32>} : memref<1x16x128xf32, #tpu.memory_space<vmem>>, vector<1x16x128xf32>,
    return
  }
  func.func @transform_0(%arg0: i32) -> (i32, i32) {
    %c0_i32 = arith.constant 0 : i32
    %c0_i32_0 = arith.constant 0 : i32
    return %arg0, %c0_i32 : i32, i32
  }
  func.func @transform_1(%arg0: i32) -> (i32, i32) {
    %c0_i32 = arith.constant 0 : i32
    %c0_i32_0 = arith.constant 0 : i32
    return %arg0, %c0_i32 : i32, i32
  }
  func.func @transform_2(%arg0: i32) -> (i32, i32) {
    %c0_i32 = arith.constant 0 : i32
    %c0_i32_0 = arith.constant 0 : i32
    return %arg0, %c0_i32 : i32, i32
  }
  func.func @transform_3(%arg0: i32) -> (i32, i32) {
    %c0_i32 = arith.constant 0 : i32
    %c0_i32_0 = arith.constant 0 : i32
    return %arg0, %c0_i32 : i32, i32
  }
  func.func @transform_4(%arg0: i32) -> (i32, i32) {
    %c0_i32 = arith.constant 0 : i32
    %c0_i32_0 = arith.constant 0 : i32
    return %arg0, %c0_i32 : i32, i32
  }
  func.func @transform_5(%arg0: i32) -> (i32, i32) {
    %c0_i32 = arith.constant 0 : i32
    %c0_i32_0 = arith.constant 0 : i32
    return %arg0, %c0_i32 : i32, i32
  }
  func.func @transform_6(%arg0: i32) -> (i32, i32, i32) {
    %c0_i32 = arith.constant 0 : i32
    %c0_i32_0 = arith.constant 0 : i32
    %c0_i32_1 = arith.constant 0 : i32
    return %arg0, %c0_i32, %c0_i32_0 : i32, i32, i32
  }
}

</mosaic_0001>

<llo_original>
// kernel: segmentation_loss.1
$region0: #{segmentation_loss.1}
  #allocation0 [shape = 'u32[]', space=smem, size = 0x4, offset = 0x4, fixed_abs, tag = 'smem constant byte address 0x4 - core index']
  #allocation1 [shape = 'u32[144,128]{1,0:T(1,128)}', space=vmem, size = 0x12000, scoped, tag = 'internal scratch']
  %s0 = inlined_call_operand.vmem [shape: f32[16,128], index: 0, kind: input, shape index: {}]
  %s1 = inlined_call_operand.vmem [shape: f32[16,128], index: 1, kind: input, shape index: {}]
  %s2 = inlined_call_operand.vmem [shape: f32[16,128], index: 2, kind: input, shape index: {}]
  %s3 = inlined_call_operand.vmem [shape: f32[16,128], index: 3, kind: input, shape index: {}]
  %s4 = inlined_call_operand.vmem [shape: f32[16,128], index: 4, kind: input, shape index: {}]
  %s5 = inlined_call_operand.vmem [shape: f32[16,128], index: 5, kind: input, shape index: {}]
  %s6 = inlined_call_operand.vmem [shape: f32[2,16,128], index: 6, kind: output, shape index: {}]
  %s7 = sld [smem:[#allocation0]]
  $region57: #{segmentation_loss.1} parent=0
    _
  %s9 = ssub.s32 1, %s7
  %s10 = scalar_select 0, %s9, %s7
  loop: start=0, step=1, limit=4
  $region2: #{segmentation_loss.1} parent=0 // loop_pre_header
    _
  $region3: #{segmentation_loss.1} parent=0 // loop_header
    %s12 = sphi 0, %s16
    %p13 = scmp.ge.s32.totalorder %s12, 4
    %s22 = sphi 0, %s24
    %s25 = sphi 0, %s22
    %s26 = sphi 0, %s25
    %s42 = sphi 0, %s26
    %s48 = sphi 0, %s50
    %s51 = sphi 0, %s48
    %s52 = sphi 0, %s51
    %s68 = sphi 0, %s52
    %s74 = sphi 0, %s76
    %s77 = sphi 0, %s74
    %s78 = sphi 0, %s77
    %s94 = sphi 0, %s78
    %s100 = sphi 0, %s102
    %s103 = sphi 0, %s100
    %s104 = sphi 0, %s103
    %s120 = sphi 0, %s104
    %s126 = sphi 0, %s128
    %s129 = sphi 0, %s126
    %s130 = sphi 0, %s129
    %s146 = sphi 0, %s130
    %s152 = sphi 0, %s154
    %s155 = sphi 0, %s152
    %s156 = sphi 0, %s155
    %s172 = sphi 0, %s156
    %s178 = sphi 0, %s180
    %s181 = sphi 0, %s178
    %s182 = sphi 0, %s181
    %s198 = sphi 0, %s182
  $region4: #{segmentation_loss.1} parent=0 // loop_header_branch
    %15 = sbr.rel (%p13) target = $region8
  $region5: #{segmentation_loss.1} parent=0 // loop_body
    %s17 = ssub.s32 %s12, 1
    %s18 = ssub.s32 %s12, 2
    %s19 = sadd.s32 %s12, 1
    %s20 = ssub.s32 %s12, %s19
    %p21 = scmp.eq.s32.totalorder %s20, 0
    %s23 = sadd.s32 %s22, 1
    %s24 = scalar_select %p21, %s22, %s23
    %p27 = pneg %p21
    %p28 = scmp.eq.s32.totalorder %s12, 1
    %p29 = por %p27, %p28
    %p30 = scmp.ne.s32.totalorder %s22, %s25
    %p31 = scmp.eq.s32.totalorder %s12, 0
    %p32 = por %p30, %p31
    %p33 = scmp.ne.s32.totalorder %s22, %s25
    %p34 = scmp.eq.s32.totalorder %s17, 1
    %p35 = por %p33, %p34
    %p36 = scmp.ne.s32.totalorder %s25, %s26
    %p37 = scmp.eq.s32.totalorder %s17, 0
    %p38 = por %p36, %p37
    %p39 = scmp.ne.s32.totalorder %s25, %s26
    %p40 = scmp.eq.s32.totalorder %s18, 1
    %p41 = por %p39, %p40
    %p43 = scmp.ne.s32.totalorder %s26, %s42
    %p44 = scmp.eq.s32.totalorder %s18, 0
    %p45 = por %p43, %p44
    %s46 = ssub.s32 %s12, %s19
    %p47 = scmp.eq.s32.totalorder %s46, 0
    %s49 = sadd.s32 %s48, 1
    %s50 = scalar_select %p47, %s48, %s49
    %p53 = pneg %p47
    %p54 = scmp.eq.s32.totalorder %s12, 1
    %p55 = por %p53, %p54
    %p56 = scmp.ne.s32.totalorder %s48, %s51
    %p57 = scmp.eq.s32.totalorder %s12, 0
    %p58 = por %p56, %p57
    %p59 = scmp.ne.s32.totalorder %s48, %s51
    %p60 = scmp.eq.s32.totalorder %s17, 1
    %p61 = por %p59, %p60
    %p62 = scmp.ne.s32.totalorder %s51, %s52
    %p63 = scmp.eq.s32.totalorder %s17, 0
    %p64 = por %p62, %p63
    %p65 = scmp.ne.s32.totalorder %s51, %s52
    %p66 = scmp.eq.s32.totalorder %s18, 1
    %p67 = por %p65, %p66
    %p69 = scmp.ne.s32.totalorder %s52, %s68
    %p70 = scmp.eq.s32.totalorder %s18, 0
    %p71 = por %p69, %p70
    %s72 = ssub.s32 %s12, %s19
    %p73 = scmp.eq.s32.totalorder %s72, 0
    %s75 = sadd.s32 %s74, 1
    %s76 = scalar_select %p73, %s74, %s75
    %p79 = pneg %p73
    %p80 = scmp.eq.s32.totalorder %s12, 1
    %p81 = por %p79, %p80
    %p82 = scmp.ne.s32.totalorder %s74, %s77
    %p83 = scmp.eq.s32.totalorder %s12, 0
    %p84 = por %p82, %p83
    %p85 = scmp.ne.s32.totalorder %s74, %s77
    %p86 = scmp.eq.s32.totalorder %s17, 1
    %p87 = por %p85, %p86
    %p88 = scmp.ne.s32.totalorder %s77, %s78
    %p89 = scmp.eq.s32.totalorder %s17, 0
    %p90 = por %p88, %p89
    %p91 = scmp.ne.s32.totalorder %s77, %s78
    %p92 = scmp.eq.s32.totalorder %s18, 1
    %p93 = por %p91, %p92
    %p95 = scmp.ne.s32.totalorder %s78, %s94
    %p96 = scmp.eq.s32.totalorder %s18, 0
    %p97 = por %p95, %p96
    %s98 = ssub.s32 %s12, %s19
    %p99 = scmp.eq.s32.totalorder %s98, 0
    %s101 = sadd.s32 %s100, 1
    %s102 = scalar_select %p99, %s100, %s101
    %p105 = pneg %p99
    %p106 = scmp.eq.s32.totalorder %s12, 1
    %p107 = por %p105, %p106
    %p108 = scmp.ne.s32.totalorder %s100, %s103
    %p109 = scmp.eq.s32.totalorder %s12, 0
    %p110 = por %p108, %p109
    %p111 = scmp.ne.s32.totalorder %s100, %s103
    %p112 = scmp.eq.s32.totalorder %s17, 1
    %p113 = por %p111, %p112
    %p114 = scmp.ne.s32.totalorder %s103, %s104
    %p115 = scmp.eq.s32.totalorder %s17, 0
    %p116 = por %p114, %p115
    %p117 = scmp.ne.s32.totalorder %s103, %s104
    %p118 = scmp.eq.s32.totalorder %s18, 1
    %p119 = por %p117, %p118
    %p121 = scmp.ne.s32.totalorder %s104, %s120
    %p122 = scmp.eq.s32.totalorder %s18, 0
    %p123 = por %p121, %p122
    %s124 = ssub.s32 %s12, %s19
    %p125 = scmp.eq.s32.totalorder %s124, 0
    %s127 = sadd.s32 %s126, 1
    %s128 = scalar_select %p125, %s126, %s127
    %p131 = pneg %p125
    %p132 = scmp.eq.s32.totalorder %s12, 1
    %p133 = por %p131, %p132
    %p134 = scmp.ne.s32.totalorder %s126, %s129
    %p135 = scmp.eq.s32.totalorder %s12, 0
    %p136 = por %p134, %p135
    %p137 = scmp.ne.s32.totalorder %s126, %s129
    %p138 = scmp.eq.s32.totalorder %s17, 1
    %p139 = por %p137, %p138
    %p140 = scmp.ne.s32.totalorder %s129, %s130
    %p141 = scmp.eq.s32.totalorder %s17, 0
    %p142 = por %p140, %p141
    %p143 = scmp.ne.s32.totalorder %s129, %s130
    %p144 = scmp.eq.s32.totalorder %s18, 1
    %p145 = por %p143, %p144
    %p147 = scmp.ne.s32.totalorder %s130, %s146
    %p148 = scmp.eq.s32.totalorder %s18, 0
    %p149 = por %p147, %p148
    %s150 = ssub.s32 %s12, %s19
    %p151 = scmp.eq.s32.totalorder %s150, 0
    %s153 = sadd.s32 %s152, 1
    %s154 = scalar_select %p151, %s152, %s153
    %p157 = pneg %p151
    %p158 = scmp.eq.s32.totalorder %s12, 1
    %p159 = por %p157, %p158
    %p160 = scmp.ne.s32.totalorder %s152, %s155
    %p161 = scmp.eq.s32.totalorder %s12, 0
    %p162 = por %p160, %p161
    %p163 = scmp.ne.s32.totalorder %s152, %s155
    %p164 = scmp.eq.s32.totalorder %s17, 1
    %p165 = por %p163, %p164
    %p166 = scmp.ne.s32.totalorder %s155, %s156
    %p167 = scmp.eq.s32.totalorder %s17, 0
    %p168 = por %p166, %p167
    %p169 = scmp.ne.s32.totalorder %s155, %s156
    %p170 = scmp.eq.s32.totalorder %s18, 1
    %p171 = por %p169, %p170
    %p173 = scmp.ne.s32.totalorder %s156, %s172
    %p174 = scmp.eq.s32.totalorder %s18, 0
    %p175 = por %p173, %p174
    %s176 = ssub.s32 %s12, %s19
    %p177 = scmp.eq.s32.totalorder %s176, 0
    %s179 = sadd.s32 %s178, 1
    %s180 = scalar_select %p177, %s178, %s179
    %p183 = pneg %p177
    %p184 = scmp.eq.s32.totalorder %s12, 1
    %p185 = por %p183, %p184
    %p186 = scmp.ne.s32.totalorder %s178, %s181
    %p187 = scmp.eq.s32.totalorder %s12, 0
    %p188 = por %p186, %p187
    %p189 = scmp.ne.s32.totalorder %s178, %s181
    %p190 = scmp.eq.s32.totalorder %s17, 1
    %p191 = por %p189, %p190
    %p192 = scmp.ne.s32.totalorder %s181, %s182
    %p193 = scmp.eq.s32.totalorder %s17, 0
    %p194 = por %p192, %p193
    %p195 = scmp.ne.s32.totalorder %s181, %s182
    %p196 = scmp.eq.s32.totalorder %s18, 1
    %p197 = por %p195, %p196
    %p199 = scmp.ne.s32.totalorder %s182, %s198
    %p200 = scmp.eq.s32.totalorder %s18, 0
    %p201 = por %p199, %p200
    %p202 = scmp.le.s32.totalorder 1, %s12
    %p203 = scmp.lt.s32.totalorder %s12, 3
    %p204 = pnand %p202, %p203
    %p205 = pneg %p204
    // Predicated region
    $region9: #{segmentation_loss.1} parent=5 // pred_check
      _
    $region10: #{segmentation_loss.1} parent=5 // pred_check_branch
      %207 = sbr.rel (%p204) target = $region12
    $region11: #{segmentation_loss.1} parent=5 // pred_region
      %s208 = ssub.s32 %s12, 1
    $region12: #{segmentation_loss.1} parent=5 // pred_fallthru
      _
    %p209 = scmp.lt.s32.totalorder %s12, 2
    // Predicated region
    $region13: #{segmentation_loss.1} parent=5 // pred_check
      %p210 = pneg %p209
    $region14: #{segmentation_loss.1} parent=5 // pred_check_branch
      %212 = sbr.rel (%p210) target = $region16
    $region15: #{segmentation_loss.1} parent=5 // pred_region
      // Predicated region
      $region17: #{segmentation_loss.1} parent=15 // pred_check
        %p213 = pneg %p32
      $region18: #{segmentation_loss.1} parent=15 // pred_check_branch
        %215 = sbr.rel (%p213) target = $region20
      $region19: #{segmentation_loss.1} parent=15 // pred_region
        %p216 = scmp.lt.s32.totalorder %s12, 1
        %s217 = scalar_select %p216, %s12, 1
        %s218 = smul.addr %s217, 8
        %s219 = scalar_lea.vmem %s0, %s218
      $region20: #{segmentation_loss.1} parent=15 // pred_fallthru
        _
      // Predicated region
      $region21: #{segmentation_loss.1} parent=15 // pred_check
        %p220 = pneg %p58
      $region22: #{segmentation_loss.1} parent=15 // pred_check_branch
        %222 = sbr.rel (%p220) target = $region24
      $region23: #{segmentation_loss.1} parent=15 // pred_region
        %p223 = scmp.lt.s32.totalorder %s12, 1
        %s224 = scalar_select %p223, %s12, 1
        %s225 = smul.addr %s224, 8
        %s226 = scalar_lea.vmem %s1, %s225
      $region24: #{segmentation_loss.1} parent=15 // pred_fallthru
        _
      // Predicated region
      $region25: #{segmentation_loss.1} parent=15 // pred_check
        %p227 = pneg %p84
      $region26: #{segmentation_loss.1} parent=15 // pred_check_branch
        %229 = sbr.rel (%p227) target = $region28
      $region27: #{segmentation_loss.1} parent=15 // pred_region
        %p230 = scmp.lt.s32.totalorder %s12, 1
        %s231 = scalar_select %p230, %s12, 1
        %s232 = smul.addr %s231, 8
        %s233 = scalar_lea.vmem %s2, %s232
      $region28: #{segmentation_loss.1} parent=15 // pred_fallthru
        _
      // Predicated region
      $region29: #{segmentation_loss.1} parent=15 // pred_check
        %p234 = pneg %p110
      $region30: #{segmentation_loss.1} parent=15 // pred_check_branch
        %236 = sbr.rel (%p234) target = $region32
      $region31: #{segmentation_loss.1} parent=15 // pred_region
        %p237 = scmp.lt.s32.totalorder %s12, 1
        %s238 = scalar_select %p237, %s12, 1
        %s239 = smul.addr %s238, 8
        %s240 = scalar_lea.vmem %s3, %s239
      $region32: #{segmentation_loss.1} parent=15 // pred_fallthru
        _
      // Predicated region
      $region33: #{segmentation_loss.1} parent=15 // pred_check
        %p241 = pneg %p136
      $region34: #{segmentation_loss.1} parent=15 // pred_check_branch
        %243 = sbr.rel (%p241) target = $region36
      $region35: #{segmentation_loss.1} parent=15 // pred_region
        %p244 = scmp.lt.s32.totalorder %s12, 1
        %s245 = scalar_select %p244, %s12, 1
        %s246 = smul.addr %s245, 8
        %s247 = scalar_lea.vmem %s4, %s246
      $region36: #{segmentation_loss.1} parent=15 // pred_fallthru
        _
      // Predicated region
      $region37: #{segmentation_loss.1} parent=15 // pred_check
        %p248 = pneg %p162
      $region38: #{segmentation_loss.1} parent=15 // pred_check_branch
        %250 = sbr.rel (%p248) target = $region40
      $region39: #{segmentation_loss.1} parent=15 // pred_region
        %p251 = scmp.lt.s32.totalorder %s12, 1
        %s252 = scalar_select %p251, %s12, 1
        %s253 = smul.addr %s252, 8
        %s254 = scalar_lea.vmem %s5, %s253
      $region40: #{segmentation_loss.1} parent=15 // pred_fallthru
        _
    $region16: #{segmentation_loss.1} parent=5 // pred_fallthru
      _
    %p255 = scmp.le.s32.totalorder 1, %s12
    %p256 = scmp.lt.s32.totalorder %s12, 3
    %p257 = pnand %p255, %p256
    %p258 = pneg %p257
    // Predicated region
    $region41: #{segmentation_loss.1} parent=5 // pred_check
      _
    $region42: #{segmentation_loss.1} parent=5 // pred_check_branch
      %260 = sbr.rel (%p257) target = $region44
    $region43: #{segmentation_loss.1} parent=5 // pred_region
      %s261 = ssub.s32 %s12, 1
      %p262 = scmp.lt.s32.totalorder %s17, 1
      %s263 = scalar_select %p262, %s17, 1
      %s264 = smul.addr %s263, 8
      %s265 = scalar_lea.vmem %s0, %s264
      %p266 = pneg %p38
      %p267 = pneg %p35
      %p268 = scmp.lt.s32.totalorder %s17, 1
      %s269 = scalar_select %p268, %s17, 1
      %s270 = smul.addr %s269, 8
      %s271 = scalar_lea.vmem %s1, %s270
      %p272 = pneg %p64
      %p273 = pneg %p61
      %p274 = scmp.lt.s32.totalorder %s17, 1
      %s275 = scalar_select %p274, %s17, 1
      %s276 = smul.addr %s275, 8
      %s277 = scalar_lea.vmem %s2, %s276
      %p278 = pneg %p90
      %p279 = pneg %p87
      %p280 = scmp.lt.s32.totalorder %s17, 1
      %s281 = scalar_select %p280, %s17, 1
      %s282 = smul.addr %s281, 8
      %s283 = scalar_lea.vmem %s3, %s282
      %p284 = pneg %p116
      %p285 = pneg %p113
      %p286 = scmp.lt.s32.totalorder %s17, 1
      %s287 = scalar_select %p286, %s17, 1
      %s288 = smul.addr %s287, 8
      %s289 = scalar_lea.vmem %s4, %s288
      %p290 = pneg %p142
      %p291 = pneg %p139
      %p292 = scmp.lt.s32.totalorder %s17, 1
      %s293 = scalar_select %p292, %s17, 1
      %s294 = smul.addr %s293, 8
      %s295 = scalar_lea.vmem %s5, %s294
      %p296 = pneg %p168
      %p297 = pneg %p165
      %p298 = pneg %p194
      %p299 = pneg %p191
      %p300 = scmp.lt.s32.totalorder %s17, 1
      %s301 = scalar_select %p300, %s17, 1
      %s302 = smul.addr %s301, 2
      %s303 = smul.addr %s302, 8
      %s304 = scalar_lea.vmem %s6, %s303
      %p305 = scmp.lt.s32.totalorder %s17, 1
      %s306 = scalar_select %p305, %s17, 1
      %s307 = smul.addr %s306, 8
      %s308 = scalar_lea.vmem %s0, %s307
      %p309 = scmp.lt.s32.totalorder %s17, 1
      %s310 = scalar_select %p309, %s17, 1
      %s311 = smul.addr %s310, 8
      %s312 = scalar_lea.vmem %s1, %s311
      %p313 = scmp.lt.s32.totalorder %s17, 1
      %s314 = scalar_select %p313, %s17, 1
      %s315 = smul.addr %s314, 8
      %s316 = scalar_lea.vmem %s2, %s315
      %p317 = scmp.lt.s32.totalorder %s17, 1
      %s318 = scalar_select %p317, %s17, 1
      %s319 = smul.addr %s318, 8
      %s320 = scalar_lea.vmem %s3, %s319
      %p321 = scmp.lt.s32.totalorder %s17, 1
      %s322 = scalar_select %p321, %s17, 1
      %s323 = smul.addr %s322, 8
      %s324 = scalar_lea.vmem %s4, %s323
      %p325 = scmp.lt.s32.totalorder %s17, 1
      %s326 = scalar_select %p325, %s17, 1
      %s327 = smul.addr %s326, 8
      %s328 = scalar_lea.vmem %s5, %s327
      %p329 = scmp.lt.s32.totalorder %s17, 1
      %s330 = scalar_select %p329, %s17, 1
      %s331 = smul.addr %s330, 2
      %s332 = smul.addr %s331, 8
      %s333 = scalar_lea.vmem %s6, %s332
      %v334 = vlaneseq
      %v335 = vshrl.u32 %v334, 7
      %s336 = smul.u32 %s17, 8
      %v337 = vstv %s336
      %v338 = vadd.s32 %v337, %v335
      %vm339 = vcmp.lt.s32.totalorder %v338, 16
      %v340 = vld [vmem:[%s308] sm:$0xff]
      %v341 = vsel %vm339, %v340, 0.0
      %v342 = vsub.f32 1.0, %v341
      %v343 = vld [vmem:[%s312] sm:$0xff]
      %v344 = vsel %vm339, %v343, -100.0
      %v345 = vand.u32 2147483647, %v344
      %v346 = vsub.f32 0.0, %v345
      %v347 = vmul.f32 %v346, 1.442695
      %v348 = vpow.pop %v347
      %v349 = vadd.f32 %v348, 1.0
      %v350 = vlog2.pop %v349
      %v351 = vmul.f32 %v350, 0.6931472
      %v352 = vmul.f32 -0.5, %v348
      %v353 = vadd.f32 %v352, 1.0
      %v354 = vmul.f32 %v353, %v348
      %v355 = vand.u32 2147483647, %v348
      %vm356 = vcmp.lt.f32.partialorder %v355, 0.0004427343
      %v357 = vsel %vm356, %v354, %v351
      %v358 = vmax.f32 %v344, 0.0
      %v359 = vadd.f32 %v358, %v357
      %v360 = vsub.f32 0.0, %v344
      %v361 = vmax.f32 %v360, 0.0
      %v362 = vadd.f32 %v361, %v357
      %v363 = vmul.f32 %v341, %v362
      %v364 = vmul.f32 %v363, 5.0
      %v365 = vmul.f32 %v342, %v359
      %v366 = vadd.f32 %v364, %v365
      %vm367 = vcmp.ge.f32.partialorder %v344, 0.0
      %v368 = vsel %vm367, 1.0, %v348
      %v369 = vadd.f32 %v348, 1.0
      %v370 = vrcp.pop %v369
      %v371 = vmul.f32 %v368, %v370
      %vm372 = vcmask 64512
      %v374 = vsel %vm372, 1.0, 0
      %376 = vmatprep.subr.mxu0 0.0
      %v377 = vand.u32 %v341, 4294901760
      %378 = vmatpush1.msra.mxu0 %v377
      %379 = vmatprep.subr.mxu0 0.0
      %380 = vmatpush1.msra.mxu0 0.0
      %381 = vmatprep.subr.mxu0 0.0
      %382 = vmatpush1.msra.mxu0 0.0
      %383 = vmatprep.subr.mxu0 0.0
      %384 = vmatpush1.msra.mxu0 0.0
      %385 = vmatprep.subr.mxu0 0.0
      %386 = vmatpush1.msra.mxu0 0.0
      %387 = vmatprep.subr.mxu0 0.0
      %388 = vmatpush1.msra.mxu0 0.0
      %389 = vmatprep.subr.mxu0 0.0
      %390 = vmatpush1.msra.mxu0 0.0
      %391 = vmatprep.subr.mxu0 0.0
      %392 = vmatpush1.msra.mxu0 0.0
      %393 = vmatprep.subr.mxu0 0.0
      %394 = vmatpush1.msra.mxu0 0.0
      %395 = vmatprep.subr.mxu0 0.0
      %396 = vmatpush1.msra.mxu0 0.0
      %397 = vmatprep.subr.mxu0 0.0
      %398 = vmatpush1.msra.mxu0 0.0
      %399 = vmatprep.subr.mxu0 0.0
      %400 = vmatpush1.msra.mxu0 0.0
      %401 = vmatprep.subr.mxu0 0.0
      %402 = vmatpush1.msra.mxu0 0.0
      %403 = vmatprep.subr.mxu0 0.0
      %404 = vmatpush1.msra.mxu0 0.0
      %405 = vmatprep.subr.mxu0 0.0
      %406 = vmatpush1.msra.mxu0 0.0
      %407 = vmatprep.subr.mxu0 0.0
      %408 = vmatpush1.msra.mxu0 0.0
      %409 = vmatprep.subr.mxu0 0.0
      %410 = vmatpush1.msra.mxu0 0.0
      %411 = vmatprep.subr.mxu0 0.0
      %412 = vmatpush1.msra.mxu0 0.0
      %413 = vmatprep.subr.mxu0 0.0
      %414 = vmatpush1.msra.mxu0 0.0
      %415 = vmatprep.subr.mxu0 0.0
      %416 = vmatpush1.msra.mxu0 0.0
      %417 = vmatprep.subr.mxu0 0.0
      %418 = vmatpush1.msra.mxu0 0.0
      %419 = vmatprep.subr.mxu0 0.0
      %420 = vmatpush1.msra.mxu0 0.0
      %421 = vmatprep.subr.mxu0 0.0
      %422 = vmatpush1.msra.mxu0 0.0
      %423 = vmatprep.subr.mxu0 0.0
      %424 = vmatpush1.msra.mxu0 0.0
      %425 = vmatprep.subr.mxu0 0.0
      %426 = vmatpush1.msra.mxu0 0.0
      %427 = vmatprep.subr.mxu0 0.0
      %428 = vmatpush1.msra.mxu0 0.0
      %429 = vmatprep.subr.mxu0 0.0
      %430 = vmatpush1.msra.mxu0 0.0
      %431 = vmatprep.subr.mxu0 0.0
      %432 = vmatpush1.msra.mxu0 0.0
      %433 = vmatprep.subr.mxu0 0.0
      %434 = vmatpush1.msra.mxu0 0.0
      %435 = vmatprep.subr.mxu0 0.0
      %436 = vmatpush1.msra.mxu0 0.0
      %437 = vmatprep.subr.mxu0 0.0
      %438 = vmatpush1.msra.mxu0 0.0
      %439 = vmatprep.subr.mxu0 0.0
      %440 = vmatpush1.msra.mxu0 0.0
      %441 = vmatprep.mubr.f32.mxu0 0.0
      %v442 = vand.u32 %v374, 4294901760
      %v443 = vsub.f32 %v374, %v442
      %v444 = vand.u32 %v443, 4294901760
      %v445 = vsub.f32 %v443, %v444
      %v446 = vand.u32 %v445, 4294901760
      %447 = vmatmul.mubr.f32.gmra.mrb[0].mxu0 %v446
      %v448 = vpop.f32.mrb[0].mxu0
      %v449 = vadd.f32 0.0, %v448
      %v450 = vpop.f32.mrb[0].mxu0
      %451 = vdwg.mxu0
      %452 = vmatprep.subr.mxu0 0.0
      %v453 = vand.u32 %v341, 4294901760
      %v454 = vsub.f32 %v341, %v453
      %v455 = vand.u32 %v454, 4294901760
      %v456 = vsub.f32 %v454, %v455
      %v457 = vand.u32 %v456, 4294901760
      %458 = vmatpush1.msra.mxu0 %v457
      %459 = vmatprep.subr.mxu0 0.0
      %460 = vmatpush1.msra.mxu0 0.0
      %461 = vmatprep.subr.mxu0 0.0
      %462 = vmatpush1.msra.mxu0 0.0
      %463 = vmatprep.subr.mxu0 0.0
      %464 = vmatpush1.msra.mxu0 0.0
      %465 = vmatprep.subr.mxu0 0.0
      %466 = vmatpush1.msra.mxu0 0.0
      %467 = vmatprep.subr.mxu0 0.0
      %468 = vmatpush1.msra.mxu0 0.0
      %469 = vmatprep.subr.mxu0 0.0
      %470 = vmatpush1.msra.mxu0 0.0
      %471 = vmatprep.subr.mxu0 0.0
      %472 = vmatpush1.msra.mxu0 0.0
      %473 = vmatprep.subr.mxu0 0.0
      %474 = vmatpush1.msra.mxu0 0.0
      %475 = vmatprep.subr.mxu0 0.0
      %476 = vmatpush1.msra.mxu0 0.0
      %477 = vmatprep.subr.mxu0 0.0
      %478 = vmatpush1.msra.mxu0 0.0
      %479 = vmatprep.subr.mxu0 0.0
      %480 = vmatpush1.msra.mxu0 0.0
      %481 = vmatprep.subr.mxu0 0.0
      %482 = vmatpush1.msra.mxu0 0.0
      %483 = vmatprep.subr.mxu0 0.0
      %484 = vmatpush1.msra.mxu0 0.0
      %485 = vmatprep.subr.mxu0 0.0
      %486 = vmatpush1.msra.mxu0 0.0
      %487 = vmatprep.subr.mxu0 0.0
      %488 = vmatpush1.msra.mxu0 0.0
      %489 = vmatprep.subr.mxu0 0.0
      %490 = vmatpush1.msra.mxu0 0.0
      %491 = vmatprep.subr.mxu0 0.0
      %492 = vmatpush1.msra.mxu0 0.0
      %493 = vmatprep.subr.mxu0 0.0
      %494 = vmatpush1.msra.mxu0 0.0
      %495 = vmatprep.subr.mxu0 0.0
      %496 = vmatpush1.msra.mxu0 0.0
      %497 = vmatprep.subr.mxu0 0.0
      %498 = vmatpush1.msra.mxu0 0.0
      %499 = vmatprep.subr.mxu0 0.0
      %500 = vmatpush1.msra.mxu0 0.0
      %501 = vmatprep.subr.mxu0 0.0
      %502 = vmatpush1.msra.mxu0 0.0
      %503 = vmatprep.subr.mxu0 0.0
      %504 = vmatpush1.msra.mxu0 0.0
      %505 = vmatprep.subr.mxu0 0.0
      %506 = vmatpush1.msra.mxu0 0.0
      %507 = vmatprep.subr.mxu0 0.0
      %508 = vmatpush1.msra.mxu0 0.0
      %509 = vmatprep.subr.mxu0 0.0
      %510 = vmatpush1.msra.mxu0 0.0
      %511 = vmatprep.subr.mxu0 0.0
      %512 = vmatpush1.msra.mxu0 0.0
      %513 = vmatprep.subr.mxu0 0.0
      %514 = vmatpush1.msra.mxu0 0.0
      %515 = vmatprep.subr.mxu0 0.0
      %516 = vmatpush1.msra.mxu0 0.0
      %517 = vmatprep.subr.mxu0 0.0
      %518 = vmatpush1.msra.mxu0 0.0
      %519 = vmatprep.subr.mxu0 0.0
      %520 = vmatpush1.msra.mxu0 0.0
      %521 = vmatprep.mubr.f32.mxu0 0.0
      %v522 = vand.u32 %v374, 4294901760
      %523 = vmatmul.mubr.f32.gmra.mrb[0].mxu0 %v522
      %v524 = vpop.f32.mrb[0].mxu0
      %v525 = vadd.f32 %v449, %v524
      %v526 = vpop.f32.mrb[0].mxu0
      %527 = vdwg.mxu0
      %528 = vmatprep.subr.mxu0 0.0
      %v529 = vand.u32 %v341, 4294901760
      %v530 = vsub.f32 %v341, %v529
      %531 = vmatpush1.msra.mxu0 %v530
      %532 = vmatprep.subr.mxu0 0.0
      %533 = vmatpush1.msra.mxu0 0.0
      %534 = vmatprep.subr.mxu0 0.0
      %535 = vmatpush1.msra.mxu0 0.0
      %536 = vmatprep.subr.mxu0 0.0
      %537 = vmatpush1.msra.mxu0 0.0
      %538 = vmatprep.subr.mxu0 0.0
      %539 = vmatpush1.msra.mxu0 0.0
      %540 = vmatprep.subr.mxu0 0.0
      %541 = vmatpush1.msra.mxu0 0.0
      %542 = vmatprep.subr.mxu0 0.0
      %543 = vmatpush1.msra.mxu0 0.0
      %544 = vmatprep.subr.mxu0 0.0
      %545 = vmatpush1.msra.mxu0 0.0
      %546 = vmatprep.subr.mxu0 0.0
      %547 = vmatpush1.msra.mxu0 0.0
      %548 = vmatprep.subr.mxu0 0.0
      %549 = vmatpush1.msra.mxu0 0.0
      %550 = vmatprep.subr.mxu0 0.0
      %551 = vmatpush1.msra.mxu0 0.0
      %552 = vmatprep.subr.mxu0 0.0
      %553 = vmatpush1.msra.mxu0 0.0
      %554 = vmatprep.subr.mxu0 0.0
      %555 = vmatpush1.msra.mxu0 0.0
      %556 = vmatprep.subr.mxu0 0.0
      %557 = vmatpush1.msra.mxu0 0.0
      %558 = vmatprep.subr.mxu0 0.0
      %559 = vmatpush1.msra.mxu0 0.0
      %560 = vmatprep.subr.mxu0 0.0
      %561 = vmatpush1.msra.mxu0 0.0
      %562 = vmatprep.subr.mxu0 0.0
      %563 = vmatpush1.msra.mxu0 0.0
      %564 = vmatprep.subr.mxu0 0.0
      %565 = vmatpush1.msra.mxu0 0.0
      %566 = vmatprep.subr.mxu0 0.0
      %567 = vmatpush1.msra.mxu0 0.0
      %568 = vmatprep.subr.mxu0 0.0
      %569 = vmatpush1.msra.mxu0 0.0
      %570 = vmatprep.subr.mxu0 0.0
      %571 = vmatpush1.msra.mxu0 0.0
      %572 = vmatprep.subr.mxu0 0.0
      %573 = vmatpush1.msra.mxu0 0.0
      %574 = vmatprep.subr.mxu0 0.0
      %575 = vmatpush1.msra.mxu0 0.0
      %576 = vmatprep.subr.mxu0 0.0
      %577 = vmatpush1.msra.mxu0 0.0
      %578 = vmatprep.subr.mxu0 0.0
      %579 = vmatpush1.msra.mxu0 0.0
      %580 = vmatprep.subr.mxu0 0.0
      %581 = vmatpush1.msra.mxu0 0.0
      %582 = vmatprep.subr.mxu0 0.0
      %583 = vmatpush1.msra.mxu0 0.0
      %584 = vmatprep.subr.mxu0 0.0
      %585 = vmatpush1.msra.mxu0 0.0
      %586 = vmatprep.subr.mxu0 0.0
      %587 = vmatpush1.msra.mxu0 0.0
      %588 = vmatprep.subr.mxu0 0.0
      %589 = vmatpush1.msra.mxu0 0.0
      %590 = vmatprep.subr.mxu0 0.0
      %591 = vmatpush1.msra.mxu0 0.0
      %592 = vmatprep.subr.mxu0 0.0
      %593 = vmatpush1.msra.mxu0 0.0
      %594 = vmatprep.mubr.f32.mxu0 0.0
      %v595 = vand.u32 %v374, 4294901760
      %v596 = vsub.f32 %v374, %v595
      %597 = vmatmul.mubr.f32.gmra.mrb[0].mxu0 %v596
      %v598 = vpop.f32.mrb[0].mxu0
      %v599 = vadd.f32 %v525, %v598
      %v600 = vpop.f32.mrb[0].mxu0
      %601 = vdwg.mxu0
      %602 = vmatprep.subr.mxu0 0.0
      %v603 = vand.u32 %v341, 4294901760
      %604 = vmatpush1.msra.mxu0 %v603
      %605 = vmatprep.subr.mxu0 0.0
      %606 = vmatpush1.msra.mxu0 0.0
      %607 = vmatprep.subr.mxu0 0.0
      %608 = vmatpush1.msra.mxu0 0.0
      %609 = vmatprep.subr.mxu0 0.0
      %610 = vmatpush1.msra.mxu0 0.0
      %611 = vmatprep.subr.mxu0 0.0
      %612 = vmatpush1.msra.mxu0 0.0
      %613 = vmatprep.subr.mxu0 0.0
      %614 = vmatpush1.msra.mxu0 0.0
      %615 = vmatprep.subr.mxu0 0.0
      %616 = vmatpush1.msra.mxu0 0.0
      %617 = vmatprep.subr.mxu0 0.0
      %618 = vmatpush1.msra.mxu0 0.0
      %619 = vmatprep.subr.mxu0 0.0
      %620 = vmatpush1.msra.mxu0 0.0
      %621 = vmatprep.subr.mxu0 0.0
      %622 = vmatpush1.msra.mxu0 0.0
      %623 = vmatprep.subr.mxu0 0.0
      %624 = vmatpush1.msra.mxu0 0.0
      %625 = vmatprep.subr.mxu0 0.0
      %626 = vmatpush1.msra.mxu0 0.0
      %627 = vmatprep.subr.mxu0 0.0
      %628 = vmatpush1.msra.mxu0 0.0
      %629 = vmatprep.subr.mxu0 0.0
      %630 = vmatpush1.msra.mxu0 0.0
      %631 = vmatprep.subr.mxu0 0.0
      %632 = vmatpush1.msra.mxu0 0.0
      %633 = vmatprep.subr.mxu0 0.0
      %634 = vmatpush1.msra.mxu0 0.0
      %635 = vmatprep.subr.mxu0 0.0
      %636 = vmatpush1.msra.mxu0 0.0
      %637 = vmatprep.subr.mxu0 0.0
      %638 = vmatpush1.msra.mxu0 0.0
      %639 = vmatprep.subr.mxu0 0.0
      %640 = vmatpush1.msra.mxu0 0.0
      %641 = vmatprep.subr.mxu0 0.0
      %642 = vmatpush1.msra.mxu0 0.0
      %643 = vmatprep.subr.mxu0 0.0
      %644 = vmatpush1.msra.mxu0 0.0
      %645 = vmatprep.subr.mxu0 0.0
      %646 = vmatpush1.msra.mxu0 0.0
      %647 = vmatprep.subr.mxu0 0.0
      %648 = vmatpush1.msra.mxu0 0.0
      %649 = vmatprep.subr.mxu0 0.0
      %650 = vmatpush1.msra.mxu0 0.0
      %651 = vmatprep.subr.mxu0 0.0
      %652 = vmatpush1.msra.mxu0 0.0
      %653 = vmatprep.subr.mxu0 0.0
      %654 = vmatpush1.msra.mxu0 0.0
      %655 = vmatprep.subr.mxu0 0.0
      %656 = vmatpush1.msra.mxu0 0.0
      %657 = vmatprep.subr.mxu0 0.0
      %658 = vmatpush1.msra.mxu0 0.0
      %659 = vmatprep.subr.mxu0 0.0
      %660 = vmatpush1.msra.mxu0 0.0
      %661 = vmatprep.subr.mxu0 0.0
      %662 = vmatpush1.msra.mxu0 0.0
      %663 = vmatprep.subr.mxu0 0.0
      %664 = vmatpush1.msra.mxu0 0.0
      %665 = vmatprep.subr.mxu0 0.0
      %666 = vmatpush1.msra.mxu0 0.0
      %667 = vmatprep.mubr.f32.mxu0 0.0
      %v668 = vand.u32 %v374, 4294901760
      %v669 = vsub.f32 %v374, %v668
      %v670 = vand.u32 %v669, 4294901760
      %671 = vmatmul.mubr.f32.gmra.mrb[0].mxu0 %v670
      %v672 = vpop.f32.mrb[0].mxu0
      %v673 = vadd.f32 %v599, %v672
      %v674 = vpop.f32.mrb[0].mxu0
      %675 = vdwg.mxu0
      %676 = vmatprep.subr.mxu0 0.0
      %v677 = vand.u32 %v341, 4294901760
      %v678 = vsub.f32 %v341, %v677
      %v679 = vand.u32 %v678, 4294901760
      %680 = vmatpush1.msra.mxu0 %v679
      %681 = vmatprep.subr.mxu0 0.0
      %682 = vmatpush1.msra.mxu0 0.0
      %683 = vmatprep.subr.mxu0 0.0
      %684 = vmatpush1.msra.mxu0 0.0
      %685 = vmatprep.subr.mxu0 0.0
      %686 = vmatpush1.msra.mxu0 0.0
      %687 = vmatprep.subr.mxu0 0.0
      %688 = vmatpush1.msra.mxu0 0.0
      %689 = vmatprep.subr.mxu0 0.0
      %690 = vmatpush1.msra.mxu0 0.0
      %691 = vmatprep.subr.mxu0 0.0
      %692 = vmatpush1.msra.mxu0 0.0
      %693 = vmatprep.subr.mxu0 0.0
      %694 = vmatpush1.msra.mxu0 0.0
      %695 = vmatprep.subr.mxu0 0.0
      %696 = vmatpush1.msra.mxu0 0.0
      %697 = vmatprep.subr.mxu0 0.0
      %698 = vmatpush1.msra.mxu0 0.0
      %699 = vmatprep.subr.mxu0 0.0
      %700 = vmatpush1.msra.mxu0 0.0
      %701 = vmatprep.subr.mxu0 0.0
      %702 = vmatpush1.msra.mxu0 0.0
      %703 = vmatprep.subr.mxu0 0.0
      %704 = vmatpush1.msra.mxu0 0.0
      %705 = vmatprep.subr.mxu0 0.0
      %706 = vmatpush1.msra.mxu0 0.0
      %707 = vmatprep.subr.mxu0 0.0
      %708 = vmatpush1.msra.mxu0 0.0
      %709 = vmatprep.subr.mxu0 0.0
      %710 = vmatpush1.msra.mxu0 0.0
      %711 = vmatprep.subr.mxu0 0.0
      %712 = vmatpush1.msra.mxu0 0.0
      %713 = vmatprep.subr.mxu0 0.0
      %714 = vmatpush1.msra.mxu0 0.0
      %715 = vmatprep.subr.mxu0 0.0
      %716 = vmatpush1.msra.mxu0 0.0
      %717 = vmatprep.subr.mxu0 0.0
      %718 = vmatpush1.msra.mxu0 0.0
      %719 = vmatprep.subr.mxu0 0.0
      %720 = vmatpush1.msra.mxu0 0.0
      %721 = vmatprep.subr.mxu0 0.0
      %722 = vmatpush1.msra.mxu0 0.0
      %723 = vmatprep.subr.mxu0 0.0
      %724 = vmatpush1.msra.mxu0 0.0
      %725 = vmatprep.subr.mxu0 0.0
      %726 = vmatpush1.msra.mxu0 0.0
      %727 = vmatprep.subr.mxu0 0.0
      %728 = vmatpush1.msra.mxu0 0.0
      %729 = vmatprep.subr.mxu0 0.0
      %730 = vmatpush1.msra.mxu0 0.0
      %731 = vmatprep.subr.mxu0 0.0
      %732 = vmatpush1.msra.mxu0 0.0
      %733 = vmatprep.subr.mxu0 0.0
      %734 = vmatpush1.msra.mxu0 0.0
      %735 = vmatprep.subr.mxu0 0.0
      %736 = vmatpush1.msra.mxu0 0.0
      %737 = vmatprep.subr.mxu0 0.0
      %738 = vmatpush1.msra.mxu0 0.0
      %739 = vmatprep.subr.mxu0 0.0
      %740 = vmatpush1.msra.mxu0 0.0
      %741 = vmatprep.subr.mxu0 0.0
      %742 = vmatpush1.msra.mxu0 0.0
      %743 = vmatprep.mubr.f32.mxu0 0.0
      %v744 = vand.u32 %v374, 4294901760
      %745 = vmatmul.mubr.f32.gmra.mrb[0].mxu0 %v744
      %v746 = vpop.f32.mrb[0].mxu0
      %v747 = vadd.f32 %v673, %v746
      %v748 = vpop.f32.mrb[0].mxu0
      %749 = vdwg.mxu0
      %750 = vmatprep.subr.mxu0 0.0
      %v751 = vand.u32 %v341, 4294901760
      %752 = vmatpush1.msra.mxu0 %v751
      %753 = vmatprep.subr.mxu0 0.0
      %754 = vmatpush1.msra.mxu0 0.0
      %755 = vmatprep.subr.mxu0 0.0
      %756 = vmatpush1.msra.mxu0 0.0
      %757 = vmatprep.subr.mxu0 0.0
      %758 = vmatpush1.msra.mxu0 0.0
      %759 = vmatprep.subr.mxu0 0.0
      %760 = vmatpush1.msra.mxu0 0.0
      %761 = vmatprep.subr.mxu0 0.0
      %762 = vmatpush1.msra.mxu0 0.0
      %763 = vmatprep.subr.mxu0 0.0
      %764 = vmatpush1.msra.mxu0 0.0
      %765 = vmatprep.subr.mxu0 0.0
      %766 = vmatpush1.msra.mxu0 0.0
      %767 = vmatprep.subr.mxu0 0.0
      %768 = vmatpush1.msra.mxu0 0.0
      %769 = vmatprep.subr.mxu0 0.0
      %770 = vmatpush1.msra.mxu0 0.0
      %771 = vmatprep.subr.mxu0 0.0
      %772 = vmatpush1.msra.mxu0 0.0
      %773 = vmatprep.subr.mxu0 0.0
      %774 = vmatpush1.msra.mxu0 0.0
      %775 = vmatprep.subr.mxu0 0.0
      %776 = vmatpush1.msra.mxu0 0.0
      %777 = vmatprep.subr.mxu0 0.0
      %778 = vmatpush1.msra.mxu0 0.0
      %779 = vmatprep.subr.mxu0 0.0
      %780 = vmatpush1.msra.mxu0 0.0
      %781 = vmatprep.subr.mxu0 0.0
      %782 = vmatpush1.msra.mxu0 0.0
      %783 = vmatprep.subr.mxu0 0.0
      %784 = vmatpush1.msra.mxu0 0.0
      %785 = vmatprep.subr.mxu0 0.0
      %786 = vmatpush1.msra.mxu0 0.0
      %787 = vmatprep.subr.mxu0 0.0
      %788 = vmatpush1.msra.mxu0 0.0
      %789 = vmatprep.subr.mxu0 0.0
      %790 = vmatpush1.msra.mxu0 0.0
      %791 = vmatprep.subr.mxu0 0.0
      %792 = vmatpush1.msra.mxu0 0.0
      %793 = vmatprep.subr.mxu0 0.0
      %794 = vmatpush1.msra.mxu0 0.0
      %795 = vmatprep.subr.mxu0 0.0
      %796 = vmatpush1.msra.mxu0 0.0
      %797 = vmatprep.subr.mxu0 0.0
      %798 = vmatpush1.msra.mxu0 0.0
      %799 = vmatprep.subr.mxu0 0.0
      %800 = vmatpush1.msra.mxu0 0.0
      %801 = vmatprep.subr.mxu0 0.0
      %802 = vmatpush1.msra.mxu0 0.0
      %803 = vmatprep.subr.mxu0 0.0
      %804 = vmatpush1.msra.mxu0 0.0
      %805 = vmatprep.subr.mxu0 0.0
      %806 = vmatpush1.msra.mxu0 0.0
      %807 = vmatprep.subr.mxu0 0.0
      %808 = vmatpush1.msra.mxu0 0.0
      %809 = vmatprep.subr.mxu0 0.0
      %810 = vmatpush1.msra.mxu0 0.0
      %811 = vmatprep.subr.mxu0 0.0
      %812 = vmatpush1.msra.mxu0 0.0
      %813 = vmatprep.subr.mxu0 0.0
      %814 = vmatpush1.msra.mxu0 0.0
      %815 = vmatprep.mubr.f32.mxu0 0.0
      %v816 = vand.u32 %v374, 4294901760
      %817 = vmatmul.mubr.f32.gmra.mrb[0].mxu0 %v816
      %v818 = vpop.f32.mrb[0].mxu0
      %v819 = vadd.f32 %v747, %v818
      %v820 = vpop.f32.mrb[0].mxu0
      %821 = vdwg.mxu0
      %822 = vmatprep.subr.mxu0 0.0
      %v823 = vand.u32 %v366, 4294901760
      %824 = vmatpush1.msra.mxu0 %v823
      %825 = vmatprep.subr.mxu0 0.0
      %826 = vmatpush1.msra.mxu0 0.0
      %827 = vmatprep.subr.mxu0 0.0
      %828 = vmatpush1.msra.mxu0 0.0
      %829 = vmatprep.subr.mxu0 0.0
      %830 = vmatpush1.msra.mxu0 0.0
      %831 = vmatprep.subr.mxu0 0.0
      %832 = vmatpush1.msra.mxu0 0.0
      %833 = vmatprep.subr.mxu0 0.0
      %834 = vmatpush1.msra.mxu0 0.0
      %835 = vmatprep.subr.mxu0 0.0
      %836 = vmatpush1.msra.mxu0 0.0
      %837 = vmatprep.subr.mxu0 0.0
      %838 = vmatpush1.msra.mxu0 0.0
      %839 = vmatprep.subr.mxu0 0.0
      %840 = vmatpush1.msra.mxu0 0.0
      %841 = vmatprep.subr.mxu0 0.0
      %842 = vmatpush1.msra.mxu0 0.0
      %843 = vmatprep.subr.mxu0 0.0
      %844 = vmatpush1.msra.mxu0 0.0
      %845 = vmatprep.subr.mxu0 0.0
      %846 = vmatpush1.msra.mxu0 0.0
      %847 = vmatprep.subr.mxu0 0.0
      %848 = vmatpush1.msra.mxu0 0.0
      %849 = vmatprep.subr.mxu0 0.0
      %850 = vmatpush1.msra.mxu0 0.0
      %851 = vmatprep.subr.mxu0 0.0
      %852 = vmatpush1.msra.mxu0 0.0
      %853 = vmatprep.subr.mxu0 0.0
      %854 = vmatpush1.msra.mxu0 0.0
      %855 = vmatprep.subr.mxu0 0.0
      %856 = vmatpush1.msra.mxu0 0.0
      %857 = vmatprep.subr.mxu0 0.0
      %858 = vmatpush1.msra.mxu0 0.0
      %859 = vmatprep.subr.mxu0 0.0
      %860 = vmatpush1.msra.mxu0 0.0
      %861 = vmatprep.subr.mxu0 0.0
      %862 = vmatpush1.msra.mxu0 0.0
      %863 = vmatprep.subr.mxu0 0.0
      %864 = vmatpush1.msra.mxu0 0.0
      %865 = vmatprep.subr.mxu0 0.0
      %866 = vmatpush1.msra.mxu0 0.0
      %867 = vmatprep.subr.mxu0 0.0
      %868 = vmatpush1.msra.mxu0 0.0
      %869 = vmatprep.subr.mxu0 0.0
      %870 = vmatpush1.msra.mxu0 0.0
      %871 = vmatprep.subr.mxu0 0.0
      %872 = vmatpush1.msra.mxu0 0.0
      %873 = vmatprep.subr.mxu0 0.0
      %874 = vmatpush1.msra.mxu0 0.0
      %875 = vmatprep.subr.mxu0 0.0
      %876 = vmatpush1.msra.mxu0 0.0
      %877 = vmatprep.subr.mxu0 0.0
      %878 = vmatpush1.msra.mxu0 0.0
      %879 = vmatprep.subr.mxu0 0.0
      %880 = vmatpush1.msra.mxu0 0.0
      %881 = vmatprep.subr.mxu0 0.0
      %882 = vmatpush1.msra.mxu0 0.0
      %883 = vmatprep.subr.mxu0 0.0
      %884 = vmatpush1.msra.mxu0 0.0
      %885 = vmatprep.subr.mxu0 0.0
      %886 = vmatpush1.msra.mxu0 0.0
      %887 = vmatprep.mubr.f32.mxu0 0.0
      %v888 = vand.u32 %v374, 4294901760
      %v889 = vsub.f32 %v374, %v888
      %v890 = vand.u32 %v889, 4294901760
      %v891 = vsub.f32 %v889, %v890
      %v892 = vand.u32 %v891, 4294901760
      %893 = vmatmul.mubr.f32.gmra.mrb[0].mxu0 %v892
      %v894 = vpop.f32.mrb[0].mxu0
      %v895 = vadd.f32 0.0, %v894
      %v896 = vpop.f32.mrb[0].mxu0
      %897 = vdwg.mxu0
      %898 = vmatprep.subr.mxu0 0.0
      %v899 = vand.u32 %v366, 4294901760
      %v900 = vsub.f32 %v366, %v899
      %v901 = vand.u32 %v900, 4294901760
      %v902 = vsub.f32 %v900, %v901
      %v903 = vand.u32 %v902, 4294901760
      %904 = vmatpush1.msra.mxu0 %v903
      %905 = vmatprep.subr.mxu0 0.0
      %906 = vmatpush1.msra.mxu0 0.0
      %907 = vmatprep.subr.mxu0 0.0
      %908 = vmatpush1.msra.mxu0 0.0
      %909 = vmatprep.subr.mxu0 0.0
      %910 = vmatpush1.msra.mxu0 0.0
      %911 = vmatprep.subr.mxu0 0.0
      %912 = vmatpush1.msra.mxu0 0.0
      %913 = vmatprep.subr.mxu0 0.0
      %914 = vmatpush1.msra.mxu0 0.0
      %915 = vmatprep.subr.mxu0 0.0
      %916 = vmatpush1.msra.mxu0 0.0
      %917 = vmatprep.subr.mxu0 0.0
      %918 = vmatpush1.msra.mxu0 0.0
      %919 = vmatprep.subr.mxu0 0.0
      %920 = vmatpush1.msra.mxu0 0.0
      %921 = vmatprep.subr.mxu0 0.0
      %922 = vmatpush1.msra.mxu0 0.0
      %923 = vmatprep.subr.mxu0 0.0
      %924 = vmatpush1.msra.mxu0 0.0
      %925 = vmatprep.subr.mxu0 0.0
      %926 = vmatpush1.msra.mxu0 0.0
      %927 = vmatprep.subr.mxu0 0.0
      %928 = vmatpush1.msra.mxu0 0.0
      %929 = vmatprep.subr.mxu0 0.0
      %930 = vmatpush1.msra.mxu0 0.0
      %931 = vmatprep.subr.mxu0 0.0
      %932 = vmatpush1.msra.mxu0 0.0
      %933 = vmatprep.subr.mxu0 0.0
      %934 = vmatpush1.msra.mxu0 0.0
      %935 = vmatprep.subr.mxu0 0.0
      %936 = vmatpush1.msra.mxu0 0.0
      %937 = vmatprep.subr.mxu0 0.0
      %938 = vmatpush1.msra.mxu0 0.0
      %939 = vmatprep.subr.mxu0 0.0
      %940 = vmatpush1.msra.mxu0 0.0
      %941 = vmatprep.subr.mxu0 0.0
      %942 = vmatpush1.msra.mxu0 0.0
      %943 = vmatprep.subr.mxu0 0.0
      %944 = vmatpush1.msra.mxu0 0.0
      %945 = vmatprep.subr.mxu0 0.0
      %946 = vmatpush1.msra.mxu0 0.0
      %947 = vmatprep.subr.mxu0 0.0
      %948 = vmatpush1.msra.mxu0 0.0
      %949 = vmatprep.subr.mxu0 0.0
      %950 = vmatpush1.msra.mxu0 0.0
      %951 = vmatprep.subr.mxu0 0.0
      %952 = vmatpush1.msra.mxu0 0.0
      %953 = vmatprep.subr.mxu0 0.0
      %954 = vmatpush1.msra.mxu0 0.0
      %955 = vmatprep.subr.mxu0 0.0
      %956 = vmatpush1.msra.mxu0 0.0
      %957 = vmatprep.subr.mxu0 0.0
      %958 = vmatpush1.msra.mxu0 0.0
      %959 = vmatprep.subr.mxu0 0.0
      %960 = vmatpush1.msra.mxu0 0.0
      %961 = vmatprep.subr.mxu0 0.0
      %962 = vmatpush1.msra.mxu0 0.0
      %963 = vmatprep.subr.mxu0 0.0
      %964 = vmatpush1.msra.mxu0 0.0
      %965 = vmatprep.subr.mxu0 0.0
      %966 = vmatpush1.msra.mxu0 0.0
      %967 = vmatprep.mubr.f32.mxu0 0.0
      %v968 = vand.u32 %v374, 4294901760
      %969 = vmatmul.mubr.f32.gmra.mrb[0].mxu0 %v968
      %v970 = vpop.f32.mrb[0].mxu0
      %v971 = vadd.f32 %v895, %v970
      %v972 = vpop.f32.mrb[0].mxu0
      %973 = vdwg.mxu0
      %974 = vmatprep.subr.mxu0 0.0
      %v975 = vand.u32 %v366, 4294901760
      %v976 = vsub.f32 %v366, %v975
      %977 = vmatpush1.msra.mxu0 %v976
      %978 = vmatprep.subr.mxu0 0.0
      %979 = vmatpush1.msra.mxu0 0.0
      %980 = vmatprep.subr.mxu0 0.0
      %981 = vmatpush1.msra.mxu0 0.0
      %982 = vmatprep.subr.mxu0 0.0
      %983 = vmatpush1.msra.mxu0 0.0
      %984 = vmatprep.subr.mxu0 0.0
      %985 = vmatpush1.msra.mxu0 0.0
      %986 = vmatprep.subr.mxu0 0.0
      %987 = vmatpush1.msra.mxu0 0.0
      %988 = vmatprep.subr.mxu0 0.0
      %989 = vmatpush1.msra.mxu0 0.0
      %990 = vmatprep.subr.mxu0 0.0
      %991 = vmatpush1.msra.mxu0 0.0
      %992 = vmatprep.subr.mxu0 0.0
      %993 = vmatpush1.msra.mxu0 0.0
      %994 = vmatprep.subr.mxu0 0.0
      %995 = vmatpush1.msra.mxu0 0.0
      %996 = vmatprep.subr.mxu0 0.0
      %997 = vmatpush1.msra.mxu0 0.0
      %998 = vmatprep.subr.mxu0 0.0
      %999 = vmatpush1.msra.mxu0 0.0
      %1000 = vmatprep.subr.mxu0 0.0
      %1001 = vmatpush1.msra.mxu0 0.0
      %1002 = vmatprep.subr.mxu0 0.0
      %1003 = vmatpush1.msra.mxu0 0.0
      %1004 = vmatprep.subr.mxu0 0.0
      %1005 = vmatpush1.msra.mxu0 0.0
      %1006 = vmatprep.subr.mxu0 0.0
      %1007 = vmatpush1.msra.mxu0 0.0
      %1008 = vmatprep.subr.mxu0 0.0
      %1009 = vmatpush1.msra.mxu0 0.0
      %1010 = vmatprep.subr.mxu0 0.0
      %1011 = vmatpush1.msra.mxu0 0.0
      %1012 = vmatprep.subr.mxu0 0.0
      %1013 = vmatpush1.msra.mxu0 0.0
      %1014 = vmatprep.subr.mxu0 0.0
      %1015 = vmatpush1.msra.mxu0 0.0
      %1016 = vmatprep.subr.mxu0 0.0
      %1017 = vmatpush1.msra.mxu0 0.0
      %1018 = vmatprep.subr.mxu0 0.0
      %1019 = vmatpush1.msra.mxu0 0.0
      %1020 = vmatprep.subr.mxu0 0.0
      %1021 = vmatpush1.msra.mxu0 0.0
      %1022 = vmatprep.subr.mxu0 0.0
      %1023 = vmatpush1.msra.mxu0 0.0
      %1024 = vmatprep.subr.mxu0 0.0
      %1025 = vmatpush1.msra.mxu0 0.0
      %1026 = vmatprep.subr.mxu0 0.0
      %1027 = vmatpush1.msra.mxu0 0.0
      %1028 = vmatprep.subr.mxu0 0.0
      %1029 = vmatpush1.msra.mxu0 0.0
      %1030 = vmatprep.subr.mxu0 0.0
      %1031 = vmatpush1.msra.mxu0 0.0
      %1032 = vmatprep.subr.mxu0 0.0
      %1033 = vmatpush1.msra.mxu0 0.0
      %1034 = vmatprep.subr.mxu0 0.0
      %1035 = vmatpush1.msra.mxu0 0.0
      %1036 = vmatprep.subr.mxu0 0.0
      %1037 = vmatpush1.msra.mxu0 0.0
      %1038 = vmatprep.subr.mxu0 0.0
      %1039 = vmatpush1.msra.mxu0 0.0
      %1040 = vmatprep.mubr.f32.mxu0 0.0
      %v1041 = vand.u32 %v374, 4294901760
      %v1042 = vsub.f32 %v374, %v1041
      %1043 = vmatmul.mubr.f32.gmra.mrb[0].mxu0 %v1042
      %v1044 = vpop.f32.mrb[0].mxu0
      %v1045 = vadd.f32 %v971, %v1044
      %v1046 = vpop.f32.mrb[0].mxu0
      %1047 = vdwg.mxu0
      %1048 = vmatprep.subr.mxu0 0.0
      %v1049 = vand.u32 %v366, 4294901760
      %1050 = vmatpush1.msra.mxu0 %v1049
      %1051 = vmatprep.subr.mxu0 0.0
      %1052 = vmatpush1.msra.mxu0 0.0
      %1053 = vmatprep.subr.mxu0 0.0
      %1054 = vmatpush1.msra.mxu0 0.0
      %1055 = vmatprep.subr.mxu0 0.0
      %1056 = vmatpush1.msra.mxu0 0.0
      %1057 = vmatprep.subr.mxu0 0.0
      %1058 = vmatpush1.msra.mxu0 0.0
      %1059 = vmatprep.subr.mxu0 0.0
      %1060 = vmatpush1.msra.mxu0 0.0
      %1061 = vmatprep.subr.mxu0 0.0
      %1062 = vmatpush1.msra.mxu0 0.0
      %1063 = vmatprep.subr.mxu0 0.0
      %1064 = vmatpush1.msra.mxu0 0.0
      %1065 = vmatprep.subr.mxu0 0.0
      %1066 = vmatpush1.msra.mxu0 0.0
      %1067 = vmatprep.subr.mxu0 0.0
      %1068 = vmatpush1.msra.mxu0 0.0
      %1069 = vmatprep.subr.mxu0 0.0
      %1070 = vmatpush1.msra.mxu0 0.0
      %1071 = vmatprep.subr.mxu0 0.0
      %1072 = vmatpush1.msra.mxu0 0.0
      %1073 = vmatprep.subr.mxu0 0.0
      %1074 = vmatpush1.msra.mxu0 0.0
      %1075 = vmatprep.subr.mxu0 0.0
      %1076 = vmatpush1.msra.mxu0 0.0
      %1077 = vmatprep.subr.mxu0 0.0
      %1078 = vmatpush1.msra.mxu0 0.0
      %1079 = vmatprep.subr.mxu0 0.0
      %1080 = vmatpush1.msra.mxu0 0.0
      %1081 = vmatprep.subr.mxu0 0.0
      %1082 = vmatpush1.msra.mxu0 0.0
      %1083 = vmatprep.subr.mxu0 0.0
      %1084 = vmatpush1.msra.mxu0 0.0
      %1085 = vmatprep.subr.mxu0 0.0
      %1086 = vmatpush1.msra.mxu0 0.0
      %1087 = vmatprep.subr.mxu0 0.0
      %1088 = vmatpush1.msra.mxu0 0.0
      %1089 = vmatprep.subr.mxu0 0.0
      %1090 = vmatpush1.msra.mxu0 0.0
      %1091 = vmatprep.subr.mxu0 0.0
      %1092 = vmatpush1.msra.mxu0 0.0
      %1093 = vmatprep.subr.mxu0 0.0
      %1094 = vmatpush1.msra.mxu0 0.0
      %1095 = vmatprep.subr.mxu0 0.0
      %1096 = vmatpush1.msra.mxu0 0.0
      %1097 = vmatprep.subr.mxu0 0.0
      %1098 = vmatpush1.msra.mxu0 0.0
      %1099 = vmatprep.subr.mxu0 0.0
      %1100 = vmatpush1.msra.mxu0 0.0
      %1101 = vmatprep.subr.mxu0 0.0
      %1102 = vmatpush1.msra.mxu0 0.0
      %1103 = vmatprep.subr.mxu0 0.0
      %1104 = vmatpush1.msra.mxu0 0.0
      %1105 = vmatprep.subr.mxu0 0.0
      %1106 = vmatpush1.msra.mxu0 0.0
      %1107 = vmatprep.subr.mxu0 0.0
      %1108 = vmatpush1.msra.mxu0 0.0
      %1109 = vmatprep.subr.mxu0 0.0
      %1110 = vmatpush1.msra.mxu0 0.0
      %1111 = vmatprep.subr.mxu0 0.0
      %1112 = vmatpush1.msra.mxu0 0.0
      %1113 = vmatprep.mubr.f32.mxu0 0.0
      %v1114 = vand.u32 %v374, 4294901760
      %v1115 = vsub.f32 %v374, %v1114
      %v1116 = vand.u32 %v1115, 4294901760
      %1117 = vmatmul.mubr.f32.gmra.mrb[0].mxu0 %v1116
      %v1118 = vpop.f32.mrb[0].mxu0
      %v1119 = vadd.f32 %v1045, %v1118
      %v1120 = vpop.f32.mrb[0].mxu0
      %1121 = vdwg.mxu0
      %1122 = vmatprep.subr.mxu0 0.0
      %v1123 = vand.u32 %v366, 4294901760
      %v1124 = vsub.f32 %v366, %v1123
      %v1125 = vand.u32 %v1124, 4294901760
      %1126 = vmatpush1.msra.mxu0 %v1125
      %1127 = vmatprep.subr.mxu0 0.0
      %1128 = vmatpush1.msra.mxu0 0.0
      %1129 = vmatprep.subr.mxu0 0.0
      %1130 = vmatpush1.msra.mxu0 0.0
      %1131 = vmatprep.subr.mxu0 0.0
      %1132 = vmatpush1.msra.mxu0 0.0
      %1133 = vmatprep.subr.mxu0 0.0
      %1134 = vmatpush1.msra.mxu0 0.0
      %1135 = vmatprep.subr.mxu0 0.0
      %1136 = vmatpush1.msra.mxu0 0.0
      %1137 = vmatprep.subr.mxu0 0.0
      %1138 = vmatpush1.msra.mxu0 0.0
      %1139 = vmatprep.subr.mxu0 0.0
      %1140 = vmatpush1.msra.mxu0 0.0
      %1141 = vmatprep.subr.mxu0 0.0
      %1142 = vmatpush1.msra.mxu0 0.0
      %1143 = vmatprep.subr.mxu0 0.0
      %1144 = vmatpush1.msra.mxu0 0.0
      %1145 = vmatprep.subr.mxu0 0.0
      %1146 = vmatpush1.msra.mxu0 0.0
      %1147 = vmatprep.subr.mxu0 0.0
      %1148 = vmatpush1.msra.mxu0 0.0
      %1149 = vmatprep.subr.mxu0 0.0
      %1150 = vmatpush1.msra.mxu0 0.0
      %1151 = vmatprep.subr.mxu0 0.0
      %1152 = vmatpush1.msra.mxu0 0.0
      %1153 = vmatprep.subr.mxu0 0.0
      %1154 = vmatpush1.msra.mxu0 0.0
      %1155 = vmatprep.subr.mxu0 0.0
      %1156 = vmatpush1.msra.mxu0 0.0
      %1157 = vmatprep.subr.mxu0 0.0
      %1158 = vmatpush1.msra.mxu0 0.0
      %1159 = vmatprep.subr.mxu0 0.0
      %1160 = vmatpush1.msra.mxu0 0.0
      %1161 = vmatprep.subr.mxu0 0.0
      %1162 = vmatpush1.msra.mxu0 0.0
      %1163 = vmatprep.subr.mxu0 0.0
      %1164 = vmatpush1.msra.mxu0 0.0
      %1165 = vmatprep.subr.mxu0 0.0
      %1166 = vmatpush1.msra.mxu0 0.0
      %1167 = vmatprep.subr.mxu0 0.0
      %1168 = vmatpush1.msra.mxu0 0.0
      %1169 = vmatprep.subr.mxu0 0.0
      %1170 = vmatpush1.msra.mxu0 0.0
      %1171 = vmatprep.subr.mxu0 0.0
      %1172 = vmatpush1.msra.mxu0 0.0
      %1173 = vmatprep.subr.mxu0 0.0
      %1174 = vmatpush1.msra.mxu0 0.0
      %1175 = vmatprep.subr.mxu0 0.0
      %1176 = vmatpush1.msra.mxu0 0.0
      %1177 = vmatprep.subr.mxu0 0.0
      %1178 = vmatpush1.msra.mxu0 0.0
      %1179 = vmatprep.subr.mxu0 0.0
      %1180 = vmatpush1.msra.mxu0 0.0
      %1181 = vmatprep.subr.mxu0 0.0
      %1182 = vmatpush1.msra.mxu0 0.0
      %1183 = vmatprep.subr.mxu0 0.0
      %1184 = vmatpush1.msra.mxu0 0.0
      %1185 = vmatprep.subr.mxu0 0.0
      %1186 = vmatpush1.msra.mxu0 0.0
      %1187 = vmatprep.subr.mxu0 0.0
      %1188 = vmatpush1.msra.mxu0 0.0
      %1189 = vmatprep.mubr.f32.mxu0 0.0
      %v1190 = vand.u32 %v374, 4294901760
      %1191 = vmatmul.mubr.f32.gmra.mrb[0].mxu0 %v1190
      %v1192 = vpop.f32.mrb[0].mxu0
      %v1193 = vadd.f32 %v1119, %v1192
      %v1194 = vpop.f32.mrb[0].mxu0
      %1195 = vdwg.mxu0
      %1196 = vmatprep.subr.mxu0 0.0
      %v1197 = vand.u32 %v366, 4294901760
      %1198 = vmatpush1.msra.mxu0 %v1197
      %1199 = vmatprep.subr.mxu0 0.0
      %1200 = vmatpush1.msra.mxu0 0.0
      %1201 = vmatprep.subr.mxu0 0.0
      %1202 = vmatpush1.msra.mxu0 0.0
      %1203 = vmatprep.subr.mxu0 0.0
      %1204 = vmatpush1.msra.mxu0 0.0
      %1205 = vmatprep.subr.mxu0 0.0
      %1206 = vmatpush1.msra.mxu0 0.0
      %1207 = vmatprep.subr.mxu0 0.0
      %1208 = vmatpush1.msra.mxu0 0.0
      %1209 = vmatprep.subr.mxu0 0.0
      %1210 = vmatpush1.msra.mxu0 0.0
      %1211 = vmatprep.subr.mxu0 0.0
      %1212 = vmatpush1.msra.mxu0 0.0
      %1213 = vmatprep.subr.mxu0 0.0
      %1214 = vmatpush1.msra.mxu0 0.0
      %1215 = vmatprep.subr.mxu0 0.0
      %1216 = vmatpush1.msra.mxu0 0.0
      %1217 = vmatprep.subr.mxu0 0.0
      %1218 = vmatpush1.msra.mxu0 0.0
      %1219 = vmatprep.subr.mxu0 0.0
      %1220 = vmatpush1.msra.mxu0 0.0
      %1221 = vmatprep.subr.mxu0 0.0
      %1222 = vmatpush1.msra.mxu0 0.0
      %1223 = vmatprep.subr.mxu0 0.0
      %1224 = vmatpush1.msra.mxu0 0.0
      %1225 = vmatprep.subr.mxu0 0.0
      %1226 = vmatpush1.msra.mxu0 0.0
      %1227 = vmatprep.subr.mxu0 0.0
      %1228 = vmatpush1.msra.mxu0 0.0
      %1229 = vmatprep.subr.mxu0 0.0
      %1230 = vmatpush1.msra.mxu0 0.0
      %1231 = vmatprep.subr.mxu0 0.0
      %1232 = vmatpush1.msra.mxu0 0.0
      %1233 = vmatprep.subr.mxu0 0.0
      %1234 = vmatpush1.msra.mxu0 0.0
      %1235 = vmatprep.subr.mxu0 0.0
      %1236 = vmatpush1.msra.mxu0 0.0
      %1237 = vmatprep.subr.mxu0 0.0
      %1238 = vmatpush1.msra.mxu0 0.0
      %1239 = vmatprep.subr.mxu0 0.0
      %1240 = vmatpush1.msra.mxu0 0.0
      %1241 = vmatprep.subr.mxu0 0.0
      %1242 = vmatpush1.msra.mxu0 0.0
      %1243 = vmatprep.subr.mxu0 0.0
      %1244 = vmatpush1.msra.mxu0 0.0
      %1245 = vmatprep.subr.mxu0 0.0
      %1246 = vmatpush1.msra.mxu0 0.0
      %1247 = vmatprep.subr.mxu0 0.0
      %1248 = vmatpush1.msra.mxu0 0.0
      %1249 = vmatprep.subr.mxu0 0.0
      %1250 = vmatpush1.msra.mxu0 0.0
      %1251 = vmatprep.subr.mxu0 0.0
      %1252 = vmatpush1.msra.mxu0 0.0
      %1253 = vmatprep.subr.mxu0 0.0
      %1254 = vmatpush1.msra.mxu0 0.0
      %1255 = vmatprep.subr.mxu0 0.0
      %1256 = vmatpush1.msra.mxu0 0.0
      %1257 = vmatprep.subr.mxu0 0.0
      %1258 = vmatpush1.msra.mxu0 0.0
      %1259 = vmatprep.subr.mxu0 0.0
      %1260 = vmatpush1.msra.mxu0 0.0
      %1261 = vmatprep.mubr.f32.mxu0 0.0
      %v1262 = vand.u32 %v374, 4294901760
      %1263 = vmatmul.mubr.f32.gmra.mrb[0].mxu0 %v1262
      %v1264 = vpop.f32.mrb[0].mxu0
      %v1265 = vadd.f32 %v1193, %v1264
      %v1266 = vpop.f32.mrb[0].mxu0
      %1267 = vdwg.mxu0
      %1268 = vmatprep.subr.mxu0 0.0
      %v1269 = vand.u32 %v371, 4294901760
      %1270 = vmatpush1.msra.mxu0 %v1269
      %1271 = vmatprep.subr.mxu0 0.0
      %1272 = vmatpush1.msra.mxu0 0.0
      %1273 = vmatprep.subr.mxu0 0.0
      %1274 = vmatpush1.msra.mxu0 0.0
      %1275 = vmatprep.subr.mxu0 0.0
      %1276 = vmatpush1.msra.mxu0 0.0
      %1277 = vmatprep.subr.mxu0 0.0
      %1278 = vmatpush1.msra.mxu0 0.0
      %1279 = vmatprep.subr.mxu0 0.0
      %1280 = vmatpush1.msra.mxu0 0.0
      %1281 = vmatprep.subr.mxu0 0.0
      %1282 = vmatpush1.msra.mxu0 0.0
      %1283 = vmatprep.subr.mxu0 0.0
      %1284 = vmatpush1.msra.mxu0 0.0
      %1285 = vmatprep.subr.mxu0 0.0
      %1286 = vmatpush1.msra.mxu0 0.0
      %1287 = vmatprep.subr.mxu0 0.0
      %1288 = vmatpush1.msra.mxu0 0.0
      %1289 = vmatprep.subr.mxu0 0.0
      %1290 = vmatpush1.msra.mxu0 0.0
      %1291 = vmatprep.subr.mxu0 0.0
      %1292 = vmatpush1.msra.mxu0 0.0
      %1293 = vmatprep.subr.mxu0 0.0
      %1294 = vmatpush1.msra.mxu0 0.0
      %1295 = vmatprep.subr.mxu0 0.0
      %1296 = vmatpush1.msra.mxu0 0.0
      %1297 = vmatprep.subr.mxu0 0.0
      %1298 = vmatpush1.msra.mxu0 0.0
      %1299 = vmatprep.subr.mxu0 0.0
      %1300 = vmatpush1.msra.mxu0 0.0
      %1301 = vmatprep.subr.mxu0 0.0
      %1302 = vmatpush1.msra.mxu0 0.0
      %1303 = vmatprep.subr.mxu0 0.0
      %1304 = vmatpush1.msra.mxu0 0.0
      %1305 = vmatprep.subr.mxu0 0.0
      %1306 = vmatpush1.msra.mxu0 0.0
      %1307 = vmatprep.subr.mxu0 0.0
      %1308 = vmatpush1.msra.mxu0 0.0
      %1309 = vmatprep.subr.mxu0 0.0
      %1310 = vmatpush1.msra.mxu0 0.0
      %1311 = vmatprep.subr.mxu0 0.0
      %1312 = vmatpush1.msra.mxu0 0.0
      %1313 = vmatprep.subr.mxu0 0.0
      %1314 = vmatpush1.msra.mxu0 0.0
      %1315 = vmatprep.subr.mxu0 0.0
      %1316 = vmatpush1.msra.mxu0 0.0
      %1317 = vmatprep.subr.mxu0 0.0
      %1318 = vmatpush1.msra.mxu0 0.0
      %1319 = vmatprep.subr.mxu0 0.0
      %1320 = vmatpush1.msra.mxu0 0.0
      %1321 = vmatprep.subr.mxu0 0.0
      %1322 = vmatpush1.msra.mxu0 0.0
      %1323 = vmatprep.subr.mxu0 0.0
      %1324 = vmatpush1.msra.mxu0 0.0
      %1325 = vmatprep.subr.mxu0 0.0
      %1326 = vmatpush1.msra.mxu0 0.0
      %1327 = vmatprep.subr.mxu0 0.0
      %1328 = vmatpush1.msra.mxu0 0.0
      %1329 = vmatprep.subr.mxu0 0.0
      %1330 = vmatpush1.msra.mxu0 0.0
      %1331 = vmatprep.subr.mxu0 0.0
      %1332 = vmatpush1.msra.mxu0 0.0
      %1333 = vmatprep.mubr.f32.mxu0 0.0
      %v1334 = vand.u32 %v374, 4294901760
      %v1335 = vsub.f32 %v374, %v1334
      %v1336 = vand.u32 %v1335, 4294901760
      %v1337 = vsub.f32 %v1335, %v1336
      %v1338 = vand.u32 %v1337, 4294901760
      %1339 = vmatmul.mubr.f32.gmra.mrb[0].mxu0 %v1338
      %v1340 = vpop.f32.mrb[0].mxu0
      %v1341 = vadd.f32 0.0, %v1340
      %v1342 = vpop.f32.mrb[0].mxu0
      %1343 = vdwg.mxu0
      %1344 = vmatprep.subr.mxu0 0.0
      %v1345 = vand.u32 %v371, 4294901760
      %v1346 = vsub.f32 %v371, %v1345
      %v1347 = vand.u32 %v1346, 4294901760
      %v1348 = vsub.f32 %v1346, %v1347
      %v1349 = vand.u32 %v1348, 4294901760
      %1350 = vmatpush1.msra.mxu0 %v1349
      %1351 = vmatprep.subr.mxu0 0.0
      %1352 = vmatpush1.msra.mxu0 0.0
      %1353 = vmatprep.subr.mxu0 0.0
      %1354 = vmatpush1.msra.mxu0 0.0
      %1355 = vmatprep.subr.mxu0 0.0
      %1356 = vmatpush1.msra.mxu0 0.0
      %1357 = vmatprep.subr.mxu0 0.0
      %1358 = vmatpush1.msra.mxu0 0.0
      %1359 = vmatprep.subr.mxu0 0.0
      %1360 = vmatpush1.msra.mxu0 0.0
      %1361 = vmatprep.subr.mxu0 0.0
      %1362 = vmatpush1.msra.mxu0 0.0
      %1363 = vmatprep.subr.mxu0 0.0
      %1364 = vmatpush1.msra.mxu0 0.0
      %1365 = vmatprep.subr.mxu0 0.0
      %1366 = vmatpush1.msra.mxu0 0.0
      %1367 = vmatprep.subr.mxu0 0.0
      %1368 = vmatpush1.msra.mxu0 0.0
      %1369 = vmatprep.subr.mxu0 0.0
      %1370 = vmatpush1.msra.mxu0 0.0
      %1371 = vmatprep.subr.mxu0 0.0
      %1372 = vmatpush1.msra.mxu0 0.0
      %1373 = vmatprep.subr.mxu0 0.0
      %1374 = vmatpush1.msra.mxu0 0.0
      %1375 = vmatprep.subr.mxu0 0.0
      %1376 = vmatpush1.msra.mxu0 0.0
      %1377 = vmatprep.subr.mxu0 0.0
      %1378 = vmatpush1.msra.mxu0 0.0
      %1379 = vmatprep.subr.mxu0 0.0
      %1380 = vmatpush1.msra.mxu0 0.0
      %1381 = vmatprep.subr.mxu0 0.0
      %1382 = vmatpush1.msra.mxu0 0.0
      %1383 = vmatprep.subr.mxu0 0.0
      %1384 = vmatpush1.msra.mxu0 0.0
      %1385 = vmatprep.subr.mxu0 0.0
      %1386 = vmatpush1.msra.mxu0 0.0
      %1387 = vmatprep.subr.mxu0 0.0
      %1388 = vmatpush1.msra.mxu0 0.0
      %1389 = vmatprep.subr.mxu0 0.0
      %1390 = vmatpush1.msra.mxu0 0.0
      %1391 = vmatprep.subr.mxu0 0.0
      %1392 = vmatpush1.msra.mxu0 0.0
      %1393 = vmatprep.subr.mxu0 0.0
      %1394 = vmatpush1.msra.mxu0 0.0
      %1395 = vmatprep.subr.mxu0 0.0
      %1396 = vmatpush1.msra.mxu0 0.0
      %1397 = vmatprep.subr.mxu0 0.0
      %1398 = vmatpush1.msra.mxu0 0.0
      %1399 = vmatprep.subr.mxu0 0.0
      %1400 = vmatpush1.msra.mxu0 0.0
      %1401 = vmatprep.subr.mxu0 0.0
      %1402 = vmatpush1.msra.mxu0 0.0
      %1403 = vmatprep.subr.mxu0 0.0
      %1404 = vmatpush1.msra.mxu0 0.0
      %1405 = vmatprep.subr.mxu0 0.0
      %1406 = vmatpush1.msra.mxu0 0.0
      %1407 = vmatprep.subr.mxu0 0.0
      %1408 = vmatpush1.msra.mxu0 0.0
      %1409 = vmatprep.subr.mxu0 0.0
      %1410 = vmatpush1.msra.mxu0 0.0
      %1411 = vmatprep.subr.mxu0 0.0
      %1412 = vmatpush1.msra.mxu0 0.0
      %1413 = vmatprep.mubr.f32.mxu0 0.0
      %v1414 = vand.u32 %v374, 4294901760
      %1415 = vmatmul.mubr.f32.gmra.mrb[0].mxu0 %v1414
      %v1416 = vpop.f32.mrb[0].mxu0
      %v1417 = vadd.f32 %v1341, %v1416
      %v1418 = vpop.f32.mrb[0].mxu0
      %1419 = vdwg.mxu0
      %1420 = vmatprep.subr.mxu0 0.0
      %v1421 = vand.u32 %v371, 4294901760
      %v1422 = vsub.f32 %v371, %v1421
      %1423 = vmatpush1.msra.mxu0 %v1422
      %1424 = vmatprep.subr.mxu0 0.0
      %1425 = vmatpush1.msra.mxu0 0.0
      %1426 = vmatprep.subr.mxu0 0.0
      %1427 = vmatpush1.msra.mxu0 0.0
      %1428 = vmatprep.subr.mxu0 0.0
      %1429 = vmatpush1.msra.mxu0 0.0
      %1430 = vmatprep.subr.mxu0 0.0
      %1431 = vmatpush1.msra.mxu0 0.0
      %1432 = vmatprep.subr.mxu0 0.0
      %1433 = vmatpush1.msra.mxu0 0.0
      %1434 = vmatprep.subr.mxu0 0.0
      %1435 = vmatpush1.msra.mxu0 0.0
      %1436 = vmatprep.subr.mxu0 0.0
      %1437 = vmatpush1.msra.mxu0 0.0
      %1438 = vmatprep.subr.mxu0 0.0
      %1439 = vmatpush1.msra.mxu0 0.0
      %1440 = vmatprep.subr.mxu0 0.0
      %1441 = vmatpush1.msra.mxu0 0.0
      %1442 = vmatprep.subr.mxu0 0.0
      %1443 = vmatpush1.msra.mxu0 0.0
      %1444 = vmatprep.subr.mxu0 0.0
      %1445 = vmatpush1.msra.mxu0 0.0
      %1446 = vmatprep.subr.mxu0 0.0
      %1447 = vmatpush1.msra.mxu0 0.0
      %1448 = vmatprep.subr.mxu0 0.0
      %1449 = vmatpush1.msra.mxu0 0.0
      %1450 = vmatprep.subr.mxu0 0.0
      %1451 = vmatpush1.msra.mxu0 0.0
      %1452 = vmatprep.subr.mxu0 0.0
      %1453 = vmatpush1.msra.mxu0 0.0
      %1454 = vmatprep.subr.mxu0 0.0
      %1455 = vmatpush1.msra.mxu0 0.0
      %1456 = vmatprep.subr.mxu0 0.0
      %1457 = vmatpush1.msra.mxu0 0.0
      %1458 = vmatprep.subr.mxu0 0.0
      %1459 = vmatpush1.msra.mxu0 0.0
      %1460 = vmatprep.subr.mxu0 0.0
      %1461 = vmatpush1.msra.mxu0 0.0
      %1462 = vmatprep.subr.mxu0 0.0
      %1463 = vmatpush1.msra.mxu0 0.0
      %1464 = vmatprep.subr.mxu0 0.0
      %1465 = vmatpush1.msra.mxu0 0.0
      %1466 = vmatprep.subr.mxu0 0.0
      %1467 = vmatpush1.msra.mxu0 0.0
      %1468 = vmatprep.subr.mxu0 0.0
      %1469 = vmatpush1.msra.mxu0 0.0
      %1470 = vmatprep.subr.mxu0 0.0
      %1471 = vmatpush1.msra.mxu0 0.0
      %1472 = vmatprep.subr.mxu0 0.0
      %1473 = vmatpush1.msra.mxu0 0.0
      %1474 = vmatprep.subr.mxu0 0.0
      %1475 = vmatpush1.msra.mxu0 0.0
      %1476 = vmatprep.subr.mxu0 0.0
      %1477 = vmatpush1.msra.mxu0 0.0
      %1478 = vmatprep.subr.mxu0 0.0
      %1479 = vmatpush1.msra.mxu0 0.0
      %1480 = vmatprep.subr.mxu0 0.0
      %1481 = vmatpush1.msra.mxu0 0.0
      %1482 = vmatprep.subr.mxu0 0.0
      %1483 = vmatpush1.msra.mxu0 0.0
      %1484 = vmatprep.subr.mxu0 0.0
      %1485 = vmatpush1.msra.mxu0 0.0
      %1486 = vmatprep.mubr.f32.mxu0 0.0
      %v1487 = vand.u32 %v374, 4294901760
      %v1488 = vsub.f32 %v374, %v1487
      %1489 = vmatmul.mubr.f32.gmra.mrb[0].mxu0 %v1488
      %v1490 = vpop.f32.mrb[0].mxu0
      %v1491 = vadd.f32 %v1417, %v1490
      %v1492 = vpop.f32.mrb[0].mxu0
      %1493 = vdwg.mxu0
      %1494 = vmatprep.subr.mxu0 0.0
      %v1495 = vand.u32 %v371, 4294901760
      %1496 = vmatpush1.msra.mxu0 %v1495
      %1497 = vmatprep.subr.mxu0 0.0
      %1498 = vmatpush1.msra.mxu0 0.0
      %1499 = vmatprep.subr.mxu0 0.0
      %1500 = vmatpush1.msra.mxu0 0.0
      %1501 = vmatprep.subr.mxu0 0.0
      %1502 = vmatpush1.msra.mxu0 0.0
      %1503 = vmatprep.subr.mxu0 0.0
      %1504 = vmatpush1.msra.mxu0 0.0
      %1505 = vmatprep.subr.mxu0 0.0
      %1506 = vmatpush1.msra.mxu0 0.0
      %1507 = vmatprep.subr.mxu0 0.0
      %1508 = vmatpush1.msra.mxu0 0.0
      %1509 = vmatprep.subr.mxu0 0.0
      %1510 = vmatpush1.msra.mxu0 0.0
      %1511 = vmatprep.subr.mxu0 0.0
      %1512 = vmatpush1.msra.mxu0 0.0
      %1513 = vmatprep.subr.mxu0 0.0
      %1514 = vmatpush1.msra.mxu0 0.0
      %1515 = vmatprep.subr.mxu0 0.0
      %1516 = vmatpush1.msra.mxu0 0.0
      %1517 = vmatprep.subr.mxu0 0.0
      %1518 = vmatpush1.msra.mxu0 0.0
      %1519 = vmatprep.subr.mxu0 0.0
      %1520 = vmatpush1.msra.mxu0 0.0
      %1521 = vmatprep.subr.mxu0 0.0
      %1522 = vmatpush1.msra.mxu0 0.0
      %1523 = vmatprep.subr.mxu0 0.0
      %1524 = vmatpush1.msra.mxu0 0.0
      %1525 = vmatprep.subr.mxu0 0.0
      %1526 = vmatpush1.msra.mxu0 0.0
      %1527 = vmatprep.subr.mxu0 0.0
      %1528 = vmatpush1.msra.mxu0 0.0
      %1529 = vmatprep.subr.mxu0 0.0
      %1530 = vmatpush1.msra.mxu0 0.0
      %1531 = vmatprep.subr.mxu0 0.0
      %1532 = vmatpush1.msra.mxu0 0.0
      %1533 = vmatprep.subr.mxu0 0.0
      %1534 = vmatpush1.msra.mxu0 0.0
      %1535 = vmatprep.subr.mxu0 0.0
      %1536 = vmatpush1.msra.mxu0 0.0
      %1537 = vmatprep.subr.mxu0 0.0
      %1538 = vmatpush1.msra.mxu0 0.0
      %1539 = vmatprep.subr.mxu0 0.0
      %1540 = vmatpush1.msra.mxu0 0.0
      %1541 = vmatprep.subr.mxu0 0.0
      %1542 = vmatpush1.msra.mxu0 0.0
      %1543 = vmatprep.subr.mxu0 0.0
      %1544 = vmatpush1.msra.mxu0 0.0
      %1545 = vmatprep.subr.mxu0 0.0
      %1546 = vmatpush1.msra.mxu0 0.0
      %1547 = vmatprep.subr.mxu0 0.0
      %1548 = vmatpush1.msra.mxu0 0.0
      %1549 = vmatprep.subr.mxu0 0.0
      %1550 = vmatpush1.msra.mxu0 0.0
      %1551 = vmatprep.subr.mxu0 0.0
      %1552 = vmatpush1.msra.mxu0 0.0
      %1553 = vmatprep.subr.mxu0 0.0
      %1554 = vmatpush1.msra.mxu0 0.0
      %1555 = vmatprep.subr.mxu0 0.0
      %1556 = vmatpush1.msra.mxu0 0.0
      %1557 = vmatprep.subr.mxu0 0.0
      %1558 = vmatpush1.msra.mxu0 0.0
      %1559 = vmatprep.mubr.f32.mxu0 0.0
      %v1560 = vand.u32 %v374, 4294901760
      %v1561 = vsub.f32 %v374, %v1560
      %v1562 = vand.u32 %v1561, 4294901760
      %1563 = vmatmul.mubr.f32.gmra.mrb[0].mxu0 %v1562
      %v1564 = vpop.f32.mrb[0].mxu0
      %v1565 = vadd.f32 %v1491, %v1564
      %v1566 = vpop.f32.mrb[0].mxu0
      %1567 = vdwg.mxu0
      %1568 = vmatprep.subr.mxu0 0.0
      %v1569 = vand.u32 %v371, 4294901760
      %v1570 = vsub.f32 %v371, %v1569
      %v1571 = vand.u32 %v1570, 4294901760
      %1572 = vmatpush1.msra.mxu0 %v1571
      %1573 = vmatprep.subr.mxu0 0.0
      %1574 = vmatpush1.msra.mxu0 0.0
      %1575 = vmatprep.subr.mxu0 0.0
      %1576 = vmatpush1.msra.mxu0 0.0
      %1577 = vmatprep.subr.mxu0 0.0
      %1578 = vmatpush1.msra.mxu0 0.0
      %1579 = vmatprep.subr.mxu0 0.0
      %1580 = vmatpush1.msra.mxu0 0.0
      %1581 = vmatprep.subr.mxu0 0.0
      %1582 = vmatpush1.msra.mxu0 0.0
      %1583 = vmatprep.subr.mxu0 0.0
      %1584 = vmatpush1.msra.mxu0 0.0
      %1585 = vmatprep.subr.mxu0 0.0
      %1586 = vmatpush1.msra.mxu0 0.0
      %1587 = vmatprep.subr.mxu0 0.0
      %1588 = vmatpush1.msra.mxu0 0.0
      %1589 = vmatprep.subr.mxu0 0.0
      %1590 = vmatpush1.msra.mxu0 0.0
      %1591 = vmatprep.subr.mxu0 0.0
      %1592 = vmatpush1.msra.mxu0 0.0
      %1593 = vmatprep.subr.mxu0 0.0
      %1594 = vmatpush1.msra.mxu0 0.0
      %1595 = vmatprep.subr.mxu0 0.0
      %1596 = vmatpush1.msra.mxu0 0.0
      %1597 = vmatprep.subr.mxu0 0.0
      %1598 = vmatpush1.msra.mxu0 0.0
      %1599 = vmatprep.subr.mxu0 0.0
      %1600 = vmatpush1.msra.mxu0 0.0
      %1601 = vmatprep.subr.mxu0 0.0
      %1602 = vmatpush1.msra.mxu0 0.0
      %1603 = vmatprep.subr.mxu0 0.0
      %1604 = vmatpush1.msra.mxu0 0.0
      %1605 = vmatprep.subr.mxu0 0.0
      %1606 = vmatpush1.msra.mxu0 0.0
      %1607 = vmatprep.subr.mxu0 0.0
      %1608 = vmatpush1.msra.mxu0 0.0
      %1609 = vmatprep.subr.mxu0 0.0
      %1610 = vmatpush1.msra.mxu0 0.0
      %1611 = vmatprep.subr.mxu0 0.0
      %1612 = vmatpush1.msra.mxu0 0.0
      %1613 = vmatprep.subr.mxu0 0.0
      %1614 = vmatpush1.msra.mxu0 0.0
      %1615 = vmatprep.subr.mxu0 0.0
      %1616 = vmatpush1.msra.mxu0 0.0
      %1617 = vmatprep.subr.mxu0 0.0
      %1618 = vmatpush1.msra.mxu0 0.0
      %1619 = vmatprep.subr.mxu0 0.0
      %1620 = vmatpush1.msra.mxu0 0.0
      %1621 = vmatprep.subr.mxu0 0.0
      %1622 = vmatpush1.msra.mxu0 0.0
      %1623 = vmatprep.subr.mxu0 0.0
      %1624 = vmatpush1.msra.mxu0 0.0
      %1625 = vmatprep.subr.mxu0 0.0
      %1626 = vmatpush1.msra.mxu0 0.0
      %1627 = vmatprep.subr.mxu0 0.0
      %1628 = vmatpush1.msra.mxu0 0.0
      %1629 = vmatprep.subr.mxu0 0.0
      %1630 = vmatpush1.msra.mxu0 0.0
      %1631 = vmatprep.subr.mxu0 0.0
      %1632 = vmatpush1.msra.mxu0 0.0
      %1633 = vmatprep.subr.mxu0 0.0
      %1634 = vmatpush1.msra.mxu0 0.0
      %1635 = vmatprep.mubr.f32.mxu0 0.0
      %v1636 = vand.u32 %v374, 4294901760
      %1637 = vmatmul.mubr.f32.gmra.mrb[0].mxu0 %v1636
      %v1638 = vpop.f32.mrb[0].mxu0
      %v1639 = vadd.f32 %v1565, %v1638
      %v1640 = vpop.f32.mrb[0].mxu0
      %1641 = vdwg.mxu0
      %1642 = vmatprep.subr.mxu0 0.0
      %v1643 = vand.u32 %v371, 4294901760
      %1644 = vmatpush1.msra.mxu0 %v1643
      %1645 = vmatprep.subr.mxu0 0.0
      %1646 = vmatpush1.msra.mxu0 0.0
      %1647 = vmatprep.subr.mxu0 0.0
      %1648 = vmatpush1.msra.mxu0 0.0
      %1649 = vmatprep.subr.mxu0 0.0
      %1650 = vmatpush1.msra.mxu0 0.0
      %1651 = vmatprep.subr.mxu0 0.0
      %1652 = vmatpush1.msra.mxu0 0.0
      %1653 = vmatprep.subr.mxu0 0.0
      %1654 = vmatpush1.msra.mxu0 0.0
      %1655 = vmatprep.subr.mxu0 0.0
      %1656 = vmatpush1.msra.mxu0 0.0
      %1657 = vmatprep.subr.mxu0 0.0
      %1658 = vmatpush1.msra.mxu0 0.0
      %1659 = vmatprep.subr.mxu0 0.0
      %1660 = vmatpush1.msra.mxu0 0.0
      %1661 = vmatprep.subr.mxu0 0.0
      %1662 = vmatpush1.msra.mxu0 0.0
      %1663 = vmatprep.subr.mxu0 0.0
      %1664 = vmatpush1.msra.mxu0 0.0
      %1665 = vmatprep.subr.mxu0 0.0
      %1666 = vmatpush1.msra.mxu0 0.0
      %1667 = vmatprep.subr.mxu0 0.0
      %1668 = vmatpush1.msra.mxu0 0.0
      %1669 = vmatprep.subr.mxu0 0.0
      %1670 = vmatpush1.msra.mxu0 0.0
      %1671 = vmatprep.subr.mxu0 0.0
      %1672 = vmatpush1.msra.mxu0 0.0
      %1673 = vmatprep.subr.mxu0 0.0
      %1674 = vmatpush1.msra.mxu0 0.0
      %1675 = vmatprep.subr.mxu0 0.0
      %1676 = vmatpush1.msra.mxu0 0.0
      %1677 = vmatprep.subr.mxu0 0.0
      %1678 = vmatpush1.msra.mxu0 0.0
      %1679 = vmatprep.subr.mxu0 0.0
      %1680 = vmatpush1.msra.mxu0 0.0
      %1681 = vmatprep.subr.mxu0 0.0
      %1682 = vmatpush1.msra.mxu0 0.0
      %1683 = vmatprep.subr.mxu0 0.0
      %1684 = vmatpush1.msra.mxu0 0.0
      %1685 = vmatprep.subr.mxu0 0.0
      %1686 = vmatpush1.msra.mxu0 0.0
      %1687 = vmatprep.subr.mxu0 0.0
      %1688 = vmatpush1.msra.mxu0 0.0
      %1689 = vmatprep.subr.mxu0 0.0
      %1690 = vmatpush1.msra.mxu0 0.0
      %1691 = vmatprep.subr.mxu0 0.0
      %1692 = vmatpush1.msra.mxu0 0.0
      %1693 = vmatprep.subr.mxu0 0.0
      %1694 = vmatpush1.msra.mxu0 0.0
      %1695 = vmatprep.subr.mxu0 0.0
      %1696 = vmatpush1.msra.mxu0 0.0
      %1697 = vmatprep.subr.mxu0 0.0
      %1698 = vmatpush1.msra.mxu0 0.0
      %1699 = vmatprep.subr.mxu0 0.0
      %1700 = vmatpush1.msra.mxu0 0.0
      %1701 = vmatprep.subr.mxu0 0.0
      %1702 = vmatpush1.msra.mxu0 0.0
      %1703 = vmatprep.subr.mxu0 0.0
      %1704 = vmatpush1.msra.mxu0 0.0
      %1705 = vmatprep.subr.mxu0 0.0
      %1706 = vmatpush1.msra.mxu0 0.0
      %1707 = vmatprep.mubr.f32.mxu0 0.0
      %v1708 = vand.u32 %v374, 4294901760
      %1709 = vmatmul.mubr.f32.gmra.mrb[0].mxu0 %v1708
      %v1710 = vpop.f32.mrb[0].mxu0
      %v1711 = vadd.f32 %v1639, %v1710
      %v1712 = vpop.f32.mrb[0].mxu0
      %1713 = vdwg.mxu0
      %v1714 = vmul.f32 %v371, %v341
      %1715 = vmatprep.subr.mxu0 0.0
      %v1716 = vand.u32 %v1714, 4294901760
      %1717 = vmatpush1.msra.mxu0 %v1716
      %1718 = vmatprep.subr.mxu0 0.0
      %1719 = vmatpush1.msra.mxu0 0.0
      %1720 = vmatprep.subr.mxu0 0.0
      %1721 = vmatpush1.msra.mxu0 0.0
      %1722 = vmatprep.subr.mxu0 0.0
      %1723 = vmatpush1.msra.mxu0 0.0
      %1724 = vmatprep.subr.mxu0 0.0
      %1725 = vmatpush1.msra.mxu0 0.0
      %1726 = vmatprep.subr.mxu0 0.0
      %1727 = vmatpush1.msra.mxu0 0.0
      %1728 = vmatprep.subr.mxu0 0.0
      %1729 = vmatpush1.msra.mxu0 0.0
      %1730 = vmatprep.subr.mxu0 0.0
      %1731 = vmatpush1.msra.mxu0 0.0
      %1732 = vmatprep.subr.mxu0 0.0
      %1733 = vmatpush1.msra.mxu0 0.0
      %1734 = vmatprep.subr.mxu0 0.0
      %1735 = vmatpush1.msra.mxu0 0.0
      %1736 = vmatprep.subr.mxu0 0.0
      %1737 = vmatpush1.msra.mxu0 0.0
      %1738 = vmatprep.subr.mxu0 0.0
      %1739 = vmatpush1.msra.mxu0 0.0
      %1740 = vmatprep.subr.mxu0 0.0
      %1741 = vmatpush1.msra.mxu0 0.0
      %1742 = vmatprep.subr.mxu0 0.0
      %1743 = vmatpush1.msra.mxu0 0.0
      %1744 = vmatprep.subr.mxu0 0.0
      %1745 = vmatpush1.msra.mxu0 0.0
      %1746 = vmatprep.subr.mxu0 0.0
      %1747 = vmatpush1.msra.mxu0 0.0
      %1748 = vmatprep.subr.mxu0 0.0
      %1749 = vmatpush1.msra.mxu0 0.0
      %1750 = vmatprep.subr.mxu0 0.0
      %1751 = vmatpush1.msra.mxu0 0.0
      %1752 = vmatprep.subr.mxu0 0.0
      %1753 = vmatpush1.msra.mxu0 0.0
      %1754 = vmatprep.subr.mxu0 0.0
      %1755 = vmatpush1.msra.mxu0 0.0
      %1756 = vmatprep.subr.mxu0 0.0
      %1757 = vmatpush1.msra.mxu0 0.0
      %1758 = vmatprep.subr.mxu0 0.0
      %1759 = vmatpush1.msra.mxu0 0.0
      %1760 = vmatprep.subr.mxu0 0.0
      %1761 = vmatpush1.msra.mxu0 0.0
      %1762 = vmatprep.subr.mxu0 0.0
      %1763 = vmatpush1.msra.mxu0 0.0
      %1764 = vmatprep.subr.mxu0 0.0
      %1765 = vmatpush1.msra.mxu0 0.0
      %1766 = vmatprep.subr.mxu0 0.0
      %1767 = vmatpush1.msra.mxu0 0.0
      %1768 = vmatprep.subr.mxu0 0.0
      %1769 = vmatpush1.msra.mxu0 0.0
      %1770 = vmatprep.subr.mxu0 0.0
      %1771 = vmatpush1.msra.mxu0 0.0
      %1772 = vmatprep.subr.mxu0 0.0
      %1773 = vmatpush1.msra.mxu0 0.0
      %1774 = vmatprep.subr.mxu0 0.0
      %1775 = vmatpush1.msra.mxu0 0.0
      %1776 = vmatprep.subr.mxu0 0.0
      %1777 = vmatpush1.msra.mxu0 0.0
      %1778 = vmatprep.subr.mxu0 0.0
      %1779 = vmatpush1.msra.mxu0 0.0
      %1780 = vmatprep.mubr.f32.mxu0 0.0
      %v1781 = vand.u32 %v374, 4294901760
      %v1782 = vsub.f32 %v374, %v1781
      %v1783 = vand.u32 %v1782, 4294901760
      %v1784 = vsub.f32 %v1782, %v1783
      %v1785 = vand.u32 %v1784, 4294901760
      %1786 = vmatmul.mubr.f32.gmra.mrb[0].mxu0 %v1785
      %v1787 = vpop.f32.mrb[0].mxu0
      %v1788 = vadd.f32 0.0, %v1787
      %v1789 = vpop.f32.mrb[0].mxu0
      %1790 = vdwg.mxu0
      %1791 = vmatprep.subr.mxu0 0.0
      %v1792 = vand.u32 %v1714, 4294901760
      %v1793 = vsub.f32 %v1714, %v1792
      %v1794 = vand.u32 %v1793, 4294901760
      %v1795 = vsub.f32 %v1793, %v1794
      %v1796 = vand.u32 %v1795, 4294901760
      %1797 = vmatpush1.msra.mxu0 %v1796
      %1798 = vmatprep.subr.mxu0 0.0
      %1799 = vmatpush1.msra.mxu0 0.0
      %1800 = vmatprep.subr.mxu0 0.0
      %1801 = vmatpush1.msra.mxu0 0.0
      %1802 = vmatprep.subr.mxu0 0.0
      %1803 = vmatpush1.msra.mxu0 0.0
      %1804 = vmatprep.subr.mxu0 0.0
      %1805 = vmatpush1.msra.mxu0 0.0
      %1806 = vmatprep.subr.mxu0 0.0
      %1807 = vmatpush1.msra.mxu0 0.0
      %1808 = vmatprep.subr.mxu0 0.0
      %1809 = vmatpush1.msra.mxu0 0.0
      %1810 = vmatprep.subr.mxu0 0.0
      %1811 = vmatpush1.msra.mxu0 0.0
      %1812 = vmatprep.subr.mxu0 0.0
      %1813 = vmatpush1.msra.mxu0 0.0
      %1814 = vmatprep.subr.mxu0 0.0
      %1815 = vmatpush1.msra.mxu0 0.0
      %1816 = vmatprep.subr.mxu0 0.0
      %1817 = vmatpush1.msra.mxu0 0.0
      %1818 = vmatprep.subr.mxu0 0.0
      %1819 = vmatpush1.msra.mxu0 0.0
      %1820 = vmatprep.subr.mxu0 0.0
      %1821 = vmatpush1.msra.mxu0 0.0
      %1822 = vmatprep.subr.mxu0 0.0
      %1823 = vmatpush1.msra.mxu0 0.0
      %1824 = vmatprep.subr.mxu0 0.0
      %1825 = vmatpush1.msra.mxu0 0.0
      %1826 = vmatprep.subr.mxu0 0.0
      %1827 = vmatpush1.msra.mxu0 0.0
      %1828 = vmatprep.subr.mxu0 0.0
      %1829 = vmatpush1.msra.mxu0 0.0
      %1830 = vmatprep.subr.mxu0 0.0
      %1831 = vmatpush1.msra.mxu0 0.0
      %1832 = vmatprep.subr.mxu0 0.0
      %1833 = vmatpush1.msra.mxu0 0.0
      %1834 = vmatprep.subr.mxu0 0.0
      %1835 = vmatpush1.msra.mxu0 0.0
      %1836 = vmatprep.subr.mxu0 0.0
      %1837 = vmatpush1.msra.mxu0 0.0
      %1838 = vmatprep.subr.mxu0 0.0
      %1839 = vmatpush1.msra.mxu0 0.0
      %1840 = vmatprep.subr.mxu0 0.0
      %1841 = vmatpush1.msra.mxu0 0.0
      %1842 = vmatprep.subr.mxu0 0.0
      %1843 = vmatpush1.msra.mxu0 0.0
      %1844 = vmatprep.subr.mxu0 0.0
      %1845 = vmatpush1.msra.mxu0 0.0
      %1846 = vmatprep.subr.mxu0 0.0
      %1847 = vmatpush1.msra.mxu0 0.0
      %1848 = vmatprep.subr.mxu0 0.0
      %1849 = vmatpush1.msra.mxu0 0.0
      %1850 = vmatprep.subr.mxu0 0.0
      %1851 = vmatpush1.msra.mxu0 0.0
      %1852 = vmatprep.subr.mxu0 0.0
      %1853 = vmatpush1.msra.mxu0 0.0
      %1854 = vmatprep.subr.mxu0 0.0
      %1855 = vmatpush1.msra.mxu0 0.0
      %1856 = vmatprep.subr.mxu0 0.0
      %1857 = vmatpush1.msra.mxu0 0.0
      %1858 = vmatprep.subr.mxu0 0.0
      %1859 = vmatpush1.msra.mxu0 0.0
      %1860 = vmatprep.mubr.f32.mxu0 0.0
      %v1861 = vand.u32 %v374, 4294901760
      %1862 = vmatmul.mubr.f32.gmra.mrb[0].mxu0 %v1861
      %v1863 = vpop.f32.mrb[0].mxu0
      %v1864 = vadd.f32 %v1788, %v1863
      %v1865 = vpop.f32.mrb[0].mxu0
      %1866 = vdwg.mxu0
      %1867 = vmatprep.subr.mxu0 0.0
      %v1868 = vand.u32 %v1714, 4294901760
      %v1869 = vsub.f32 %v1714, %v1868
      %1870 = vmatpush1.msra.mxu0 %v1869
      %1871 = vmatprep.subr.mxu0 0.0
      %1872 = vmatpush1.msra.mxu0 0.0
      %1873 = vmatprep.subr.mxu0 0.0
      %1874 = vmatpush1.msra.mxu0 0.0
      %1875 = vmatprep.subr.mxu0 0.0
      %1876 = vmatpush1.msra.mxu0 0.0
      %1877 = vmatprep.subr.mxu0 0.0
      %1878 = vmatpush1.msra.mxu0 0.0
      %1879 = vmatprep.subr.mxu0 0.0
      %1880 = vmatpush1.msra.mxu0 0.0
      %1881 = vmatprep.subr.mxu0 0.0
      %1882 = vmatpush1.msra.mxu0 0.0
      %1883 = vmatprep.subr.mxu0 0.0
      %1884 = vmatpush1.msra.mxu0 0.0
      %1885 = vmatprep.subr.mxu0 0.0
      %1886 = vmatpush1.msra.mxu0 0.0
      %1887 = vmatprep.subr.mxu0 0.0
      %1888 = vmatpush1.msra.mxu0 0.0
      %1889 = vmatprep.subr.mxu0 0.0
      %1890 = vmatpush1.msra.mxu0 0.0
      %1891 = vmatprep.subr.mxu0 0.0
      %1892 = vmatpush1.msra.mxu0 0.0
      %1893 = vmatprep.subr.mxu0 0.0
      %1894 = vmatpush1.msra.mxu0 0.0
      %1895 = vmatprep.subr.mxu0 0.0
      %1896 = vmatpush1.msra.mxu0 0.0
      %1897 = vmatprep.subr.mxu0 0.0
      %1898 = vmatpush1.msra.mxu0 0.0
      %1899 = vmatprep.subr.mxu0 0.0
      %1900 = vmatpush1.msra.mxu0 0.0
      %1901 = vmatprep.subr.mxu0 0.0
      %1902 = vmatpush1.msra.mxu0 0.0
      %1903 = vmatprep.subr.mxu0 0.0
      %1904 = vmatpush1.msra.mxu0 0.0
      %1905 = vmatprep.subr.mxu0 0.0
      %1906 = vmatpush1.msra.mxu0 0.0
      %1907 = vmatprep.subr.mxu0 0.0
      %1908 = vmatpush1.msra.mxu0 0.0
      %1909 = vmatprep.subr.mxu0 0.0
      %1910 = vmatpush1.msra.mxu0 0.0
      %1911 = vmatprep.subr.mxu0 0.0
      %1912 = vmatpush1.msra.mxu0 0.0
      %1913 = vmatprep.subr.mxu0 0.0
      %1914 = vmatpush1.msra.mxu0 0.0
      %1915 = vmatprep.subr.mxu0 0.0
      %1916 = vmatpush1.msra.mxu0 0.0
      %1917 = vmatprep.subr.mxu0 0.0
      %1918 = vmatpush1.msra.mxu0 0.0
      %1919 = vmatprep.subr.mxu0 0.0
      %1920 = vmatpush1.msra.mxu0 0.0
      %1921 = vmatprep.subr.mxu0 0.0
      %1922 = vmatpush1.msra.mxu0 0.0
      %1923 = vmatprep.subr.mxu0 0.0
      %1924 = vmatpush1.msra.mxu0 0.0
      %1925 = vmatprep.subr.mxu0 0.0
      %1926 = vmatpush1.msra.mxu0 0.0
      %1927 = vmatprep.subr.mxu0 0.0
      %1928 = vmatpush1.msra.mxu0 0.0
      %1929 = vmatprep.subr.mxu0 0.0
      %1930 = vmatpush1.msra.mxu0 0.0
      %1931 = vmatprep.subr.mxu0 0.0
      %1932 = vmatpush1.msra.mxu0 0.0
      %1933 = vmatprep.mubr.f32.mxu0 0.0
      %v1934 = vand.u32 %v374, 4294901760
      %v1935 = vsub.f32 %v374, %v1934
      %1936 = vmatmul.mubr.f32.gmra.mrb[0].mxu0 %v1935
      %v1937 = vpop.f32.mrb[0].mxu0
      %v1938 = vadd.f32 %v1864, %v1937
      %v1939 = vpop.f32.mrb[0].mxu0
      %1940 = vdwg.mxu0
      %1941 = vmatprep.subr.mxu0 0.0
      %v1942 = vand.u32 %v1714, 4294901760
      %1943 = vmatpush1.msra.mxu0 %v1942
      %1944 = vmatprep.subr.mxu0 0.0
      %1945 = vmatpush1.msra.mxu0 0.0
      %1946 = vmatprep.subr.mxu0 0.0
      %1947 = vmatpush1.msra.mxu0 0.0
      %1948 = vmatprep.subr.mxu0 0.0
      %1949 = vmatpush1.msra.mxu0 0.0
      %1950 = vmatprep.subr.mxu0 0.0
      %1951 = vmatpush1.msra.mxu0 0.0
      %1952 = vmatprep.subr.mxu0 0.0
      %1953 = vmatpush1.msra.mxu0 0.0
      %1954 = vmatprep.subr.mxu0 0.0
      %1955 = vmatpush1.msra.mxu0 0.0
      %1956 = vmatprep.subr.mxu0 0.0
      %1957 = vmatpush1.msra.mxu0 0.0
      %1958 = vmatprep.subr.mxu0 0.0
      %1959 = vmatpush1.msra.mxu0 0.0
      %1960 = vmatprep.subr.mxu0 0.0
      %1961 = vmatpush1.msra.mxu0 0.0
      %1962 = vmatprep.subr.mxu0 0.0
      %1963 = vmatpush1.msra.mxu0 0.0
      %1964 = vmatprep.subr.mxu0 0.0
      %1965 = vmatpush1.msra.mxu0 0.0
      %1966 = vmatprep.subr.mxu0 0.0
      %1967 = vmatpush1.msra.mxu0 0.0
      %1968 = vmatprep.subr.mxu0 0.0
      %1969 = vmatpush1.msra.mxu0 0.0
      %1970 = vmatprep.subr.mxu0 0.0
      %1971 = vmatpush1.msra.mxu0 0.0
      %1972 = vmatprep.subr.mxu0 0.0
      %1973 = vmatpush1.msra.mxu0 0.0
      %1974 = vmatprep.subr.mxu0 0.0
      %1975 = vmatpush1.msra.mxu0 0.0
      %1976 = vmatprep.subr.mxu0 0.0
      %1977 = vmatpush1.msra.mxu0 0.0
      %1978 = vmatprep.subr.mxu0 0.0
      %1979 = vmatpush1.msra.mxu0 0.0
      %1980 = vmatprep.subr.mxu0 0.0
      %1981 = vmatpush1.msra.mxu0 0.0
      %1982 = vmatprep.subr.mxu0 0.0
      %1983 = vmatpush1.msra.mxu0 0.0
      %1984 = vmatprep.subr.mxu0 0.0
      %1985 = vmatpush1.msra.mxu0 0.0
      %1986 = vmatprep.subr.mxu0 0.0
      %1987 = vmatpush1.msra.mxu0 0.0
      %1988 = vmatprep.subr.mxu0 0.0
      %1989 = vmatpush1.msra.mxu0 0.0
      %1990 = vmatprep.subr.mxu0 0.0
      %1991 = vmatpush1.msra.mxu0 0.0
      %1992 = vmatprep.subr.mxu0 0.0
      %1993 = vmatpush1.msra.mxu0 0.0
      %1994 = vmatprep.subr.mxu0 0.0
      %1995 = vmatpush1.msra.mxu0 0.0
      %1996 = vmatprep.subr.mxu0 0.0
      %1997 = vmatpush1.msra.mxu0 0.0
      %1998 = vmatprep.subr.mxu0 0.0
      %1999 = vmatpush1.msra.mxu0 0.0
      %2000 = vmatprep.subr.mxu0 0.0
      %2001 = vmatpush1.msra.mxu0 0.0
      %2002 = vmatprep.subr.mxu0 0.0
      %2003 = vmatpush1.msra.mxu0 0.0
      %2004 = vmatprep.subr.mxu0 0.0
      %2005 = vmatpush1.msra.mxu0 0.0
      %2006 = vmatprep.mubr.f32.mxu0 0.0
      %v2007 = vand.u32 %v374, 4294901760
      %v2008 = vsub.f32 %v374, %v2007
      %v2009 = vand.u32 %v2008, 4294901760
      %2010 = vmatmul.mubr.f32.gmra.mrb[0].mxu0 %v2009
      %v2011 = vpop.f32.mrb[0].mxu0
      %v2012 = vadd.f32 %v1938, %v2011
      %v2013 = vpop.f32.mrb[0].mxu0
      %2014 = vdwg.mxu0
      %2015 = vmatprep.subr.mxu0 0.0
      %v2016 = vand.u32 %v1714, 4294901760
      %v2017 = vsub.f32 %v1714, %v2016
      %v2018 = vand.u32 %v2017, 4294901760
      %2019 = vmatpush1.msra.mxu0 %v2018
      %2020 = vmatprep.subr.mxu0 0.0
      %2021 = vmatpush1.msra.mxu0 0.0
      %2022 = vmatprep.subr.mxu0 0.0
      %2023 = vmatpush1.msra.mxu0 0.0
      %2024 = vmatprep.subr.mxu0 0.0
      %2025 = vmatpush1.msra.mxu0 0.0
      %2026 = vmatprep.subr.mxu0 0.0
      %2027 = vmatpush1.msra.mxu0 0.0
      %2028 = vmatprep.subr.mxu0 0.0
      %2029 = vmatpush1.msra.mxu0 0.0
      %2030 = vmatprep.subr.mxu0 0.0
      %2031 = vmatpush1.msra.mxu0 0.0
      %2032 = vmatprep.subr.mxu0 0.0
      %2033 = vmatpush1.msra.mxu0 0.0
      %2034 = vmatprep.subr.mxu0 0.0
      %2035 = vmatpush1.msra.mxu0 0.0
      %2036 = vmatprep.subr.mxu0 0.0
      %2037 = vmatpush1.msra.mxu0 0.0
      %2038 = vmatprep.subr.mxu0 0.0
      %2039 = vmatpush1.msra.mxu0 0.0
      %2040 = vmatprep.subr.mxu0 0.0
      %2041 = vmatpush1.msra.mxu0 0.0
      %2042 = vmatprep.subr.mxu0 0.0
      %2043 = vmatpush1.msra.mxu0 0.0
      %2044 = vmatprep.subr.mxu0 0.0
      %2045 = vmatpush1.msra.mxu0 0.0
      %2046 = vmatprep.subr.mxu0 0.0
      %2047 = vmatpush1.msra.mxu0 0.0
      %2048 = vmatprep.subr.mxu0 0.0
      %2049 = vmatpush1.msra.mxu0 0.0
      %2050 = vmatprep.subr.mxu0 0.0
      %2051 = vmatpush1.msra.mxu0 0.0
      %2052 = vmatprep.subr.mxu0 0.0
      %2053 = vmatpush1.msra.mxu0 0.0
      %2054 = vmatprep.subr.mxu0 0.0
      %2055 = vmatpush1.msra.mxu0 0.0
      %2056 = vmatprep.subr.mxu0 0.0
      %2057 = vmatpush1.msra.mxu0 0.0
      %2058 = vmatprep.subr.mxu0 0.0
      %2059 = vmatpush1.msra.mxu0 0.0
      %2060 = vmatprep.subr.mxu0 0.0
      %2061 = vmatpush1.msra.mxu0 0.0
      %2062 = vmatprep.subr.mxu0 0.0
      %2063 = vmatpush1.msra.mxu0 0.0
      %2064 = vmatprep.subr.mxu0 0.0
      %2065 = vmatpush1.msra.mxu0 0.0
      %2066 = vmatprep.subr.mxu0 0.0
      %2067 = vmatpush1.msra.mxu0 0.0
      %2068 = vmatprep.subr.mxu0 0.0
      %2069 = vmatpush1.msra.mxu0 0.0
      %2070 = vmatprep.subr.mxu0 0.0
      %2071 = vmatpush1.msra.mxu0 0.0
      %2072 = vmatprep.subr.mxu0 0.0
      %2073 = vmatpush1.msra.mxu0 0.0
      %2074 = vmatprep.subr.mxu0 0.0
      %2075 = vmatpush1.msra.mxu0 0.0
      %2076 = vmatprep.subr.mxu0 0.0
      %2077 = vmatpush1.msra.mxu0 0.0
      %2078 = vmatprep.subr.mxu0 0.0
      %2079 = vmatpush1.msra.mxu0 0.0
      %2080 = vmatprep.subr.mxu0 0.0
      %2081 = vmatpush1.msra.mxu0 0.0
      %2082 = vmatprep.mubr.f32.mxu0 0.0
      %v2083 = vand.u32 %v374, 4294901760
      %2084 = vmatmul.mubr.f32.gmra.mrb[0].mxu0 %v2083
      %v2085 = vpop.f32.mrb[0].mxu0
      %v2086 = vadd.f32 %v2012, %v2085
      %v2087 = vpop.f32.mrb[0].mxu0
      %2088 = vdwg.mxu0
      %2089 = vmatprep.subr.mxu0 0.0
      %v2090 = vand.u32 %v1714, 4294901760
      %2091 = vmatpush1.msra.mxu0 %v2090
      %2092 = vmatprep.subr.mxu0 0.0
      %2093 = vmatpush1.msra.mxu0 0.0
      %2094 = vmatprep.subr.mxu0 0.0
      %2095 = vmatpush1.msra.mxu0 0.0
      %2096 = vmatprep.subr.mxu0 0.0
      %2097 = vmatpush1.msra.mxu0 0.0
      %2098 = vmatprep.subr.mxu0 0.0
      %2099 = vmatpush1.msra.mxu0 0.0
      %2100 = vmatprep.subr.mxu0 0.0
      %2101 = vmatpush1.msra.mxu0 0.0
      %2102 = vmatprep.subr.mxu0 0.0
      %2103 = vmatpush1.msra.mxu0 0.0
      %2104 = vmatprep.subr.mxu0 0.0
      %2105 = vmatpush1.msra.mxu0 0.0
      %2106 = vmatprep.subr.mxu0 0.0
      %2107 = vmatpush1.msra.mxu0 0.0
      %2108 = vmatprep.subr.mxu0 0.0
      %2109 = vmatpush1.msra.mxu0 0.0
      %2110 = vmatprep.subr.mxu0 0.0
      %2111 = vmatpush1.msra.mxu0 0.0
      %2112 = vmatprep.subr.mxu0 0.0
      %2113 = vmatpush1.msra.mxu0 0.0
      %2114 = vmatprep.subr.mxu0 0.0
      %2115 = vmatpush1.msra.mxu0 0.0
      %2116 = vmatprep.subr.mxu0 0.0
      %2117 = vmatpush1.msra.mxu0 0.0
      %2118 = vmatprep.subr.mxu0 0.0
      %2119 = vmatpush1.msra.mxu0 0.0
      %2120 = vmatprep.subr.mxu0 0.0
      %2121 = vmatpush1.msra.mxu0 0.0
      %2122 = vmatprep.subr.mxu0 0.0
      %2123 = vmatpush1.msra.mxu0 0.0
      %2124 = vmatprep.subr.mxu0 0.0
      %2125 = vmatpush1.msra.mxu0 0.0
      %2126 = vmatprep.subr.mxu0 0.0
      %2127 = vmatpush1.msra.mxu0 0.0
      %2128 = vmatprep.subr.mxu0 0.0
      %2129 = vmatpush1.msra.mxu0 0.0
      %2130 = vmatprep.subr.mxu0 0.0
      %2131 = vmatpush1.msra.mxu0 0.0
      %2132 = vmatprep.subr.mxu0 0.0
      %2133 = vmatpush1.msra.mxu0 0.0
      %2134 = vmatprep.subr.mxu0 0.0
      %2135 = vmatpush1.msra.mxu0 0.0
      %2136 = vmatprep.subr.mxu0 0.0
      %2137 = vmatpush1.msra.mxu0 0.0
      %2138 = vmatprep.subr.mxu0 0.0
      %2139 = vmatpush1.msra.mxu0 0.0
      %2140 = vmatprep.subr.mxu0 0.0
      %2141 = vmatpush1.msra.mxu0 0.0
      %2142 = vmatprep.subr.mxu0 0.0
      %2143 = vmatpush1.msra.mxu0 0.0
      %2144 = vmatprep.subr.mxu0 0.0
      %2145 = vmatpush1.msra.mxu0 0.0
      %2146 = vmatprep.subr.mxu0 0.0
      %2147 = vmatpush1.msra.mxu0 0.0
      %2148 = vmatprep.subr.mxu0 0.0
      %2149 = vmatpush1.msra.mxu0 0.0
      %2150 = vmatprep.subr.mxu0 0.0
      %2151 = vmatpush1.msra.mxu0 0.0
      %2152 = vmatprep.subr.mxu0 0.0
      %2153 = vmatpush1.msra.mxu0 0.0
      %2154 = vmatprep.mubr.f32.mxu0 0.0
      %v2155 = vand.u32 %v374, 4294901760
      %2156 = vmatmul.mubr.f32.gmra.mrb[0].mxu0 %v2155
      %v2157 = vpop.f32.mrb[0].mxu0
      %v2158 = vadd.f32 %v2086, %v2157
      %v2159 = vpop.f32.mrb[0].mxu0
      %2160 = vdwg.mxu0
      %v2161 = vld [vmem:[%s316] sm:$0xff]
      %v2162 = vsel %vm339, %v2161, 0.0
      %v2163 = vlog2.pop %v2162
      %v2164 = vmul.f32 %v2163, 0.6931472
      %v2165 = vmax.f32 %v2164, -100.0
      %v2166 = vsub.f32 0.0, %v2162
      %v2167 = vadd.f32 %v2166, 1.0
      %v2168 = vlog2.pop %v2167
      %v2169 = vmul.f32 %v2168, 0.6931472
      %v2170 = vmul.f32 -0.5, %v2166
      %v2171 = vadd.f32 %v2170, 1.0
      %v2172 = vmul.f32 %v2171, %v2166
      %v2173 = vand.u32 2147483647, %v2166
      %vm2174 = vcmp.lt.f32.partialorder %v2173, 0.0004427343
      %v2175 = vsel %vm2174, %v2172, %v2169
      %v2176 = vmax.f32 %v2175, -100.0
      %v2177 = vmul.f32 %v341, %v2165
      %v2178 = vmul.f32 %v342, %v2176
      %v2179 = vadd.f32 %v2177, %v2178
      %v2180 = vsub.f32 0.0, %v2179
      %2181 = vmatprep.subr.mxu0 0.0
      %v2182 = vand.u32 %v2180, 4294901760
      %2183 = vmatpush1.msra.mxu0 %v2182
      %2184 = vmatprep.subr.mxu0 0.0
      %2185 = vmatpush1.msra.mxu0 0.0
      %2186 = vmatprep.subr.mxu0 0.0
      %2187 = vmatpush1.msra.mxu0 0.0
      %2188 = vmatprep.subr.mxu0 0.0
      %2189 = vmatpush1.msra.mxu0 0.0
      %2190 = vmatprep.subr.mxu0 0.0
      %2191 = vmatpush1.msra.mxu0 0.0
      %2192 = vmatprep.subr.mxu0 0.0
      %2193 = vmatpush1.msra.mxu0 0.0
      %2194 = vmatprep.subr.mxu0 0.0
      %2195 = vmatpush1.msra.mxu0 0.0
      %2196 = vmatprep.subr.mxu0 0.0
      %2197 = vmatpush1.msra.mxu0 0.0
      %2198 = vmatprep.subr.mxu0 0.0
      %2199 = vmatpush1.msra.mxu0 0.0
      %2200 = vmatprep.subr.mxu0 0.0
      %2201 = vmatpush1.msra.mxu0 0.0
      %2202 = vmatprep.subr.mxu0 0.0
      %2203 = vmatpush1.msra.mxu0 0.0
      %2204 = vmatprep.subr.mxu0 0.0
      %2205 = vmatpush1.msra.mxu0 0.0
      %2206 = vmatprep.subr.mxu0 0.0
      %2207 = vmatpush1.msra.mxu0 0.0
      %2208 = vmatprep.subr.mxu0 0.0
      %2209 = vmatpush1.msra.mxu0 0.0
      %2210 = vmatprep.subr.mxu0 0.0
      %2211 = vmatpush1.msra.mxu0 0.0
      %2212 = vmatprep.subr.mxu0 0.0
      %2213 = vmatpush1.msra.mxu0 0.0
      %2214 = vmatprep.subr.mxu0 0.0
      %2215 = vmatpush1.msra.mxu0 0.0
      %2216 = vmatprep.subr.mxu0 0.0
      %2217 = vmatpush1.msra.mxu0 0.0
      %2218 = vmatprep.subr.mxu0 0.0
      %2219 = vmatpush1.msra.mxu0 0.0
      %2220 = vmatprep.subr.mxu0 0.0
      %2221 = vmatpush1.msra.mxu0 0.0
      %2222 = vmatprep.subr.mxu0 0.0
      %2223 = vmatpush1.msra.mxu0 0.0
      %2224 = vmatprep.subr.mxu0 0.0
      %2225 = vmatpush1.msra.mxu0 0.0
      %2226 = vmatprep.subr.mxu0 0.0
      %2227 = vmatpush1.msra.mxu0 0.0
      %2228 = vmatprep.subr.mxu0 0.0
      %2229 = vmatpush1.msra.mxu0 0.0
      %2230 = vmatprep.subr.mxu0 0.0
      %2231 = vmatpush1.msra.mxu0 0.0
      %2232 = vmatprep.subr.mxu0 0.0
      %2233 = vmatpush1.msra.mxu0 0.0
      %2234 = vmatprep.subr.mxu0 0.0
      %2235 = vmatpush1.msra.mxu0 0.0
      %2236 = vmatprep.subr.mxu0 0.0
      %2237 = vmatpush1.msra.mxu0 0.0
      %2238 = vmatprep.subr.mxu0 0.0
      %2239 = vmatpush1.msra.mxu0 0.0
      %2240 = vmatprep.subr.mxu0 0.0
      %2241 = vmatpush1.msra.mxu0 0.0
      %2242 = vmatprep.subr.mxu0 0.0
      %2243 = vmatpush1.msra.mxu0 0.0
      %2244 = vmatprep.subr.mxu0 0.0
      %2245 = vmatpush1.msra.mxu0 0.0
      %2246 = vmatprep.mubr.f32.mxu0 0.0
      %v2247 = vand.u32 %v374, 4294901760
      %v2248 = vsub.f32 %v374, %v2247
      %v2249 = vand.u32 %v2248, 4294901760
      %v2250 = vsub.f32 %v2248, %v2249
      %v2251 = vand.u32 %v2250, 4294901760
      %2252 = vmatmul.mubr.f32.gmra.mrb[0].mxu0 %v2251
      %v2253 = vpop.f32.mrb[0].mxu0
      %v2254 = vadd.f32 0.0, %v2253
      %v2255 = vpop.f32.mrb[0].mxu0
      %2256 = vdwg.mxu0
      %2257 = vmatprep.subr.mxu0 0.0
      %v2258 = vand.u32 %v2180, 4294901760
      %v2259 = vsub.f32 %v2180, %v2258
      %v2260 = vand.u32 %v2259, 4294901760
      %v2261 = vsub.f32 %v2259, %v2260
      %v2262 = vand.u32 %v2261, 4294901760
      %2263 = vmatpush1.msra.mxu0 %v2262
      %2264 = vmatprep.subr.mxu0 0.0
      %2265 = vmatpush1.msra.mxu0 0.0
      %2266 = vmatprep.subr.mxu0 0.0
      %2267 = vmatpush1.msra.mxu0 0.0
      %2268 = vmatprep.subr.mxu0 0.0
      %2269 = vmatpush1.msra.mxu0 0.0
      %2270 = vmatprep.subr.mxu0 0.0
      %2271 = vmatpush1.msra.mxu0 0.0
      %2272 = vmatprep.subr.mxu0 0.0
      %2273 = vmatpush1.msra.mxu0 0.0
      %2274 = vmatprep.subr.mxu0 0.0
      %2275 = vmatpush1.msra.mxu0 0.0
      %2276 = vmatprep.subr.mxu0 0.0
      %2277 = vmatpush1.msra.mxu0 0.0
      %2278 = vmatprep.subr.mxu0 0.0
      %2279 = vmatpush1.msra.mxu0 0.0
      %2280 = vmatprep.subr.mxu0 0.0
      %2281 = vmatpush1.msra.mxu0 0.0
      %2282 = vmatprep.subr.mxu0 0.0
      %2283 = vmatpush1.msra.mxu0 0.0
      %2284 = vmatprep.subr.mxu0 0.0
      %2285 = vmatpush1.msra.mxu0 0.0
      %2286 = vmatprep.subr.mxu0 0.0
      %2287 = vmatpush1.msra.mxu0 0.0
      %2288 = vmatprep.subr.mxu0 0.0
      %2289 = vmatpush1.msra.mxu0 0.0
      %2290 = vmatprep.subr.mxu0 0.0
      %2291 = vmatpush1.msra.mxu0 0.0
      %2292 = vmatprep.subr.mxu0 0.0
      %2293 = vmatpush1.msra.mxu0 0.0
      %2294 = vmatprep.subr.mxu0 0.0
      %2295 = vmatpush1.msra.mxu0 0.0
      %2296 = vmatprep.subr.mxu0 0.0
      %2297 = vmatpush1.msra.mxu0 0.0
      %2298 = vmatprep.subr.mxu0 0.0
      %2299 = vmatpush1.msra.mxu0 0.0
      %2300 = vmatprep.subr.mxu0 0.0
      %2301 = vmatpush1.msra.mxu0 0.0
      %2302 = vmatprep.subr.mxu0 0.0
      %2303 = vmatpush1.msra.mxu0 0.0
      %2304 = vmatprep.subr.mxu0 0.0
      %2305 = vmatpush1.msra.mxu0 0.0
      %2306 = vmatprep.subr.mxu0 0.0
      %2307 = vmatpush1.msra.mxu0 0.0
      %2308 = vmatprep.subr.mxu0 0.0
      %2309 = vmatpush1.msra.mxu0 0.0
      %2310 = vmatprep.subr.mxu0 0.0
      %2311 = vmatpush1.msra.mxu0 0.0
      %2312 = vmatprep.subr.mxu0 0.0
      %2313 = vmatpush1.msra.mxu0 0.0
      %2314 = vmatprep.subr.mxu0 0.0
      %2315 = vmatpush1.msra.mxu0 0.0
      %2316 = vmatprep.subr.mxu0 0.0
      %2317 = vmatpush1.msra.mxu0 0.0
      %2318 = vmatprep.subr.mxu0 0.0
      %2319 = vmatpush1.msra.mxu0 0.0
      %2320 = vmatprep.subr.mxu0 0.0
      %2321 = vmatpush1.msra.mxu0 0.0
      %2322 = vmatprep.subr.mxu0 0.0
      %2323 = vmatpush1.msra.mxu0 0.0
      %2324 = vmatprep.subr.mxu0 0.0
      %2325 = vmatpush1.msra.mxu0 0.0
      %2326 = vmatprep.mubr.f32.mxu0 0.0
      %v2327 = vand.u32 %v374, 4294901760
      %2328 = vmatmul.mubr.f32.gmra.mrb[0].mxu0 %v2327
      %v2329 = vpop.f32.mrb[0].mxu0
      %v2330 = vadd.f32 %v2254, %v2329
      %v2331 = vpop.f32.mrb[0].mxu0
      %2332 = vdwg.mxu0
      %2333 = vmatprep.subr.mxu0 0.0
      %v2334 = vand.u32 %v2180, 4294901760
      %v2335 = vsub.f32 %v2180, %v2334
      %2336 = vmatpush1.msra.mxu0 %v2335
      %2337 = vmatprep.subr.mxu0 0.0
      %2338 = vmatpush1.msra.mxu0 0.0
      %2339 = vmatprep.subr.mxu0 0.0
      %2340 = vmatpush1.msra.mxu0 0.0
      %2341 = vmatprep.subr.mxu0 0.0
      %2342 = vmatpush1.msra.mxu0 0.0
      %2343 = vmatprep.subr.mxu0 0.0
      %2344 = vmatpush1.msra.mxu0 0.0
      %2345 = vmatprep.subr.mxu0 0.0
      %2346 = vmatpush1.msra.mxu0 0.0
      %2347 = vmatprep.subr.mxu0 0.0
      %2348 = vmatpush1.msra.mxu0 0.0
      %2349 = vmatprep.subr.mxu0 0.0
      %2350 = vmatpush1.msra.mxu0 0.0
      %2351 = vmatprep.subr.mxu0 0.0
      %2352 = vmatpush1.msra.mxu0 0.0
      %2353 = vmatprep.subr.mxu0 0.0
      %2354 = vmatpush1.msra.mxu0 0.0
      %2355 = vmatprep.subr.mxu0 0.0
      %2356 = vmatpush1.msra.mxu0 0.0
      %2357 = vmatprep.subr.mxu0 0.0
      %2358 = vmatpush1.msra.mxu0 0.0
      %2359 = vmatprep.subr.mxu0 0.0
      %2360 = vmatpush1.msra.mxu0 0.0
      %2361 = vmatprep.subr.mxu0 0.0
      %2362 = vmatpush1.msra.mxu0 0.0
      %2363 = vmatprep.subr.mxu0 0.0
      %2364 = vmatpush1.msra.mxu0 0.0
      %2365 = vmatprep.subr.mxu0 0.0
      %2366 = vmatpush1.msra.mxu0 0.0
      %2367 = vmatprep.subr.mxu0 0.0
      %2368 = vmatpush1.msra.mxu0 0.0
      %2369 = vmatprep.subr.mxu0 0.0
      %2370 = vmatpush1.msra.mxu0 0.0
      %2371 = vmatprep.subr.mxu0 0.0
      %2372 = vmatpush1.msra.mxu0 0.0
      %2373 = vmatprep.subr.mxu0 0.0
      %2374 = vmatpush1.msra.mxu0 0.0
      %2375 = vmatprep.subr.mxu0 0.0
      %2376 = vmatpush1.msra.mxu0 0.0
      %2377 = vmatprep.subr.mxu0 0.0
      %2378 = vmatpush1.msra.mxu0 0.0
      %2379 = vmatprep.subr.mxu0 0.0
      %2380 = vmatpush1.msra.mxu0 0.0
      %2381 = vmatprep.subr.mxu0 0.0
      %2382 = vmatpush1.msra.mxu0 0.0
      %2383 = vmatprep.subr.mxu0 0.0
      %2384 = vmatpush1.msra.mxu0 0.0
      %2385 = vmatprep.subr.mxu0 0.0
      %2386 = vmatpush1.msra.mxu0 0.0
      %2387 = vmatprep.subr.mxu0 0.0
      %2388 = vmatpush1.msra.mxu0 0.0
      %2389 = vmatprep.subr.mxu0 0.0
      %2390 = vmatpush1.msra.mxu0 0.0
      %2391 = vmatprep.subr.mxu0 0.0
      %2392 = vmatpush1.msra.mxu0 0.0
      %2393 = vmatprep.subr.mxu0 0.0
      %2394 = vmatpush1.msra.mxu0 0.0
      %2395 = vmatprep.subr.mxu0 0.0
      %2396 = vmatpush1.msra.mxu0 0.0
      %2397 = vmatprep.subr.mxu0 0.0
      %2398 = vmatpush1.msra.mxu0 0.0
      %2399 = vmatprep.mubr.f32.mxu0 0.0
      %v2400 = vand.u32 %v374, 4294901760
      %v2401 = vsub.f32 %v374, %v2400
      %2402 = vmatmul.mubr.f32.gmra.mrb[0].mxu0 %v2401
      %v2403 = vpop.f32.mrb[0].mxu0
      %v2404 = vadd.f32 %v2330, %v2403
      %v2405 = vpop.f32.mrb[0].mxu0
      %2406 = vdwg.mxu0
      %2407 = vmatprep.subr.mxu0 0.0
      %v2408 = vand.u32 %v2180, 4294901760
      %2409 = vmatpush1.msra.mxu0 %v2408
      %2410 = vmatprep.subr.mxu0 0.0
      %2411 = vmatpush1.msra.mxu0 0.0
      %2412 = vmatprep.subr.mxu0 0.0
      %2413 = vmatpush1.msra.mxu0 0.0
      %2414 = vmatprep.subr.mxu0 0.0
      %2415 = vmatpush1.msra.mxu0 0.0
      %2416 = vmatprep.subr.mxu0 0.0
      %2417 = vmatpush1.msra.mxu0 0.0
      %2418 = vmatprep.subr.mxu0 0.0
      %2419 = vmatpush1.msra.mxu0 0.0
      %2420 = vmatprep.subr.mxu0 0.0
      %2421 = vmatpush1.msra.mxu0 0.0
      %2422 = vmatprep.subr.mxu0 0.0
      %2423 = vmatpush1.msra.mxu0 0.0
      %2424 = vmatprep.subr.mxu0 0.0
      %2425 = vmatpush1.msra.mxu0 0.0
      %2426 = vmatprep.subr.mxu0 0.0
      %2427 = vmatpush1.msra.mxu0 0.0
      %2428 = vmatprep.subr.mxu0 0.0
      %2429 = vmatpush1.msra.mxu0 0.0
      %2430 = vmatprep.subr.mxu0 0.0
      %2431 = vmatpush1.msra.mxu0 0.0
      %2432 = vmatprep.subr.mxu0 0.0
      %2433 = vmatpush1.msra.mxu0 0.0
      %2434 = vmatprep.subr.mxu0 0.0
      %2435 = vmatpush1.msra.mxu0 0.0
      %2436 = vmatprep.subr.mxu0 0.0
      %2437 = vmatpush1.msra.mxu0 0.0
      %2438 = vmatprep.subr.mxu0 0.0
      %2439 = vmatpush1.msra.mxu0 0.0
      %2440 = vmatprep.subr.mxu0 0.0
      %2441 = vmatpush1.msra.mxu0 0.0
      %2442 = vmatprep.subr.mxu0 0.0
      %2443 = vmatpush1.msra.mxu0 0.0
      %2444 = vmatprep.subr.mxu0 0.0
      %2445 = vmatpush1.msra.mxu0 0.0
      %2446 = vmatprep.subr.mxu0 0.0
      %2447 = vmatpush1.msra.mxu0 0.0
      %2448 = vmatprep.subr.mxu0 0.0
      %2449 = vmatpush1.msra.mxu0 0.0
      %2450 = vmatprep.subr.mxu0 0.0
      %2451 = vmatpush1.msra.mxu0 0.0
      %2452 = vmatprep.subr.mxu0 0.0
      %2453 = vmatpush1.msra.mxu0 0.0
      %2454 = vmatprep.subr.mxu0 0.0
      %2455 = vmatpush1.msra.mxu0 0.0
      %2456 = vmatprep.subr.mxu0 0.0
      %2457 = vmatpush1.msra.mxu0 0.0
      %2458 = vmatprep.subr.mxu0 0.0
      %2459 = vmatpush1.msra.mxu0 0.0
      %2460 = vmatprep.subr.mxu0 0.0
      %2461 = vmatpush1.msra.mxu0 0.0
      %2462 = vmatprep.subr.mxu0 0.0
      %2463 = vmatpush1.msra.mxu0 0.0
      %2464 = vmatprep.subr.mxu0 0.0
      %2465 = vmatpush1.msra.mxu0 0.0
      %2466 = vmatprep.subr.mxu0 0.0
      %2467 = vmatpush1.msra.mxu0 0.0
      %2468 = vmatprep.subr.mxu0 0.0
      %2469 = vmatpush1.msra.mxu0 0.0
      %2470 = vmatprep.subr.mxu0 0.0
      %2471 = vmatpush1.msra.mxu0 0.0
      %2472 = vmatprep.mubr.f32.mxu0 0.0
      %v2473 = vand.u32 %v374, 4294901760
      %v2474 = vsub.f32 %v374, %v2473
      %v2475 = vand.u32 %v2474, 4294901760
      %2476 = vmatmul.mubr.f32.gmra.mrb[0].mxu0 %v2475
      %v2477 = vpop.f32.mrb[0].mxu0
      %v2478 = vadd.f32 %v2404, %v2477
      %v2479 = vpop.f32.mrb[0].mxu0
      %2480 = vdwg.mxu0
      %2481 = vmatprep.subr.mxu0 0.0
      %v2482 = vand.u32 %v2180, 4294901760
      %v2483 = vsub.f32 %v2180, %v2482
      %v2484 = vand.u32 %v2483, 4294901760
      %2485 = vmatpush1.msra.mxu0 %v2484
      %2486 = vmatprep.subr.mxu0 0.0
      %2487 = vmatpush1.msra.mxu0 0.0
      %2488 = vmatprep.subr.mxu0 0.0
      %2489 = vmatpush1.msra.mxu0 0.0
      %2490 = vmatprep.subr.mxu0 0.0
      %2491 = vmatpush1.msra.mxu0 0.0
      %2492 = vmatprep.subr.mxu0 0.0
      %2493 = vmatpush1.msra.mxu0 0.0
      %2494 = vmatprep.subr.mxu0 0.0
      %2495 = vmatpush1.msra.mxu0 0.0
      %2496 = vmatprep.subr.mxu0 0.0
      %2497 = vmatpush1.msra.mxu0 0.0
      %2498 = vmatprep.subr.mxu0 0.0
      %2499 = vmatpush1.msra.mxu0 0.0
      %2500 = vmatprep.subr.mxu0 0.0
      %2501 = vmatpush1.msra.mxu0 0.0
      %2502 = vmatprep.subr.mxu0 0.0
      %2503 = vmatpush1.msra.mxu0 0.0
      %2504 = vmatprep.subr.mxu0 0.0
      %2505 = vmatpush1.msra.mxu0 0.0
      %2506 = vmatprep.subr.mxu0 0.0
      %2507 = vmatpush1.msra.mxu0 0.0
      %2508 = vmatprep.subr.mxu0 0.0
      %2509 = vmatpush1.msra.mxu0 0.0
      %2510 = vmatprep.subr.mxu0 0.0
      %2511 = vmatpush1.msra.mxu0 0.0
      %2512 = vmatprep.subr.mxu0 0.0
      %2513 = vmatpush1.msra.mxu0 0.0
      %2514 = vmatprep.subr.mxu0 0.0
      %2515 = vmatpush1.msra.mxu0 0.0
      %2516 = vmatprep.subr.mxu0 0.0
      %2517 = vmatpush1.msra.mxu0 0.0
      %2518 = vmatprep.subr.mxu0 0.0
      %2519 = vmatpush1.msra.mxu0 0.0
      %2520 = vmatprep.subr.mxu0 0.0
      %2521 = vmatpush1.msra.mxu0 0.0
      %2522 = vmatprep.subr.mxu0 0.0
      %2523 = vmatpush1.msra.mxu0 0.0
      %2524 = vmatprep.subr.mxu0 0.0
      %2525 = vmatpush1.msra.mxu0 0.0
      %2526 = vmatprep.subr.mxu0 0.0
      %2527 = vmatpush1.msra.mxu0 0.0
      %2528 = vmatprep.subr.mxu0 0.0
      %2529 = vmatpush1.msra.mxu0 0.0
      %2530 = vmatprep.subr.mxu0 0.0
      %2531 = vmatpush1.msra.mxu0 0.0
      %2532 = vmatprep.subr.mxu0 0.0
      %2533 = vmatpush1.msra.mxu0 0.0
      %2534 = vmatprep.subr.mxu0 0.0
      %2535 = vmatpush1.msra.mxu0 0.0
      %2536 = vmatprep.subr.mxu0 0.0
      %2537 = vmatpush1.msra.mxu0 0.0
      %2538 = vmatprep.subr.mxu0 0.0
      %2539 = vmatpush1.msra.mxu0 0.0
      %2540 = vmatprep.subr.mxu0 0.0
      %2541 = vmatpush1.msra.mxu0 0.0
      %2542 = vmatprep.subr.mxu0 0.0
      %2543 = vmatpush1.msra.mxu0 0.0
      %2544 = vmatprep.subr.mxu0 0.0
      %2545 = vmatpush1.msra.mxu0 0.0
      %2546 = vmatprep.subr.mxu0 0.0
      %2547 = vmatpush1.msra.mxu0 0.0
      %2548 = vmatprep.mubr.f32.mxu0 0.0
      %v2549 = vand.u32 %v374, 4294901760
      %2550 = vmatmul.mubr.f32.gmra.mrb[0].mxu0 %v2549
      %v2551 = vpop.f32.mrb[0].mxu0
      %v2552 = vadd.f32 %v2478, %v2551
      %v2553 = vpop.f32.mrb[0].mxu0
      %2554 = vdwg.mxu0
      %2555 = vmatprep.subr.mxu0 0.0
      %v2556 = vand.u32 %v2180, 4294901760
      %2557 = vmatpush1.msra.mxu0 %v2556
      %2558 = vmatprep.subr.mxu0 0.0
      %2559 = vmatpush1.msra.mxu0 0.0
      %2560 = vmatprep.subr.mxu0 0.0
      %2561 = vmatpush1.msra.mxu0 0.0
      %2562 = vmatprep.subr.mxu0 0.0
      %2563 = vmatpush1.msra.mxu0 0.0
      %2564 = vmatprep.subr.mxu0 0.0
      %2565 = vmatpush1.msra.mxu0 0.0
      %2566 = vmatprep.subr.mxu0 0.0
      %2567 = vmatpush1.msra.mxu0 0.0
      %2568 = vmatprep.subr.mxu0 0.0
      %2569 = vmatpush1.msra.mxu0 0.0
      %2570 = vmatprep.subr.mxu0 0.0
      %2571 = vmatpush1.msra.mxu0 0.0
      %2572 = vmatprep.subr.mxu0 0.0
      %2573 = vmatpush1.msra.mxu0 0.0
      %2574 = vmatprep.subr.mxu0 0.0
      %2575 = vmatpush1.msra.mxu0 0.0
      %2576 = vmatprep.subr.mxu0 0.0
      %2577 = vmatpush1.msra.mxu0 0.0
      %2578 = vmatprep.subr.mxu0 0.0
      %2579 = vmatpush1.msra.mxu0 0.0
      %2580 = vmatprep.subr.mxu0 0.0
      %2581 = vmatpush1.msra.mxu0 0.0
      %2582 = vmatprep.subr.mxu0 0.0
      %2583 = vmatpush1.msra.mxu0 0.0
      %2584 = vmatprep.subr.mxu0 0.0
      %2585 = vmatpush1.msra.mxu0 0.0
      %2586 = vmatprep.subr.mxu0 0.0
      %2587 = vmatpush1.msra.mxu0 0.0
      %2588 = vmatprep.subr.mxu0 0.0
      %2589 = vmatpush1.msra.mxu0 0.0
      %2590 = vmatprep.subr.mxu0 0.0
      %2591 = vmatpush1.msra.mxu0 0.0
      %2592 = vmatprep.subr.mxu0 0.0
      %2593 = vmatpush1.msra.mxu0 0.0
      %2594 = vmatprep.subr.mxu0 0.0
      %2595 = vmatpush1.msra.mxu0 0.0
      %2596 = vmatprep.subr.mxu0 0.0
      %2597 = vmatpush1.msra.mxu0 0.0
      %2598 = vmatprep.subr.mxu0 0.0
      %2599 = vmatpush1.msra.mxu0 0.0
      %2600 = vmatprep.subr.mxu0 0.0
      %2601 = vmatpush1.msra.mxu0 0.0
      %2602 = vmatprep.subr.mxu0 0.0
      %2603 = vmatpush1.msra.mxu0 0.0
      %2604 = vmatprep.subr.mxu0 0.0
      %2605 = vmatpush1.msra.mxu0 0.0
      %2606 = vmatprep.subr.mxu0 0.0
      %2607 = vmatpush1.msra.mxu0 0.0
      %2608 = vmatprep.subr.mxu0 0.0
      %2609 = vmatpush1.msra.mxu0 0.0
      %2610 = vmatprep.subr.mxu0 0.0
      %2611 = vmatpush1.msra.mxu0 0.0
      %2612 = vmatprep.subr.mxu0 0.0
      %2613 = vmatpush1.msra.mxu0 0.0
      %2614 = vmatprep.subr.mxu0 0.0
      %2615 = vmatpush1.msra.mxu0 0.0
      %2616 = vmatprep.subr.mxu0 0.0
      %2617 = vmatpush1.msra.mxu0 0.0
      %2618 = vmatprep.subr.mxu0 0.0
      %2619 = vmatpush1.msra.mxu0 0.0
      %2620 = vmatprep.mubr.f32.mxu0 0.0
      %v2621 = vand.u32 %v374, 4294901760
      %2622 = vmatmul.mubr.f32.gmra.mrb[0].mxu0 %v2621
      %v2623 = vpop.f32.mrb[0].mxu0
      %v2624 = vadd.f32 %v2552, %v2623
      %v2625 = vpop.f32.mrb[0].mxu0
      %2626 = vdwg.mxu0
      %2627 = vmatprep.subr.mxu0 0.0
      %v2628 = vand.u32 %v2162, 4294901760
      %2629 = vmatpush1.msra.mxu0 %v2628
      %2630 = vmatprep.subr.mxu0 0.0
      %2631 = vmatpush1.msra.mxu0 0.0
      %2632 = vmatprep.subr.mxu0 0.0
      %2633 = vmatpush1.msra.mxu0 0.0
      %2634 = vmatprep.subr.mxu0 0.0
      %2635 = vmatpush1.msra.mxu0 0.0
      %2636 = vmatprep.subr.mxu0 0.0
      %2637 = vmatpush1.msra.mxu0 0.0
      %2638 = vmatprep.subr.mxu0 0.0
      %2639 = vmatpush1.msra.mxu0 0.0
      %2640 = vmatprep.subr.mxu0 0.0
      %2641 = vmatpush1.msra.mxu0 0.0
      %2642 = vmatprep.subr.mxu0 0.0
      %2643 = vmatpush1.msra.mxu0 0.0
      %2644 = vmatprep.subr.mxu0 0.0
      %2645 = vmatpush1.msra.mxu0 0.0
      %2646 = vmatprep.subr.mxu0 0.0
      %2647 = vmatpush1.msra.mxu0 0.0
      %2648 = vmatprep.subr.mxu0 0.0
      %2649 = vmatpush1.msra.mxu0 0.0
      %2650 = vmatprep.subr.mxu0 0.0
      %2651 = vmatpush1.msra.mxu0 0.0
      %2652 = vmatprep.subr.mxu0 0.0
      %2653 = vmatpush1.msra.mxu0 0.0
      %2654 = vmatprep.subr.mxu0 0.0
      %2655 = vmatpush1.msra.mxu0 0.0
      %2656 = vmatprep.subr.mxu0 0.0
      %2657 = vmatpush1.msra.mxu0 0.0
      %2658 = vmatprep.subr.mxu0 0.0
      %2659 = vmatpush1.msra.mxu0 0.0
      %2660 = vmatprep.subr.mxu0 0.0
      %2661 = vmatpush1.msra.mxu0 0.0
      %2662 = vmatprep.subr.mxu0 0.0
      %2663 = vmatpush1.msra.mxu0 0.0
      %2664 = vmatprep.subr.mxu0 0.0
      %2665 = vmatpush1.msra.mxu0 0.0
      %2666 = vmatprep.subr.mxu0 0.0
      %2667 = vmatpush1.msra.mxu0 0.0
      %2668 = vmatprep.subr.mxu0 0.0
      %2669 = vmatpush1.msra.mxu0 0.0
      %2670 = vmatprep.subr.mxu0 0.0
      %2671 = vmatpush1.msra.mxu0 0.0
      %2672 = vmatprep.subr.mxu0 0.0
      %2673 = vmatpush1.msra.mxu0 0.0
      %2674 = vmatprep.subr.mxu0 0.0
      %2675 = vmatpush1.msra.mxu0 0.0
      %2676 = vmatprep.subr.mxu0 0.0
      %2677 = vmatpush1.msra.mxu0 0.0
      %2678 = vmatprep.subr.mxu0 0.0
      %2679 = vmatpush1.msra.mxu0 0.0
      %2680 = vmatprep.subr.mxu0 0.0
      %2681 = vmatpush1.msra.mxu0 0.0
      %2682 = vmatprep.subr.mxu0 0.0
      %2683 = vmatpush1.msra.mxu0 0.0
      %2684 = vmatprep.subr.mxu0 0.0
      %2685 = vmatpush1.msra.mxu0 0.0
      %2686 = vmatprep.subr.mxu0 0.0
      %2687 = vmatpush1.msra.mxu0 0.0
      %2688 = vmatprep.subr.mxu0 0.0
      %2689 = vmatpush1.msra.mxu0 0.0
      %2690 = vmatprep.subr.mxu0 0.0
      %2691 = vmatpush1.msra.mxu0 0.0
      %2692 = vmatprep.mubr.f32.mxu0 0.0
      %v2693 = vand.u32 %v374, 4294901760
      %v2694 = vsub.f32 %v374, %v2693
      %v2695 = vand.u32 %v2694, 4294901760
      %v2696 = vsub.f32 %v2694, %v2695
      %v2697 = vand.u32 %v2696, 4294901760
      %2698 = vmatmul.mubr.f32.gmra.mrb[0].mxu0 %v2697
      %v2699 = vpop.f32.mrb[0].mxu0
      %v2700 = vadd.f32 0.0, %v2699
      %v2701 = vpop.f32.mrb[0].mxu0
      %2702 = vdwg.mxu0
      %2703 = vmatprep.subr.mxu0 0.0
      %v2704 = vand.u32 %v2162, 4294901760
      %v2705 = vsub.f32 %v2162, %v2704
      %v2706 = vand.u32 %v2705, 4294901760
      %v2707 = vsub.f32 %v2705, %v2706
      %v2708 = vand.u32 %v2707, 4294901760
      %2709 = vmatpush1.msra.mxu0 %v2708
      %2710 = vmatprep.subr.mxu0 0.0
      %2711 = vmatpush1.msra.mxu0 0.0
      %2712 = vmatprep.subr.mxu0 0.0
      %2713 = vmatpush1.msra.mxu0 0.0
      %2714 = vmatprep.subr.mxu0 0.0
      %2715 = vmatpush1.msra.mxu0 0.0
      %2716 = vmatprep.subr.mxu0 0.0
      %2717 = vmatpush1.msra.mxu0 0.0
      %2718 = vmatprep.subr.mxu0 0.0
      %2719 = vmatpush1.msra.mxu0 0.0
      %2720 = vmatprep.subr.mxu0 0.0
      %2721 = vmatpush1.msra.mxu0 0.0
      %2722 = vmatprep.subr.mxu0 0.0
      %2723 = vmatpush1.msra.mxu0 0.0
      %2724 = vmatprep.subr.mxu0 0.0
      %2725 = vmatpush1.msra.mxu0 0.0
      %2726 = vmatprep.subr.mxu0 0.0
      %2727 = vmatpush1.msra.mxu0 0.0
      %2728 = vmatprep.subr.mxu0 0.0
      %2729 = vmatpush1.msra.mxu0 0.0
      %2730 = vmatprep.subr.mxu0 0.0
      %2731 = vmatpush1.msra.mxu0 0.0
      %2732 = vmatprep.subr.mxu0 0.0
      %2733 = vmatpush1.msra.mxu0 0.0
      %2734 = vmatprep.subr.mxu0 0.0
      %2735 = vmatpush1.msra.mxu0 0.0
      %2736 = vmatprep.subr.mxu0 0.0
      %2737 = vmatpush1.msra.mxu0 0.0
      %2738 = vmatprep.subr.mxu0 0.0
      %2739 = vmatpush1.msra.mxu0 0.0
      %2740 = vmatprep.subr.mxu0 0.0
      %2741 = vmatpush1.msra.mxu0 0.0
      %2742 = vmatprep.subr.mxu0 0.0
      %2743 = vmatpush1.msra.mxu0 0.0
      %2744 = vmatprep.subr.mxu0 0.0
      %2745 = vmatpush1.msra.mxu0 0.0
      %2746 = vmatprep.subr.mxu0 0.0
      %2747 = vmatpush1.msra.mxu0 0.0
      %2748 = vmatprep.subr.mxu0 0.0
      %2749 = vmatpush1.msra.mxu0 0.0
      %2750 = vmatprep.subr.mxu0 0.0
      %2751 = vmatpush1.msra.mxu0 0.0
      %2752 = vmatprep.subr.mxu0 0.0
      %2753 = vmatpush1.msra.mxu0 0.0
      %2754 = vmatprep.subr.mxu0 0.0
      %2755 = vmatpush1.msra.mxu0 0.0
      %2756 = vmatprep.subr.mxu0 0.0
      %2757 = vmatpush1.msra.mxu0 0.0
      %2758 = vmatprep.subr.mxu0 0.0
      %2759 = vmatpush1.msra.mxu0 0.0
      %2760 = vmatprep.subr.mxu0 0.0
      %2761 = vmatpush1.msra.mxu0 0.0
      %2762 = vmatprep.subr.mxu0 0.0
      %2763 = vmatpush1.msra.mxu0 0.0
      %2764 = vmatprep.subr.mxu0 0.0
      %2765 = vmatpush1.msra.mxu0 0.0
      %2766 = vmatprep.subr.mxu0 0.0
      %2767 = vmatpush1.msra.mxu0 0.0
      %2768 = vmatprep.subr.mxu0 0.0
      %2769 = vmatpush1.msra.mxu0 0.0
      %2770 = vmatprep.subr.mxu0 0.0
      %2771 = vmatpush1.msra.mxu0 0.0
      %2772 = vmatprep.mubr.f32.mxu0 0.0
      %v2773 = vand.u32 %v374, 4294901760
      %2774 = vmatmul.mubr.f32.gmra.mrb[0].mxu0 %v2773
      %v2775 = vpop.f32.mrb[0].mxu0
      %v2776 = vadd.f32 %v2700, %v2775
      %v2777 = vpop.f32.mrb[0].mxu0
      %2778 = vdwg.mxu0
      %2779 = vmatprep.subr.mxu0 0.0
      %v2780 = vand.u32 %v2162, 4294901760
      %v2781 = vsub.f32 %v2162, %v2780
      %2782 = vmatpush1.msra.mxu0 %v2781
      %2783 = vmatprep.subr.mxu0 0.0
      %2784 = vmatpush1.msra.mxu0 0.0
      %2785 = vmatprep.subr.mxu0 0.0
      %2786 = vmatpush1.msra.mxu0 0.0
      %2787 = vmatprep.subr.mxu0 0.0
      %2788 = vmatpush1.msra.mxu0 0.0
      %2789 = vmatprep.subr.mxu0 0.0
      %2790 = vmatpush1.msra.mxu0 0.0
      %2791 = vmatprep.subr.mxu0 0.0
      %2792 = vmatpush1.msra.mxu0 0.0
      %2793 = vmatprep.subr.mxu0 0.0
      %2794 = vmatpush1.msra.mxu0 0.0
      %2795 = vmatprep.subr.mxu0 0.0
      %2796 = vmatpush1.msra.mxu0 0.0
      %2797 = vmatprep.subr.mxu0 0.0
      %2798 = vmatpush1.msra.mxu0 0.0
      %2799 = vmatprep.subr.mxu0 0.0
      %2800 = vmatpush1.msra.mxu0 0.0
      %2801 = vmatprep.subr.mxu0 0.0
      %2802 = vmatpush1.msra.mxu0 0.0
      %2803 = vmatprep.subr.mxu0 0.0
      %2804 = vmatpush1.msra.mxu0 0.0
      %2805 = vmatprep.subr.mxu0 0.0
      %2806 = vmatpush1.msra.mxu0 0.0
      %2807 = vmatprep.subr.mxu0 0.0
      %2808 = vmatpush1.msra.mxu0 0.0
      %2809 = vmatprep.subr.mxu0 0.0
      %2810 = vmatpush1.msra.mxu0 0.0
      %2811 = vmatprep.subr.mxu0 0.0
      %2812 = vmatpush1.msra.mxu0 0.0
      %2813 = vmatprep.subr.mxu0 0.0
      %2814 = vmatpush1.msra.mxu0 0.0
      %2815 = vmatprep.subr.mxu0 0.0
      %2816 = vmatpush1.msra.mxu0 0.0
      %2817 = vmatprep.subr.mxu0 0.0
      %2818 = vmatpush1.msra.mxu0 0.0
      %2819 = vmatprep.subr.mxu0 0.0
      %2820 = vmatpush1.msra.mxu0 0.0
      %2821 = vmatprep.subr.mxu0 0.0
      %2822 = vmatpush1.msra.mxu0 0.0
      %2823 = vmatprep.subr.mxu0 0.0
      %2824 = vmatpush1.msra.mxu0 0.0
      %2825 = vmatprep.subr.mxu0 0.0
      %2826 = vmatpush1.msra.mxu0 0.0
      %2827 = vmatprep.subr.mxu0 0.0
      %2828 = vmatpush1.msra.mxu0 0.0
      %2829 = vmatprep.subr.mxu0 0.0
      %2830 = vmatpush1.msra.mxu0 0.0
      %2831 = vmatprep.subr.mxu0 0.0
      %2832 = vmatpush1.msra.mxu0 0.0
      %2833 = vmatprep.subr.mxu0 0.0
      %2834 = vmatpush1.msra.mxu0 0.0
      %2835 = vmatprep.subr.mxu0 0.0
      %2836 = vmatpush1.msra.mxu0 0.0
      %2837 = vmatprep.subr.mxu0 0.0
      %2838 = vmatpush1.msra.mxu0 0.0
      %2839 = vmatprep.subr.mxu0 0.0
      %2840 = vmatpush1.msra.mxu0 0.0
      %2841 = vmatprep.subr.mxu0 0.0
      %2842 = vmatpush1.msra.mxu0 0.0
      %2843 = vmatprep.subr.mxu0 0.0
      %2844 = vmatpush1.msra.mxu0 0.0
      %2845 = vmatprep.mubr.f32.mxu0 0.0
      %v2846 = vand.u32 %v374, 4294901760
      %v2847 = vsub.f32 %v374, %v2846
      %2848 = vmatmul.mubr.f32.gmra.mrb[0].mxu0 %v2847
      %v2849 = vpop.f32.mrb[0].mxu0
      %v2850 = vadd.f32 %v2776, %v2849
      %v2851 = vpop.f32.mrb[0].mxu0
      %2852 = vdwg.mxu0
      %2853 = vmatprep.subr.mxu0 0.0
      %v2854 = vand.u32 %v2162, 4294901760
      %2855 = vmatpush1.msra.mxu0 %v2854
      %2856 = vmatprep.subr.mxu0 0.0
      %2857 = vmatpush1.msra.mxu0 0.0
      %2858 = vmatprep.subr.mxu0 0.0
      %2859 = vmatpush1.msra.mxu0 0.0
      %2860 = vmatprep.subr.mxu0 0.0
      %2861 = vmatpush1.msra.mxu0 0.0
      %2862 = vmatprep.subr.mxu0 0.0
      %2863 = vmatpush1.msra.mxu0 0.0
      %2864 = vmatprep.subr.mxu0 0.0
      %2865 = vmatpush1.msra.mxu0 0.0
      %2866 = vmatprep.subr.mxu0 0.0
      %2867 = vmatpush1.msra.mxu0 0.0
      %2868 = vmatprep.subr.mxu0 0.0
      %2869 = vmatpush1.msra.mxu0 0.0
      %2870 = vmatprep.subr.mxu0 0.0
      %2871 = vmatpush1.msra.mxu0 0.0
      %2872 = vmatprep.subr.mxu0 0.0
      %2873 = vmatpush1.msra.mxu0 0.0
      %2874 = vmatprep.subr.mxu0 0.0
      %2875 = vmatpush1.msra.mxu0 0.0
      %2876 = vmatprep.subr.mxu0 0.0
      %2877 = vmatpush1.msra.mxu0 0.0
      %2878 = vmatprep.subr.mxu0 0.0
      %2879 = vmatpush1.msra.mxu0 0.0
      %2880 = vmatprep.subr.mxu0 0.0
      %2881 = vmatpush1.msra.mxu0 0.0
      %2882 = vmatprep.subr.mxu0 0.0
      %2883 = vmatpush1.msra.mxu0 0.0
      %2884 = vmatprep.subr.mxu0 0.0
      %2885 = vmatpush1.msra.mxu0 0.0
      %2886 = vmatprep.subr.mxu0 0.0
      %2887 = vmatpush1.msra.mxu0 0.0
      %2888 = vmatprep.subr.mxu0 0.0
      %2889 = vmatpush1.msra.mxu0 0.0
      %2890 = vmatprep.subr.mxu0 0.0
      %2891 = vmatpush1.msra.mxu0 0.0
      %2892 = vmatprep.subr.mxu0 0.0
      %2893 = vmatpush1.msra.mxu0 0.0
      %2894 = vmatprep.subr.mxu0 0.0
      %2895 = vmatpush1.msra.mxu0 0.0
      %2896 = vmatprep.subr.mxu0 0.0
      %2897 = vmatpush1.msra.mxu0 0.0
      %2898 = vmatprep.subr.mxu0 0.0
      %2899 = vmatpush1.msra.mxu0 0.0
      %2900 = vmatprep.subr.mxu0 0.0
      %2901 = vmatpush1.msra.mxu0 0.0
      %2902 = vmatprep.subr.mxu0 0.0
      %2903 = vmatpush1.msra.mxu0 0.0
      %2904 = vmatprep.subr.mxu0 0.0
      %2905 = vmatpush1.msra.mxu0 0.0
      %2906 = vmatprep.subr.mxu0 0.0
      %2907 = vmatpush1.msra.mxu0 0.0
      %2908 = vmatprep.subr.mxu0 0.0
      %2909 = vmatpush1.msra.mxu0 0.0
      %2910 = vmatprep.subr.mxu0 0.0
      %2911 = vmatpush1.msra.mxu0 0.0
      %2912 = vmatprep.subr.mxu0 0.0
      %2913 = vmatpush1.msra.mxu0 0.0
      %2914 = vmatprep.subr.mxu0 0.0
      %2915 = vmatpush1.msra.mxu0 0.0
      %2916 = vmatprep.subr.mxu0 0.0
      %2917 = vmatpush1.msra.mxu0 0.0
      %2918 = vmatprep.mubr.f32.mxu0 0.0
      %v2919 = vand.u32 %v374, 4294901760
      %v2920 = vsub.f32 %v374, %v2919
      %v2921 = vand.u32 %v2920, 4294901760
      %2922 = vmatmul.mubr.f32.gmra.mrb[0].mxu0 %v2921
      %v2923 = vpop.f32.mrb[0].mxu0
      %v2924 = vadd.f32 %v2850, %v2923
      %v2925 = vpop.f32.mrb[0].mxu0
      %2926 = vdwg.mxu0
      %2927 = vmatprep.subr.mxu0 0.0
      %v2928 = vand.u32 %v2162, 4294901760
      %v2929 = vsub.f32 %v2162, %v2928
      %v2930 = vand.u32 %v2929, 4294901760
      %2931 = vmatpush1.msra.mxu0 %v2930
      %2932 = vmatprep.subr.mxu0 0.0
      %2933 = vmatpush1.msra.mxu0 0.0
      %2934 = vmatprep.subr.mxu0 0.0
      %2935 = vmatpush1.msra.mxu0 0.0
      %2936 = vmatprep.subr.mxu0 0.0
      %2937 = vmatpush1.msra.mxu0 0.0
      %2938 = vmatprep.subr.mxu0 0.0
      %2939 = vmatpush1.msra.mxu0 0.0
      %2940 = vmatprep.subr.mxu0 0.0
      %2941 = vmatpush1.msra.mxu0 0.0
      %2942 = vmatprep.subr.mxu0 0.0
      %2943 = vmatpush1.msra.mxu0 0.0
      %2944 = vmatprep.subr.mxu0 0.0
      %2945 = vmatpush1.msra.mxu0 0.0
      %2946 = vmatprep.subr.mxu0 0.0
      %2947 = vmatpush1.msra.mxu0 0.0
      %2948 = vmatprep.subr.mxu0 0.0
      %2949 = vmatpush1.msra.mxu0 0.0
      %2950 = vmatprep.subr.mxu0 0.0
      %2951 = vmatpush1.msra.mxu0 0.0
      %2952 = vmatprep.subr.mxu0 0.0
      %2953 = vmatpush1.msra.mxu0 0.0
      %2954 = vmatprep.subr.mxu0 0.0
      %2955 = vmatpush1.msra.mxu0 0.0
      %2956 = vmatprep.subr.mxu0 0.0
      %2957 = vmatpush1.msra.mxu0 0.0
      %2958 = vmatprep.subr.mxu0 0.0
      %2959 = vmatpush1.msra.mxu0 0.0
      %2960 = vmatprep.subr.mxu0 0.0
      %2961 = vmatpush1.msra.mxu0 0.0
      %2962 = vmatprep.subr.mxu0 0.0
      %2963 = vmatpush1.msra.mxu0 0.0
      %2964 = vmatprep.subr.mxu0 0.0
      %2965 = vmatpush1.msra.mxu0 0.0
      %2966 = vmatprep.subr.mxu0 0.0
      %2967 = vmatpush1.msra.mxu0 0.0
      %2968 = vmatprep.subr.mxu0 0.0
      %2969 = vmatpush1.msra.mxu0 0.0
      %2970 = vmatprep.subr.mxu0 0.0
      %2971 = vmatpush1.msra.mxu0 0.0
      %2972 = vmatprep.subr.mxu0 0.0
      %2973 = vmatpush1.msra.mxu0 0.0
      %2974 = vmatprep.subr.mxu0 0.0
      %2975 = vmatpush1.msra.mxu0 0.0
      %2976 = vmatprep.subr.mxu0 0.0
      %2977 = vmatpush1.msra.mxu0 0.0
      %2978 = vmatprep.subr.mxu0 0.0
      %2979 = vmatpush1.msra.mxu0 0.0
      %2980 = vmatprep.subr.mxu0 0.0
      %2981 = vmatpush1.msra.mxu0 0.0
      %2982 = vmatprep.subr.mxu0 0.0
      %2983 = vmatpush1.msra.mxu0 0.0
      %2984 = vmatprep.subr.mxu0 0.0
      %2985 = vmatpush1.msra.mxu0 0.0
      %2986 = vmatprep.subr.mxu0 0.0
      %2987 = vmatpush1.msra.mxu0 0.0
      %2988 = vmatprep.subr.mxu0 0.0
      %2989 = vmatpush1.msra.mxu0 0.0
      %2990 = vmatprep.subr.mxu0 0.0
      %2991 = vmatpush1.msra.mxu0 0.0
      %2992 = vmatprep.subr.mxu0 0.0
      %2993 = vmatpush1.msra.mxu0 0.0
      %2994 = vmatprep.mubr.f32.mxu0 0.0
      %v2995 = vand.u32 %v374, 4294901760
      %2996 = vmatmul.mubr.f32.gmra.mrb[0].mxu0 %v2995
      %v2997 = vpop.f32.mrb[0].mxu0
      %v2998 = vadd.f32 %v2924, %v2997
      %v2999 = vpop.f32.mrb[0].mxu0
      %3000 = vdwg.mxu0
      %3001 = vmatprep.subr.mxu0 0.0
      %v3002 = vand.u32 %v2162, 4294901760
      %3003 = vmatpush1.msra.mxu0 %v3002
      %3004 = vmatprep.subr.mxu0 0.0
      %3005 = vmatpush1.msra.mxu0 0.0
      %3006 = vmatprep.subr.mxu0 0.0
      %3007 = vmatpush1.msra.mxu0 0.0
      %3008 = vmatprep.subr.mxu0 0.0
      %3009 = vmatpush1.msra.mxu0 0.0
      %3010 = vmatprep.subr.mxu0 0.0
      %3011 = vmatpush1.msra.mxu0 0.0
      %3012 = vmatprep.subr.mxu0 0.0
      %3013 = vmatpush1.msra.mxu0 0.0
      %3014 = vmatprep.subr.mxu0 0.0
      %3015 = vmatpush1.msra.mxu0 0.0
      %3016 = vmatprep.subr.mxu0 0.0
      %3017 = vmatpush1.msra.mxu0 0.0
      %3018 = vmatprep.subr.mxu0 0.0
      %3019 = vmatpush1.msra.mxu0 0.0
      %3020 = vmatprep.subr.mxu0 0.0
      %3021 = vmatpush1.msra.mxu0 0.0
      %3022 = vmatprep.subr.mxu0 0.0
      %3023 = vmatpush1.msra.mxu0 0.0
      %3024 = vmatprep.subr.mxu0 0.0
      %3025 = vmatpush1.msra.mxu0 0.0
      %3026 = vmatprep.subr.mxu0 0.0
      %3027 = vmatpush1.msra.mxu0 0.0
      %3028 = vmatprep.subr.mxu0 0.0
      %3029 = vmatpush1.msra.mxu0 0.0
      %3030 = vmatprep.subr.mxu0 0.0
      %3031 = vmatpush1.msra.mxu0 0.0
      %3032 = vmatprep.subr.mxu0 0.0
      %3033 = vmatpush1.msra.mxu0 0.0
      %3034 = vmatprep.subr.mxu0 0.0
      %3035 = vmatpush1.msra.mxu0 0.0
      %3036 = vmatprep.subr.mxu0 0.0
      %3037 = vmatpush1.msra.mxu0 0.0
      %3038 = vmatprep.subr.mxu0 0.0
      %3039 = vmatpush1.msra.mxu0 0.0
      %3040 = vmatprep.subr.mxu0 0.0
      %3041 = vmatpush1.msra.mxu0 0.0
      %3042 = vmatprep.subr.mxu0 0.0
      %3043 = vmatpush1.msra.mxu0 0.0
      %3044 = vmatprep.subr.mxu0 0.0
      %3045 = vmatpush1.msra.mxu0 0.0
      %3046 = vmatprep.subr.mxu0 0.0
      %3047 = vmatpush1.msra.mxu0 0.0
      %3048 = vmatprep.subr.mxu0 0.0
      %3049 = vmatpush1.msra.mxu0 0.0
      %3050 = vmatprep.subr.mxu0 0.0
      %3051 = vmatpush1.msra.mxu0 0.0
      %3052 = vmatprep.subr.mxu0 0.0
      %3053 = vmatpush1.msra.mxu0 0.0
      %3054 = vmatprep.subr.mxu0 0.0
      %3055 = vmatpush1.msra.mxu0 0.0
      %3056 = vmatprep.subr.mxu0 0.0
      %3057 = vmatpush1.msra.mxu0 0.0
      %3058 = vmatprep.subr.mxu0 0.0
      %3059 = vmatpush1.msra.mxu0 0.0
      %3060 = vmatprep.subr.mxu0 0.0
      %3061 = vmatpush1.msra.mxu0 0.0
      %3062 = vmatprep.subr.mxu0 0.0
      %3063 = vmatpush1.msra.mxu0 0.0
      %3064 = vmatprep.subr.mxu0 0.0
      %3065 = vmatpush1.msra.mxu0 0.0
      %3066 = vmatprep.mubr.f32.mxu0 0.0
      %v3067 = vand.u32 %v374, 4294901760
      %3068 = vmatmul.mubr.f32.gmra.mrb[0].mxu0 %v3067
      %v3069 = vpop.f32.mrb[0].mxu0
      %v3070 = vadd.f32 %v2998, %v3069
      %v3071 = vpop.f32.mrb[0].mxu0
      %3072 = vdwg.mxu0
      %v3073 = vmul.f32 %v2162, %v341
      %3074 = vmatprep.subr.mxu0 0.0
      %v3075 = vand.u32 %v3073, 4294901760
      %3076 = vmatpush1.msra.mxu0 %v3075
      %3077 = vmatprep.subr.mxu0 0.0
      %3078 = vmatpush1.msra.mxu0 0.0
      %3079 = vmatprep.subr.mxu0 0.0
      %3080 = vmatpush1.msra.mxu0 0.0
      %3081 = vmatprep.subr.mxu0 0.0
      %3082 = vmatpush1.msra.mxu0 0.0
      %3083 = vmatprep.subr.mxu0 0.0
      %3084 = vmatpush1.msra.mxu0 0.0
      %3085 = vmatprep.subr.mxu0 0.0
      %3086 = vmatpush1.msra.mxu0 0.0
      %3087 = vmatprep.subr.mxu0 0.0
      %3088 = vmatpush1.msra.mxu0 0.0
      %3089 = vmatprep.subr.mxu0 0.0
      %3090 = vmatpush1.msra.mxu0 0.0
      %3091 = vmatprep.subr.mxu0 0.0
      %3092 = vmatpush1.msra.mxu0 0.0
      %3093 = vmatprep.subr.mxu0 0.0
      %3094 = vmatpush1.msra.mxu0 0.0
      %3095 = vmatprep.subr.mxu0 0.0
      %3096 = vmatpush1.msra.mxu0 0.0
      %3097 = vmatprep.subr.mxu0 0.0
      %3098 = vmatpush1.msra.mxu0 0.0
      %3099 = vmatprep.subr.mxu0 0.0
      %3100 = vmatpush1.msra.mxu0 0.0
      %3101 = vmatprep.subr.mxu0 0.0
      %3102 = vmatpush1.msra.mxu0 0.0
      %3103 = vmatprep.subr.mxu0 0.0
      %3104 = vmatpush1.msra.mxu0 0.0
      %3105 = vmatprep.subr.mxu0 0.0
      %3106 = vmatpush1.msra.mxu0 0.0
      %3107 = vmatprep.subr.mxu0 0.0
      %3108 = vmatpush1.msra.mxu0 0.0
      %3109 = vmatprep.subr.mxu0 0.0
      %3110 = vmatpush1.msra.mxu0 0.0
      %3111 = vmatprep.subr.mxu0 0.0
      %3112 = vmatpush1.msra.mxu0 0.0
      %3113 = vmatprep.subr.mxu0 0.0
      %3114 = vmatpush1.msra.mxu0 0.0
      %3115 = vmatprep.subr.mxu0 0.0
      %3116 = vmatpush1.msra.mxu0 0.0
      %3117 = vmatprep.subr.mxu0 0.0
      %3118 = vmatpush1.msra.mxu0 0.0
      %3119 = vmatprep.subr.mxu0 0.0
      %3120 = vmatpush1.msra.mxu0 0.0
      %3121 = vmatprep.subr.mxu0 0.0
      %3122 = vmatpush1.msra.mxu0 0.0
      %3123 = vmatprep.subr.mxu0 0.0
      %3124 = vmatpush1.msra.mxu0 0.0
      %3125 = vmatprep.subr.mxu0 0.0
      %3126 = vmatpush1.msra.mxu0 0.0
      %3127 = vmatprep.subr.mxu0 0.0
      %3128 = vmatpush1.msra.mxu0 0.0
      %3129 = vmatprep.subr.mxu0 0.0
      %3130 = vmatpush1.msra.mxu0 0.0
      %3131 = vmatprep.subr.mxu0 0.0
      %3132 = vmatpush1.msra.mxu0 0.0
      %3133 = vmatprep.subr.mxu0 0.0
      %3134 = vmatpush1.msra.mxu0 0.0
      %3135 = vmatprep.subr.mxu0 0.0
      %3136 = vmatpush1.msra.mxu0 0.0
      %3137 = vmatprep.subr.mxu0 0.0
      %3138 = vmatpush1.msra.mxu0 0.0
      %3139 = vmatprep.mubr.f32.mxu0 0.0
      %v3140 = vand.u32 %v374, 4294901760
      %v3141 = vsub.f32 %v374, %v3140
      %v3142 = vand.u32 %v3141, 4294901760
      %v3143 = vsub.f32 %v3141, %v3142
      %v3144 = vand.u32 %v3143, 4294901760
      %3145 = vmatmul.mubr.f32.gmra.mrb[0].mxu0 %v3144
      %v3146 = vpop.f32.mrb[0].mxu0
      %v3147 = vadd.f32 0.0, %v3146
      %v3148 = vpop.f32.mrb[0].mxu0
      %3149 = vdwg.mxu0
      %3150 = vmatprep.subr.mxu0 0.0
      %v3151 = vand.u32 %v3073, 4294901760
      %v3152 = vsub.f32 %v3073, %v3151
      %v3153 = vand.u32 %v3152, 4294901760
      %v3154 = vsub.f32 %v3152, %v3153
      %v3155 = vand.u32 %v3154, 4294901760
      %3156 = vmatpush1.msra.mxu0 %v3155
      %3157 = vmatprep.subr.mxu0 0.0
      %3158 = vmatpush1.msra.mxu0 0.0
      %3159 = vmatprep.subr.mxu0 0.0
      %3160 = vmatpush1.msra.mxu0 0.0
      %3161 = vmatprep.subr.mxu0 0.0
      %3162 = vmatpush1.msra.mxu0 0.0
      %3163 = vmatprep.subr.mxu0 0.0
      %3164 = vmatpush1.msra.mxu0 0.0
      %3165 = vmatprep.subr.mxu0 0.0
      %3166 = vmatpush1.msra.mxu0 0.0
      %3167 = vmatprep.subr.mxu0 0.0
      %3168 = vmatpush1.msra.mxu0 0.0
      %3169 = vmatprep.subr.mxu0 0.0
      %3170 = vmatpush1.msra.mxu0 0.0
      %3171 = vmatprep.subr.mxu0 0.0
      %3172 = vmatpush1.msra.mxu0 0.0
      %3173 = vmatprep.subr.mxu0 0.0
      %3174 = vmatpush1.msra.mxu0 0.0
      %3175 = vmatprep.subr.mxu0 0.0
      %3176 = vmatpush1.msra.mxu0 0.0
      %3177 = vmatprep.subr.mxu0 0.0
      %3178 = vmatpush1.msra.mxu0 0.0
      %3179 = vmatprep.subr.mxu0 0.0
      %3180 = vmatpush1.msra.mxu0 0.0
      %3181 = vmatprep.subr.mxu0 0.0
      %3182 = vmatpush1.msra.mxu0 0.0
      %3183 = vmatprep.subr.mxu0 0.0
      %3184 = vmatpush1.msra.mxu0 0.0
      %3185 = vmatprep.subr.mxu0 0.0
      %3186 = vmatpush1.msra.mxu0 0.0
      %3187 = vmatprep.subr.mxu0 0.0
      %3188 = vmatpush1.msra.mxu0 0.0
      %3189 = vmatprep.subr.mxu0 0.0
      %3190 = vmatpush1.msra.mxu0 0.0
      %3191 = vmatprep.subr.mxu0 0.0
      %3192 = vmatpush1.msra.mxu0 0.0
      %3193 = vmatprep.subr.mxu0 0.0
      %3194 = vmatpush1.msra.mxu0 0.0
      %3195 = vmatprep.subr.mxu0 0.0
      %3196 = vmatpush1.msra.mxu0 0.0
      %3197 = vmatprep.subr.mxu0 0.0
      %3198 = vmatpush1.msra.mxu0 0.0
      %3199 = vmatprep.subr.mxu0 0.0
      %3200 = vmatpush1.msra.mxu0 0.0
      %3201 = vmatprep.subr.mxu0 0.0
      %3202 = vmatpush1.msra.mxu0 0.0
      %3203 = vmatprep.subr.mxu0 0.0
      %3204 = vmatpush1.msra.mxu0 0.0
      %3205 = vmatprep.subr.mxu0 0.0
      %3206 = vmatpush1.msra.mxu0 0.0
      %3207 = vmatprep.subr.mxu0 0.0
      %3208 = vmatpush1.msra.mxu0 0.0
      %3209 = vmatprep.subr.mxu0 0.0
      %3210 = vmatpush1.msra.mxu0 0.0
      %3211 = vmatprep.subr.mxu0 0.0
      %3212 = vmatpush1.msra.mxu0 0.0
      %3213 = vmatprep.subr.mxu0 0.0
      %3214 = vmatpush1.msra.mxu0 0.0
      %3215 = vmatprep.subr.mxu0 0.0
      %3216 = vmatpush1.msra.mxu0 0.0
      %3217 = vmatprep.subr.mxu0 0.0
      %3218 = vmatpush1.msra.mxu0 0.0
      %3219 = vmatprep.mubr.f32.mxu0 0.0
      %v3220 = vand.u32 %v374, 4294901760
      %3221 = vmatmul.mubr.f32.gmra.mrb[0].mxu0 %v3220
      %v3222 = vpop.f32.mrb[0].mxu0
      %v3223 = vadd.f32 %v3147, %v3222
      %v3224 = vpop.f32.mrb[0].mxu0
      %3225 = vdwg.mxu0
      %3226 = vmatprep.subr.mxu0 0.0
      %v3227 = vand.u32 %v3073, 4294901760
      %v3228 = vsub.f32 %v3073, %v3227
      %3229 = vmatpush1.msra.mxu0 %v3228
      %3230 = vmatprep.subr.mxu0 0.0
      %3231 = vmatpush1.msra.mxu0 0.0
      %3232 = vmatprep.subr.mxu0 0.0
      %3233 = vmatpush1.msra.mxu0 0.0
      %3234 = vmatprep.subr.mxu0 0.0
      %3235 = vmatpush1.msra.mxu0 0.0
      %3236 = vmatprep.subr.mxu0 0.0
      %3237 = vmatpush1.msra.mxu0 0.0
      %3238 = vmatprep.subr.mxu0 0.0
      %3239 = vmatpush1.msra.mxu0 0.0
      %3240 = vmatprep.subr.mxu0 0.0
      %3241 = vmatpush1.msra.mxu0 0.0
      %3242 = vmatprep.subr.mxu0 0.0
      %3243 = vmatpush1.msra.mxu0 0.0
      %3244 = vmatprep.subr.mxu0 0.0
      %3245 = vmatpush1.msra.mxu0 0.0
      %3246 = vmatprep.subr.mxu0 0.0
      %3247 = vmatpush1.msra.mxu0 0.0
      %3248 = vmatprep.subr.mxu0 0.0
      %3249 = vmatpush1.msra.mxu0 0.0
      %3250 = vmatprep.subr.mxu0 0.0
      %3251 = vmatpush1.msra.mxu0 0.0
      %3252 = vmatprep.subr.mxu0 0.0
      %3253 = vmatpush1.msra.mxu0 0.0
      %3254 = vmatprep.subr.mxu0 0.0
      %3255 = vmatpush1.msra.mxu0 0.0
      %3256 = vmatprep.subr.mxu0 0.0
      %3257 = vmatpush1.msra.mxu0 0.0
      %3258 = vmatprep.subr.mxu0 0.0
      %3259 = vmatpush1.msra.mxu0 0.0
      %3260 = vmatprep.subr.mxu0 0.0
      %3261 = vmatpush1.msra.mxu0 0.0
      %3262 = vmatprep.subr.mxu0 0.0
      %3263 = vmatpush1.msra.mxu0 0.0
      %3264 = vmatprep.subr.mxu0 0.0
      %3265 = vmatpush1.msra.mxu0 0.0
      %3266 = vmatprep.subr.mxu0 0.0
      %3267 = vmatpush1.msra.mxu0 0.0
      %3268 = vmatprep.subr.mxu0 0.0
      %3269 = vmatpush1.msra.mxu0 0.0
      %3270 = vmatprep.subr.mxu0 0.0
      %3271 = vmatpush1.msra.mxu0 0.0
      %3272 = vmatprep.subr.mxu0 0.0
      %3273 = vmatpush1.msra.mxu0 0.0
      %3274 = vmatprep.subr.mxu0 0.0
      %3275 = vmatpush1.msra.mxu0 0.0
      %3276 = vmatprep.subr.mxu0 0.0
      %3277 = vmatpush1.msra.mxu0 0.0
      %3278 = vmatprep.subr.mxu0 0.0
      %3279 = vmatpush1.msra.mxu0 0.0
      %3280 = vmatprep.subr.mxu0 0.0
      %3281 = vmatpush1.msra.mxu0 0.0
      %3282 = vmatprep.subr.mxu0 0.0
      %3283 = vmatpush1.msra.mxu0 0.0
      %3284 = vmatprep.subr.mxu0 0.0
      %3285 = vmatpush1.msra.mxu0 0.0
      %3286 = vmatprep.subr.mxu0 0.0
      %3287 = vmatpush1.msra.mxu0 0.0
      %3288 = vmatprep.subr.mxu0 0.0
      %3289 = vmatpush1.msra.mxu0 0.0
      %3290 = vmatprep.subr.mxu0 0.0
      %3291 = vmatpush1.msra.mxu0 0.0
      %3292 = vmatprep.mubr.f32.mxu0 0.0
      %v3293 = vand.u32 %v374, 4294901760
      %v3294 = vsub.f32 %v374, %v3293
      %3295 = vmatmul.mubr.f32.gmra.mrb[0].mxu0 %v3294
      %v3296 = vpop.f32.mrb[0].mxu0
      %v3297 = vadd.f32 %v3223, %v3296
      %v3298 = vpop.f32.mrb[0].mxu0
      %3299 = vdwg.mxu0
      %3300 = vmatprep.subr.mxu0 0.0
      %v3301 = vand.u32 %v3073, 4294901760
      %3302 = vmatpush1.msra.mxu0 %v3301
      %3303 = vmatprep.subr.mxu0 0.0
      %3304 = vmatpush1.msra.mxu0 0.0
      %3305 = vmatprep.subr.mxu0 0.0
      %3306 = vmatpush1.msra.mxu0 0.0
      %3307 = vmatprep.subr.mxu0 0.0
      %3308 = vmatpush1.msra.mxu0 0.0
      %3309 = vmatprep.subr.mxu0 0.0
      %3310 = vmatpush1.msra.mxu0 0.0
      %3311 = vmatprep.subr.mxu0 0.0
      %3312 = vmatpush1.msra.mxu0 0.0
      %3313 = vmatprep.subr.mxu0 0.0
      %3314 = vmatpush1.msra.mxu0 0.0
      %3315 = vmatprep.subr.mxu0 0.0
      %3316 = vmatpush1.msra.mxu0 0.0
      %3317 = vmatprep.subr.mxu0 0.0
      %3318 = vmatpush1.msra.mxu0 0.0
      %3319 = vmatprep.subr.mxu0 0.0
      %3320 = vmatpush1.msra.mxu0 0.0
      %3321 = vmatprep.subr.mxu0 0.0
      %3322 = vmatpush1.msra.mxu0 0.0
      %3323 = vmatprep.subr.mxu0 0.0
      %3324 = vmatpush1.msra.mxu0 0.0
      %3325 = vmatprep.subr.mxu0 0.0
      %3326 = vmatpush1.msra.mxu0 0.0
      %3327 = vmatprep.subr.mxu0 0.0
      %3328 = vmatpush1.msra.mxu0 0.0
      %3329 = vmatprep.subr.mxu0 0.0
      %3330 = vmatpush1.msra.mxu0 0.0
      %3331 = vmatprep.subr.mxu0 0.0
      %3332 = vmatpush1.msra.mxu0 0.0
      %3333 = vmatprep.subr.mxu0 0.0
      %3334 = vmatpush1.msra.mxu0 0.0
      %3335 = vmatprep.subr.mxu0 0.0
      %3336 = vmatpush1.msra.mxu0 0.0
      %3337 = vmatprep.subr.mxu0 0.0
      %3338 = vmatpush1.msra.mxu0 0.0
      %3339 = vmatprep.subr.mxu0 0.0
      %3340 = vmatpush1.msra.mxu0 0.0
      %3341 = vmatprep.subr.mxu0 0.0
      %3342 = vmatpush1.msra.mxu0 0.0
      %3343 = vmatprep.subr.mxu0 0.0
      %3344 = vmatpush1.msra.mxu0 0.0
      %3345 = vmatprep.subr.mxu0 0.0
      %3346 = vmatpush1.msra.mxu0 0.0
      %3347 = vmatprep.subr.mxu0 0.0
      %3348 = vmatpush1.msra.mxu0 0.0
      %3349 = vmatprep.subr.mxu0 0.0
      %3350 = vmatpush1.msra.mxu0 0.0
      %3351 = vmatprep.subr.mxu0 0.0
      %3352 = vmatpush1.msra.mxu0 0.0
      %3353 = vmatprep.subr.mxu0 0.0
      %3354 = vmatpush1.msra.mxu0 0.0
      %3355 = vmatprep.subr.mxu0 0.0
      %3356 = vmatpush1.msra.mxu0 0.0
      %3357 = vmatprep.subr.mxu0 0.0
      %3358 = vmatpush1.msra.mxu0 0.0
      %3359 = vmatprep.subr.mxu0 0.0
      %3360 = vmatpush1.msra.mxu0 0.0
      %3361 = vmatprep.subr.mxu0 0.0
      %3362 = vmatpush1.msra.mxu0 0.0
      %3363 = vmatprep.subr.mxu0 0.0
      %3364 = vmatpush1.msra.mxu0 0.0
      %3365 = vmatprep.mubr.f32.mxu0 0.0
      %v3366 = vand.u32 %v374, 4294901760
      %v3367 = vsub.f32 %v374, %v3366
      %v3368 = vand.u32 %v3367, 4294901760
      %3369 = vmatmul.mubr.f32.gmra.mrb[0].mxu0 %v3368
      %v3370 = vpop.f32.mrb[0].mxu0
      %v3371 = vadd.f32 %v3297, %v3370
      %v3372 = vpop.f32.mrb[0].mxu0
      %3373 = vdwg.mxu0
      %3374 = vmatprep.subr.mxu0 0.0
      %v3375 = vand.u32 %v3073, 4294901760
      %v3376 = vsub.f32 %v3073, %v3375
      %v3377 = vand.u32 %v3376, 4294901760
      %3378 = vmatpush1.msra.mxu0 %v3377
      %3379 = vmatprep.subr.mxu0 0.0
      %3380 = vmatpush1.msra.mxu0 0.0
      %3381 = vmatprep.subr.mxu0 0.0
      %3382 = vmatpush1.msra.mxu0 0.0
      %3383 = vmatprep.subr.mxu0 0.0
      %3384 = vmatpush1.msra.mxu0 0.0
      %3385 = vmatprep.subr.mxu0 0.0
      %3386 = vmatpush1.msra.mxu0 0.0
      %3387 = vmatprep.subr.mxu0 0.0
      %3388 = vmatpush1.msra.mxu0 0.0
      %3389 = vmatprep.subr.mxu0 0.0
      %3390 = vmatpush1.msra.mxu0 0.0
      %3391 = vmatprep.subr.mxu0 0.0
      %3392 = vmatpush1.msra.mxu0 0.0
      %3393 = vmatprep.subr.mxu0 0.0
      %3394 = vmatpush1.msra.mxu0 0.0
      %3395 = vmatprep.subr.mxu0 0.0
      %3396 = vmatpush1.msra.mxu0 0.0
      %3397 = vmatprep.subr.mxu0 0.0
      %3398 = vmatpush1.msra.mxu0 0.0
      %3399 = vmatprep.subr.mxu0 0.0
      %3400 = vmatpush1.msra.mxu0 0.0
      %3401 = vmatprep.subr.mxu0 0.0
      %3402 = vmatpush1.msra.mxu0 0.0
      %3403 = vmatprep.subr.mxu0 0.0
      %3404 = vmatpush1.msra.mxu0 0.0
      %3405 = vmatprep.subr.mxu0 0.0
      %3406 = vmatpush1.msra.mxu0 0.0
      %3407 = vmatprep.subr.mxu0 0.0
      %3408 = vmatpush1.msra.mxu0 0.0
      %3409 = vmatprep.subr.mxu0 0.0
      %3410 = vmatpush1.msra.mxu0 0.0
      %3411 = vmatprep.subr.mxu0 0.0
      %3412 = vmatpush1.msra.mxu0 0.0
      %3413 = vmatprep.subr.mxu0 0.0
      %3414 = vmatpush1.msra.mxu0 0.0
      %3415 = vmatprep.subr.mxu0 0.0
      %3416 = vmatpush1.msra.mxu0 0.0
      %3417 = vmatprep.subr.mxu0 0.0
      %3418 = vmatpush1.msra.mxu0 0.0
      %3419 = vmatprep.subr.mxu0 0.0
      %3420 = vmatpush1.msra.mxu0 0.0
      %3421 = vmatprep.subr.mxu0 0.0
      %3422 = vmatpush1.msra.mxu0 0.0
      %3423 = vmatprep.subr.mxu0 0.0
      %3424 = vmatpush1.msra.mxu0 0.0
      %3425 = vmatprep.subr.mxu0 0.0
      %3426 = vmatpush1.msra.mxu0 0.0
      %3427 = vmatprep.subr.mxu0 0.0
      %3428 = vmatpush1.msra.mxu0 0.0
      %3429 = vmatprep.subr.mxu0 0.0
      %3430 = vmatpush1.msra.mxu0 0.0
      %3431 = vmatprep.subr.mxu0 0.0
      %3432 = vmatpush1.msra.mxu0 0.0
      %3433 = vmatprep.subr.mxu0 0.0
      %3434 = vmatpush1.msra.mxu0 0.0
      %3435 = vmatprep.subr.mxu0 0.0
      %3436 = vmatpush1.msra.mxu0 0.0
      %3437 = vmatprep.subr.mxu0 0.0
      %3438 = vmatpush1.msra.mxu0 0.0
      %3439 = vmatprep.subr.mxu0 0.0
      %3440 = vmatpush1.msra.mxu0 0.0
      %3441 = vmatprep.mubr.f32.mxu0 0.0
      %v3442 = vand.u32 %v374, 4294901760
      %3443 = vmatmul.mubr.f32.gmra.mrb[0].mxu0 %v3442
      %v3444 = vpop.f32.mrb[0].mxu0
      %v3445 = vadd.f32 %v3371, %v3444
      %v3446 = vpop.f32.mrb[0].mxu0
      %3447 = vdwg.mxu0
      %3448 = vmatprep.subr.mxu0 0.0
      %v3449 = vand.u32 %v3073, 4294901760
      %3450 = vmatpush1.msra.mxu0 %v3449
      %3451 = vmatprep.subr.mxu0 0.0
      %3452 = vmatpush1.msra.mxu0 0.0
      %3453 = vmatprep.subr.mxu0 0.0
      %3454 = vmatpush1.msra.mxu0 0.0
      %3455 = vmatprep.subr.mxu0 0.0
      %3456 = vmatpush1.msra.mxu0 0.0
      %3457 = vmatprep.subr.mxu0 0.0
      %3458 = vmatpush1.msra.mxu0 0.0
      %3459 = vmatprep.subr.mxu0 0.0
      %3460 = vmatpush1.msra.mxu0 0.0
      %3461 = vmatprep.subr.mxu0 0.0
      %3462 = vmatpush1.msra.mxu0 0.0
      %3463 = vmatprep.subr.mxu0 0.0
      %3464 = vmatpush1.msra.mxu0 0.0
      %3465 = vmatprep.subr.mxu0 0.0
      %3466 = vmatpush1.msra.mxu0 0.0
      %3467 = vmatprep.subr.mxu0 0.0
      %3468 = vmatpush1.msra.mxu0 0.0
      %3469 = vmatprep.subr.mxu0 0.0
      %3470 = vmatpush1.msra.mxu0 0.0
      %3471 = vmatprep.subr.mxu0 0.0
      %3472 = vmatpush1.msra.mxu0 0.0
      %3473 = vmatprep.subr.mxu0 0.0
      %3474 = vmatpush1.msra.mxu0 0.0
      %3475 = vmatprep.subr.mxu0 0.0
      %3476 = vmatpush1.msra.mxu0 0.0
      %3477 = vmatprep.subr.mxu0 0.0
      %3478 = vmatpush1.msra.mxu0 0.0
      %3479 = vmatprep.subr.mxu0 0.0
      %3480 = vmatpush1.msra.mxu0 0.0
      %3481 = vmatprep.subr.mxu0 0.0
      %3482 = vmatpush1.msra.mxu0 0.0
      %3483 = vmatprep.subr.mxu0 0.0
      %3484 = vmatpush1.msra.mxu0 0.0
      %3485 = vmatprep.subr.mxu0 0.0
      %3486 = vmatpush1.msra.mxu0 0.0
      %3487 = vmatprep.subr.mxu0 0.0
      %3488 = vmatpush1.msra.mxu0 0.0
      %3489 = vmatprep.subr.mxu0 0.0
      %3490 = vmatpush1.msra.mxu0 0.0
      %3491 = vmatprep.subr.mxu0 0.0
      %3492 = vmatpush1.msra.mxu0 0.0
      %3493 = vmatprep.subr.mxu0 0.0
      %3494 = vmatpush1.msra.mxu0 0.0
      %3495 = vmatprep.subr.mxu0 0.0
      %3496 = vmatpush1.msra.mxu0 0.0
      %3497 = vmatprep.subr.mxu0 0.0
      %3498 = vmatpush1.msra.mxu0 0.0
      %3499 = vmatprep.subr.mxu0 0.0
      %3500 = vmatpush1.msra.mxu0 0.0
      %3501 = vmatprep.subr.mxu0 0.0
      %3502 = vmatpush1.msra.mxu0 0.0
      %3503 = vmatprep.subr.mxu0 0.0
      %3504 = vmatpush1.msra.mxu0 0.0
      %3505 = vmatprep.subr.mxu0 0.0
      %3506 = vmatpush1.msra.mxu0 0.0
      %3507 = vmatprep.subr.mxu0 0.0
      %3508 = vmatpush1.msra.mxu0 0.0
      %3509 = vmatprep.subr.mxu0 0.0
      %3510 = vmatpush1.msra.mxu0 0.0
      %3511 = vmatprep.subr.mxu0 0.0
      %3512 = vmatpush1.msra.mxu0 0.0
      %3513 = vmatprep.mubr.f32.mxu0 0.0
      %v3514 = vand.u32 %v374, 4294901760
      %3515 = vmatmul.mubr.f32.gmra.mrb[0].mxu0 %v3514
      %v3516 = vpop.f32.mrb[0].mxu0
      %v3517 = vadd.f32 %v3445, %v3516
      %v3518 = vpop.f32.mrb[0].mxu0
      %3519 = vdwg.mxu0
      %v3520 = vld [vmem:[%s320] sm:$0xff]
      %v3521 = vsel %vm339, %v3520, 0.0
      %v3522 = vlog2.pop %v3521
      %v3523 = vmul.f32 %v3522, 0.6931472
      %v3524 = vmax.f32 %v3523, -100.0
      %v3525 = vsub.f32 0.0, %v3521
      %v3526 = vadd.f32 %v3525, 1.0
      %v3527 = vlog2.pop %v3526
      %v3528 = vmul.f32 %v3527, 0.6931472
      %v3529 = vmul.f32 -0.5, %v3525
      %v3530 = vadd.f32 %v3529, 1.0
      %v3531 = vmul.f32 %v3530, %v3525
      %v3532 = vand.u32 2147483647, %v3525
      %vm3533 = vcmp.lt.f32.partialorder %v3532, 0.0004427343
      %v3534 = vsel %vm3533, %v3531, %v3528
      %v3535 = vmax.f32 %v3534, -100.0
      %v3536 = vmul.f32 %v341, %v3524
      %v3537 = vmul.f32 %v342, %v3535
      %v3538 = vadd.f32 %v3536, %v3537
      %v3539 = vsub.f32 0.0, %v3538
      %3540 = vmatprep.subr.mxu0 0.0
      %v3541 = vand.u32 %v3539, 4294901760
      %3542 = vmatpush1.msra.mxu0 %v3541
      %3543 = vmatprep.subr.mxu0 0.0
      %3544 = vmatpush1.msra.mxu0 0.0
      %3545 = vmatprep.subr.mxu0 0.0
      %3546 = vmatpush1.msra.mxu0 0.0
      %3547 = vmatprep.subr.mxu0 0.0
      %3548 = vmatpush1.msra.mxu0 0.0
      %3549 = vmatprep.subr.mxu0 0.0
      %3550 = vmatpush1.msra.mxu0 0.0
      %3551 = vmatprep.subr.mxu0 0.0
      %3552 = vmatpush1.msra.mxu0 0.0
      %3553 = vmatprep.subr.mxu0 0.0
      %3554 = vmatpush1.msra.mxu0 0.0
      %3555 = vmatprep.subr.mxu0 0.0
      %3556 = vmatpush1.msra.mxu0 0.0
      %3557 = vmatprep.subr.mxu0 0.0
      %3558 = vmatpush1.msra.mxu0 0.0
      %3559 = vmatprep.subr.mxu0 0.0
      %3560 = vmatpush1.msra.mxu0 0.0
      %3561 = vmatprep.subr.mxu0 0.0
      %3562 = vmatpush1.msra.mxu0 0.0
      %3563 = vmatprep.subr.mxu0 0.0
      %3564 = vmatpush1.msra.mxu0 0.0
      %3565 = vmatprep.subr.mxu0 0.0
      %3566 = vmatpush1.msra.mxu0 0.0
      %3567 = vmatprep.subr.mxu0 0.0
      %3568 = vmatpush1.msra.mxu0 0.0
      %3569 = vmatprep.subr.mxu0 0.0
      %3570 = vmatpush1.msra.mxu0 0.0
      %3571 = vmatprep.subr.mxu0 0.0
      %3572 = vmatpush1.msra.mxu0 0.0
      %3573 = vmatprep.subr.mxu0 0.0
      %3574 = vmatpush1.msra.mxu0 0.0
      %3575 = vmatprep.subr.mxu0 0.0
      %3576 = vmatpush1.msra.mxu0 0.0
      %3577 = vmatprep.subr.mxu0 0.0
      %3578 = vmatpush1.msra.mxu0 0.0
      %3579 = vmatprep.subr.mxu0 0.0
      %3580 = vmatpush1.msra.mxu0 0.0
      %3581 = vmatprep.subr.mxu0 0.0
      %3582 = vmatpush1.msra.mxu0 0.0
      %3583 = vmatprep.subr.mxu0 0.0
      %3584 = vmatpush1.msra.mxu0 0.0
      %3585 = vmatprep.subr.mxu0 0.0
      %3586 = vmatpush1.msra.mxu0 0.0
      %3587 = vmatprep.subr.mxu0 0.0
      %3588 = vmatpush1.msra.mxu0 0.0
      %3589 = vmatprep.subr.mxu0 0.0
      %3590 = vmatpush1.msra.mxu0 0.0
      %3591 = vmatprep.subr.mxu0 0.0
      %3592 = vmatpush1.msra.mxu0 0.0
      %3593 = vmatprep.subr.mxu0 0.0
      %3594 = vmatpush1.msra.mxu0 0.0
      %3595 = vmatprep.subr.mxu0 0.0
      %3596 = vmatpush1.msra.mxu0 0.0
      %3597 = vmatprep.subr.mxu0 0.0
      %3598 = vmatpush1.msra.mxu0 0.0
      %3599 = vmatprep.subr.mxu0 0.0
      %3600 = vmatpush1.msra.mxu0 0.0
      %3601 = vmatprep.subr.mxu0 0.0
      %3602 = vmatpush1.msra.mxu0 0.0
      %3603 = vmatprep.subr.mxu0 0.0
      %3604 = vmatpush1.msra.mxu0 0.0
      %3605 = vmatprep.mubr.f32.mxu0 0.0
      %v3606 = vand.u32 %v374, 4294901760
      %v3607 = vsub.f32 %v374, %v3606
      %v3608 = vand.u32 %v3607, 4294901760
      %v3609 = vsub.f32 %v3607, %v3608
      %v3610 = vand.u32 %v3609, 4294901760
      %3611 = vmatmul.mubr.f32.gmra.mrb[0].mxu0 %v3610
      %v3612 = vpop.f32.mrb[0].mxu0
      %v3613 = vadd.f32 0.0, %v3612
      %v3614 = vpop.f32.mrb[0].mxu0
      %3615 = vdwg.mxu0
      %3616 = vmatprep.subr.mxu0 0.0
      %v3617 = vand.u32 %v3539, 4294901760
      %v3618 = vsub.f32 %v3539, %v3617
      %v3619 = vand.u32 %v3618, 4294901760
      %v3620 = vsub.f32 %v3618, %v3619
      %v3621 = vand.u32 %v3620, 4294901760
      %3622 = vmatpush1.msra.mxu0 %v3621
      %3623 = vmatprep.subr.mxu0 0.0
      %3624 = vmatpush1.msra.mxu0 0.0
      %3625 = vmatprep.subr.mxu0 0.0
      %3626 = vmatpush1.msra.mxu0 0.0
      %3627 = vmatprep.subr.mxu0 0.0
      %3628 = vmatpush1.msra.mxu0 0.0
      %3629 = vmatprep.subr.mxu0 0.0
      %3630 = vmatpush1.msra.mxu0 0.0
      %3631 = vmatprep.subr.mxu0 0.0
      %3632 = vmatpush1.msra.mxu0 0.0
      %3633 = vmatprep.subr.mxu0 0.0
      %3634 = vmatpush1.msra.mxu0 0.0
      %3635 = vmatprep.subr.mxu0 0.0
      %3636 = vmatpush1.msra.mxu0 0.0
      %3637 = vmatprep.subr.mxu0 0.0
      %3638 = vmatpush1.msra.mxu0 0.0
      %3639 = vmatprep.subr.mxu0 0.0
      %3640 = vmatpush1.msra.mxu0 0.0
      %3641 = vmatprep.subr.mxu0 0.0
      %3642 = vmatpush1.msra.mxu0 0.0
      %3643 = vmatprep.subr.mxu0 0.0
      %3644 = vmatpush1.msra.mxu0 0.0
      %3645 = vmatprep.subr.mxu0 0.0
      %3646 = vmatpush1.msra.mxu0 0.0
      %3647 = vmatprep.subr.mxu0 0.0
      %3648 = vmatpush1.msra.mxu0 0.0
      %3649 = vmatprep.subr.mxu0 0.0
      %3650 = vmatpush1.msra.mxu0 0.0
      %3651 = vmatprep.subr.mxu0 0.0
      %3652 = vmatpush1.msra.mxu0 0.0
      %3653 = vmatprep.subr.mxu0 0.0
      %3654 = vmatpush1.msra.mxu0 0.0
      %3655 = vmatprep.subr.mxu0 0.0
      %3656 = vmatpush1.msra.mxu0 0.0
      %3657 = vmatprep.subr.mxu0 0.0
      %3658 = vmatpush1.msra.mxu0 0.0
      %3659 = vmatprep.subr.mxu0 0.0
      %3660 = vmatpush1.msra.mxu0 0.0
      %3661 = vmatprep.subr.mxu0 0.0
      %3662 = vmatpush1.msra.mxu0 0.0
      %3663 = vmatprep.subr.mxu0 0.0
      %3664 = vmatpush1.msra.mxu0 0.0
      %3665 = vmatprep.subr.mxu0 0.0
      %3666 = vmatpush1.msra.mxu0 0.0
      %3667 = vmatprep.subr.mxu0 0.0
      %3668 = vmatpush1.msra.mxu0 0.0
      %3669 = vmatprep.subr.mxu0 0.0
      %3670 = vmatpush1.msra.mxu0 0.0
      %3671 = vmatprep.subr.mxu0 0.0
      %3672 = vmatpush1.msra.mxu0 0.0
      %3673 = vmatprep.subr.mxu0 0.0
      %3674 = vmatpush1.msra.mxu0 0.0
      %3675 = vmatprep.subr.mxu0 0.0
      %3676 = vmatpush1.msra.mxu0 0.0
      %3677 = vmatprep.subr.mxu0 0.0
      %3678 = vmatpush1.msra.mxu0 0.0
      %3679 = vmatprep.subr.mxu0 0.0
      %3680 = vmatpush1.msra.mxu0 0.0
      %3681 = vmatprep.subr.mxu0 0.0
      %3682 = vmatpush1.msra.mxu0 0.0
      %3683 = vmatprep.subr.mxu0 0.0
      %3684 = vmatpush1.msra.mxu0 0.0
      %3685 = vmatprep.mubr.f32.mxu0 0.0
      %v3686 = vand.u32 %v374, 4294901760
      %3687 = vmatmul.mubr.f32.gmra.mrb[0].mxu0 %v3686
      %v3688 = vpop.f32.mrb[0].mxu0
      %v3689 = vadd.f32 %v3613, %v3688
      %v3690 = vpop.f32.mrb[0].mxu0
      %3691 = vdwg.mxu0
      %3692 = vmatprep.subr.mxu0 0.0
      %v3693 = vand.u32 %v3539, 4294901760
      %v3694 = vsub.f32 %v3539, %v3693
      %3695 = vmatpush1.msra.mxu0 %v3694
      %3696 = vmatprep.subr.mxu0 0.0
      %3697 = vmatpush1.msra.mxu0 0.0
      %3698 = vmatprep.subr.mxu0 0.0
      %3699 = vmatpush1.msra.mxu0 0.0
      %3700 = vmatprep.subr.mxu0 0.0
      %3701 = vmatpush1.msra.mxu0 0.0
      %3702 = vmatprep.subr.mxu0 0.0
      %3703 = vmatpush1.msra.mxu0 0.0
      %3704 = vmatprep.subr.mxu0 0.0
      %3705 = vmatpush1.msra.mxu0 0.0
      %3706 = vmatprep.subr.mxu0 0.0
      %3707 = vmatpush1.msra.mxu0 0.0
      %3708 = vmatprep.subr.mxu0 0.0
      %3709 = vmatpush1.msra.mxu0 0.0
      %3710 = vmatprep.subr.mxu0 0.0
      %3711 = vmatpush1.msra.mxu0 0.0
      %3712 = vmatprep.subr.mxu0 0.0
      %3713 = vmatpush1.msra.mxu0 0.0
      %3714 = vmatprep.subr.mxu0 0.0
      %3715 = vmatpush1.msra.mxu0 0.0
      %3716 = vmatprep.subr.mxu0 0.0
      %3717 = vmatpush1.msra.mxu0 0.0
      %3718 = vmatprep.subr.mxu0 0.0
      %3719 = vmatpush1.msra.mxu0 0.0
      %3720 = vmatprep.subr.mxu0 0.0
      %3721 = vmatpush1.msra.mxu0 0.0
      %3722 = vmatprep.subr.mxu0 0.0
      %3723 = vmatpush1.msra.mxu0 0.0
      %3724 = vmatprep.subr.mxu0 0.0
      %3725 = vmatpush1.msra.mxu0 0.0
      %3726 = vmatprep.subr.mxu0 0.0
      %3727 = vmatpush1.msra.mxu0 0.0
      %3728 = vmatprep.subr.mxu0 0.0
      %3729 = vmatpush1.msra.mxu0 0.0
      %3730 = vmatprep.subr.mxu0 0.0
      %3731 = vmatpush1.msra.mxu0 0.0
      %3732 = vmatprep.subr.mxu0 0.0
      %3733 = vmatpush1.msra.mxu0 0.0
      %3734 = vmatprep.subr.mxu0 0.0
      %3735 = vmatpush1.msra.mxu0 0.0
      %3736 = vmatprep.subr.mxu0 0.0
      %3737 = vmatpush1.msra.mxu0 0.0
      %3738 = vmatprep.subr.mxu0 0.0
      %3739 = vmatpush1.msra.mxu0 0.0
      %3740 = vmatprep.subr.mxu0 0.0
      %3741 = vmatpush1.msra.mxu0 0.0
      %3742 = vmatprep.subr.mxu0 0.0
      %3743 = vmatpush1.msra.mxu0 0.0
      %3744 = vmatprep.subr.mxu0 0.0
      %3745 = vmatpush1.msra.mxu0 0.0
      %3746 = vmatprep.subr.mxu0 0.0
      %3747 = vmatpush1.msra.mxu0 0.0
      %3748 = vmatprep.subr.mxu0 0.0
      %3749 = vmatpush1.msra.mxu0 0.0
      %3750 = vmatprep.subr.mxu0 0.0
      %3751 = vmatpush1.msra.mxu0 0.0
      %3752 = vmatprep.subr.mxu0 0.0
      %3753 = vmatpush1.msra.mxu0 0.0
      %3754 = vmatprep.subr.mxu0 0.0
      %3755 = vmatpush1.msra.mxu0 0.0
      %3756 = vmatprep.subr.mxu0 0.0
      %3757 = vmatpush1.msra.mxu0 0.0
      %3758 = vmatprep.mubr.f32.mxu0 0.0
      %v3759 = vand.u32 %v374, 4294901760
      %v3760 = vsub.f32 %v374, %v3759
      %3761 = vmatmul.mubr.f32.gmra.mrb[0].mxu0 %v3760
      %v3762 = vpop.f32.mrb[0].mxu0
      %v3763 = vadd.f32 %v3689, %v3762
      %v3764 = vpop.f32.mrb[0].mxu0
      %3765 = vdwg.mxu0
      %3766 = vmatprep.subr.mxu0 0.0
      %v3767 = vand.u32 %v3539, 4294901760
      %3768 = vmatpush1.msra.mxu0 %v3767
      %3769 = vmatprep.subr.mxu0 0.0
      %3770 = vmatpush1.msra.mxu0 0.0
      %3771 = vmatprep.subr.mxu0 0.0
      %3772 = vmatpush1.msra.mxu0 0.0
      %3773 = vmatprep.subr.mxu0 0.0
      %3774 = vmatpush1.msra.mxu0 0.0
      %3775 = vmatprep.subr.mxu0 0.0
      %3776 = vmatpush1.msra.mxu0 0.0
      %3777 = vmatprep.subr.mxu0 0.0
      %3778 = vmatpush1.msra.mxu0 0.0
      %3779 = vmatprep.subr.mxu0 0.0
      %3780 = vmatpush1.msra.mxu0 0.0
      %3781 = vmatprep.subr.mxu0 0.0
      %3782 = vmatpush1.msra.mxu0 0.0
      %3783 = vmatprep.subr.mxu0 0.0
      %3784 = vmatpush1.msra.mxu0 0.0
      %3785 = vmatprep.subr.mxu0 0.0
      %3786 = vmatpush1.msra.mxu0 0.0
      %3787 = vmatprep.subr.mxu0 0.0
      %3788 = vmatpush1.msra.mxu0 0.0
      %3789 = vmatprep.subr.mxu0 0.0
      %3790 = vmatpush1.msra.mxu0 0.0
      %3791 = vmatprep.subr.mxu0 0.0
      %3792 = vmatpush1.msra.mxu0 0.0
      %3793 = vmatprep.subr.mxu0 0.0
      %3794 = vmatpush1.msra.mxu0 0.0
      %3795 = vmatprep.subr.mxu0 0.0
      %3796 = vmatpush1.msra.mxu0 0.0
      %3797 = vmatprep.subr.mxu0 0.0
      %3798 = vmatpush1.msra.mxu0 0.0
      %3799 = vmatprep.subr.mxu0 0.0
      %3800 = vmatpush1.msra.mxu0 0.0
      %3801 = vmatprep.subr.mxu0 0.0
      %3802 = vmatpush1.msra.mxu0 0.0
      %3803 = vmatprep.subr.mxu0 0.0
      %3804 = vmatpush1.msra.mxu0 0.0
      %3805 = vmatprep.subr.mxu0 0.0
      %3806 = vmatpush1.msra.mxu0 0.0
      %3807 = vmatprep.subr.mxu0 0.0
      %3808 = vmatpush1.msra.mxu0 0.0
      %3809 = vmatprep.subr.mxu0 0.0
      %3810 = vmatpush1.msra.mxu0 0.0
      %3811 = vmatprep.subr.mxu0 0.0
      %3812 = vmatpush1.msra.mxu0 0.0
      %3813 = vmatprep.subr.mxu0 0.0
      %3814 = vmatpush1.msra.mxu0 0.0
      %3815 = vmatprep.subr.mxu0 0.0
      %3816 = vmatpush1.msra.mxu0 0.0
      %3817 = vmatprep.subr.mxu0 0.0
      %3818 = vmatpush1.msra.mxu0 0.0
      %3819 = vmatprep.subr.mxu0 0.0
      %3820 = vmatpush1.msra.mxu0 0.0
      %3821 = vmatprep.subr.mxu0 0.0
      %3822 = vmatpush1.msra.mxu0 0.0
      %3823 = vmatprep.subr.mxu0 0.0
      %3824 = vmatpush1.msra.mxu0 0.0
      %3825 = vmatprep.subr.mxu0 0.0
      %3826 = vmatpush1.msra.mxu0 0.0
      %3827 = vmatprep.subr.mxu0 0.0
      %3828 = vmatpush1.msra.mxu0 0.0
      %3829 = vmatprep.subr.mxu0 0.0
      %3830 = vmatpush1.msra.mxu0 0.0
      %3831 = vmatprep.mubr.f32.mxu0 0.0
      %v3832 = vand.u32 %v374, 4294901760
      %v3833 = vsub.f32 %v374, %v3832
      %v3834 = vand.u32 %v3833, 4294901760
      %3835 = vmatmul.mubr.f32.gmra.mrb[0].mxu0 %v3834
      %v3836 = vpop.f32.mrb[0].mxu0
      %v3837 = vadd.f32 %v3763, %v3836
      %v3838 = vpop.f32.mrb[0].mxu0
      %3839 = vdwg.mxu0
      %3840 = vmatprep.subr.mxu0 0.0
      %v3841 = vand.u32 %v3539, 4294901760
      %v3842 = vsub.f32 %v3539, %v3841
      %v3843 = vand.u32 %v3842, 4294901760
      %3844 = vmatpush1.msra.mxu0 %v3843
      %3845 = vmatprep.subr.mxu0 0.0
      %3846 = vmatpush1.msra.mxu0 0.0
      %3847 = vmatprep.subr.mxu0 0.0
      %3848 = vmatpush1.msra.mxu0 0.0
      %3849 = vmatprep.subr.mxu0 0.0
      %3850 = vmatpush1.msra.mxu0 0.0
      %3851 = vmatprep.subr.mxu0 0.0
      %3852 = vmatpush1.msra.mxu0 0.0
      %3853 = vmatprep.subr.mxu0 0.0
      %3854 = vmatpush1.msra.mxu0 0.0
      %3855 = vmatprep.subr.mxu0 0.0
      %3856 = vmatpush1.msra.mxu0 0.0
      %3857 = vmatprep.subr.mxu0 0.0
      %3858 = vmatpush1.msra.mxu0 0.0
      %3859 = vmatprep.subr.mxu0 0.0
      %3860 = vmatpush1.msra.mxu0 0.0
      %3861 = vmatprep.subr.mxu0 0.0
      %3862 = vmatpush1.msra.mxu0 0.0
      %3863 = vmatprep.subr.mxu0 0.0
      %3864 = vmatpush1.msra.mxu0 0.0
      %3865 = vmatprep.subr.mxu0 0.0
      %3866 = vmatpush1.msra.mxu0 0.0
      %3867 = vmatprep.subr.mxu0 0.0
      %3868 = vmatpush1.msra.mxu0 0.0
      %3869 = vmatprep.subr.mxu0 0.0
      %3870 = vmatpush1.msra.mxu0 0.0
      %3871 = vmatprep.subr.mxu0 0.0
      %3872 = vmatpush1.msra.mxu0 0.0
      %3873 = vmatprep.subr.mxu0 0.0
      %3874 = vmatpush1.msra.mxu0 0.0
      %3875 = vmatprep.subr.mxu0 0.0
      %3876 = vmatpush1.msra.mxu0 0.0
      %3877 = vmatprep.subr.mxu0 0.0
      %3878 = vmatpush1.msra.mxu0 0.0
      %3879 = vmatprep.subr.mxu0 0.0
      %3880 = vmatpush1.msra.mxu0 0.0
      %3881 = vmatprep.subr.mxu0 0.0
      %3882 = vmatpush1.msra.mxu0 0.0
      %3883 = vmatprep.subr.mxu0 0.0
      %3884 = vmatpush1.msra.mxu0 0.0
      %3885 = vmatprep.subr.mxu0 0.0
      %3886 = vmatpush1.msra.mxu0 0.0
      %3887 = vmatprep.subr.mxu0 0.0
      %3888 = vmatpush1.msra.mxu0 0.0
      %3889 = vmatprep.subr.mxu0 0.0
      %3890 = vmatpush1.msra.mxu0 0.0
      %3891 = vmatprep.subr.mxu0 0.0
      %3892 = vmatpush1.msra.mxu0 0.0
      %3893 = vmatprep.subr.mxu0 0.0
      %3894 = vmatpush1.msra.mxu0 0.0
      %3895 = vmatprep.subr.mxu0 0.0
      %3896 = vmatpush1.msra.mxu0 0.0
      %3897 = vmatprep.subr.mxu0 0.0
      %3898 = vmatpush1.msra.mxu0 0.0
      %3899 = vmatprep.subr.mxu0 0.0
      %3900 = vmatpush1.msra.mxu0 0.0
      %3901 = vmatprep.subr.mxu0 0.0
      %3902 = vmatpush1.msra.mxu0 0.0
      %3903 = vmatprep.subr.mxu0 0.0
      %3904 = vmatpush1.msra.mxu0 0.0
      %3905 = vmatprep.subr.mxu0 0.0
      %3906 = vmatpush1.msra.mxu0 0.0
      %3907 = vmatprep.mubr.f32.mxu0 0.0
      %v3908 = vand.u32 %v374, 4294901760
      %3909 = vmatmul.mubr.f32.gmra.mrb[0].mxu0 %v3908
      %v3910 = vpop.f32.mrb[0].mxu0
      %v3911 = vadd.f32 %v3837, %v3910
      %v3912 = vpop.f32.mrb[0].mxu0
      %3913 = vdwg.mxu0
      %3914 = vmatprep.subr.mxu0 0.0
      %v3915 = vand.u32 %v3539, 4294901760
      %3916 = vmatpush1.msra.mxu0 %v3915
      %3917 = vmatprep.subr.mxu0 0.0
      %3918 = vmatpush1.msra.mxu0 0.0
      %3919 = vmatprep.subr.mxu0 0.0
      %3920 = vmatpush1.msra.mxu0 0.0
      %3921 = vmatprep.subr.mxu0 0.0
      %3922 = vmatpush1.msra.mxu0 0.0
      %3923 = vmatprep.subr.mxu0 0.0
      %3924 = vmatpush1.msra.mxu0 0.0
      %3925 = vmatprep.subr.mxu0 0.0
      %3926 = vmatpush1.msra.mxu0 0.0
      %3927 = vmatprep.subr.mxu0 0.0
      %3928 = vmatpush1.msra.mxu0 0.0
      %3929 = vmatprep.subr.mxu0 0.0
      %3930 = vmatpush1.msra.mxu0 0.0
      %3931 = vmatprep.subr.mxu0 0.0
      %3932 = vmatpush1.msra.mxu0 0.0
      %3933 = vmatprep.subr.mxu0 0.0
      %3934 = vmatpush1.msra.mxu0 0.0
      %3935 = vmatprep.subr.mxu0 0.0
      %3936 = vmatpush1.msra.mxu0 0.0
      %3937 = vmatprep.subr.mxu0 0.0
      %3938 = vmatpush1.msra.mxu0 0.0
      %3939 = vmatprep.subr.mxu0 0.0
      %3940 = vmatpush1.msra.mxu0 0.0
      %3941 = vmatprep.subr.mxu0 0.0
      %3942 = vmatpush1.msra.mxu0 0.0
      %3943 = vmatprep.subr.mxu0 0.0
      %3944 = vmatpush1.msra.mxu0 0.0
      %3945 = vmatprep.subr.mxu0 0.0
      %3946 = vmatpush1.msra.mxu0 0.0
      %3947 = vmatprep.subr.mxu0 0.0
      %3948 = vmatpush1.msra.mxu0 0.0
      %3949 = vmatprep.subr.mxu0 0.0
      %3950 = vmatpush1.msra.mxu0 0.0
      %3951 = vmatprep.subr.mxu0 0.0
      %3952 = vmatpush1.msra.mxu0 0.0
      %3953 = vmatprep.subr.mxu0 0.0
      %3954 = vmatpush1.msra.mxu0 0.0
      %3955 = vmatprep.subr.mxu0 0.0
      %3956 = vmatpush1.msra.mxu0 0.0
      %3957 = vmatprep.subr.mxu0 0.0
      %3958 = vmatpush1.msra.mxu0 0.0
      %3959 = vmatprep.subr.mxu0 0.0
      %3960 = vmatpush1.msra.mxu0 0.0
      %3961 = vmatprep.subr.mxu0 0.0
      %3962 = vmatpush1.msra.mxu0 0.0
      %3963 = vmatprep.subr.mxu0 0.0
      %3964 = vmatpush1.msra.mxu0 0.0
      %3965 = vmatprep.subr.mxu0 0.0
      %3966 = vmatpush1.msra.mxu0 0.0
      %3967 = vmatprep.subr.mxu0 0.0
      %3968 = vmatpush1.msra.mxu0 0.0
      %3969 = vmatprep.subr.mxu0 0.0
      %3970 = vmatpush1.msra.mxu0 0.0
      %3971 = vmatprep.subr.mxu0 0.0
      %3972 = vmatpush1.msra.mxu0 0.0
      %3973 = vmatprep.subr.mxu0 0.0
      %3974 = vmatpush1.msra.mxu0 0.0
      %3975 = vmatprep.subr.mxu0 0.0
      %3976 = vmatpush1.msra.mxu0 0.0
      %3977 = vmatprep.subr.mxu0 0.0
      %3978 = vmatpush1.msra.mxu0 0.0
      %3979 = vmatprep.mubr.f32.mxu0 0.0
      %v3980 = vand.u32 %v374, 4294901760
      %3981 = vmatmul.mubr.f32.gmra.mrb[0].mxu0 %v3980
      %v3982 = vpop.f32.mrb[0].mxu0
      %v3983 = vadd.f32 %v3911, %v3982
      %v3984 = vpop.f32.mrb[0].mxu0
      %3985 = vdwg.mxu0
      %3986 = vmatprep.subr.mxu0 0.0
      %v3987 = vand.u32 %v3521, 4294901760
      %3988 = vmatpush1.msra.mxu0 %v3987
      %3989 = vmatprep.subr.mxu0 0.0
      %3990 = vmatpush1.msra.mxu0 0.0
      %3991 = vmatprep.subr.mxu0 0.0
      %3992 = vmatpush1.msra.mxu0 0.0
      %3993 = vmatprep.subr.mxu0 0.0
      %3994 = vmatpush1.msra.mxu0 0.0
      %3995 = vmatprep.subr.mxu0 0.0
      %3996 = vmatpush1.msra.mxu0 0.0
      %3997 = vmatprep.subr.mxu0 0.0
      %3998 = vmatpush1.msra.mxu0 0.0
      %3999 = vmatprep.subr.mxu0 0.0
      %4000 = vmatpush1.msra.mxu0 0.0
      %4001 = vmatprep.subr.mxu0 0.0
      %4002 = vmatpush1.msra.mxu0 0.0
      %4003 = vmatprep.subr.mxu0 0.0
      %4004 = vmatpush1.msra.mxu0 0.0
      %4005 = vmatprep.subr.mxu0 0.0
      %4006 = vmatpush1.msra.mxu0 0.0
      %4007 = vmatprep.subr.mxu0 0.0
      %4008 = vmatpush1.msra.mxu0 0.0
      %4009 = vmatprep.subr.mxu0 0.0
      %4010 = vmatpush1.msra.mxu0 0.0
      %4011 = vmatprep.subr.mxu0 0.0
      %4012 = vmatpush1.msra.mxu0 0.0
      %4013 = vmatprep.subr.mxu0 0.0
      %4014 = vmatpush1.msra.mxu0 0.0
      %4015 = vmatprep.subr.mxu0 0.0
      %4016 = vmatpush1.msra.mxu0 0.0
      %4017 = vmatprep.subr.mxu0 0.0
      %4018 = vmatpush1.msra.mxu0 0.0
      %4019 = vmatprep.subr.mxu0 0.0
      %4020 = vmatpush1.msra.mxu0 0.0
      %4021 = vmatprep.subr.mxu0 0.0
      %4022 = vmatpush1.msra.mxu0 0.0
      %4023 = vmatprep.subr.mxu0 0.0
      %4024 = vmatpush1.msra.mxu0 0.0
      %4025 = vmatprep.subr.mxu0 0.0
      %4026 = vmatpush1.msra.mxu0 0.0
      %4027 = vmatprep.subr.mxu0 0.0
      %4028 = vmatpush1.msra.mxu0 0.0
      %4029 = vmatprep.subr.mxu0 0.0
      %4030 = vmatpush1.msra.mxu0 0.0
      %4031 = vmatprep.subr.mxu0 0.0
      %4032 = vmatpush1.msra.mxu0 0.0
      %4033 = vmatprep.subr.mxu0 0.0
      %4034 = vmatpush1.msra.mxu0 0.0
      %4035 = vmatprep.subr.mxu0 0.0
      %4036 = vmatpush1.msra.mxu0 0.0
      %4037 = vmatprep.subr.mxu0 0.0
      %4038 = vmatpush1.msra.mxu0 0.0
      %4039 = vmatprep.subr.mxu0 0.0
      %4040 = vmatpush1.msra.mxu0 0.0
      %4041 = vmatprep.subr.mxu0 0.0
      %4042 = vmatpush1.msra.mxu0 0.0
      %4043 = vmatprep.subr.mxu0 0.0
      %4044 = vmatpush1.msra.mxu0 0.0
      %4045 = vmatprep.subr.mxu0 0.0
      %4046 = vmatpush1.msra.mxu0 0.0
      %4047 = vmatprep.subr.mxu0 0.0
      %4048 = vmatpush1.msra.mxu0 0.0
      %4049 = vmatprep.subr.mxu0 0.0
      %4050 = vmatpush1.msra.mxu0 0.0
      %4051 = vmatprep.mubr.f32.mxu0 0.0
      %v4052 = vand.u32 %v374, 4294901760
      %v4053 = vsub.f32 %v374, %v4052
      %v4054 = vand.u32 %v4053, 4294901760
      %v4055 = vsub.f32 %v4053, %v4054
      %v4056 = vand.u32 %v4055, 4294901760
      %4057 = vmatmul.mubr.f32.gmra.mrb[0].mxu0 %v4056
      %v4058 = vpop.f32.mrb[0].mxu0
      %v4059 = vadd.f32 0.0, %v4058
      %v4060 = vpop.f32.mrb[0].mxu0
      %4061 = vdwg.mxu0
      %4062 = vmatprep.subr.mxu0 0.0
      %v4063 = vand.u32 %v3521, 4294901760
      %v4064 = vsub.f32 %v3521, %v4063
      %v4065 = vand.u32 %v4064, 4294901760
      %v4066 = vsub.f32 %v4064, %v4065
      %v4067 = vand.u32 %v4066, 4294901760
      %4068 = vmatpush1.msra.mxu0 %v4067
      %4069 = vmatprep.subr.mxu0 0.0
      %4070 = vmatpush1.msra.mxu0 0.0
      %4071 = vmatprep.subr.mxu0 0.0
      %4072 = vmatpush1.msra.mxu0 0.0
      %4073 = vmatprep.subr.mxu0 0.0
      %4074 = vmatpush1.msra.mxu0 0.0
      %4075 = vmatprep.subr.mxu0 0.0
      %4076 = vmatpush1.msra.mxu0 0.0
      %4077 = vmatprep.subr.mxu0 0.0
      %4078 = vmatpush1.msra.mxu0 0.0
      %4079 = vmatprep.subr.mxu0 0.0
      %4080 = vmatpush1.msra.mxu0 0.0
      %4081 = vmatprep.subr.mxu0 0.0
      %4082 = vmatpush1.msra.mxu0 0.0
      %4083 = vmatprep.subr.mxu0 0.0
      %4084 = vmatpush1.msra.mxu0 0.0
      %4085 = vmatprep.subr.mxu0 0.0
      %4086 = vmatpush1.msra.mxu0 0.0
      %4087 = vmatprep.subr.mxu0 0.0
      %4088 = vmatpush1.msra.mxu0 0.0
      %4089 = vmatprep.subr.mxu0 0.0
      %4090 = vmatpush1.msra.mxu0 0.0
      %4091 = vmatprep.subr.mxu0 0.0
      %4092 = vmatpush1.msra.mxu0 0.0
      %4093 = vmatprep.subr.mxu0 0.0
      %4094 = vmatpush1.msra.mxu0 0.0
      %4095 = vmatprep.subr.mxu0 0.0
      %4096 = vmatpush1.msra.mxu0 0.0
      %4097 = vmatprep.subr.mxu0 0.0
      %4098 = vmatpush1.msra.mxu0 0.0
      %4099 = vmatprep.subr.mxu0 0.0
      %4100 = vmatpush1.msra.mxu0 0.0
      %4101 = vmatprep.subr.mxu0 0.0
      %4102 = vmatpush1.msra.mxu0 0.0
      %4103 = vmatprep.subr.mxu0 0.0
      %4104 = vmatpush1.msra.mxu0 0.0
      %4105 = vmatprep.subr.mxu0 0.0
      %4106 = vmatpush1.msra.mxu0 0.0
      %4107 = vmatprep.subr.mxu0 0.0
      %4108 = vmatpush1.msra.mxu0 0.0
      %4109 = vmatprep.subr.mxu0 0.0
      %4110 = vmatpush1.msra.mxu0 0.0
      %4111 = vmatprep.subr.mxu0 0.0
      %4112 = vmatpush1.msra.mxu0 0.0
      %4113 = vmatprep.subr.mxu0 0.0
      %4114 = vmatpush1.msra.mxu0 0.0
      %4115 = vmatprep.subr.mxu0 0.0
      %4116 = vmatpush1.msra.mxu0 0.0
      %4117 = vmatprep.subr.mxu0 0.0
      %4118 = vmatpush1.msra.mxu0 0.0
      %4119 = vmatprep.subr.mxu0 0.0
      %4120 = vmatpush1.msra.mxu0 0.0
      %4121 = vmatprep.subr.mxu0 0.0
      %4122 = vmatpush1.msra.mxu0 0.0
      %4123 = vmatprep.subr.mxu0 0.0
      %4124 = vmatpush1.msra.mxu0 0.0
      %4125 = vmatprep.subr.mxu0 0.0
      %4126 = vmatpush1.msra.mxu0 0.0
      %4127 = vmatprep.subr.mxu0 0.0
      %4128 = vmatpush1.msra.mxu0 0.0
      %4129 = vmatprep.subr.mxu0 0.0
      %4130 = vmatpush1.msra.mxu0 0.0
      %4131 = vmatprep.mubr.f32.mxu0 0.0
      %v4132 = vand.u32 %v374, 4294901760
      %4133 = vmatmul.mubr.f32.gmra.mrb[0].mxu0 %v4132
      %v4134 = vpop.f32.mrb[0].mxu0
      %v4135 = vadd.f32 %v4059, %v4134
      %v4136 = vpop.f32.mrb[0].mxu0
      %4137 = vdwg.mxu0
      %4138 = vmatprep.subr.mxu0 0.0
      %v4139 = vand.u32 %v3521, 4294901760
      %v4140 = vsub.f32 %v3521, %v4139
      %4141 = vmatpush1.msra.mxu0 %v4140
      %4142 = vmatprep.subr.mxu0 0.0
      %4143 = vmatpush1.msra.mxu0 0.0
      %4144 = vmatprep.subr.mxu0 0.0
      %4145 = vmatpush1.msra.mxu0 0.0
      %4146 = vmatprep.subr.mxu0 0.0
      %4147 = vmatpush1.msra.mxu0 0.0
      %4148 = vmatprep.subr.mxu0 0.0
      %4149 = vmatpush1.msra.mxu0 0.0
      %4150 = vmatprep.subr.mxu0 0.0
      %4151 = vmatpush1.msra.mxu0 0.0
      %4152 = vmatprep.subr.mxu0 0.0
      %4153 = vmatpush1.msra.mxu0 0.0
      %4154 = vmatprep.subr.mxu0 0.0
      %4155 = vmatpush1.msra.mxu0 0.0
      %4156 = vmatprep.subr.mxu0 0.0
      %4157 = vmatpush1.msra.mxu0 0.0
      %4158 = vmatprep.subr.mxu0 0.0
      %4159 = vmatpush1.msra.mxu0 0.0
      %4160 = vmatprep.subr.mxu0 0.0
      %4161 = vmatpush1.msra.mxu0 0.0
      %4162 = vmatprep.subr.mxu0 0.0
      %4163 = vmatpush1.msra.mxu0 0.0
      %4164 = vmatprep.subr.mxu0 0.0
      %4165 = vmatpush1.msra.mxu0 0.0
      %4166 = vmatprep.subr.mxu0 0.0
      %4167 = vmatpush1.msra.mxu0 0.0
      %4168 = vmatprep.subr.mxu0 0.0
      %4169 = vmatpush1.msra.mxu0 0.0
      %4170 = vmatprep.subr.mxu0 0.0
      %4171 = vmatpush1.msra.mxu0 0.0
      %4172 = vmatprep.subr.mxu0 0.0
      %4173 = vmatpush1.msra.mxu0 0.0
      %4174 = vmatprep.subr.mxu0 0.0
      %4175 = vmatpush1.msra.mxu0 0.0
      %4176 = vmatprep.subr.mxu0 0.0
      %4177 = vmatpush1.msra.mxu0 0.0
      %4178 = vmatprep.subr.mxu0 0.0
      %4179 = vmatpush1.msra.mxu0 0.0
      %4180 = vmatprep.subr.mxu0 0.0
      %4181 = vmatpush1.msra.mxu0 0.0
      %4182 = vmatprep.subr.mxu0 0.0
      %4183 = vmatpush1.msra.mxu0 0.0
      %4184 = vmatprep.subr.mxu0 0.0
      %4185 = vmatpush1.msra.mxu0 0.0
      %4186 = vmatprep.subr.mxu0 0.0
      %4187 = vmatpush1.msra.mxu0 0.0
      %4188 = vmatprep.subr.mxu0 0.0
      %4189 = vmatpush1.msra.mxu0 0.0
      %4190 = vmatprep.subr.mxu0 0.0
      %4191 = vmatpush1.msra.mxu0 0.0
      %4192 = vmatprep.subr.mxu0 0.0
      %4193 = vmatpush1.msra.mxu0 0.0
      %4194 = vmatprep.subr.mxu0 0.0
      %4195 = vmatpush1.msra.mxu0 0.0
      %4196 = vmatprep.subr.mxu0 0.0
      %4197 = vmatpush1.msra.mxu0 0.0
      %4198 = vmatprep.subr.mxu0 0.0
      %4199 = vmatpush1.msra.mxu0 0.0
      %4200 = vmatprep.subr.mxu0 0.0
      %4201 = vmatpush1.msra.mxu0 0.0
      %4202 = vmatprep.subr.mxu0 0.0
      %4203 = vmatpush1.msra.mxu0 0.0
      %4204 = vmatprep.mubr.f32.mxu0 0.0
      %v4205 = vand.u32 %v374, 4294901760
      %v4206 = vsub.f32 %v374, %v4205
      %4207 = vmatmul.mubr.f32.gmra.mrb[0].mxu0 %v4206
      %v4208 = vpop.f32.mrb[0].mxu0
      %v4209 = vadd.f32 %v4135, %v4208
      %v4210 = vpop.f32.mrb[0].mxu0
      %4211 = vdwg.mxu0
      %4212 = vmatprep.subr.mxu0 0.0
      %v4213 = vand.u32 %v3521, 4294901760
      %4214 = vmatpush1.msra.mxu0 %v4213
      %4215 = vmatprep.subr.mxu0 0.0
      %4216 = vmatpush1.msra.mxu0 0.0
      %4217 = vmatprep.subr.mxu0 0.0
      %4218 = vmatpush1.msra.mxu0 0.0
      %4219 = vmatprep.subr.mxu0 0.0
      %4220 = vmatpush1.msra.mxu0 0.0
      %4221 = vmatprep.subr.mxu0 0.0
      %4222 = vmatpush1.msra.mxu0 0.0
      %4223 = vmatprep.subr.mxu0 0.0
      %4224 = vmatpush1.msra.mxu0 0.0
      %4225 = vmatprep.subr.mxu0 0.0
      %4226 = vmatpush1.msra.mxu0 0.0
      %4227 = vmatprep.subr.mxu0 0.0
      %4228 = vmatpush1.msra.mxu0 0.0
      %4229 = vmatprep.subr.mxu0 0.0
      %4230 = vmatpush1.msra.mxu0 0.0
      %4231 = vmatprep.subr.mxu0 0.0
      %4232 = vmatpush1.msra.mxu0 0.0
      %4233 = vmatprep.subr.mxu0 0.0
      %4234 = vmatpush1.msra.mxu0 0.0
      %4235 = vmatprep.subr.mxu0 0.0
      %4236 = vmatpush1.msra.mxu0 0.0
      %4237 = vmatprep.subr.mxu0 0.0
      %4238 = vmatpush1.msra.mxu0 0.0
      %4239 = vmatprep.subr.mxu0 0.0
      %4240 = vmatpush1.msra.mxu0 0.0
      %4241 = vmatprep.subr.mxu0 0.0
      %4242 = vmatpush1.msra.mxu0 0.0
      %4243 = vmatprep.subr.mxu0 0.0
      %4244 = vmatpush1.msra.mxu0 0.0
      %4245 = vmatprep.subr.mxu0 0.0
      %4246 = vmatpush1.msra.mxu0 0.0
      %4247 = vmatprep.subr.mxu0 0.0
      %4248 = vmatpush1.msra.mxu0 0.0
      %4249 = vmatprep.subr.mxu0 0.0
      %4250 = vmatpush1.msra.mxu0 0.0
      %4251 = vmatprep.subr.mxu0 0.0
      %4252 = vmatpush1.msra.mxu0 0.0
      %4253 = vmatprep.subr.mxu0 0.0
      %4254 = vmatpush1.msra.mxu0 0.0
      %4255 = vmatprep.subr.mxu0 0.0
      %4256 = vmatpush1.msra.mxu0 0.0
      %4257 = vmatprep.subr.mxu0 0.0
      %4258 = vmatpush1.msra.mxu0 0.0
      %4259 = vmatprep.subr.mxu0 0.0
      %4260 = vmatpush1.msra.mxu0 0.0
      %4261 = vmatprep.subr.mxu0 0.0
      %4262 = vmatpush1.msra.mxu0 0.0
      %4263 = vmatprep.subr.mxu0 0.0
      %4264 = vmatpush1.msra.mxu0 0.0
      %4265 = vmatprep.subr.mxu0 0.0
      %4266 = vmatpush1.msra.mxu0 0.0
      %4267 = vmatprep.subr.mxu0 0.0
      %4268 = vmatpush1.msra.mxu0 0.0
      %4269 = vmatprep.subr.mxu0 0.0
      %4270 = vmatpush1.msra.mxu0 0.0
      %4271 = vmatprep.subr.mxu0 0.0
      %4272 = vmatpush1.msra.mxu0 0.0
      %4273 = vmatprep.subr.mxu0 0.0
      %4274 = vmatpush1.msra.mxu0 0.0
      %4275 = vmatprep.subr.mxu0 0.0
      %4276 = vmatpush1.msra.mxu0 0.0
      %4277 = vmatprep.mubr.f32.mxu0 0.0
      %v4278 = vand.u32 %v374, 4294901760
      %v4279 = vsub.f32 %v374, %v4278
      %v4280 = vand.u32 %v4279, 4294901760
      %4281 = vmatmul.mubr.f32.gmra.mrb[0].mxu0 %v4280
      %v4282 = vpop.f32.mrb[0].mxu0
      %v4283 = vadd.f32 %v4209, %v4282
      %v4284 = vpop.f32.mrb[0].mxu0
      %4285 = vdwg.mxu0
      %4286 = vmatprep.subr.mxu0 0.0
      %v4287 = vand.u32 %v3521, 4294901760
      %v4288 = vsub.f32 %v3521, %v4287
      %v4289 = vand.u32 %v4288, 4294901760
      %4290 = vmatpush1.msra.mxu0 %v4289
      %4291 = vmatprep.subr.mxu0 0.0
      %4292 = vmatpush1.msra.mxu0 0.0
      %4293 = vmatprep.subr.mxu0 0.0
      %4294 = vmatpush1.msra.mxu0 0.0
      %4295 = vmatprep.subr.mxu0 0.0
      %4296 = vmatpush1.msra.mxu0 0.0
      %4297 = vmatprep.subr.mxu0 0.0
      %4298 = vmatpush1.msra.mxu0 0.0
      %4299 = vmatprep.subr.mxu0 0.0
      %4300 = vmatpush1.msra.mxu0 0.0
      %4301 = vmatprep.subr.mxu0 0.0
      %4302 = vmatpush1.msra.mxu0 0.0
      %4303 = vmatprep.subr.mxu0 0.0
      %4304 = vmatpush1.msra.mxu0 0.0
      %4305 = vmatprep.subr.mxu0 0.0
      %4306 = vmatpush1.msra.mxu0 0.0
      %4307 = vmatprep.subr.mxu0 0.0
      %4308 = vmatpush1.msra.mxu0 0.0
      %4309 = vmatprep.subr.mxu0 0.0
      %4310 = vmatpush1.msra.mxu0 0.0
      %4311 = vmatprep.subr.mxu0 0.0
      %4312 = vmatpush1.msra.mxu0 0.0
      %4313 = vmatprep.subr.mxu0 0.0
      %4314 = vmatpush1.msra.mxu0 0.0
      %4315 = vmatprep.subr.mxu0 0.0
      %4316 = vmatpush1.msra.mxu0 0.0
      %4317 = vmatprep.subr.mxu0 0.0
      %4318 = vmatpush1.msra.mxu0 0.0
      %4319 = vmatprep.subr.mxu0 0.0
      %4320 = vmatpush1.msra.mxu0 0.0
      %4321 = vmatprep.subr.mxu0 0.0
      %4322 = vmatpush1.msra.mxu0 0.0
      %4323 = vmatprep.subr.mxu0 0.0
      %4324 = vmatpush1.msra.mxu0 0.0
      %4325 = vmatprep.subr.mxu0 0.0
      %4326 = vmatpush1.msra.mxu0 0.0
      %4327 = vmatprep.subr.mxu0 0.0
      %4328 = vmatpush1.msra.mxu0 0.0
      %4329 = vmatprep.subr.mxu0 0.0
      %4330 = vmatpush1.msra.mxu0 0.0
      %4331 = vmatprep.subr.mxu0 0.0
      %4332 = vmatpush1.msra.mxu0 0.0
      %4333 = vmatprep.subr.mxu0 0.0
      %4334 = vmatpush1.msra.mxu0 0.0
      %4335 = vmatprep.subr.mxu0 0.0
      %4336 = vmatpush1.msra.mxu0 0.0
      %4337 = vmatprep.subr.mxu0 0.0
      %4338 = vmatpush1.msra.mxu0 0.0
      %4339 = vmatprep.subr.mxu0 0.0
      %4340 = vmatpush1.msra.mxu0 0.0
      %4341 = vmatprep.subr.mxu0 0.0
      %4342 = vmatpush1.msra.mxu0 0.0
      %4343 = vmatprep.subr.mxu0 0.0
      %4344 = vmatpush1.msra.mxu0 0.0
      %4345 = vmatprep.subr.mxu0 0.0
      %4346 = vmatpush1.msra.mxu0 0.0
      %4347 = vmatprep.subr.mxu0 0.0
      %4348 = vmatpush1.msra.mxu0 0.0
      %4349 = vmatprep.subr.mxu0 0.0
      %4350 = vmatpush1.msra.mxu0 0.0
      %4351 = vmatprep.subr.mxu0 0.0
      %4352 = vmatpush1.msra.mxu0 0.0
      %4353 = vmatprep.mubr.f32.mxu0 0.0
      %v4354 = vand.u32 %v374, 4294901760
      %4355 = vmatmul.mubr.f32.gmra.mrb[0].mxu0 %v4354
      %v4356 = vpop.f32.mrb[0].mxu0
      %v4357 = vadd.f32 %v4283, %v4356
      %v4358 = vpop.f32.mrb[0].mxu0
      %4359 = vdwg.mxu0
      %4360 = vmatprep.subr.mxu0 0.0
      %v4361 = vand.u32 %v3521, 4294901760
      %4362 = vmatpush1.msra.mxu0 %v4361
      %4363 = vmatprep.subr.mxu0 0.0
      %4364 = vmatpush1.msra.mxu0 0.0
      %4365 = vmatprep.subr.mxu0 0.0
      %4366 = vmatpush1.msra.mxu0 0.0
      %4367 = vmatprep.subr.mxu0 0.0
      %4368 = vmatpush1.msra.mxu0 0.0
      %4369 = vmatprep.subr.mxu0 0.0
      %4370 = vmatpush1.msra.mxu0 0.0
      %4371 = vmatprep.subr.mxu0 0.0
      %4372 = vmatpush1.msra.mxu0 0.0
      %4373 = vmatprep.subr.mxu0 0.0
      %4374 = vmatpush1.msra.mxu0 0.0
      %4375 = vmatprep.subr.mxu0 0.0
      %4376 = vmatpush1.msra.mxu0 0.0
      %4377 = vmatprep.subr.mxu0 0.0
      %4378 = vmatpush1.msra.mxu0 0.0
      %4379 = vmatprep.subr.mxu0 0.0
      %4380 = vmatpush1.msra.mxu0 0.0
      %4381 = vmatprep.subr.mxu0 0.0
      %4382 = vmatpush1.msra.mxu0 0.0
      %4383 = vmatprep.subr.mxu0 0.0
      %4384 = vmatpush1.msra.mxu0 0.0
      %4385 = vmatprep.subr.mxu0 0.0
      %4386 = vmatpush1.msra.mxu0 0.0
      %4387 = vmatprep.subr.mxu0 0.0
      %4388 = vmatpush1.msra.mxu0 0.0
      %4389 = vmatprep.subr.mxu0 0.0
      %4390 = vmatpush1.msra.mxu0 0.0
      %4391 = vmatprep.subr.mxu0 0.0
      %4392 = vmatpush1.msra.mxu0 0.0
      %4393 = vmatprep.subr.mxu0 0.0
      %4394 = vmatpush1.msra.mxu0 0.0
      %4395 = vmatprep.subr.mxu0 0.0
      %4396 = vmatpush1.msra.mxu0 0.0
      %4397 = vmatprep.subr.mxu0 0.0
      %4398 = vmatpush1.msra.mxu0 0.0
      %4399 = vmatprep.subr.mxu0 0.0
      %4400 = vmatpush1.msra.mxu0 0.0
      %4401 = vmatprep.subr.mxu0 0.0
      %4402 = vmatpush1.msra.mxu0 0.0
      %4403 = vmatprep.subr.mxu0 0.0
      %4404 = vmatpush1.msra.mxu0 0.0
      %4405 = vmatprep.subr.mxu0 0.0
      %4406 = vmatpush1.msra.mxu0 0.0
      %4407 = vmatprep.subr.mxu0 0.0
      %4408 = vmatpush1.msra.mxu0 0.0
      %4409 = vmatprep.subr.mxu0 0.0
      %4410 = vmatpush1.msra.mxu0 0.0
      %4411 = vmatprep.subr.mxu0 0.0
      %4412 = vmatpush1.msra.mxu0 0.0
      %4413 = vmatprep.subr.mxu0 0.0
      %4414 = vmatpush1.msra.mxu0 0.0
      %4415 = vmatprep.subr.mxu0 0.0
      %4416 = vmatpush1.msra.mxu0 0.0
      %4417 = vmatprep.subr.mxu0 0.0
      %4418 = vmatpush1.msra.mxu0 0.0
      %4419 = vmatprep.subr.mxu0 0.0
      %4420 = vmatpush1.msra.mxu0 0.0
      %4421 = vmatprep.subr.mxu0 0.0
      %4422 = vmatpush1.msra.mxu0 0.0
      %4423 = vmatprep.subr.mxu0 0.0
      %4424 = vmatpush1.msra.mxu0 0.0
      %4425 = vmatprep.mubr.f32.mxu0 0.0
      %v4426 = vand.u32 %v374, 4294901760
      %4427 = vmatmul.mubr.f32.gmra.mrb[0].mxu0 %v4426
      %v4428 = vpop.f32.mrb[0].mxu0
      %v4429 = vadd.f32 %v4357, %v4428
      %v4430 = vpop.f32.mrb[0].mxu0
      %4431 = vdwg.mxu0
      %v4432 = vmul.f32 %v3521, %v341
      %4433 = vmatprep.subr.mxu0 0.0
      %v4434 = vand.u32 %v4432, 4294901760
      %4435 = vmatpush1.msra.mxu0 %v4434
      %4436 = vmatprep.subr.mxu0 0.0
      %4437 = vmatpush1.msra.mxu0 0.0
      %4438 = vmatprep.subr.mxu0 0.0
      %4439 = vmatpush1.msra.mxu0 0.0
      %4440 = vmatprep.subr.mxu0 0.0
      %4441 = vmatpush1.msra.mxu0 0.0
      %4442 = vmatprep.subr.mxu0 0.0
      %4443 = vmatpush1.msra.mxu0 0.0
      %4444 = vmatprep.subr.mxu0 0.0
      %4445 = vmatpush1.msra.mxu0 0.0
      %4446 = vmatprep.subr.mxu0 0.0
      %4447 = vmatpush1.msra.mxu0 0.0
      %4448 = vmatprep.subr.mxu0 0.0
      %4449 = vmatpush1.msra.mxu0 0.0
      %4450 = vmatprep.subr.mxu0 0.0
      %4451 = vmatpush1.msra.mxu0 0.0
      %4452 = vmatprep.subr.mxu0 0.0
      %4453 = vmatpush1.msra.mxu0 0.0
      %4454 = vmatprep.subr.mxu0 0.0
      %4455 = vmatpush1.msra.mxu0 0.0
      %4456 = vmatprep.subr.mxu0 0.0
      %4457 = vmatpush1.msra.mxu0 0.0
      %4458 = vmatprep.subr.mxu0 0.0
      %4459 = vmatpush1.msra.mxu0 0.0
      %4460 = vmatprep.subr.mxu0 0.0
      %4461 = vmatpush1.msra.mxu0 0.0
      %4462 = vmatprep.subr.mxu0 0.0
      %4463 = vmatpush1.msra.mxu0 0.0
      %4464 = vmatprep.subr.mxu0 0.0
      %4465 = vmatpush1.msra.mxu0 0.0
      %4466 = vmatprep.subr.mxu0 0.0
      %4467 = vmatpush1.msra.mxu0 0.0
      %4468 = vmatprep.subr.mxu0 0.0
      %4469 = vmatpush1.msra.mxu0 0.0
      %4470 = vmatprep.subr.mxu0 0.0
      %4471 = vmatpush1.msra.mxu0 0.0
      %4472 = vmatprep.subr.mxu0 0.0
      %4473 = vmatpush1.msra.mxu0 0.0
      %4474 = vmatprep.subr.mxu0 0.0
      %4475 = vmatpush1.msra.mxu0 0.0
      %4476 = vmatprep.subr.mxu0 0.0
      %4477 = vmatpush1.msra.mxu0 0.0
      %4478 = vmatprep.subr.mxu0 0.0
      %4479 = vmatpush1.msra.mxu0 0.0
      %4480 = vmatprep.subr.mxu0 0.0
      %4481 = vmatpush1.msra.mxu0 0.0
      %4482 = vmatprep.subr.mxu0 0.0
      %4483 = vmatpush1.msra.mxu0 0.0
      %4484 = vmatprep.subr.mxu0 0.0
      %4485 = vmatpush1.msra.mxu0 0.0
      %4486 = vmatprep.subr.mxu0 0.0
      %4487 = vmatpush1.msra.mxu0 0.0
      %4488 = vmatprep.subr.mxu0 0.0
      %4489 = vmatpush1.msra.mxu0 0.0
      %4490 = vmatprep.subr.mxu0 0.0
      %4491 = vmatpush1.msra.mxu0 0.0
      %4492 = vmatprep.subr.mxu0 0.0
      %4493 = vmatpush1.msra.mxu0 0.0
      %4494 = vmatprep.subr.mxu0 0.0
      %4495 = vmatpush1.msra.mxu0 0.0
      %4496 = vmatprep.subr.mxu0 0.0
      %4497 = vmatpush1.msra.mxu0 0.0
      %4498 = vmatprep.mubr.f32.mxu0 0.0
      %v4499 = vand.u32 %v374, 4294901760
      %v4500 = vsub.f32 %v374, %v4499
      %v4501 = vand.u32 %v4500, 4294901760
      %v4502 = vsub.f32 %v4500, %v4501
      %v4503 = vand.u32 %v4502, 4294901760
      %4504 = vmatmul.mubr.f32.gmra.mrb[0].mxu0 %v4503
      %v4505 = vpop.f32.mrb[0].mxu0
      %v4506 = vadd.f32 0.0, %v4505
      %v4507 = vpop.f32.mrb[0].mxu0
      %4508 = vdwg.mxu0
      %4509 = vmatprep.subr.mxu0 0.0
      %v4510 = vand.u32 %v4432, 4294901760
      %v4511 = vsub.f32 %v4432, %v4510
      %v4512 = vand.u32 %v4511, 4294901760
      %v4513 = vsub.f32 %v4511, %v4512
      %v4514 = vand.u32 %v4513, 4294901760
      %4515 = vmatpush1.msra.mxu0 %v4514
      %4516 = vmatprep.subr.mxu0 0.0
      %4517 = vmatpush1.msra.mxu0 0.0
      %4518 = vmatprep.subr.mxu0 0.0
      %4519 = vmatpush1.msra.mxu0 0.0
      %4520 = vmatprep.subr.mxu0 0.0
      %4521 = vmatpush1.msra.mxu0 0.0
      %4522 = vmatprep.subr.mxu0 0.0
      %4523 = vmatpush1.msra.mxu0 0.0
      %4524 = vmatprep.subr.mxu0 0.0
      %4525 = vmatpush1.msra.mxu0 0.0
      %4526 = vmatprep.subr.mxu0 0.0
      %4527 = vmatpush1.msra.mxu0 0.0
      %4528 = vmatprep.subr.mxu0 0.0
      %4529 = vmatpush1.msra.mxu0 0.0
      %4530 = vmatprep.subr.mxu0 0.0
      %4531 = vmatpush1.msra.mxu0 0.0
      %4532 = vmatprep.subr.mxu0 0.0
      %4533 = vmatpush1.msra.mxu0 0.0
      %4534 = vmatprep.subr.mxu0 0.0
      %4535 = vmatpush1.msra.mxu0 0.0
      %4536 = vmatprep.subr.mxu0 0.0
      %4537 = vmatpush1.msra.mxu0 0.0
      %4538 = vmatprep.subr.mxu0 0.0
      %4539 = vmatpush1.msra.mxu0 0.0
      %4540 = vmatprep.subr.mxu0 0.0
      %4541 = vmatpush1.msra.mxu0 0.0
      %4542 = vmatprep.subr.mxu0 0.0
      %4543 = vmatpush1.msra.mxu0 0.0
      %4544 = vmatprep.subr.mxu0 0.0
      %4545 = vmatpush1.msra.mxu0 0.0
      %4546 = vmatprep.subr.mxu0 0.0
      %4547 = vmatpush1.msra.mxu0 0.0
      %4548 = vmatprep.subr.mxu0 0.0
      %4549 = vmatpush1.msra.mxu0 0.0
      %4550 = vmatprep.subr.mxu0 0.0
      %4551 = vmatpush1.msra.mxu0 0.0
      %4552 = vmatprep.subr.mxu0 0.0
      %4553 = vmatpush1.msra.mxu0 0.0
      %4554 = vmatprep.subr.mxu0 0.0
      %4555 = vmatpush1.msra.mxu0 0.0
      %4556 = vmatprep.subr.mxu0 0.0
      %4557 = vmatpush1.msra.mxu0 0.0
      %4558 = vmatprep.subr.mxu0 0.0
      %4559 = vmatpush1.msra.mxu0 0.0
      %4560 = vmatprep.subr.mxu0 0.0
      %4561 = vmatpush1.msra.mxu0 0.0
      %4562 = vmatprep.subr.mxu0 0.0
      %4563 = vmatpush1.msra.mxu0 0.0
      %4564 = vmatprep.subr.mxu0 0.0
      %4565 = vmatpush1.msra.mxu0 0.0
      %4566 = vmatprep.subr.mxu0 0.0
      %4567 = vmatpush1.msra.mxu0 0.0
      %4568 = vmatprep.subr.mxu0 0.0
      %4569 = vmatpush1.msra.mxu0 0.0
      %4570 = vmatprep.subr.mxu0 0.0
      %4571 = vmatpush1.msra.mxu0 0.0
      %4572 = vmatprep.subr.mxu0 0.0
      %4573 = vmatpush1.msra.mxu0 0.0
      %4574 = vmatprep.subr.mxu0 0.0
      %4575 = vmatpush1.msra.mxu0 0.0
      %4576 = vmatprep.subr.mxu0 0.0
      %4577 = vmatpush1.msra.mxu0 0.0
      %4578 = vmatprep.mubr.f32.mxu0 0.0
      %v4579 = vand.u32 %v374, 4294901760
      %4580 = vmatmul.mubr.f32.gmra.mrb[0].mxu0 %v4579
      %v4581 = vpop.f32.mrb[0].mxu0
      %v4582 = vadd.f32 %v4506, %v4581
      %v4583 = vpop.f32.mrb[0].mxu0
      %4584 = vdwg.mxu0
      %4585 = vmatprep.subr.mxu0 0.0
      %v4586 = vand.u32 %v4432, 4294901760
      %v4587 = vsub.f32 %v4432, %v4586
      %4588 = vmatpush1.msra.mxu0 %v4587
      %4589 = vmatprep.subr.mxu0 0.0
      %4590 = vmatpush1.msra.mxu0 0.0
      %4591 = vmatprep.subr.mxu0 0.0
      %4592 = vmatpush1.msra.mxu0 0.0
      %4593 = vmatprep.subr.mxu0 0.0
      %4594 = vmatpush1.msra.mxu0 0.0
      %4595 = vmatprep.subr.mxu0 0.0
      %4596 = vmatpush1.msra.mxu0 0.0
      %4597 = vmatprep.subr.mxu0 0.0
      %4598 = vmatpush1.msra.mxu0 0.0
      %4599 = vmatprep.subr.mxu0 0.0
      %4600 = vmatpush1.msra.mxu0 0.0
      %4601 = vmatprep.subr.mxu0 0.0
      %4602 = vmatpush1.msra.mxu0 0.0
      %4603 = vmatprep.subr.mxu0 0.0
      %4604 = vmatpush1.msra.mxu0 0.0
      %4605 = vmatprep.subr.mxu0 0.0
      %4606 = vmatpush1.msra.mxu0 0.0
      %4607 = vmatprep.subr.mxu0 0.0
      %4608 = vmatpush1.msra.mxu0 0.0
      %4609 = vmatprep.subr.mxu0 0.0
      %4610 = vmatpush1.msra.mxu0 0.0
      %4611 = vmatprep.subr.mxu0 0.0
      %4612 = vmatpush1.msra.mxu0 0.0
      %4613 = vmatprep.subr.mxu0 0.0
      %4614 = vmatpush1.msra.mxu0 0.0
      %4615 = vmatprep.subr.mxu0 0.0
      %4616 = vmatpush1.msra.mxu0 0.0
      %4617 = vmatprep.subr.mxu0 0.0
      %4618 = vmatpush1.msra.mxu0 0.0
      %4619 = vmatprep.subr.mxu0 0.0
      %4620 = vmatpush1.msra.mxu0 0.0
      %4621 = vmatprep.subr.mxu0 0.0
      %4622 = vmatpush1.msra.mxu0 0.0
      %4623 = vmatprep.subr.mxu0 0.0
      %4624 = vmatpush1.msra.mxu0 0.0
      %4625 = vmatprep.subr.mxu0 0.0
      %4626 = vmatpush1.msra.mxu0 0.0
      %4627 = vmatprep.subr.mxu0 0.0
      %4628 = vmatpush1.msra.mxu0 0.0
      %4629 = vmatprep.subr.mxu0 0.0
      %4630 = vmatpush1.msra.mxu0 0.0
      %4631 = vmatprep.subr.mxu0 0.0
      %4632 = vmatpush1.msra.mxu0 0.0
      %4633 = vmatprep.subr.mxu0 0.0
      %4634 = vmatpush1.msra.mxu0 0.0
      %4635 = vmatprep.subr.mxu0 0.0
      %4636 = vmatpush1.msra.mxu0 0.0
      %4637 = vmatprep.subr.mxu0 0.0
      %4638 = vmatpush1.msra.mxu0 0.0
      %4639 = vmatprep.subr.mxu0 0.0
      %4640 = vmatpush1.msra.mxu0 0.0
      %4641 = vmatprep.subr.mxu0 0.0
      %4642 = vmatpush1.msra.mxu0 0.0
      %4643 = vmatprep.subr.mxu0 0.0
      %4644 = vmatpush1.msra.mxu0 0.0
      %4645 = vmatprep.subr.mxu0 0.0
      %4646 = vmatpush1.msra.mxu0 0.0
      %4647 = vmatprep.subr.mxu0 0.0
      %4648 = vmatpush1.msra.mxu0 0.0
      %4649 = vmatprep.subr.mxu0 0.0
      %4650 = vmatpush1.msra.mxu0 0.0
      %4651 = vmatprep.mubr.f32.mxu0 0.0
      %v4652 = vand.u32 %v374, 4294901760
      %v4653 = vsub.f32 %v374, %v4652
      %4654 = vmatmul.mubr.f32.gmra.mrb[0].mxu0 %v4653
      %v4655 = vpop.f32.mrb[0].mxu0
      %v4656 = vadd.f32 %v4582, %v4655
      %v4657 = vpop.f32.mrb[0].mxu0
      %4658 = vdwg.mxu0
      %4659 = vmatprep.subr.mxu0 0.0
      %v4660 = vand.u32 %v4432, 4294901760
      %4661 = vmatpush1.msra.mxu0 %v4660
      %4662 = vmatprep.subr.mxu0 0.0
      %4663 = vmatpush1.msra.mxu0 0.0
      %4664 = vmatprep.subr.mxu0 0.0
      %4665 = vmatpush1.msra.mxu0 0.0
      %4666 = vmatprep.subr.mxu0 0.0
      %4667 = vmatpush1.msra.mxu0 0.0
      %4668 = vmatprep.subr.mxu0 0.0
      %4669 = vmatpush1.msra.mxu0 0.0
      %4670 = vmatprep.subr.mxu0 0.0
      %4671 = vmatpush1.msra.mxu0 0.0
      %4672 = vmatprep.subr.mxu0 0.0
      %4673 = vmatpush1.msra.mxu0 0.0
      %4674 = vmatprep.subr.mxu0 0.0
      %4675 = vmatpush1.msra.mxu0 0.0
      %4676 = vmatprep.subr.mxu0 0.0
      %4677 = vmatpush1.msra.mxu0 0.0
      %4678 = vmatprep.subr.mxu0 0.0
      %4679 = vmatpush1.msra.mxu0 0.0
      %4680 = vmatprep.subr.mxu0 0.0
      %4681 = vmatpush1.msra.mxu0 0.0
      %4682 = vmatprep.subr.mxu0 0.0
      %4683 = vmatpush1.msra.mxu0 0.0
      %4684 = vmatprep.subr.mxu0 0.0
      %4685 = vmatpush1.msra.mxu0 0.0
      %4686 = vmatprep.subr.mxu0 0.0
      %4687 = vmatpush1.msra.mxu0 0.0
      %4688 = vmatprep.subr.mxu0 0.0
      %4689 = vmatpush1.msra.mxu0 0.0
      %4690 = vmatprep.subr.mxu0 0.0
      %4691 = vmatpush1.msra.mxu0 0.0
      %4692 = vmatprep.subr.mxu0 0.0
      %4693 = vmatpush1.msra.mxu0 0.0
      %4694 = vmatprep.subr.mxu0 0.0
      %4695 = vmatpush1.msra.mxu0 0.0
      %4696 = vmatprep.subr.mxu0 0.0
      %4697 = vmatpush1.msra.mxu0 0.0
      %4698 = vmatprep.subr.mxu0 0.0
      %4699 = vmatpush1.msra.mxu0 0.0
      %4700 = vmatprep.subr.mxu0 0.0
      %4701 = vmatpush1.msra.mxu0 0.0
      %4702 = vmatprep.subr.mxu0 0.0
      %4703 = vmatpush1.msra.mxu0 0.0
      %4704 = vmatprep.subr.mxu0 0.0
      %4705 = vmatpush1.msra.mxu0 0.0
      %4706 = vmatprep.subr.mxu0 0.0
      %4707 = vmatpush1.msra.mxu0 0.0
      %4708 = vmatprep.subr.mxu0 0.0
      %4709 = vmatpush1.msra.mxu0 0.0
      %4710 = vmatprep.subr.mxu0 0.0
      %4711 = vmatpush1.msra.mxu0 0.0
      %4712 = vmatprep.subr.mxu0 0.0
      %4713 = vmatpush1.msra.mxu0 0.0
      %4714 = vmatprep.subr.mxu0 0.0
      %4715 = vmatpush1.msra.mxu0 0.0
      %4716 = vmatprep.subr.mxu0 0.0
      %4717 = vmatpush1.msra.mxu0 0.0
      %4718 = vmatprep.subr.mxu0 0.0
      %4719 = vmatpush1.msra.mxu0 0.0
      %4720 = vmatprep.subr.mxu0 0.0
      %4721 = vmatpush1.msra.mxu0 0.0
      %4722 = vmatprep.subr.mxu0 0.0
      %4723 = vmatpush1.msra.mxu0 0.0
      %4724 = vmatprep.mubr.f32.mxu0 0.0
      %v4725 = vand.u32 %v374, 4294901760
      %v4726 = vsub.f32 %v374, %v4725
      %v4727 = vand.u32 %v4726, 4294901760
      %4728 = vmatmul.mubr.f32.gmra.mrb[0].mxu0 %v4727
      %v4729 = vpop.f32.mrb[0].mxu0
      %v4730 = vadd.f32 %v4656, %v4729
      %v4731 = vpop.f32.mrb[0].mxu0
      %4732 = vdwg.mxu0
      %4733 = vmatprep.subr.mxu0 0.0
      %v4734 = vand.u32 %v4432, 4294901760
      %v4735 = vsub.f32 %v4432, %v4734
      %v4736 = vand.u32 %v4735, 4294901760
      %4737 = vmatpush1.msra.mxu0 %v4736
      %4738 = vmatprep.subr.mxu0 0.0
      %4739 = vmatpush1.msra.mxu0 0.0
      %4740 = vmatprep.subr.mxu0 0.0
      %4741 = vmatpush1.msra.mxu0 0.0
      %4742 = vmatprep.subr.mxu0 0.0
      %4743 = vmatpush1.msra.mxu0 0.0
      %4744 = vmatprep.subr.mxu0 0.0
      %4745 = vmatpush1.msra.mxu0 0.0
      %4746 = vmatprep.subr.mxu0 0.0
      %4747 = vmatpush1.msra.mxu0 0.0
      %4748 = vmatprep.subr.mxu0 0.0
      %4749 = vmatpush1.msra.mxu0 0.0
      %4750 = vmatprep.subr.mxu0 0.0
      %4751 = vmatpush1.msra.mxu0 0.0
      %4752 = vmatprep.subr.mxu0 0.0
      %4753 = vmatpush1.msra.mxu0 0.0
      %4754 = vmatprep.subr.mxu0 0.0
      %4755 = vmatpush1.msra.mxu0 0.0
      %4756 = vmatprep.subr.mxu0 0.0
      %4757 = vmatpush1.msra.mxu0 0.0
      %4758 = vmatprep.subr.mxu0 0.0
      %4759 = vmatpush1.msra.mxu0 0.0
      %4760 = vmatprep.subr.mxu0 0.0
      %4761 = vmatpush1.msra.mxu0 0.0
      %4762 = vmatprep.subr.mxu0 0.0
      %4763 = vmatpush1.msra.mxu0 0.0
      %4764 = vmatprep.subr.mxu0 0.0
      %4765 = vmatpush1.msra.mxu0 0.0
      %4766 = vmatprep.subr.mxu0 0.0
      %4767 = vmatpush1.msra.mxu0 0.0
      %4768 = vmatprep.subr.mxu0 0.0
      %4769 = vmatpush1.msra.mxu0 0.0
      %4770 = vmatprep.subr.mxu0 0.0
      %4771 = vmatpush1.msra.mxu0 0.0
      %4772 = vmatprep.subr.mxu0 0.0
      %4773 = vmatpush1.msra.mxu0 0.0
      %4774 = vmatprep.subr.mxu0 0.0
      %4775 = vmatpush1.msra.mxu0 0.0
      %4776 = vmatprep.subr.mxu0 0.0
      %4777 = vmatpush1.msra.mxu0 0.0
      %4778 = vmatprep.subr.mxu0 0.0
      %4779 = vmatpush1.msra.mxu0 0.0
      %4780 = vmatprep.subr.mxu0 0.0
      %4781 = vmatpush1.msra.mxu0 0.0
      %4782 = vmatprep.subr.mxu0 0.0
      %4783 = vmatpush1.msra.mxu0 0.0
      %4784 = vmatprep.subr.mxu0 0.0
      %4785 = vmatpush1.msra.mxu0 0.0
      %4786 = vmatprep.subr.mxu0 0.0
      %4787 = vmatpush1.msra.mxu0 0.0
      %4788 = vmatprep.subr.mxu0 0.0
      %4789 = vmatpush1.msra.mxu0 0.0
      %4790 = vmatprep.subr.mxu0 0.0
      %4791 = vmatpush1.msra.mxu0 0.0
      %4792 = vmatprep.subr.mxu0 0.0
      %4793 = vmatpush1.msra.mxu0 0.0
      %4794 = vmatprep.subr.mxu0 0.0
      %4795 = vmatpush1.msra.mxu0 0.0
      %4796 = vmatprep.subr.mxu0 0.0
      %4797 = vmatpush1.msra.mxu0 0.0
      %4798 = vmatprep.subr.mxu0 0.0
      %4799 = vmatpush1.msra.mxu0 0.0
      %4800 = vmatprep.mubr.f32.mxu0 0.0
      %v4801 = vand.u32 %v374, 4294901760
      %4802 = vmatmul.mubr.f32.gmra.mrb[0].mxu0 %v4801
      %v4803 = vpop.f32.mrb[0].mxu0
      %v4804 = vadd.f32 %v4730, %v4803
      %v4805 = vpop.f32.mrb[0].mxu0
      %4806 = vdwg.mxu0
      %4807 = vmatprep.subr.mxu0 0.0
      %v4808 = vand.u32 %v4432, 4294901760
      %4809 = vmatpush1.msra.mxu0 %v4808
      %4810 = vmatprep.subr.mxu0 0.0
      %4811 = vmatpush1.msra.mxu0 0.0
      %4812 = vmatprep.subr.mxu0 0.0
      %4813 = vmatpush1.msra.mxu0 0.0
      %4814 = vmatprep.subr.mxu0 0.0
      %4815 = vmatpush1.msra.mxu0 0.0
      %4816 = vmatprep.subr.mxu0 0.0
      %4817 = vmatpush1.msra.mxu0 0.0
      %4818 = vmatprep.subr.mxu0 0.0
      %4819 = vmatpush1.msra.mxu0 0.0
      %4820 = vmatprep.subr.mxu0 0.0
      %4821 = vmatpush1.msra.mxu0 0.0
      %4822 = vmatprep.subr.mxu0 0.0
      %4823 = vmatpush1.msra.mxu0 0.0
      %4824 = vmatprep.subr.mxu0 0.0
      %4825 = vmatpush1.msra.mxu0 0.0
      %4826 = vmatprep.subr.mxu0 0.0
      %4827 = vmatpush1.msra.mxu0 0.0
      %4828 = vmatprep.subr.mxu0 0.0
      %4829 = vmatpush1.msra.mxu0 0.0
      %4830 = vmatprep.subr.mxu0 0.0
      %4831 = vmatpush1.msra.mxu0 0.0
      %4832 = vmatprep.subr.mxu0 0.0
      %4833 = vmatpush1.msra.mxu0 0.0
      %4834 = vmatprep.subr.mxu0 0.0
      %4835 = vmatpush1.msra.mxu0 0.0
      %4836 = vmatprep.subr.mxu0 0.0
      %4837 = vmatpush1.msra.mxu0 0.0
      %4838 = vmatprep.subr.mxu0 0.0
      %4839 = vmatpush1.msra.mxu0 0.0
      %4840 = vmatprep.subr.mxu0 0.0
      %4841 = vmatpush1.msra.mxu0 0.0
      %4842 = vmatprep.subr.mxu0 0.0
      %4843 = vmatpush1.msra.mxu0 0.0
      %4844 = vmatprep.subr.mxu0 0.0
      %4845 = vmatpush1.msra.mxu0 0.0
      %4846 = vmatprep.subr.mxu0 0.0
      %4847 = vmatpush1.msra.mxu0 0.0
      %4848 = vmatprep.subr.mxu0 0.0
      %4849 = vmatpush1.msra.mxu0 0.0
      %4850 = vmatprep.subr.mxu0 0.0
      %4851 = vmatpush1.msra.mxu0 0.0
      %4852 = vmatprep.subr.mxu0 0.0
      %4853 = vmatpush1.msra.mxu0 0.0
      %4854 = vmatprep.subr.mxu0 0.0
      %4855 = vmatpush1.msra.mxu0 0.0
      %4856 = vmatprep.subr.mxu0 0.0
      %4857 = vmatpush1.msra.mxu0 0.0
      %4858 = vmatprep.subr.mxu0 0.0
      %4859 = vmatpush1.msra.mxu0 0.0
      %4860 = vmatprep.subr.mxu0 0.0
      %4861 = vmatpush1.msra.mxu0 0.0
      %4862 = vmatprep.subr.mxu0 0.0
      %4863 = vmatpush1.msra.mxu0 0.0
      %4864 = vmatprep.subr.mxu0 0.0
      %4865 = vmatpush1.msra.mxu0 0.0
      %4866 = vmatprep.subr.mxu0 0.0
      %4867 = vmatpush1.msra.mxu0 0.0
      %4868 = vmatprep.subr.mxu0 0.0
      %4869 = vmatpush1.msra.mxu0 0.0
      %4870 = vmatprep.subr.mxu0 0.0
      %4871 = vmatpush1.msra.mxu0 0.0
      %4872 = vmatprep.mubr.f32.mxu0 0.0
      %v4873 = vand.u32 %v374, 4294901760
      %4874 = vmatmul.mubr.f32.gmra.mrb[0].mxu0 %v4873
      %v4875 = vpop.f32.mrb[0].mxu0
      %v4876 = vadd.f32 %v4804, %v4875
      %v4877 = vpop.f32.mrb[0].mxu0
      %4878 = vdwg.mxu0
      %v4879 = vld [vmem:[%s324] sm:$0xff]
      %v4880 = vsel %vm339, %v4879, 0.0
      %v4881 = vlog2.pop %v4880
      %v4882 = vmul.f32 %v4881, 0.6931472
      %v4883 = vmax.f32 %v4882, -100.0
      %v4884 = vsub.f32 0.0, %v4880
      %v4885 = vadd.f32 %v4884, 1.0
      %v4886 = vlog2.pop %v4885
      %v4887 = vmul.f32 %v4886, 0.6931472
      %v4888 = vmul.f32 -0.5, %v4884
      %v4889 = vadd.f32 %v4888, 1.0
      %v4890 = vmul.f32 %v4889, %v4884
      %v4891 = vand.u32 2147483647, %v4884
      %vm4892 = vcmp.lt.f32.partialorder %v4891, 0.0004427343
      %v4893 = vsel %vm4892, %v4890, %v4887
      %v4894 = vmax.f32 %v4893, -100.0
      %v4895 = vmul.f32 %v341, %v4883
      %v4896 = vmul.f32 %v342, %v4894
      %v4897 = vadd.f32 %v4895, %v4896
      %v4898 = vsub.f32 0.0, %v4897
      %4899 = vmatprep.subr.mxu0 0.0
      %v4900 = vand.u32 %v4898, 4294901760
      %4901 = vmatpush1.msra.mxu0 %v4900
      %4902 = vmatprep.subr.mxu0 0.0
      %4903 = vmatpush1.msra.mxu0 0.0
      %4904 = vmatprep.subr.mxu0 0.0
      %4905 = vmatpush1.msra.mxu0 0.0
      %4906 = vmatprep.subr.mxu0 0.0
      %4907 = vmatpush1.msra.mxu0 0.0
      %4908 = vmatprep.subr.mxu0 0.0
      %4909 = vmatpush1.msra.mxu0 0.0
      %4910 = vmatprep.subr.mxu0 0.0
      %4911 = vmatpush1.msra.mxu0 0.0
      %4912 = vmatprep.subr.mxu0 0.0
      %4913 = vmatpush1.msra.mxu0 0.0
      %4914 = vmatprep.subr.mxu0 0.0
      %4915 = vmatpush1.msra.mxu0 0.0
      %4916 = vmatprep.subr.mxu0 0.0
      %4917 = vmatpush1.msra.mxu0 0.0
      %4918 = vmatprep.subr.mxu0 0.0
      %4919 = vmatpush1.msra.mxu0 0.0
      %4920 = vmatprep.subr.mxu0 0.0
      %4921 = vmatpush1.msra.mxu0 0.0
      %4922 = vmatprep.subr.mxu0 0.0
      %4923 = vmatpush1.msra.mxu0 0.0
      %4924 = vmatprep.subr.mxu0 0.0
      %4925 = vmatpush1.msra.mxu0 0.0
      %4926 = vmatprep.subr.mxu0 0.0
      %4927 = vmatpush1.msra.mxu0 0.0
      %4928 = vmatprep.subr.mxu0 0.0
      %4929 = vmatpush1.msra.mxu0 0.0
      %4930 = vmatprep.subr.mxu0 0.0
      %4931 = vmatpush1.msra.mxu0 0.0
      %4932 = vmatprep.subr.mxu0 0.0
      %4933 = vmatpush1.msra.mxu0 0.0
      %4934 = vmatprep.subr.mxu0 0.0
      %4935 = vmatpush1.msra.mxu0 0.0
      %4936 = vmatprep.subr.mxu0 0.0
      %4937 = vmatpush1.msra.mxu0 0.0
      %4938 = vmatprep.subr.mxu0 0.0
      %4939 = vmatpush1.msra.mxu0 0.0
      %4940 = vmatprep.subr.mxu0 0.0
      %4941 = vmatpush1.msra.mxu0 0.0
      %4942 = vmatprep.subr.mxu0 0.0
      %4943 = vmatpush1.msra.mxu0 0.0
      %4944 = vmatprep.subr.mxu0 0.0
      %4945 = vmatpush1.msra.mxu0 0.0
      %4946 = vmatprep.subr.mxu0 0.0
      %4947 = vmatpush1.msra.mxu0 0.0
      %4948 = vmatprep.subr.mxu0 0.0
      %4949 = vmatpush1.msra.mxu0 0.0
      %4950 = vmatprep.subr.mxu0 0.0
      %4951 = vmatpush1.msra.mxu0 0.0
      %4952 = vmatprep.subr.mxu0 0.0
      %4953 = vmatpush1.msra.mxu0 0.0
      %4954 = vmatprep.subr.mxu0 0.0
      %4955 = vmatpush1.msra.mxu0 0.0
      %4956 = vmatprep.subr.mxu0 0.0
      %4957 = vmatpush1.msra.mxu0 0.0
      %4958 = vmatprep.subr.mxu0 0.0
      %4959 = vmatpush1.msra.mxu0 0.0
      %4960 = vmatprep.subr.mxu0 0.0
      %4961 = vmatpush1.msra.mxu0 0.0
      %4962 = vmatprep.subr.mxu0 0.0
      %4963 = vmatpush1.msra.mxu0 0.0
      %4964 = vmatprep.mubr.f32.mxu0 0.0
      %v4965 = vand.u32 %v374, 4294901760
      %v4966 = vsub.f32 %v374, %v4965
      %v4967 = vand.u32 %v4966, 4294901760
      %v4968 = vsub.f32 %v4966, %v4967
      %v4969 = vand.u32 %v4968, 4294901760
      %4970 = vmatmul.mubr.f32.gmra.mrb[0].mxu0 %v4969
      %v4971 = vpop.f32.mrb[0].mxu0
      %v4972 = vadd.f32 0.0, %v4971
      %v4973 = vpop.f32.mrb[0].mxu0
      %4974 = vdwg.mxu0
      %4975 = vmatprep.subr.mxu0 0.0
      %v4976 = vand.u32 %v4898, 4294901760
      %v4977 = vsub.f32 %v4898, %v4976
      %v4978 = vand.u32 %v4977, 4294901760
      %v4979 = vsub.f32 %v4977, %v4978
      %v4980 = vand.u32 %v4979, 4294901760
      %4981 = vmatpush1.msra.mxu0 %v4980
      %4982 = vmatprep.subr.mxu0 0.0
      %4983 = vmatpush1.msra.mxu0 0.0
      %4984 = vmatprep.subr.mxu0 0.0
      %4985 = vmatpush1.msra.mxu0 0.0
      %4986 = vmatprep.subr.mxu0 0.0
      %4987 = vmatpush1.msra.mxu0 0.0
      %4988 = vmatprep.subr.mxu0 0.0
      %4989 = vmatpush1.msra.mxu0 0.0
      %4990 = vmatprep.subr.mxu0 0.0
      %4991 = vmatpush1.msra.mxu0 0.0
      %4992 = vmatprep.subr.mxu0 0.0
      %4993 = vmatpush1.msra.mxu0 0.0
      %4994 = vmatprep.subr.mxu0 0.0
      %4995 = vmatpush1.msra.mxu0 0.0
      %4996 = vmatprep.subr.mxu0 0.0
      %4997 = vmatpush1.msra.mxu0 0.0
      %4998 = vmatprep.subr.mxu0 0.0
      %4999 = vmatpush1.msra.mxu0 0.0
      %5000 = vmatprep.subr.mxu0 0.0
      %5001 = vmatpush1.msra.mxu0 0.0
      %5002 = vmatprep.subr.mxu0 0.0
      %5003 = vmatpush1.msra.mxu0 0.0
      %5004 = vmatprep.subr.mxu0 0.0
      %5005 = vmatpush1.msra.mxu0 0.0
      %5006 = vmatprep.subr.mxu0 0.0
      %5007 = vmatpush1.msra.mxu0 0.0
      %5008 = vmatprep.subr.mxu0 0.0
      %5009 = vmatpush1.msra.mxu0 0.0
      %5010 = vmatprep.subr.mxu0 0.0
      %5011 = vmatpush1.msra.mxu0 0.0
      %5012 = vmatprep.subr.mxu0 0.0
      %5013 = vmatpush1.msra.mxu0 0.0
      %5014 = vmatprep.subr.mxu0 0.0
      %5015 = vmatpush1.msra.mxu0 0.0
      %5016 = vmatprep.subr.mxu0 0.0
      %5017 = vmatpush1.msra.mxu0 0.0
      %5018 = vmatprep.subr.mxu0 0.0
      %5019 = vmatpush1.msra.mxu0 0.0
      %5020 = vmatprep.subr.mxu0 0.0
      %5021 = vmatpush1.msra.mxu0 0.0
      %5022 = vmatprep.subr.mxu0 0.0
      %5023 = vmatpush1.msra.mxu0 0.0
      %5024 = vmatprep.subr.mxu0 0.0
      %5025 = vmatpush1.msra.mxu0 0.0
      %5026 = vmatprep.subr.mxu0 0.0
      %5027 = vmatpush1.msra.mxu0 0.0
      %5028 = vmatprep.subr.mxu0 0.0
      %5029 = vmatpush1.msra.mxu0 0.0
      %5030 = vmatprep.subr.mxu0 0.0
      %5031 = vmatpush1.msra.mxu0 0.0
      %5032 = vmatprep.subr.mxu0 0.0
      %5033 = vmatpush1.msra.mxu0 0.0
      %5034 = vmatprep.subr.mxu0 0.0
      %5035 = vmatpush1.msra.mxu0 0.0
      %5036 = vmatprep.subr.mxu0 0.0
      %5037 = vmatpush1.msra.mxu0 0.0
      %5038 = vmatprep.subr.mxu0 0.0
      %5039 = vmatpush1.msra.mxu0 0.0
      %5040 = vmatprep.subr.mxu0 0.0
      %5041 = vmatpush1.msra.mxu0 0.0
      %5042 = vmatprep.subr.mxu0 0.0
      %5043 = vmatpush1.msra.mxu0 0.0
      %5044 = vmatprep.mubr.f32.mxu0 0.0
      %v5045 = vand.u32 %v374, 4294901760
      %5046 = vmatmul.mubr.f32.gmra.mrb[0].mxu0 %v5045
      %v5047 = vpop.f32.mrb[0].mxu0
      %v5048 = vadd.f32 %v4972, %v5047
      %v5049 = vpop.f32.mrb[0].mxu0
      %5050 = vdwg.mxu0
      %5051 = vmatprep.subr.mxu0 0.0
      %v5052 = vand.u32 %v4898, 4294901760
      %v5053 = vsub.f32 %v4898, %v5052
      %5054 = vmatpush1.msra.mxu0 %v5053
      %5055 = vmatprep.subr.mxu0 0.0
      %5056 = vmatpush1.msra.mxu0 0.0
      %5057 = vmatprep.subr.mxu0 0.0
      %5058 = vmatpush1.msra.mxu0 0.0
      %5059 = vmatprep.subr.mxu0 0.0
      %5060 = vmatpush1.msra.mxu0 0.0
      %5061 = vmatprep.subr.mxu0 0.0
      %5062 = vmatpush1.msra.mxu0 0.0
      %5063 = vmatprep.subr.mxu0 0.0
      %5064 = vmatpush1.msra.mxu0 0.0
      %5065 = vmatprep.subr.mxu0 0.0
      %5066 = vmatpush1.msra.mxu0 0.0
      %5067 = vmatprep.subr.mxu0 0.0
      %5068 = vmatpush1.msra.mxu0 0.0
      %5069 = vmatprep.subr.mxu0 0.0
      %5070 = vmatpush1.msra.mxu0 0.0
      %5071 = vmatprep.subr.mxu0 0.0
      %5072 = vmatpush1.msra.mxu0 0.0
      %5073 = vmatprep.subr.mxu0 0.0
      %5074 = vmatpush1.msra.mxu0 0.0
      %5075 = vmatprep.subr.mxu0 0.0
      %5076 = vmatpush1.msra.mxu0 0.0
      %5077 = vmatprep.subr.mxu0 0.0
      %5078 = vmatpush1.msra.mxu0 0.0
      %5079 = vmatprep.subr.mxu0 0.0
      %5080 = vmatpush1.msra.mxu0 0.0
      %5081 = vmatprep.subr.mxu0 0.0
      %5082 = vmatpush1.msra.mxu0 0.0
      %5083 = vmatprep.subr.mxu0 0.0
      %5084 = vmatpush1.msra.mxu0 0.0
      %5085 = vmatprep.subr.mxu0 0.0
      %5086 = vmatpush1.msra.mxu0 0.0
      %5087 = vmatprep.subr.mxu0 0.0
      %5088 = vmatpush1.msra.mxu0 0.0
      %5089 = vmatprep.subr.mxu0 0.0
      %5090 = vmatpush1.msra.mxu0 0.0
      %5091 = vmatprep.subr.mxu0 0.0
      %5092 = vmatpush1.msra.mxu0 0.0
      %5093 = vmatprep.subr.mxu0 0.0
      %5094 = vmatpush1.msra.mxu0 0.0
      %5095 = vmatprep.subr.mxu0 0.0
      %5096 = vmatpush1.msra.mxu0 0.0
      %5097 = vmatprep.subr.mxu0 0.0
      %5098 = vmatpush1.msra.mxu0 0.0
      %5099 = vmatprep.subr.mxu0 0.0
      %5100 = vmatpush1.msra.mxu0 0.0
      %5101 = vmatprep.subr.mxu0 0.0
      %5102 = vmatpush1.msra.mxu0 0.0
      %5103 = vmatprep.subr.mxu0 0.0
      %5104 = vmatpush1.msra.mxu0 0.0
      %5105 = vmatprep.subr.mxu0 0.0
      %5106 = vmatpush1.msra.mxu0 0.0
      %5107 = vmatprep.subr.mxu0 0.0
      %5108 = vmatpush1.msra.mxu0 0.0
      %5109 = vmatprep.subr.mxu0 0.0
      %5110 = vmatpush1.msra.mxu0 0.0
      %5111 = vmatprep.subr.mxu0 0.0
      %5112 = vmatpush1.msra.mxu0 0.0
      %5113 = vmatprep.subr.mxu0 0.0
      %5114 = vmatpush1.msra.mxu0 0.0
      %5115 = vmatprep.subr.mxu0 0.0
      %5116 = vmatpush1.msra.mxu0 0.0
      %5117 = vmatprep.mubr.f32.mxu0 0.0
      %v5118 = vand.u32 %v374, 4294901760
      %v5119 = vsub.f32 %v374, %v5118
      %5120 = vmatmul.mubr.f32.gmra.mrb[0].mxu0 %v5119
      %v5121 = vpop.f32.mrb[0].mxu0
      %v5122 = vadd.f32 %v5048, %v5121
      %v5123 = vpop.f32.mrb[0].mxu0
      %5124 = vdwg.mxu0
      %5125 = vmatprep.subr.mxu0 0.0
      %v5126 = vand.u32 %v4898, 4294901760
      %5127 = vmatpush1.msra.mxu0 %v5126
      %5128 = vmatprep.subr.mxu0 0.0
      %5129 = vmatpush1.msra.mxu0 0.0
      %5130 = vmatprep.subr.mxu0 0.0
      %5131 = vmatpush1.msra.mxu0 0.0
      %5132 = vmatprep.subr.mxu0 0.0
      %5133 = vmatpush1.msra.mxu0 0.0
      %5134 = vmatprep.subr.mxu0 0.0
      %5135 = vmatpush1.msra.mxu0 0.0
      %5136 = vmatprep.subr.mxu0 0.0
      %5137 = vmatpush1.msra.mxu0 0.0
      %5138 = vmatprep.subr.mxu0 0.0
      %5139 = vmatpush1.msra.mxu0 0.0
      %5140 = vmatprep.subr.mxu0 0.0
      %5141 = vmatpush1.msra.mxu0 0.0
      %5142 = vmatprep.subr.mxu0 0.0
      %5143 = vmatpush1.msra.mxu0 0.0
      %5144 = vmatprep.subr.mxu0 0.0
      %5145 = vmatpush1.msra.mxu0 0.0
      %5146 = vmatprep.subr.mxu0 0.0
      %5147 = vmatpush1.msra.mxu0 0.0
      %5148 = vmatprep.subr.mxu0 0.0
      %5149 = vmatpush1.msra.mxu0 0.0
      %5150 = vmatprep.subr.mxu0 0.0
      %5151 = vmatpush1.msra.mxu0 0.0
      %5152 = vmatprep.subr.mxu0 0.0
      %5153 = vmatpush1.msra.mxu0 0.0
      %5154 = vmatprep.subr.mxu0 0.0
      %5155 = vmatpush1.msra.mxu0 0.0
      %5156 = vmatprep.subr.mxu0 0.0
      %5157 = vmatpush1.msra.mxu0 0.0
      %5158 = vmatprep.subr.mxu0 0.0
      %5159 = vmatpush1.msra.mxu0 0.0
      %5160 = vmatprep.subr.mxu0 0.0
      %5161 = vmatpush1.msra.mxu0 0.0
      %5162 = vmatprep.subr.mxu0 0.0
      %5163 = vmatpush1.msra.mxu0 0.0
      %5164 = vmatprep.subr.mxu0 0.0
      %5165 = vmatpush1.msra.mxu0 0.0
      %5166 = vmatprep.subr.mxu0 0.0
      %5167 = vmatpush1.msra.mxu0 0.0
      %5168 = vmatprep.subr.mxu0 0.0
      %5169 = vmatpush1.msra.mxu0 0.0
      %5170 = vmatprep.subr.mxu0 0.0
      %5171 = vmatpush1.msra.mxu0 0.0
      %5172 = vmatprep.subr.mxu0 0.0
      %5173 = vmatpush1.msra.mxu0 0.0
      %5174 = vmatprep.subr.mxu0 0.0
      %5175 = vmatpush1.msra.mxu0 0.0
      %5176 = vmatprep.subr.mxu0 0.0
      %5177 = vmatpush1.msra.mxu0 0.0
      %5178 = vmatprep.subr.mxu0 0.0
      %5179 = vmatpush1.msra.mxu0 0.0
      %5180 = vmatprep.subr.mxu0 0.0
      %5181 = vmatpush1.msra.mxu0 0.0
      %5182 = vmatprep.subr.mxu0 0.0
      %5183 = vmatpush1.msra.mxu0 0.0
      %5184 = vmatprep.subr.mxu0 0.0
      %5185 = vmatpush1.msra.mxu0 0.0
      %5186 = vmatprep.subr.mxu0 0.0
      %5187 = vmatpush1.msra.mxu0 0.0
      %5188 = vmatprep.subr.mxu0 0.0
      %5189 = vmatpush1.msra.mxu0 0.0
      %5190 = vmatprep.mubr.f32.mxu0 0.0
      %v5191 = vand.u32 %v374, 4294901760
      %v5192 = vsub.f32 %v374, %v5191
      %v5193 = vand.u32 %v5192, 4294901760
      %5194 = vmatmul.mubr.f32.gmra.mrb[0].mxu0 %v5193
      %v5195 = vpop.f32.mrb[0].mxu0
      %v5196 = vadd.f32 %v5122, %v5195
      %v5197 = vpop.f32.mrb[0].mxu0
      %5198 = vdwg.mxu0
      %5199 = vmatprep.subr.mxu0 0.0
      %v5200 = vand.u32 %v4898, 4294901760
      %v5201 = vsub.f32 %v4898, %v5200
      %v5202 = vand.u32 %v5201, 4294901760
      %5203 = vmatpush1.msra.mxu0 %v5202
      %5204 = vmatprep.subr.mxu0 0.0
      %5205 = vmatpush1.msra.mxu0 0.0
      %5206 = vmatprep.subr.mxu0 0.0
      %5207 = vmatpush1.msra.mxu0 0.0
      %5208 = vmatprep.subr.mxu0 0.0
      %5209 = vmatpush1.msra.mxu0 0.0
      %5210 = vmatprep.subr.mxu0 0.0
      %5211 = vmatpush1.msra.mxu0 0.0
      %5212 = vmatprep.subr.mxu0 0.0
      %5213 = vmatpush1.msra.mxu0 0.0
      %5214 = vmatprep.subr.mxu0 0.0
      %5215 = vmatpush1.msra.mxu0 0.0
      %5216 = vmatprep.subr.mxu0 0.0
      %5217 = vmatpush1.msra.mxu0 0.0
      %5218 = vmatprep.subr.mxu0 0.0
      %5219 = vmatpush1.msra.mxu0 0.0
      %5220 = vmatprep.subr.mxu0 0.0
      %5221 = vmatpush1.msra.mxu0 0.0
      %5222 = vmatprep.subr.mxu0 0.0
      %5223 = vmatpush1.msra.mxu0 0.0
      %5224 = vmatprep.subr.mxu0 0.0
      %5225 = vmatpush1.msra.mxu0 0.0
      %5226 = vmatprep.subr.mxu0 0.0
      %5227 = vmatpush1.msra.mxu0 0.0
      %5228 = vmatprep.subr.mxu0 0.0
      %5229 = vmatpush1.msra.mxu0 0.0
      %5230 = vmatprep.subr.mxu0 0.0
      %5231 = vmatpush1.msra.mxu0 0.0
      %5232 = vmatprep.subr.mxu0 0.0
      %5233 = vmatpush1.msra.mxu0 0.0
      %5234 = vmatprep.subr.mxu0 0.0
      %5235 = vmatpush1.msra.mxu0 0.0
      %5236 = vmatprep.subr.mxu0 0.0
      %5237 = vmatpush1.msra.mxu0 0.0
      %5238 = vmatprep.subr.mxu0 0.0
      %5239 = vmatpush1.msra.mxu0 0.0
      %5240 = vmatprep.subr.mxu0 0.0
      %5241 = vmatpush1.msra.mxu0 0.0
      %5242 = vmatprep.subr.mxu0 0.0
      %5243 = vmatpush1.msra.mxu0 0.0
      %5244 = vmatprep.subr.mxu0 0.0
      %5245 = vmatpush1.msra.mxu0 0.0
      %5246 = vmatprep.subr.mxu0 0.0
      %5247 = vmatpush1.msra.mxu0 0.0
      %5248 = vmatprep.subr.mxu0 0.0
      %5249 = vmatpush1.msra.mxu0 0.0
      %5250 = vmatprep.subr.mxu0 0.0
      %5251 = vmatpush1.msra.mxu0 0.0
      %5252 = vmatprep.subr.mxu0 0.0
      %5253 = vmatpush1.msra.mxu0 0.0
      %5254 = vmatprep.subr.mxu0 0.0
      %5255 = vmatpush1.msra.mxu0 0.0
      %5256 = vmatprep.subr.mxu0 0.0
      %5257 = vmatpush1.msra.mxu0 0.0
      %5258 = vmatprep.subr.mxu0 0.0
      %5259 = vmatpush1.msra.mxu0 0.0
      %5260 = vmatprep.subr.mxu0 0.0
      %5261 = vmatpush1.msra.mxu0 0.0
      %5262 = vmatprep.subr.mxu0 0.0
      %5263 = vmatpush1.msra.mxu0 0.0
      %5264 = vmatprep.subr.mxu0 0.0
      %5265 = vmatpush1.msra.mxu0 0.0
      %5266 = vmatprep.mubr.f32.mxu0 0.0
      %v5267 = vand.u32 %v374, 4294901760
      %5268 = vmatmul.mubr.f32.gmra.mrb[0].mxu0 %v5267
      %v5269 = vpop.f32.mrb[0].mxu0
      %v5270 = vadd.f32 %v5196, %v5269
      %v5271 = vpop.f32.mrb[0].mxu0
      %5272 = vdwg.mxu0
      %5273 = vmatprep.subr.mxu0 0.0
      %v5274 = vand.u32 %v4898, 4294901760
      %5275 = vmatpush1.msra.mxu0 %v5274
      %5276 = vmatprep.subr.mxu0 0.0
      %5277 = vmatpush1.msra.mxu0 0.0
      %5278 = vmatprep.subr.mxu0 0.0
      %5279 = vmatpush1.msra.mxu0 0.0
      %5280 = vmatprep.subr.mxu0 0.0
      %5281 = vmatpush1.msra.mxu0 0.0
      %5282 = vmatprep.subr.mxu0 0.0
      %5283 = vmatpush1.msra.mxu0 0.0
      %5284 = vmatprep.subr.mxu0 0.0
      %5285 = vmatpush1.msra.mxu0 0.0
      %5286 = vmatprep.subr.mxu0 0.0
      %5287 = vmatpush1.msra.mxu0 0.0
      %5288 = vmatprep.subr.mxu0 0.0
      %5289 = vmatpush1.msra.mxu0 0.0
      %5290 = vmatprep.subr.mxu0 0.0
      %5291 = vmatpush1.msra.mxu0 0.0
      %5292 = vmatprep.subr.mxu0 0.0
      %5293 = vmatpush1.msra.mxu0 0.0
      %5294 = vmatprep.subr.mxu0 0.0
      %5295 = vmatpush1.msra.mxu0 0.0
      %5296 = vmatprep.subr.mxu0 0.0
      %5297 = vmatpush1.msra.mxu0 0.0
      %5298 = vmatprep.subr.mxu0 0.0
      %5299 = vmatpush1.msra.mxu0 0.0
      %5300 = vmatprep.subr.mxu0 0.0
      %5301 = vmatpush1.msra.mxu0 0.0
      %5302 = vmatprep.subr.mxu0 0.0
      %5303 = vmatpush1.msra.mxu0 0.0
      %5304 = vmatprep.subr.mxu0 0.0
      %5305 = vmatpush1.msra.mxu0 0.0
      %5306 = vmatprep.subr.mxu0 0.0
      %5307 = vmatpush1.msra.mxu0 0.0
      %5308 = vmatprep.subr.mxu0 0.0
      %5309 = vmatpush1.msra.mxu0 0.0
      %5310 = vmatprep.subr.mxu0 0.0
      %5311 = vmatpush1.msra.mxu0 0.0
      %5312 = vmatprep.subr.mxu0 0.0
      %5313 = vmatpush1.msra.mxu0 0.0
      %5314 = vmatprep.subr.mxu0 0.0
      %5315 = vmatpush1.msra.mxu0 0.0
      %5316 = vmatprep.subr.mxu0 0.0
      %5317 = vmatpush1.msra.mxu0 0.0
      %5318 = vmatprep.subr.mxu0 0.0
      %5319 = vmatpush1.msra.mxu0 0.0
      %5320 = vmatprep.subr.mxu0 0.0
      %5321 = vmatpush1.msra.mxu0 0.0
      %5322 = vmatprep.subr.mxu0 0.0
      %5323 = vmatpush1.msra.mxu0 0.0
      %5324 = vmatprep.subr.mxu0 0.0
      %5325 = vmatpush1.msra.mxu0 0.0
      %5326 = vmatprep.subr.mxu0 0.0
      %5327 = vmatpush1.msra.mxu0 0.0
      %5328 = vmatprep.subr.mxu0 0.0
      %5329 = vmatpush1.msra.mxu0 0.0
      %5330 = vmatprep.subr.mxu0 0.0
      %5331 = vmatpush1.msra.mxu0 0.0
      %5332 = vmatprep.subr.mxu0 0.0
      %5333 = vmatpush1.msra.mxu0 0.0
      %5334 = vmatprep.subr.mxu0 0.0
      %5335 = vmatpush1.msra.mxu0 0.0
      %5336 = vmatprep.subr.mxu0 0.0
      %5337 = vmatpush1.msra.mxu0 0.0
      %5338 = vmatprep.mubr.f32.mxu0 0.0
      %v5339 = vand.u32 %v374, 4294901760
      %5340 = vmatmul.mubr.f32.gmra.mrb[0].mxu0 %v5339
      %v5341 = vpop.f32.mrb[0].mxu0
      %v5342 = vadd.f32 %v5270, %v5341
      %v5343 = vpop.f32.mrb[0].mxu0
      %5344 = vdwg.mxu0
      %5345 = vmatprep.subr.mxu0 0.0
      %v5346 = vand.u32 %v4880, 4294901760
      %5347 = vmatpush1.msra.mxu0 %v5346
      %5348 = vmatprep.subr.mxu0 0.0
      %5349 = vmatpush1.msra.mxu0 0.0
      %5350 = vmatprep.subr.mxu0 0.0
      %5351 = vmatpush1.msra.mxu0 0.0
      %5352 = vmatprep.subr.mxu0 0.0
      %5353 = vmatpush1.msra.mxu0 0.0
      %5354 = vmatprep.subr.mxu0 0.0
      %5355 = vmatpush1.msra.mxu0 0.0
      %5356 = vmatprep.subr.mxu0 0.0
      %5357 = vmatpush1.msra.mxu0 0.0
      %5358 = vmatprep.subr.mxu0 0.0
      %5359 = vmatpush1.msra.mxu0 0.0
      %5360 = vmatprep.subr.mxu0 0.0
      %5361 = vmatpush1.msra.mxu0 0.0
      %5362 = vmatprep.subr.mxu0 0.0
      %5363 = vmatpush1.msra.mxu0 0.0
      %5364 = vmatprep.subr.mxu0 0.0
      %5365 = vmatpush1.msra.mxu0 0.0
      %5366 = vmatprep.subr.mxu0 0.0
      %5367 = vmatpush1.msra.mxu0 0.0
      %5368 = vmatprep.subr.mxu0 0.0
      %5369 = vmatpush1.msra.mxu0 0.0
      %5370 = vmatprep.subr.mxu0 0.0
      %5371 = vmatpush1.msra.mxu0 0.0
      %5372 = vmatprep.subr.mxu0 0.0
      %5373 = vmatpush1.msra.mxu0 0.0
      %5374 = vmatprep.subr.mxu0 0.0
      %5375 = vmatpush1.msra.mxu0 0.0
      %5376 = vmatprep.subr.mxu0 0.0
      %5377 = vmatpush1.msra.mxu0 0.0
      %5378 = vmatprep.subr.mxu0 0.0
      %5379 = vmatpush1.msra.mxu0 0.0
      %5380 = vmatprep.subr.mxu0 0.0
      %5381 = vmatpush1.msra.mxu0 0.0
      %5382 = vmatprep.subr.mxu0 0.0
      %5383 = vmatpush1.msra.mxu0 0.0
      %5384 = vmatprep.subr.mxu0 0.0
      %5385 = vmatpush1.msra.mxu0 0.0
      %5386 = vmatprep.subr.mxu0 0.0
      %5387 = vmatpush1.msra.mxu0 0.0
      %5388 = vmatprep.subr.mxu0 0.0
      %5389 = vmatpush1.msra.mxu0 0.0
      %5390 = vmatprep.subr.mxu0 0.0
      %5391 = vmatpush1.msra.mxu0 0.0
      %5392 = vmatprep.subr.mxu0 0.0
      %5393 = vmatpush1.msra.mxu0 0.0
      %5394 = vmatprep.subr.mxu0 0.0
      %5395 = vmatpush1.msra.mxu0 0.0
      %5396 = vmatprep.subr.mxu0 0.0
      %5397 = vmatpush1.msra.mxu0 0.0
      %5398 = vmatprep.subr.mxu0 0.0
      %5399 = vmatpush1.msra.mxu0 0.0
      %5400 = vmatprep.subr.mxu0 0.0
      %5401 = vmatpush1.msra.mxu0 0.0
      %5402 = vmatprep.subr.mxu0 0.0
      %5403 = vmatpush1.msra.mxu0 0.0
      %5404 = vmatprep.subr.mxu0 0.0
      %5405 = vmatpush1.msra.mxu0 0.0
      %5406 = vmatprep.subr.mxu0 0.0
      %5407 = vmatpush1.msra.mxu0 0.0
      %5408 = vmatprep.subr.mxu0 0.0
      %5409 = vmatpush1.msra.mxu0 0.0
      %5410 = vmatprep.mubr.f32.mxu0 0.0
      %v5411 = vand.u32 %v374, 4294901760
      %v5412 = vsub.f32 %v374, %v5411
      %v5413 = vand.u32 %v5412, 4294901760
      %v5414 = vsub.f32 %v5412, %v5413
      %v5415 = vand.u32 %v5414, 4294901760
      %5416 = vmatmul.mubr.f32.gmra.mrb[0].mxu0 %v5415
      %v5417 = vpop.f32.mrb[0].mxu0
      %v5418 = vadd.f32 0.0, %v5417
      %v5419 = vpop.f32.mrb[0].mxu0
      %5420 = vdwg.mxu0
      %5421 = vmatprep.subr.mxu0 0.0
      %v5422 = vand.u32 %v4880, 4294901760
      %v5423 = vsub.f32 %v4880, %v5422
      %v5424 = vand.u32 %v5423, 4294901760
      %v5425 = vsub.f32 %v5423, %v5424
      %v5426 = vand.u32 %v5425, 4294901760
      %5427 = vmatpush1.msra.mxu0 %v5426
      %5428 = vmatprep.subr.mxu0 0.0
      %5429 = vmatpush1.msra.mxu0 0.0
      %5430 = vmatprep.subr.mxu0 0.0
      %5431 = vmatpush1.msra.mxu0 0.0
      %5432 = vmatprep.subr.mxu0 0.0
      %5433 = vmatpush1.msra.mxu0 0.0
      %5434 = vmatprep.subr.mxu0 0.0
      %5435 = vmatpush1.msra.mxu0 0.0
      %5436 = vmatprep.subr.mxu0 0.0
      %5437 = vmatpush1.msra.mxu0 0.0
      %5438 = vmatprep.subr.mxu0 0.0
      %5439 = vmatpush1.msra.mxu0 0.0
      %5440 = vmatprep.subr.mxu0 0.0
      %5441 = vmatpush1.msra.mxu0 0.0
      %5442 = vmatprep.subr.mxu0 0.0
      %5443 = vmatpush1.msra.mxu0 0.0
      %5444 = vmatprep.subr.mxu0 0.0
      %5445 = vmatpush1.msra.mxu0 0.0
      %5446 = vmatprep.subr.mxu0 0.0
      %5447 = vmatpush1.msra.mxu0 0.0
      %5448 = vmatprep.subr.mxu0 0.0
      %5449 = vmatpush1.msra.mxu0 0.0
      %5450 = vmatprep.subr.mxu0 0.0
      %5451 = vmatpush1.msra.mxu0 0.0
      %5452 = vmatprep.subr.mxu0 0.0
      %5453 = vmatpush1.msra.mxu0 0.0
      %5454 = vmatprep.subr.mxu0 0.0
      %5455 = vmatpush1.msra.mxu0 0.0
      %5456 = vmatprep.subr.mxu0 0.0
      %5457 = vmatpush1.msra.mxu0 0.0
      %5458 = vmatprep.subr.mxu0 0.0
      %5459 = vmatpush1.msra.mxu0 0.0
      %5460 = vmatprep.subr.mxu0 0.0
      %5461 = vmatpush1.msra.mxu0 0.0
      %5462 = vmatprep.subr.mxu0 0.0
      %5463 = vmatpush1.msra.mxu0 0.0
      %5464 = vmatprep.subr.mxu0 0.0
      %5465 = vmatpush1.msra.mxu0 0.0
      %5466 = vmatprep.subr.mxu0 0.0
      %5467 = vmatpush1.msra.mxu0 0.0
      %5468 = vmatprep.subr.mxu0 0.0
      %5469 = vmatpush1.msra.mxu0 0.0
      %5470 = vmatprep.subr.mxu0 0.0
      %5471 = vmatpush1.msra.mxu0 0.0
      %5472 = vmatprep.subr.mxu0 0.0
      %5473 = vmatpush1.msra.mxu0 0.0
      %5474 = vmatprep.subr.mxu0 0.0
      %5475 = vmatpush1.msra.mxu0 0.0
      %5476 = vmatprep.subr.mxu0 0.0
      %5477 = vmatpush1.msra.mxu0 0.0
      %5478 = vmatprep.subr.mxu0 0.0
      %5479 = vmatpush1.msra.mxu0 0.0
      %5480 = vmatprep.subr.mxu0 0.0
      %5481 = vmatpush1.msra.mxu0 0.0
      %5482 = vmatprep.subr.mxu0 0.0
      %5483 = vmatpush1.msra.mxu0 0.0
      %5484 = vmatprep.subr.mxu0 0.0
      %5485 = vmatpush1.msra.mxu0 0.0
      %5486 = vmatprep.subr.mxu0 0.0
      %5487 = vmatpush1.msra.mxu0 0.0
      %5488 = vmatprep.subr.mxu0 0.0
      %5489 = vmatpush1.msra.mxu0 0.0
      %5490 = vmatprep.mubr.f32.mxu0 0.0
      %v5491 = vand.u32 %v374, 4294901760
      %5492 = vmatmul.mubr.f32.gmra.mrb[0].mxu0 %v5491
      %v5493 = vpop.f32.mrb[0].mxu0
      %v5494 = vadd.f32 %v5418, %v5493
      %v5495 = vpop.f32.mrb[0].mxu0
      %5496 = vdwg.mxu0
      %5497 = vmatprep.subr.mxu0 0.0
      %v5498 = vand.u32 %v4880, 4294901760
      %v5499 = vsub.f32 %v4880, %v5498
      %5500 = vmatpush1.msra.mxu0 %v5499
      %5501 = vmatprep.subr.mxu0 0.0
      %5502 = vmatpush1.msra.mxu0 0.0
      %5503 = vmatprep.subr.mxu0 0.0
      %5504 = vmatpush1.msra.mxu0 0.0
      %5505 = vmatprep.subr.mxu0 0.0
      %5506 = vmatpush1.msra.mxu0 0.0
      %5507 = vmatprep.subr.mxu0 0.0
      %5508 = vmatpush1.msra.mxu0 0.0
      %5509 = vmatprep.subr.mxu0 0.0
      %5510 = vmatpush1.msra.mxu0 0.0
      %5511 = vmatprep.subr.mxu0 0.0
      %5512 = vmatpush1.msra.mxu0 0.0
      %5513 = vmatprep.subr.mxu0 0.0
      %5514 = vmatpush1.msra.mxu0 0.0
      %5515 = vmatprep.subr.mxu0 0.0
      %5516 = vmatpush1.msra.mxu0 0.0
      %5517 = vmatprep.subr.mxu0 0.0
      %5518 = vmatpush1.msra.mxu0 0.0
      %5519 = vmatprep.subr.mxu0 0.0
      %5520 = vmatpush1.msra.mxu0 0.0
      %5521 = vmatprep.subr.mxu0 0.0
      %5522 = vmatpush1.msra.mxu0 0.0
      %5523 = vmatprep.subr.mxu0 0.0
      %5524 = vmatpush1.msra.mxu0 0.0
      %5525 = vmatprep.subr.mxu0 0.0
      %5526 = vmatpush1.msra.mxu0 0.0
      %5527 = vmatprep.subr.mxu0 0.0
      %5528 = vmatpush1.msra.mxu0 0.0
      %5529 = vmatprep.subr.mxu0 0.0
      %5530 = vmatpush1.msra.mxu0 0.0
      %5531 = vmatprep.subr.mxu0 0.0
      %5532 = vmatpush1.msra.mxu0 0.0
      %5533 = vmatprep.subr.mxu0 0.0
      %5534 = vmatpush1.msra.mxu0 0.0
      %5535 = vmatprep.subr.mxu0 0.0
      %5536 = vmatpush1.msra.mxu0 0.0
      %5537 = vmatprep.subr.mxu0 0.0
      %5538 = vmatpush1.msra.mxu0 0.0
      %5539 = vmatprep.subr.mxu0 0.0
      %5540 = vmatpush1.msra.mxu0 0.0
      %5541 = vmatprep.subr.mxu0 0.0
      %5542 = vmatpush1.msra.mxu0 0.0
      %5543 = vmatprep.subr.mxu0 0.0
      %5544 = vmatpush1.msra.mxu0 0.0
      %5545 = vmatprep.subr.mxu0 0.0
      %5546 = vmatpush1.msra.mxu0 0.0
      %5547 = vmatprep.subr.mxu0 0.0
      %5548 = vmatpush1.msra.mxu0 0.0
      %5549 = vmatprep.subr.mxu0 0.0
      %5550 = vmatpush1.msra.mxu0 0.0
      %5551 = vmatprep.subr.mxu0 0.0
      %5552 = vmatpush1.msra.mxu0 0.0
      %5553 = vmatprep.subr.mxu0 0.0
      %5554 = vmatpush1.msra.mxu0 0.0
      %5555 = vmatprep.subr.mxu0 0.0
      %5556 = vmatpush1.msra.mxu0 0.0
      %5557 = vmatprep.subr.mxu0 0.0
      %5558 = vmatpush1.msra.mxu0 0.0
      %5559 = vmatprep.subr.mxu0 0.0
      %5560 = vmatpush1.msra.mxu0 0.0
      %5561 = vmatprep.subr.mxu0 0.0
      %5562 = vmatpush1.msra.mxu0 0.0
      %5563 = vmatprep.mubr.f32.mxu0 0.0
      %v5564 = vand.u32 %v374, 4294901760
      %v5565 = vsub.f32 %v374, %v5564
      %5566 = vmatmul.mubr.f32.gmra.mrb[0].mxu0 %v5565
      %v5567 = vpop.f32.mrb[0].mxu0
      %v5568 = vadd.f32 %v5494, %v5567
      %v5569 = vpop.f32.mrb[0].mxu0
      %5570 = vdwg.mxu0
      %5571 = vmatprep.subr.mxu0 0.0
      %v5572 = vand.u32 %v4880, 4294901760
      %5573 = vmatpush1.msra.mxu0 %v5572
      %5574 = vmatprep.subr.mxu0 0.0
      %5575 = vmatpush1.msra.mxu0 0.0
      %5576 = vmatprep.subr.mxu0 0.0
      %5577 = vmatpush1.msra.mxu0 0.0
      %5578 = vmatprep.subr.mxu0 0.0
      %5579 = vmatpush1.msra.mxu0 0.0
      %5580 = vmatprep.subr.mxu0 0.0
      %5581 = vmatpush1.msra.mxu0 0.0
      %5582 = vmatprep.subr.mxu0 0.0
      %5583 = vmatpush1.msra.mxu0 0.0
      %5584 = vmatprep.subr.mxu0 0.0
      %5585 = vmatpush1.msra.mxu0 0.0
      %5586 = vmatprep.subr.mxu0 0.0
      %5587 = vmatpush1.msra.mxu0 0.0
      %5588 = vmatprep.subr.mxu0 0.0
      %5589 = vmatpush1.msra.mxu0 0.0
      %5590 = vmatprep.subr.mxu0 0.0
      %5591 = vmatpush1.msra.mxu0 0.0
      %5592 = vmatprep.subr.mxu0 0.0
      %5593 = vmatpush1.msra.mxu0 0.0
      %5594 = vmatprep.subr.mxu0 0.0
      %5595 = vmatpush1.msra.mxu0 0.0
      %5596 = vmatprep.subr.mxu0 0.0
      %5597 = vmatpush1.msra.mxu0 0.0
      %5598 = vmatprep.subr.mxu0 0.0
      %5599 = vmatpush1.msra.mxu0 0.0
      %5600 = vmatprep.subr.mxu0 0.0
      %5601 = vmatpush1.msra.mxu0 0.0
      %5602 = vmatprep.subr.mxu0 0.0
      %5603 = vmatpush1.msra.mxu0 0.0
      %5604 = vmatprep.subr.mxu0 0.0
      %5605 = vmatpush1.msra.mxu0 0.0
      %5606 = vmatprep.subr.mxu0 0.0
      %5607 = vmatpush1.msra.mxu0 0.0
      %5608 = vmatprep.subr.mxu0 0.0
      %5609 = vmatpush1.msra.mxu0 0.0
      %5610 = vmatprep.subr.mxu0 0.0
      %5611 = vmatpush1.msra.mxu0 0.0
      %5612 = vmatprep.subr.mxu0 0.0
      %5613 = vmatpush1.msra.mxu0 0.0
      %5614 = vmatprep.subr.mxu0 0.0
      %5615 = vmatpush1.msra.mxu0 0.0
      %5616 = vmatprep.subr.mxu0 0.0
      %5617 = vmatpush1.msra.mxu0 0.0
      %5618 = vmatprep.subr.mxu0 0.0
      %5619 = vmatpush1.msra.mxu0 0.0
      %5620 = vmatprep.subr.mxu0 0.0
      %5621 = vmatpush1.msra.mxu0 0.0
      %5622 = vmatprep.subr.mxu0 0.0
      %5623 = vmatpush1.msra.mxu0 0.0
      %5624 = vmatprep.subr.mxu0 0.0
      %5625 = vmatpush1.msra.mxu0 0.0
      %5626 = vmatprep.subr.mxu0 0.0
      %5627 = vmatpush1.msra.mxu0 0.0
      %5628 = vmatprep.subr.mxu0 0.0
      %5629 = vmatpush1.msra.mxu0 0.0
      %5630 = vmatprep.subr.mxu0 0.0
      %5631 = vmatpush1.msra.mxu0 0.0
      %5632 = vmatprep.subr.mxu0 0.0
      %5633 = vmatpush1.msra.mxu0 0.0
      %5634 = vmatprep.subr.mxu0 0.0
      %5635 = vmatpush1.msra.mxu0 0.0
      %5636 = vmatprep.mubr.f32.mxu0 0.0
      %v5637 = vand.u32 %v374, 4294901760
      %v5638 = vsub.f32 %v374, %v5637
      %v5639 = vand.u32 %v5638, 4294901760
      %5640 = vmatmul.mubr.f32.gmra.mrb[0].mxu0 %v5639
      %v5641 = vpop.f32.mrb[0].mxu0
      %v5642 = vadd.f32 %v5568, %v5641
      %v5643 = vpop.f32.mrb[0].mxu0
      %5644 = vdwg.mxu0
      %5645 = vmatprep.subr.mxu0 0.0
      %v5646 = vand.u32 %v4880, 4294901760
      %v5647 = vsub.f32 %v4880, %v5646
      %v5648 = vand.u32 %v5647, 4294901760
      %5649 = vmatpush1.msra.mxu0 %v5648
      %5650 = vmatprep.subr.mxu0 0.0
      %5651 = vmatpush1.msra.mxu0 0.0
      %5652 = vmatprep.subr.mxu0 0.0
      %5653 = vmatpush1.msra.mxu0 0.0
      %5654 = vmatprep.subr.mxu0 0.0
      %5655 = vmatpush1.msra.mxu0 0.0
      %5656 = vmatprep.subr.mxu0 0.0
      %5657 = vmatpush1.msra.mxu0 0.0
      %5658 = vmatprep.subr.mxu0 0.0
      %5659 = vmatpush1.msra.mxu0 0.0
      %5660 = vmatprep.subr.mxu0 0.0
      %5661 = vmatpush1.msra.mxu0 0.0
      %5662 = vmatprep.subr.mxu0 0.0
      %5663 = vmatpush1.msra.mxu0 0.0
      %5664 = vmatprep.subr.mxu0 0.0
      %5665 = vmatpush1.msra.mxu0 0.0
      %5666 = vmatprep.subr.mxu0 0.0
      %5667 = vmatpush1.msra.mxu0 0.0
      %5668 = vmatprep.subr.mxu0 0.0
      %5669 = vmatpush1.msra.mxu0 0.0
      %5670 = vmatprep.subr.mxu0 0.0
      %5671 = vmatpush1.msra.mxu0 0.0
      %5672 = vmatprep.subr.mxu0 0.0
      %5673 = vmatpush1.msra.mxu0 0.0
      %5674 = vmatprep.subr.mxu0 0.0
      %5675 = vmatpush1.msra.mxu0 0.0
      %5676 = vmatprep.subr.mxu0 0.0
      %5677 = vmatpush1.msra.mxu0 0.0
      %5678 = vmatprep.subr.mxu0 0.0
      %5679 = vmatpush1.msra.mxu0 0.0
      %5680 = vmatprep.subr.mxu0 0.0
      %5681 = vmatpush1.msra.mxu0 0.0
      %5682 = vmatprep.subr.mxu0 0.0
      %5683 = vmatpush1.msra.mxu0 0.0
      %5684 = vmatprep.subr.mxu0 0.0
      %5685 = vmatpush1.msra.mxu0 0.0
      %5686 = vmatprep.subr.mxu0 0.0
      %5687 = vmatpush1.msra.mxu0 0.0
      %5688 = vmatprep.subr.mxu0 0.0
      %5689 = vmatpush1.msra.mxu0 0.0
      %5690 = vmatprep.subr.mxu0 0.0
      %5691 = vmatpush1.msra.mxu0 0.0
      %5692 = vmatprep.subr.mxu0 0.0
      %5693 = vmatpush1.msra.mxu0 0.0
      %5694 = vmatprep.subr.mxu0 0.0
      %5695 = vmatpush1.msra.mxu0 0.0
      %5696 = vmatprep.subr.mxu0 0.0
      %5697 = vmatpush1.msra.mxu0 0.0
      %5698 = vmatprep.subr.mxu0 0.0
      %5699 = vmatpush1.msra.mxu0 0.0
      %5700 = vmatprep.subr.mxu0 0.0
      %5701 = vmatpush1.msra.mxu0 0.0
      %5702 = vmatprep.subr.mxu0 0.0
      %5703 = vmatpush1.msra.mxu0 0.0
      %5704 = vmatprep.subr.mxu0 0.0
      %5705 = vmatpush1.msra.mxu0 0.0
      %5706 = vmatprep.subr.mxu0 0.0
      %5707 = vmatpush1.msra.mxu0 0.0
      %5708 = vmatprep.subr.mxu0 0.0
      %5709 = vmatpush1.msra.mxu0 0.0
      %5710 = vmatprep.subr.mxu0 0.0
      %5711 = vmatpush1.msra.mxu0 0.0
      %5712 = vmatprep.mubr.f32.mxu0 0.0
      %v5713 = vand.u32 %v374, 4294901760
      %5714 = vmatmul.mubr.f32.gmra.mrb[0].mxu0 %v5713
      %v5715 = vpop.f32.mrb[0].mxu0
      %v5716 = vadd.f32 %v5642, %v5715
      %v5717 = vpop.f32.mrb[0].mxu0
      %5718 = vdwg.mxu0
      %5719 = vmatprep.subr.mxu0 0.0
      %v5720 = vand.u32 %v4880, 4294901760
      %5721 = vmatpush1.msra.mxu0 %v5720
      %5722 = vmatprep.subr.mxu0 0.0
      %5723 = vmatpush1.msra.mxu0 0.0
      %5724 = vmatprep.subr.mxu0 0.0
      %5725 = vmatpush1.msra.mxu0 0.0
      %5726 = vmatprep.subr.mxu0 0.0
      %5727 = vmatpush1.msra.mxu0 0.0
      %5728 = vmatprep.subr.mxu0 0.0
      %5729 = vmatpush1.msra.mxu0 0.0
      %5730 = vmatprep.subr.mxu0 0.0
      %5731 = vmatpush1.msra.mxu0 0.0
      %5732 = vmatprep.subr.mxu0 0.0
      %5733 = vmatpush1.msra.mxu0 0.0
      %5734 = vmatprep.subr.mxu0 0.0
      %5735 = vmatpush1.msra.mxu0 0.0
      %5736 = vmatprep.subr.mxu0 0.0
      %5737 = vmatpush1.msra.mxu0 0.0
      %5738 = vmatprep.subr.mxu0 0.0
      %5739 = vmatpush1.msra.mxu0 0.0
      %5740 = vmatprep.subr.mxu0 0.0
      %5741 = vmatpush1.msra.mxu0 0.0
      %5742 = vmatprep.subr.mxu0 0.0
      %5743 = vmatpush1.msra.mxu0 0.0
      %5744 = vmatprep.subr.mxu0 0.0
      %5745 = vmatpush1.msra.mxu0 0.0
      %5746 = vmatprep.subr.mxu0 0.0
      %5747 = vmatpush1.msra.mxu0 0.0
      %5748 = vmatprep.subr.mxu0 0.0
      %5749 = vmatpush1.msra.mxu0 0.0
      %5750 = vmatprep.subr.mxu0 0.0
      %5751 = vmatpush1.msra.mxu0 0.0
      %5752 = vmatprep.subr.mxu0 0.0
      %5753 = vmatpush1.msra.mxu0 0.0
      %5754 = vmatprep.subr.mxu0 0.0
      %5755 = vmatpush1.msra.mxu0 0.0
      %5756 = vmatprep.subr.mxu0 0.0
      %5757 = vmatpush1.msra.mxu0 0.0
      %5758 = vmatprep.subr.mxu0 0.0
      %5759 = vmatpush1.msra.mxu0 0.0
      %5760 = vmatprep.subr.mxu0 0.0
      %5761 = vmatpush1.msra.mxu0 0.0
      %5762 = vmatprep.subr.mxu0 0.0
      %5763 = vmatpush1.msra.mxu0 0.0
      %5764 = vmatprep.subr.mxu0 0.0
      %5765 = vmatpush1.msra.mxu0 0.0
      %5766 = vmatprep.subr.mxu0 0.0
      %5767 = vmatpush1.msra.mxu0 0.0
      %5768 = vmatprep.subr.mxu0 0.0
      %5769 = vmatpush1.msra.mxu0 0.0
      %5770 = vmatprep.subr.mxu0 0.0
      %5771 = vmatpush1.msra.mxu0 0.0
      %5772 = vmatprep.subr.mxu0 0.0
      %5773 = vmatpush1.msra.mxu0 0.0
      %5774 = vmatprep.subr.mxu0 0.0
      %5775 = vmatpush1.msra.mxu0 0.0
      %5776 = vmatprep.subr.mxu0 0.0
      %5777 = vmatpush1.msra.mxu0 0.0
      %5778 = vmatprep.subr.mxu0 0.0
      %5779 = vmatpush1.msra.mxu0 0.0
      %5780 = vmatprep.subr.mxu0 0.0
      %5781 = vmatpush1.msra.mxu0 0.0
      %5782 = vmatprep.subr.mxu0 0.0
      %5783 = vmatpush1.msra.mxu0 0.0
      %5784 = vmatprep.mubr.f32.mxu0 0.0
      %v5785 = vand.u32 %v374, 4294901760
      %5786 = vmatmul.mubr.f32.gmra.mrb[0].mxu0 %v5785
      %v5787 = vpop.f32.mrb[0].mxu0
      %v5788 = vadd.f32 %v5716, %v5787
      %v5789 = vpop.f32.mrb[0].mxu0
      %5790 = vdwg.mxu0
      %v5791 = vmul.f32 %v4880, %v341
      %5792 = vmatprep.subr.mxu0 0.0
      %v5793 = vand.u32 %v5791, 4294901760
      %5794 = vmatpush1.msra.mxu0 %v5793
      %5795 = vmatprep.subr.mxu0 0.0
      %5796 = vmatpush1.msra.mxu0 0.0
      %5797 = vmatprep.subr.mxu0 0.0
      %5798 = vmatpush1.msra.mxu0 0.0
      %5799 = vmatprep.subr.mxu0 0.0
      %5800 = vmatpush1.msra.mxu0 0.0
      %5801 = vmatprep.subr.mxu0 0.0
      %5802 = vmatpush1.msra.mxu0 0.0
      %5803 = vmatprep.subr.mxu0 0.0
      %5804 = vmatpush1.msra.mxu0 0.0
      %5805 = vmatprep.subr.mxu0 0.0
      %5806 = vmatpush1.msra.mxu0 0.0
      %5807 = vmatprep.subr.mxu0 0.0
      %5808 = vmatpush1.msra.mxu0 0.0
      %5809 = vmatprep.subr.mxu0 0.0
      %5810 = vmatpush1.msra.mxu0 0.0
      %5811 = vmatprep.subr.mxu0 0.0
      %5812 = vmatpush1.msra.mxu0 0.0
      %5813 = vmatprep.subr.mxu0 0.0
      %5814 = vmatpush1.msra.mxu0 0.0
      %5815 = vmatprep.subr.mxu0 0.0
      %5816 = vmatpush1.msra.mxu0 0.0
      %5817 = vmatprep.subr.mxu0 0.0
      %5818 = vmatpush1.msra.mxu0 0.0
      %5819 = vmatprep.subr.mxu0 0.0
      %5820 = vmatpush1.msra.mxu0 0.0
      %5821 = vmatprep.subr.mxu0 0.0
      %5822 = vmatpush1.msra.mxu0 0.0
      %5823 = vmatprep.subr.mxu0 0.0
      %5824 = vmatpush1.msra.mxu0 0.0
      %5825 = vmatprep.subr.mxu0 0.0
      %5826 = vmatpush1.msra.mxu0 0.0
      %5827 = vmatprep.subr.mxu0 0.0
      %5828 = vmatpush1.msra.mxu0 0.0
      %5829 = vmatprep.subr.mxu0 0.0
      %5830 = vmatpush1.msra.mxu0 0.0
      %5831 = vmatprep.subr.mxu0 0.0
      %5832 = vmatpush1.msra.mxu0 0.0
      %5833 = vmatprep.subr.mxu0 0.0
      %5834 = vmatpush1.msra.mxu0 0.0
      %5835 = vmatprep.subr.mxu0 0.0
      %5836 = vmatpush1.msra.mxu0 0.0
      %5837 = vmatprep.subr.mxu0 0.0
      %5838 = vmatpush1.msra.mxu0 0.0
      %5839 = vmatprep.subr.mxu0 0.0
      %5840 = vmatpush1.msra.mxu0 0.0
      %5841 = vmatprep.subr.mxu0 0.0
      %5842 = vmatpush1.msra.mxu0 0.0
      %5843 = vmatprep.subr.mxu0 0.0
      %5844 = vmatpush1.msra.mxu0 0.0
      %5845 = vmatprep.subr.mxu0 0.0
      %5846 = vmatpush1.msra.mxu0 0.0
      %5847 = vmatprep.subr.mxu0 0.0
      %5848 = vmatpush1.msra.mxu0 0.0
      %5849 = vmatprep.subr.mxu0 0.0
      %5850 = vmatpush1.msra.mxu0 0.0
      %5851 = vmatprep.subr.mxu0 0.0
      %5852 = vmatpush1.msra.mxu0 0.0
      %5853 = vmatprep.subr.mxu0 0.0
      %5854 = vmatpush1.msra.mxu0 0.0
      %5855 = vmatprep.subr.mxu0 0.0
      %5856 = vmatpush1.msra.mxu0 0.0
      %5857 = vmatprep.mubr.f32.mxu0 0.0
      %v5858 = vand.u32 %v374, 4294901760
      %v5859 = vsub.f32 %v374, %v5858
      %v5860 = vand.u32 %v5859, 4294901760
      %v5861 = vsub.f32 %v5859, %v5860
      %v5862 = vand.u32 %v5861, 4294901760
      %5863 = vmatmul.mubr.f32.gmra.mrb[0].mxu0 %v5862
      %v5864 = vpop.f32.mrb[0].mxu0
      %v5865 = vadd.f32 0.0, %v5864
      %v5866 = vpop.f32.mrb[0].mxu0
      %5867 = vdwg.mxu0
      %5868 = vmatprep.subr.mxu0 0.0
      %v5869 = vand.u32 %v5791, 4294901760
      %v5870 = vsub.f32 %v5791, %v5869
      %v5871 = vand.u32 %v5870, 4294901760
      %v5872 = vsub.f32 %v5870, %v5871
      %v5873 = vand.u32 %v5872, 4294901760
      %5874 = vmatpush1.msra.mxu0 %v5873
      %5875 = vmatprep.subr.mxu0 0.0
      %5876 = vmatpush1.msra.mxu0 0.0
      %5877 = vmatprep.subr.mxu0 0.0
      %5878 = vmatpush1.msra.mxu0 0.0
      %5879 = vmatprep.subr.mxu0 0.0
      %5880 = vmatpush1.msra.mxu0 0.0
      %5881 = vmatprep.subr.mxu0 0.0
      %5882 = vmatpush1.msra.mxu0 0.0
      %5883 = vmatprep.subr.mxu0 0.0
      %5884 = vmatpush1.msra.mxu0 0.0
      %5885 = vmatprep.subr.mxu0 0.0
      %5886 = vmatpush1.msra.mxu0 0.0
      %5887 = vmatprep.subr.mxu0 0.0
      %5888 = vmatpush1.msra.mxu0 0.0
      %5889 = vmatprep.subr.mxu0 0.0
      %5890 = vmatpush1.msra.mxu0 0.0
      %5891 = vmatprep.subr.mxu0 0.0
      %5892 = vmatpush1.msra.mxu0 0.0
      %5893 = vmatprep.subr.mxu0 0.0
      %5894 = vmatpush1.msra.mxu0 0.0
      %5895 = vmatprep.subr.mxu0 0.0
      %5896 = vmatpush1.msra.mxu0 0.0
      %5897 = vmatprep.subr.mxu0 0.0
      %5898 = vmatpush1.msra.mxu0 0.0
      %5899 = vmatprep.subr.mxu0 0.0
      %5900 = vmatpush1.msra.mxu0 0.0
      %5901 = vmatprep.subr.mxu0 0.0
      %5902 = vmatpush1.msra.mxu0 0.0
      %5903 = vmatprep.subr.mxu0 0.0
      %5904 = vmatpush1.msra.mxu0 0.0
      %5905 = vmatprep.subr.mxu0 0.0
      %5906 = vmatpush1.msra.mxu0 0.0
      %5907 = vmatprep.subr.mxu0 0.0
      %5908 = vmatpush1.msra.mxu0 0.0
      %5909 = vmatprep.subr.mxu0 0.0
      %5910 = vmatpush1.msra.mxu0 0.0
      %5911 = vmatprep.subr.mxu0 0.0
      %5912 = vmatpush1.msra.mxu0 0.0
      %5913 = vmatprep.subr.mxu0 0.0
      %5914 = vmatpush1.msra.mxu0 0.0
      %5915 = vmatprep.subr.mxu0 0.0
      %5916 = vmatpush1.msra.mxu0 0.0
      %5917 = vmatprep.subr.mxu0 0.0
      %5918 = vmatpush1.msra.mxu0 0.0
      %5919 = vmatprep.subr.mxu0 0.0
      %5920 = vmatpush1.msra.mxu0 0.0
      %5921 = vmatprep.subr.mxu0 0.0
      %5922 = vmatpush1.msra.mxu0 0.0
      %5923 = vmatprep.subr.mxu0 0.0
      %5924 = vmatpush1.msra.mxu0 0.0
      %5925 = vmatprep.subr.mxu0 0.0
      %5926 = vmatpush1.msra.mxu0 0.0
      %5927 = vmatprep.subr.mxu0 0.0
      %5928 = vmatpush1.msra.mxu0 0.0
      %5929 = vmatprep.subr.mxu0 0.0
      %5930 = vmatpush1.msra.mxu0 0.0
      %5931 = vmatprep.subr.mxu0 0.0
      %5932 = vmatpush1.msra.mxu0 0.0
      %5933 = vmatprep.subr.mxu0 0.0
      %5934 = vmatpush1.msra.mxu0 0.0
      %5935 = vmatprep.subr.mxu0 0.0
      %5936 = vmatpush1.msra.mxu0 0.0
      %5937 = vmatprep.mubr.f32.mxu0 0.0
      %v5938 = vand.u32 %v374, 4294901760
      %5939 = vmatmul.mubr.f32.gmra.mrb[0].mxu0 %v5938
      %v5940 = vpop.f32.mrb[0].mxu0
      %v5941 = vadd.f32 %v5865, %v5940
      %v5942 = vpop.f32.mrb[0].mxu0
      %5943 = vdwg.mxu0
      %5944 = vmatprep.subr.mxu0 0.0
      %v5945 = vand.u32 %v5791, 4294901760
      %v5946 = vsub.f32 %v5791, %v5945
      %5947 = vmatpush1.msra.mxu0 %v5946
      %5948 = vmatprep.subr.mxu0 0.0
      %5949 = vmatpush1.msra.mxu0 0.0
      %5950 = vmatprep.subr.mxu0 0.0
      %5951 = vmatpush1.msra.mxu0 0.0
      %5952 = vmatprep.subr.mxu0 0.0
      %5953 = vmatpush1.msra.mxu0 0.0
      %5954 = vmatprep.subr.mxu0 0.0
      %5955 = vmatpush1.msra.mxu0 0.0
      %5956 = vmatprep.subr.mxu0 0.0
      %5957 = vmatpush1.msra.mxu0 0.0
      %5958 = vmatprep.subr.mxu0 0.0
      %5959 = vmatpush1.msra.mxu0 0.0
      %5960 = vmatprep.subr.mxu0 0.0
      %5961 = vmatpush1.msra.mxu0 0.0
      %5962 = vmatprep.subr.mxu0 0.0
      %5963 = vmatpush1.msra.mxu0 0.0
      %5964 = vmatprep.subr.mxu0 0.0
      %5965 = vmatpush1.msra.mxu0 0.0
      %5966 = vmatprep.subr.mxu0 0.0
      %5967 = vmatpush1.msra.mxu0 0.0
      %5968 = vmatprep.subr.mxu0 0.0
      %5969 = vmatpush1.msra.mxu0 0.0
      %5970 = vmatprep.subr.mxu0 0.0
      %5971 = vmatpush1.msra.mxu0 0.0
      %5972 = vmatprep.subr.mxu0 0.0
      %5973 = vmatpush1.msra.mxu0 0.0
      %5974 = vmatprep.subr.mxu0 0.0
      %5975 = vmatpush1.msra.mxu0 0.0
      %5976 = vmatprep.subr.mxu0 0.0
      %5977 = vmatpush1.msra.mxu0 0.0
      %5978 = vmatprep.subr.mxu0 0.0
      %5979 = vmatpush1.msra.mxu0 0.0
      %5980 = vmatprep.subr.mxu0 0.0
      %5981 = vmatpush1.msra.mxu0 0.0
      %5982 = vmatprep.subr.mxu0 0.0
      %5983 = vmatpush1.msra.mxu0 0.0
      %5984 = vmatprep.subr.mxu0 0.0
      %5985 = vmatpush1.msra.mxu0 0.0
      %5986 = vmatprep.subr.mxu0 0.0
      %5987 = vmatpush1.msra.mxu0 0.0
      %5988 = vmatprep.subr.mxu0 0.0
      %5989 = vmatpush1.msra.mxu0 0.0
      %5990 = vmatprep.subr.mxu0 0.0
      %5991 = vmatpush1.msra.mxu0 0.0
      %5992 = vmatprep.subr.mxu0 0.0
      %5993 = vmatpush1.msra.mxu0 0.0
      %5994 = vmatprep.subr.mxu0 0.0
      %5995 = vmatpush1.msra.mxu0 0.0
      %5996 = vmatprep.subr.mxu0 0.0
      %5997 = vmatpush1.msra.mxu0 0.0
      %5998 = vmatprep.subr.mxu0 0.0
      %5999 = vmatpush1.msra.mxu0 0.0
      %6000 = vmatprep.subr.mxu0 0.0
      %6001 = vmatpush1.msra.mxu0 0.0
      %6002 = vmatprep.subr.mxu0 0.0
      %6003 = vmatpush1.msra.mxu0 0.0
      %6004 = vmatprep.subr.mxu0 0.0
      %6005 = vmatpush1.msra.mxu0 0.0
      %6006 = vmatprep.subr.mxu0 0.0
      %6007 = vmatpush1.msra.mxu0 0.0
      %6008 = vmatprep.subr.mxu0 0.0
      %6009 = vmatpush1.msra.mxu0 0.0
      %6010 = vmatprep.mubr.f32.mxu0 0.0
      %v6011 = vand.u32 %v374, 4294901760
      %v6012 = vsub.f32 %v374, %v6011
      %6013 = vmatmul.mubr.f32.gmra.mrb[0].mxu0 %v6012
      %v6014 = vpop.f32.mrb[0].mxu0
      %v6015 = vadd.f32 %v5941, %v6014
      %v6016 = vpop.f32.mrb[0].mxu0
      %6017 = vdwg.mxu0
      %6018 = vmatprep.subr.mxu0 0.0
      %v6019 = vand.u32 %v5791, 4294901760
      %6020 = vmatpush1.msra.mxu0 %v6019
      %6021 = vmatprep.subr.mxu0 0.0
      %6022 = vmatpush1.msra.mxu0 0.0
      %6023 = vmatprep.subr.mxu0 0.0
      %6024 = vmatpush1.msra.mxu0 0.0
      %6025 = vmatprep.subr.mxu0 0.0
      %6026 = vmatpush1.msra.mxu0 0.0
      %6027 = vmatprep.subr.mxu0 0.0
      %6028 = vmatpush1.msra.mxu0 0.0
      %6029 = vmatprep.subr.mxu0 0.0
      %6030 = vmatpush1.msra.mxu0 0.0
      %6031 = vmatprep.subr.mxu0 0.0
      %6032 = vmatpush1.msra.mxu0 0.0
      %6033 = vmatprep.subr.mxu0 0.0
      %6034 = vmatpush1.msra.mxu0 0.0
      %6035 = vmatprep.subr.mxu0 0.0
      %6036 = vmatpush1.msra.mxu0 0.0
      %6037 = vmatprep.subr.mxu0 0.0
      %6038 = vmatpush1.msra.mxu0 0.0
      %6039 = vmatprep.subr.mxu0 0.0
      %6040 = vmatpush1.msra.mxu0 0.0
      %6041 = vmatprep.subr.mxu0 0.0
      %6042 = vmatpush1.msra.mxu0 0.0
      %6043 = vmatprep.subr.mxu0 0.0
      %6044 = vmatpush1.msra.mxu0 0.0
      %6045 = vmatprep.subr.mxu0 0.0
      %6046 = vmatpush1.msra.mxu0 0.0
      %6047 = vmatprep.subr.mxu0 0.0
      %6048 = vmatpush1.msra.mxu0 0.0
      %6049 = vmatprep.subr.mxu0 0.0
      %6050 = vmatpush1.msra.mxu0 0.0
      %6051 = vmatprep.subr.mxu0 0.0
      %6052 = vmatpush1.msra.mxu0 0.0
      %6053 = vmatprep.subr.mxu0 0.0
      %6054 = vmatpush1.msra.mxu0 0.0
      %6055 = vmatprep.subr.mxu0 0.0
      %6056 = vmatpush1.msra.mxu0 0.0
      %6057 = vmatprep.subr.mxu0 0.0
      %6058 = vmatpush1.msra.mxu0 0.0
      %6059 = vmatprep.subr.mxu0 0.0
      %6060 = vmatpush1.msra.mxu0 0.0
      %6061 = vmatprep.subr.mxu0 0.0
      %6062 = vmatpush1.msra.mxu0 0.0
      %6063 = vmatprep.subr.mxu0 0.0
      %6064 = vmatpush1.msra.mxu0 0.0
      %6065 = vmatprep.subr.mxu0 0.0
      %6066 = vmatpush1.msra.mxu0 0.0
      %6067 = vmatprep.subr.mxu0 0.0
      %6068 = vmatpush1.msra.mxu0 0.0
      %6069 = vmatprep.subr.mxu0 0.0
      %6070 = vmatpush1.msra.mxu0 0.0
      %6071 = vmatprep.subr.mxu0 0.0
      %6072 = vmatpush1.msra.mxu0 0.0
      %6073 = vmatprep.subr.mxu0 0.0
      %6074 = vmatpush1.msra.mxu0 0.0
      %6075 = vmatprep.subr.mxu0 0.0
      %6076 = vmatpush1.msra.mxu0 0.0
      %6077 = vmatprep.subr.mxu0 0.0
      %6078 = vmatpush1.msra.mxu0 0.0
      %6079 = vmatprep.subr.mxu0 0.0
      %6080 = vmatpush1.msra.mxu0 0.0
      %6081 = vmatprep.subr.mxu0 0.0
      %6082 = vmatpush1.msra.mxu0 0.0
      %6083 = vmatprep.mubr.f32.mxu0 0.0
      %v6084 = vand.u32 %v374, 4294901760
      %v6085 = vsub.f32 %v374, %v6084
      %v6086 = vand.u32 %v6085, 4294901760
      %6087 = vmatmul.mubr.f32.gmra.mrb[0].mxu0 %v6086
      %v6088 = vpop.f32.mrb[0].mxu0
      %v6089 = vadd.f32 %v6015, %v6088
      %v6090 = vpop.f32.mrb[0].mxu0
      %6091 = vdwg.mxu0
      %6092 = vmatprep.subr.mxu0 0.0
      %v6093 = vand.u32 %v5791, 4294901760
      %v6094 = vsub.f32 %v5791, %v6093
      %v6095 = vand.u32 %v6094, 4294901760
      %6096 = vmatpush1.msra.mxu0 %v6095
      %6097 = vmatprep.subr.mxu0 0.0
      %6098 = vmatpush1.msra.mxu0 0.0
      %6099 = vmatprep.subr.mxu0 0.0
      %6100 = vmatpush1.msra.mxu0 0.0
      %6101 = vmatprep.subr.mxu0 0.0
      %6102 = vmatpush1.msra.mxu0 0.0
      %6103 = vmatprep.subr.mxu0 0.0
      %6104 = vmatpush1.msra.mxu0 0.0
      %6105 = vmatprep.subr.mxu0 0.0
      %6106 = vmatpush1.msra.mxu0 0.0
      %6107 = vmatprep.subr.mxu0 0.0
      %6108 = vmatpush1.msra.mxu0 0.0
      %6109 = vmatprep.subr.mxu0 0.0
      %6110 = vmatpush1.msra.mxu0 0.0
      %6111 = vmatprep.subr.mxu0 0.0
      %6112 = vmatpush1.msra.mxu0 0.0
      %6113 = vmatprep.subr.mxu0 0.0
      %6114 = vmatpush1.msra.mxu0 0.0
      %6115 = vmatprep.subr.mxu0 0.0
      %6116 = vmatpush1.msra.mxu0 0.0
      %6117 = vmatprep.subr.mxu0 0.0
      %6118 = vmatpush1.msra.mxu0 0.0
      %6119 = vmatprep.subr.mxu0 0.0
      %6120 = vmatpush1.msra.mxu0 0.0
      %6121 = vmatprep.subr.mxu0 0.0
      %6122 = vmatpush1.msra.mxu0 0.0
      %6123 = vmatprep.subr.mxu0 0.0
      %6124 = vmatpush1.msra.mxu0 0.0
      %6125 = vmatprep.subr.mxu0 0.0
      %6126 = vmatpush1.msra.mxu0 0.0
      %6127 = vmatprep.subr.mxu0 0.0
      %6128 = vmatpush1.msra.mxu0 0.0
      %6129 = vmatprep.subr.mxu0 0.0
      %6130 = vmatpush1.msra.mxu0 0.0
      %6131 = vmatprep.subr.mxu0 0.0
      %6132 = vmatpush1.msra.mxu0 0.0
      %6133 = vmatprep.subr.mxu0 0.0
      %6134 = vmatpush1.msra.mxu0 0.0
      %6135 = vmatprep.subr.mxu0 0.0
      %6136 = vmatpush1.msra.mxu0 0.0
      %6137 = vmatprep.subr.mxu0 0.0
      %6138 = vmatpush1.msra.mxu0 0.0
      %6139 = vmatprep.subr.mxu0 0.0
      %6140 = vmatpush1.msra.mxu0 0.0
      %6141 = vmatprep.subr.mxu0 0.0
      %6142 = vmatpush1.msra.mxu0 0.0
      %6143 = vmatprep.subr.mxu0 0.0
      %6144 = vmatpush1.msra.mxu0 0.0
      %6145 = vmatprep.subr.mxu0 0.0
      %6146 = vmatpush1.msra.mxu0 0.0
      %6147 = vmatprep.subr.mxu0 0.0
      %6148 = vmatpush1.msra.mxu0 0.0
      %6149 = vmatprep.subr.mxu0 0.0
      %6150 = vmatpush1.msra.mxu0 0.0
      %6151 = vmatprep.subr.mxu0 0.0
      %6152 = vmatpush1.msra.mxu0 0.0
      %6153 = vmatprep.subr.mxu0 0.0
      %6154 = vmatpush1.msra.mxu0 0.0
      %6155 = vmatprep.subr.mxu0 0.0
      %6156 = vmatpush1.msra.mxu0 0.0
      %6157 = vmatprep.subr.mxu0 0.0
      %6158 = vmatpush1.msra.mxu0 0.0
      %6159 = vmatprep.mubr.f32.mxu0 0.0
      %v6160 = vand.u32 %v374, 4294901760
      %6161 = vmatmul.mubr.f32.gmra.mrb[0].mxu0 %v6160
      %v6162 = vpop.f32.mrb[0].mxu0
      %v6163 = vadd.f32 %v6089, %v6162
      %v6164 = vpop.f32.mrb[0].mxu0
      %6165 = vdwg.mxu0
      %6166 = vmatprep.subr.mxu0 0.0
      %v6167 = vand.u32 %v5791, 4294901760
      %6168 = vmatpush1.msra.mxu0 %v6167
      %6169 = vmatprep.subr.mxu0 0.0
      %6170 = vmatpush1.msra.mxu0 0.0
      %6171 = vmatprep.subr.mxu0 0.0
      %6172 = vmatpush1.msra.mxu0 0.0
      %6173 = vmatprep.subr.mxu0 0.0
      %6174 = vmatpush1.msra.mxu0 0.0
      %6175 = vmatprep.subr.mxu0 0.0
      %6176 = vmatpush1.msra.mxu0 0.0
      %6177 = vmatprep.subr.mxu0 0.0
      %6178 = vmatpush1.msra.mxu0 0.0
      %6179 = vmatprep.subr.mxu0 0.0
      %6180 = vmatpush1.msra.mxu0 0.0
      %6181 = vmatprep.subr.mxu0 0.0
      %6182 = vmatpush1.msra.mxu0 0.0
      %6183 = vmatprep.subr.mxu0 0.0
      %6184 = vmatpush1.msra.mxu0 0.0
      %6185 = vmatprep.subr.mxu0 0.0
      %6186 = vmatpush1.msra.mxu0 0.0
      %6187 = vmatprep.subr.mxu0 0.0
      %6188 = vmatpush1.msra.mxu0 0.0
      %6189 = vmatprep.subr.mxu0 0.0
      %6190 = vmatpush1.msra.mxu0 0.0
      %6191 = vmatprep.subr.mxu0 0.0
      %6192 = vmatpush1.msra.mxu0 0.0
      %6193 = vmatprep.subr.mxu0 0.0
      %6194 = vmatpush1.msra.mxu0 0.0
      %6195 = vmatprep.subr.mxu0 0.0
      %6196 = vmatpush1.msra.mxu0 0.0
      %6197 = vmatprep.subr.mxu0 0.0
      %6198 = vmatpush1.msra.mxu0 0.0
      %6199 = vmatprep.subr.mxu0 0.0
      %6200 = vmatpush1.msra.mxu0 0.0
      %6201 = vmatprep.subr.mxu0 0.0
      %6202 = vmatpush1.msra.mxu0 0.0
      %6203 = vmatprep.subr.mxu0 0.0
      %6204 = vmatpush1.msra.mxu0 0.0
      %6205 = vmatprep.subr.mxu0 0.0
      %6206 = vmatpush1.msra.mxu0 0.0
      %6207 = vmatprep.subr.mxu0 0.0
      %6208 = vmatpush1.msra.mxu0 0.0
      %6209 = vmatprep.subr.mxu0 0.0
      %6210 = vmatpush1.msra.mxu0 0.0
      %6211 = vmatprep.subr.mxu0 0.0
      %6212 = vmatpush1.msra.mxu0 0.0
      %6213 = vmatprep.subr.mxu0 0.0
      %6214 = vmatpush1.msra.mxu0 0.0
      %6215 = vmatprep.subr.mxu0 0.0
      %6216 = vmatpush1.msra.mxu0 0.0
      %6217 = vmatprep.subr.mxu0 0.0
      %6218 = vmatpush1.msra.mxu0 0.0
      %6219 = vmatprep.subr.mxu0 0.0
      %6220 = vmatpush1.msra.mxu0 0.0
      %6221 = vmatprep.subr.mxu0 0.0
      %6222 = vmatpush1.msra.mxu0 0.0
      %6223 = vmatprep.subr.mxu0 0.0
      %6224 = vmatpush1.msra.mxu0 0.0
      %6225 = vmatprep.subr.mxu0 0.0
      %6226 = vmatpush1.msra.mxu0 0.0
      %6227 = vmatprep.subr.mxu0 0.0
      %6228 = vmatpush1.msra.mxu0 0.0
      %6229 = vmatprep.subr.mxu0 0.0
      %6230 = vmatpush1.msra.mxu0 0.0
      %6231 = vmatprep.mubr.f32.mxu0 0.0
      %v6232 = vand.u32 %v374, 4294901760
      %6233 = vmatmul.mubr.f32.gmra.mrb[0].mxu0 %v6232
      %v6234 = vpop.f32.mrb[0].mxu0
      %v6235 = vadd.f32 %v6163, %v6234
      %v6236 = vpop.f32.mrb[0].mxu0
      %6237 = vdwg.mxu0
      %v6238 = vld [vmem:[%s328] sm:$0xff]
      %v6239 = vsel %vm339, %v6238, 0.0
      %v6240 = vlog2.pop %v6239
      %v6241 = vmul.f32 %v6240, 0.6931472
      %v6242 = vmax.f32 %v6241, -100.0
      %v6243 = vsub.f32 0.0, %v6239
      %v6244 = vadd.f32 %v6243, 1.0
      %v6245 = vlog2.pop %v6244
      %v6246 = vmul.f32 %v6245, 0.6931472
      %v6247 = vmul.f32 -0.5, %v6243
      %v6248 = vadd.f32 %v6247, 1.0
      %v6249 = vmul.f32 %v6248, %v6243
      %v6250 = vand.u32 2147483647, %v6243
      %vm6251 = vcmp.lt.f32.partialorder %v6250, 0.0004427343
      %v6252 = vsel %vm6251, %v6249, %v6246
      %v6253 = vmax.f32 %v6252, -100.0
      %v6254 = vmul.f32 %v341, %v6242
      %v6255 = vmul.f32 %v342, %v6253
      %v6256 = vadd.f32 %v6254, %v6255
      %v6257 = vsub.f32 0.0, %v6256
      %6258 = vmatprep.subr.mxu0 0.0
      %v6259 = vand.u32 %v6257, 4294901760
      %6260 = vmatpush1.msra.mxu0 %v6259
      %6261 = vmatprep.subr.mxu0 0.0
      %6262 = vmatpush1.msra.mxu0 0.0
      %6263 = vmatprep.subr.mxu0 0.0
      %6264 = vmatpush1.msra.mxu0 0.0
      %6265 = vmatprep.subr.mxu0 0.0
      %6266 = vmatpush1.msra.mxu0 0.0
      %6267 = vmatprep.subr.mxu0 0.0
      %6268 = vmatpush1.msra.mxu0 0.0
      %6269 = vmatprep.subr.mxu0 0.0
      %6270 = vmatpush1.msra.mxu0 0.0
      %6271 = vmatprep.subr.mxu0 0.0
      %6272 = vmatpush1.msra.mxu0 0.0
      %6273 = vmatprep.subr.mxu0 0.0
      %6274 = vmatpush1.msra.mxu0 0.0
      %6275 = vmatprep.subr.mxu0 0.0
      %6276 = vmatpush1.msra.mxu0 0.0
      %6277 = vmatprep.subr.mxu0 0.0
      %6278 = vmatpush1.msra.mxu0 0.0
      %6279 = vmatprep.subr.mxu0 0.0
      %6280 = vmatpush1.msra.mxu0 0.0
      %6281 = vmatprep.subr.mxu0 0.0
      %6282 = vmatpush1.msra.mxu0 0.0
      %6283 = vmatprep.subr.mxu0 0.0
      %6284 = vmatpush1.msra.mxu0 0.0
      %6285 = vmatprep.subr.mxu0 0.0
      %6286 = vmatpush1.msra.mxu0 0.0
      %6287 = vmatprep.subr.mxu0 0.0
      %6288 = vmatpush1.msra.mxu0 0.0
      %6289 = vmatprep.subr.mxu0 0.0
      %6290 = vmatpush1.msra.mxu0 0.0
      %6291 = vmatprep.subr.mxu0 0.0
      %6292 = vmatpush1.msra.mxu0 0.0
      %6293 = vmatprep.subr.mxu0 0.0
      %6294 = vmatpush1.msra.mxu0 0.0
      %6295 = vmatprep.subr.mxu0 0.0
      %6296 = vmatpush1.msra.mxu0 0.0
      %6297 = vmatprep.subr.mxu0 0.0
      %6298 = vmatpush1.msra.mxu0 0.0
      %6299 = vmatprep.subr.mxu0 0.0
      %6300 = vmatpush1.msra.mxu0 0.0
      %6301 = vmatprep.subr.mxu0 0.0
      %6302 = vmatpush1.msra.mxu0 0.0
      %6303 = vmatprep.subr.mxu0 0.0
      %6304 = vmatpush1.msra.mxu0 0.0
      %6305 = vmatprep.subr.mxu0 0.0
      %6306 = vmatpush1.msra.mxu0 0.0
      %6307 = vmatprep.subr.mxu0 0.0
      %6308 = vmatpush1.msra.mxu0 0.0
      %6309 = vmatprep.subr.mxu0 0.0
      %6310 = vmatpush1.msra.mxu0 0.0
      %6311 = vmatprep.subr.mxu0 0.0
      %6312 = vmatpush1.msra.mxu0 0.0
      %6313 = vmatprep.subr.mxu0 0.0
      %6314 = vmatpush1.msra.mxu0 0.0
      %6315 = vmatprep.subr.mxu0 0.0
      %6316 = vmatpush1.msra.mxu0 0.0
      %6317 = vmatprep.subr.mxu0 0.0
      %6318 = vmatpush1.msra.mxu0 0.0
      %6319 = vmatprep.subr.mxu0 0.0
      %6320 = vmatpush1.msra.mxu0 0.0
      %6321 = vmatprep.subr.mxu0 0.0
      %6322 = vmatpush1.msra.mxu0 0.0
      %6323 = vmatprep.mubr.f32.mxu0 0.0
      %v6324 = vand.u32 %v374, 4294901760
      %v6325 = vsub.f32 %v374, %v6324
      %v6326 = vand.u32 %v6325, 4294901760
      %v6327 = vsub.f32 %v6325, %v6326
      %v6328 = vand.u32 %v6327, 4294901760
      %6329 = vmatmul.mubr.f32.gmra.mrb[0].mxu0 %v6328
      %v6330 = vpop.f32.mrb[0].mxu0
      %v6331 = vadd.f32 0.0, %v6330
      %v6332 = vpop.f32.mrb[0].mxu0
      %6333 = vdwg.mxu0
      %6334 = vmatprep.subr.mxu0 0.0
      %v6335 = vand.u32 %v6257, 4294901760
      %v6336 = vsub.f32 %v6257, %v6335
      %v6337 = vand.u32 %v6336, 4294901760
      %v6338 = vsub.f32 %v6336, %v6337
      %v6339 = vand.u32 %v6338, 4294901760
      %6340 = vmatpush1.msra.mxu0 %v6339
      %6341 = vmatprep.subr.mxu0 0.0
      %6342 = vmatpush1.msra.mxu0 0.0
      %6343 = vmatprep.subr.mxu0 0.0
      %6344 = vmatpush1.msra.mxu0 0.0
      %6345 = vmatprep.subr.mxu0 0.0
      %6346 = vmatpush1.msra.mxu0 0.0
      %6347 = vmatprep.subr.mxu0 0.0
      %6348 = vmatpush1.msra.mxu0 0.0
      %6349 = vmatprep.subr.mxu0 0.0
      %6350 = vmatpush1.msra.mxu0 0.0
      %6351 = vmatprep.subr.mxu0 0.0
      %6352 = vmatpush1.msra.mxu0 0.0
      %6353 = vmatprep.subr.mxu0 0.0
      %6354 = vmatpush1.msra.mxu0 0.0
      %6355 = vmatprep.subr.mxu0 0.0
      %6356 = vmatpush1.msra.mxu0 0.0
      %6357 = vmatprep.subr.mxu0 0.0
      %6358 = vmatpush1.msra.mxu0 0.0
      %6359 = vmatprep.subr.mxu0 0.0
      %6360 = vmatpush1.msra.mxu0 0.0
      %6361 = vmatprep.subr.mxu0 0.0
      %6362 = vmatpush1.msra.mxu0 0.0
      %6363 = vmatprep.subr.mxu0 0.0
      %6364 = vmatpush1.msra.mxu0 0.0
      %6365 = vmatprep.subr.mxu0 0.0
      %6366 = vmatpush1.msra.mxu0 0.0
      %6367 = vmatprep.subr.mxu0 0.0
      %6368 = vmatpush1.msra.mxu0 0.0
      %6369 = vmatprep.subr.mxu0 0.0
      %6370 = vmatpush1.msra.mxu0 0.0
      %6371 = vmatprep.subr.mxu0 0.0
      %6372 = vmatpush1.msra.mxu0 0.0
      %6373 = vmatprep.subr.mxu0 0.0
      %6374 = vmatpush1.msra.mxu0 0.0
      %6375 = vmatprep.subr.mxu0 0.0
      %6376 = vmatpush1.msra.mxu0 0.0
      %6377 = vmatprep.subr.mxu0 0.0
      %6378 = vmatpush1.msra.mxu0 0.0
      %6379 = vmatprep.subr.mxu0 0.0
      %6380 = vmatpush1.msra.mxu0 0.0
      %6381 = vmatprep.subr.mxu0 0.0
      %6382 = vmatpush1.msra.mxu0 0.0
      %6383 = vmatprep.subr.mxu0 0.0
      %6384 = vmatpush1.msra.mxu0 0.0
      %6385 = vmatprep.subr.mxu0 0.0
      %6386 = vmatpush1.msra.mxu0 0.0
      %6387 = vmatprep.subr.mxu0 0.0
      %6388 = vmatpush1.msra.mxu0 0.0
      %6389 = vmatprep.subr.mxu0 0.0
      %6390 = vmatpush1.msra.mxu0 0.0
      %6391 = vmatprep.subr.mxu0 0.0
      %6392 = vmatpush1.msra.mxu0 0.0
      %6393 = vmatprep.subr.mxu0 0.0
      %6394 = vmatpush1.msra.mxu0 0.0
      %6395 = vmatprep.subr.mxu0 0.0
      %6396 = vmatpush1.msra.mxu0 0.0
      %6397 = vmatprep.subr.mxu0 0.0
      %6398 = vmatpush1.msra.mxu0 0.0
      %6399 = vmatprep.subr.mxu0 0.0
      %6400 = vmatpush1.msra.mxu0 0.0
      %6401 = vmatprep.subr.mxu0 0.0
      %6402 = vmatpush1.msra.mxu0 0.0
      %6403 = vmatprep.mubr.f32.mxu0 0.0
      %v6404 = vand.u32 %v374, 4294901760
      %6405 = vmatmul.mubr.f32.gmra.mrb[0].mxu0 %v6404
      %v6406 = vpop.f32.mrb[0].mxu0
      %v6407 = vadd.f32 %v6331, %v6406
      %v6408 = vpop.f32.mrb[0].mxu0
      %6409 = vdwg.mxu0
      %6410 = vmatprep.subr.mxu0 0.0
      %v6411 = vand.u32 %v6257, 4294901760
      %v6412 = vsub.f32 %v6257, %v6411
      %6413 = vmatpush1.msra.mxu0 %v6412
      %6414 = vmatprep.subr.mxu0 0.0
      %6415 = vmatpush1.msra.mxu0 0.0
      %6416 = vmatprep.subr.mxu0 0.0
      %6417 = vmatpush1.msra.mxu0 0.0
      %6418 = vmatprep.subr.mxu0 0.0
      %6419 = vmatpush1.msra.mxu0 0.0
      %6420 = vmatprep.subr.mxu0 0.0
      %6421 = vmatpush1.msra.mxu0 0.0
      %6422 = vmatprep.subr.mxu0 0.0
      %6423 = vmatpush1.msra.mxu0 0.0
      %6424 = vmatprep.subr.mxu0 0.0
      %6425 = vmatpush1.msra.mxu0 0.0
      %6426 = vmatprep.subr.mxu0 0.0
      %6427 = vmatpush1.msra.mxu0 0.0
      %6428 = vmatprep.subr.mxu0 0.0
      %6429 = vmatpush1.msra.mxu0 0.0
      %6430 = vmatprep.subr.mxu0 0.0
      %6431 = vmatpush1.msra.mxu0 0.0
      %6432 = vmatprep.subr.mxu0 0.0
      %6433 = vmatpush1.msra.mxu0 0.0
      %6434 = vmatprep.subr.mxu0 0.0
      %6435 = vmatpush1.msra.mxu0 0.0
      %6436 = vmatprep.subr.mxu0 0.0
      %6437 = vmatpush1.msra.mxu0 0.0
      %6438 = vmatprep.subr.mxu0 0.0
      %6439 = vmatpush1.msra.mxu0 0.0
      %6440 = vmatprep.subr.mxu0 0.0
      %6441 = vmatpush1.msra.mxu0 0.0
      %6442 = vmatprep.subr.mxu0 0.0
      %6443 = vmatpush1.msra.mxu0 0.0
      %6444 = vmatprep.subr.mxu0 0.0
      %6445 = vmatpush1.msra.mxu0 0.0
      %6446 = vmatprep.subr.mxu0 0.0
      %6447 = vmatpush1.msra.mxu0 0.0
      %6448 = vmatprep.subr.mxu0 0.0
      %6449 = vmatpush1.msra.mxu0 0.0
      %6450 = vmatprep.subr.mxu0 0.0
      %6451 = vmatpush1.msra.mxu0 0.0
      %6452 = vmatprep.subr.mxu0 0.0
      %6453 = vmatpush1.msra.mxu0 0.0
      %6454 = vmatprep.subr.mxu0 0.0
      %6455 = vmatpush1.msra.mxu0 0.0
      %6456 = vmatprep.subr.mxu0 0.0
      %6457 = vmatpush1.msra.mxu0 0.0
      %6458 = vmatprep.subr.mxu0 0.0
      %6459 = vmatpush1.msra.mxu0 0.0
      %6460 = vmatprep.subr.mxu0 0.0
      %6461 = vmatpush1.msra.mxu0 0.0
      %6462 = vmatprep.subr.mxu0 0.0
      %6463 = vmatpush1.msra.mxu0 0.0
      %6464 = vmatprep.subr.mxu0 0.0
      %6465 = vmatpush1.msra.mxu0 0.0
      %6466 = vmatprep.subr.mxu0 0.0
      %6467 = vmatpush1.msra.mxu0 0.0
      %6468 = vmatprep.subr.mxu0 0.0
      %6469 = vmatpush1.msra.mxu0 0.0
      %6470 = vmatprep.subr.mxu0 0.0
      %6471 = vmatpush1.msra.mxu0 0.0
      %6472 = vmatprep.subr.mxu0 0.0
      %6473 = vmatpush1.msra.mxu0 0.0
      %6474 = vmatprep.subr.mxu0 0.0
      %6475 = vmatpush1.msra.mxu0 0.0
      %6476 = vmatprep.mubr.f32.mxu0 0.0
      %v6477 = vand.u32 %v374, 4294901760
      %v6478 = vsub.f32 %v374, %v6477
      %6479 = vmatmul.mubr.f32.gmra.mrb[0].mxu0 %v6478
      %v6480 = vpop.f32.mrb[0].mxu0
      %v6481 = vadd.f32 %v6407, %v6480
      %v6482 = vpop.f32.mrb[0].mxu0
      %6483 = vdwg.mxu0
      %6484 = vmatprep.subr.mxu0 0.0
      %v6485 = vand.u32 %v6257, 4294901760
      %6486 = vmatpush1.msra.mxu0 %v6485
      %6487 = vmatprep.subr.mxu0 0.0
      %6488 = vmatpush1.msra.mxu0 0.0
      %6489 = vmatprep.subr.mxu0 0.0
      %6490 = vmatpush1.msra.mxu0 0.0
      %6491 = vmatprep.subr.mxu0 0.0
      %6492 = vmatpush1.msra.mxu0 0.0
      %6493 = vmatprep.subr.mxu0 0.0
      %6494 = vmatpush1.msra.mxu0 0.0
      %6495 = vmatprep.subr.mxu0 0.0
      %6496 = vmatpush1.msra.mxu0 0.0
      %6497 = vmatprep.subr.mxu0 0.0
      %6498 = vmatpush1.msra.mxu0 0.0
      %6499 = vmatprep.subr.mxu0 0.0
      %6500 = vmatpush1.msra.mxu0 0.0
      %6501 = vmatprep.subr.mxu0 0.0
      %6502 = vmatpush1.msra.mxu0 0.0
      %6503 = vmatprep.subr.mxu0 0.0
      %6504 = vmatpush1.msra.mxu0 0.0
      %6505 = vmatprep.subr.mxu0 0.0
      %6506 = vmatpush1.msra.mxu0 0.0
      %6507 = vmatprep.subr.mxu0 0.0
      %6508 = vmatpush1.msra.mxu0 0.0
      %6509 = vmatprep.subr.mxu0 0.0
      %6510 = vmatpush1.msra.mxu0 0.0
      %6511 = vmatprep.subr.mxu0 0.0
      %6512 = vmatpush1.msra.mxu0 0.0
      %6513 = vmatprep.subr.mxu0 0.0
      %6514 = vmatpush1.msra.mxu0 0.0
      %6515 = vmatprep.subr.mxu0 0.0
      %6516 = vmatpush1.msra.mxu0 0.0
      %6517 = vmatprep.subr.mxu0 0.0
      %6518 = vmatpush1.msra.mxu0 0.0
      %6519 = vmatprep.subr.mxu0 0.0
      %6520 = vmatpush1.msra.mxu0 0.0
      %6521 = vmatprep.subr.mxu0 0.0
      %6522 = vmatpush1.msra.mxu0 0.0
      %6523 = vmatprep.subr.mxu0 0.0
      %6524 = vmatpush1.msra.mxu0 0.0
      %6525 = vmatprep.subr.mxu0 0.0
      %6526 = vmatpush1.msra.mxu0 0.0
      %6527 = vmatprep.subr.mxu0 0.0
      %6528 = vmatpush1.msra.mxu0 0.0
      %6529 = vmatprep.subr.mxu0 0.0
      %6530 = vmatpush1.msra.mxu0 0.0
      %6531 = vmatprep.subr.mxu0 0.0
      %6532 = vmatpush1.msra.mxu0 0.0
      %6533 = vmatprep.subr.mxu0 0.0
      %6534 = vmatpush1.msra.mxu0 0.0
      %6535 = vmatprep.subr.mxu0 0.0
      %6536 = vmatpush1.msra.mxu0 0.0
      %6537 = vmatprep.subr.mxu0 0.0
      %6538 = vmatpush1.msra.mxu0 0.0
      %6539 = vmatprep.subr.mxu0 0.0
      %6540 = vmatpush1.msra.mxu0 0.0
      %6541 = vmatprep.subr.mxu0 0.0
      %6542 = vmatpush1.msra.mxu0 0.0
      %6543 = vmatprep.subr.mxu0 0.0
      %6544 = vmatpush1.msra.mxu0 0.0
      %6545 = vmatprep.subr.mxu0 0.0
      %6546 = vmatpush1.msra.mxu0 0.0
      %6547 = vmatprep.subr.mxu0 0.0
      %6548 = vmatpush1.msra.mxu0 0.0
      %6549 = vmatprep.mubr.f32.mxu0 0.0
      %v6550 = vand.u32 %v374, 4294901760
      %v6551 = vsub.f32 %v374, %v6550
      %v6552 = vand.u32 %v6551, 4294901760
      %6553 = vmatmul.mubr.f32.gmra.mrb[0].mxu0 %v6552
      %v6554 = vpop.f32.mrb[0].mxu0
      %v6555 = vadd.f32 %v6481, %v6554
      %v6556 = vpop.f32.mrb[0].mxu0
      %6557 = vdwg.mxu0
      %6558 = vmatprep.subr.mxu0 0.0
      %v6559 = vand.u32 %v6257, 4294901760
      %v6560 = vsub.f32 %v6257, %v6559
      %v6561 = vand.u32 %v6560, 4294901760
      %6562 = vmatpush1.msra.mxu0 %v6561
      %6563 = vmatprep.subr.mxu0 0.0
      %6564 = vmatpush1.msra.mxu0 0.0
      %6565 = vmatprep.subr.mxu0 0.0
      %6566 = vmatpush1.msra.mxu0 0.0
      %6567 = vmatprep.subr.mxu0 0.0
      %6568 = vmatpush1.msra.mxu0 0.0
      %6569 = vmatprep.subr.mxu0 0.0
      %6570 = vmatpush1.msra.mxu0 0.0
      %6571 = vmatprep.subr.mxu0 0.0
      %6572 = vmatpush1.msra.mxu0 0.0
      %6573 = vmatprep.subr.mxu0 0.0
      %6574 = vmatpush1.msra.mxu0 0.0
      %6575 = vmatprep.subr.mxu0 0.0
      %6576 = vmatpush1.msra.mxu0 0.0
      %6577 = vmatprep.subr.mxu0 0.0
      %6578 = vmatpush1.msra.mxu0 0.0
      %6579 = vmatprep.subr.mxu0 0.0
      %6580 = vmatpush1.msra.mxu0 0.0
      %6581 = vmatprep.subr.mxu0 0.0
      %6582 = vmatpush1.msra.mxu0 0.0
      %6583 = vmatprep.subr.mxu0 0.0
      %6584 = vmatpush1.msra.mxu0 0.0
      %6585 = vmatprep.subr.mxu0 0.0
      %6586 = vmatpush1.msra.mxu0 0.0
      %6587 = vmatprep.subr.mxu0 0.0
      %6588 = vmatpush1.msra.mxu0 0.0
      %6589 = vmatprep.subr.mxu0 0.0
      %6590 = vmatpush1.msra.mxu0 0.0
      %6591 = vmatprep.subr.mxu0 0.0
      %6592 = vmatpush1.msra.mxu0 0.0
      %6593 = vmatprep.subr.mxu0 0.0
      %6594 = vmatpush1.msra.mxu0 0.0
      %6595 = vmatprep.subr.mxu0 0.0
      %6596 = vmatpush1.msra.mxu0 0.0
      %6597 = vmatprep.subr.mxu0 0.0
      %6598 = vmatpush1.msra.mxu0 0.0
      %6599 = vmatprep.subr.mxu0 0.0
      %6600 = vmatpush1.msra.mxu0 0.0
      %6601 = vmatprep.subr.mxu0 0.0
      %6602 = vmatpush1.msra.mxu0 0.0
      %6603 = vmatprep.subr.mxu0 0.0
      %6604 = vmatpush1.msra.mxu0 0.0
      %6605 = vmatprep.subr.mxu0 0.0
      %6606 = vmatpush1.msra.mxu0 0.0
      %6607 = vmatprep.subr.mxu0 0.0
      %6608 = vmatpush1.msra.mxu0 0.0
      %6609 = vmatprep.subr.mxu0 0.0
      %6610 = vmatpush1.msra.mxu0 0.0
      %6611 = vmatprep.subr.mxu0 0.0
      %6612 = vmatpush1.msra.mxu0 0.0
      %6613 = vmatprep.subr.mxu0 0.0
      %6614 = vmatpush1.msra.mxu0 0.0
      %6615 = vmatprep.subr.mxu0 0.0
      %6616 = vmatpush1.msra.mxu0 0.0
      %6617 = vmatprep.subr.mxu0 0.0
      %6618 = vmatpush1.msra.mxu0 0.0
      %6619 = vmatprep.subr.mxu0 0.0
      %6620 = vmatpush1.msra.mxu0 0.0
      %6621 = vmatprep.subr.mxu0 0.0
      %6622 = vmatpush1.msra.mxu0 0.0
      %6623 = vmatprep.subr.mxu0 0.0
      %6624 = vmatpush1.msra.mxu0 0.0
      %6625 = vmatprep.mubr.f32.mxu0 0.0
      %v6626 = vand.u32 %v374, 4294901760
      %6627 = vmatmul.mubr.f32.gmra.mrb[0].mxu0 %v6626
      %v6628 = vpop.f32.mrb[0].mxu0
      %v6629 = vadd.f32 %v6555, %v6628
      %v6630 = vpop.f32.mrb[0].mxu0
      %6631 = vdwg.mxu0
      %6632 = vmatprep.subr.mxu0 0.0
      %v6633 = vand.u32 %v6257, 4294901760
      %6634 = vmatpush1.msra.mxu0 %v6633
      %6635 = vmatprep.subr.mxu0 0.0
      %6636 = vmatpush1.msra.mxu0 0.0
      %6637 = vmatprep.subr.mxu0 0.0
      %6638 = vmatpush1.msra.mxu0 0.0
      %6639 = vmatprep.subr.mxu0 0.0
      %6640 = vmatpush1.msra.mxu0 0.0
      %6641 = vmatprep.subr.mxu0 0.0
      %6642 = vmatpush1.msra.mxu0 0.0
      %6643 = vmatprep.subr.mxu0 0.0
      %6644 = vmatpush1.msra.mxu0 0.0
      %6645 = vmatprep.subr.mxu0 0.0
      %6646 = vmatpush1.msra.mxu0 0.0
      %6647 = vmatprep.subr.mxu0 0.0
      %6648 = vmatpush1.msra.mxu0 0.0
      %6649 = vmatprep.subr.mxu0 0.0
      %6650 = vmatpush1.msra.mxu0 0.0
      %6651 = vmatprep.subr.mxu0 0.0
      %6652 = vmatpush1.msra.mxu0 0.0
      %6653 = vmatprep.subr.mxu0 0.0
      %6654 = vmatpush1.msra.mxu0 0.0
      %6655 = vmatprep.subr.mxu0 0.0
      %6656 = vmatpush1.msra.mxu0 0.0
      %6657 = vmatprep.subr.mxu0 0.0
      %6658 = vmatpush1.msra.mxu0 0.0
      %6659 = vmatprep.subr.mxu0 0.0
      %6660 = vmatpush1.msra.mxu0 0.0
      %6661 = vmatprep.subr.mxu0 0.0
      %6662 = vmatpush1.msra.mxu0 0.0
      %6663 = vmatprep.subr.mxu0 0.0
      %6664 = vmatpush1.msra.mxu0 0.0
      %6665 = vmatprep.subr.mxu0 0.0
      %6666 = vmatpush1.msra.mxu0 0.0
      %6667 = vmatprep.subr.mxu0 0.0
      %6668 = vmatpush1.msra.mxu0 0.0
      %6669 = vmatprep.subr.mxu0 0.0
      %6670 = vmatpush1.msra.mxu0 0.0
      %6671 = vmatprep.subr.mxu0 0.0
      %6672 = vmatpush1.msra.mxu0 0.0
      %6673 = vmatprep.subr.mxu0 0.0
      %6674 = vmatpush1.msra.mxu0 0.0
      %6675 = vmatprep.subr.mxu0 0.0
      %6676 = vmatpush1.msra.mxu0 0.0
      %6677 = vmatprep.subr.mxu0 0.0
      %6678 = vmatpush1.msra.mxu0 0.0
      %6679 = vmatprep.subr.mxu0 0.0
      %6680 = vmatpush1.msra.mxu0 0.0
      %6681 = vmatprep.subr.mxu0 0.0
      %6682 = vmatpush1.msra.mxu0 0.0
      %6683 = vmatprep.subr.mxu0 0.0
      %6684 = vmatpush1.msra.mxu0 0.0
      %6685 = vmatprep.subr.mxu0 0.0
      %6686 = vmatpush1.msra.mxu0 0.0
      %6687 = vmatprep.subr.mxu0 0.0
      %6688 = vmatpush1.msra.mxu0 0.0
      %6689 = vmatprep.subr.mxu0 0.0
      %6690 = vmatpush1.msra.mxu0 0.0
      %6691 = vmatprep.subr.mxu0 0.0
      %6692 = vmatpush1.msra.mxu0 0.0
      %6693 = vmatprep.subr.mxu0 0.0
      %6694 = vmatpush1.msra.mxu0 0.0
      %6695 = vmatprep.subr.mxu0 0.0
      %6696 = vmatpush1.msra.mxu0 0.0
      %6697 = vmatprep.mubr.f32.mxu0 0.0
      %v6698 = vand.u32 %v374, 4294901760
      %6699 = vmatmul.mubr.f32.gmra.mrb[0].mxu0 %v6698
      %v6700 = vpop.f32.mrb[0].mxu0
      %v6701 = vadd.f32 %v6629, %v6700
      %v6702 = vpop.f32.mrb[0].mxu0
      %6703 = vdwg.mxu0
      %6704 = vmatprep.subr.mxu0 0.0
      %v6705 = vand.u32 %v6239, 4294901760
      %6706 = vmatpush1.msra.mxu0 %v6705
      %6707 = vmatprep.subr.mxu0 0.0
      %6708 = vmatpush1.msra.mxu0 0.0
      %6709 = vmatprep.subr.mxu0 0.0
      %6710 = vmatpush1.msra.mxu0 0.0
      %6711 = vmatprep.subr.mxu0 0.0
      %6712 = vmatpush1.msra.mxu0 0.0
      %6713 = vmatprep.subr.mxu0 0.0
      %6714 = vmatpush1.msra.mxu0 0.0
      %6715 = vmatprep.subr.mxu0 0.0
      %6716 = vmatpush1.msra.mxu0 0.0
      %6717 = vmatprep.subr.mxu0 0.0
      %6718 = vmatpush1.msra.mxu0 0.0
      %6719 = vmatprep.subr.mxu0 0.0
      %6720 = vmatpush1.msra.mxu0 0.0
      %6721 = vmatprep.subr.mxu0 0.0
      %6722 = vmatpush1.msra.mxu0 0.0
      %6723 = vmatprep.subr.mxu0 0.0
      %6724 = vmatpush1.msra.mxu0 0.0
      %6725 = vmatprep.subr.mxu0 0.0
      %6726 = vmatpush1.msra.mxu0 0.0
      %6727 = vmatprep.subr.mxu0 0.0
      %6728 = vmatpush1.msra.mxu0 0.0
      %6729 = vmatprep.subr.mxu0 0.0
      %6730 = vmatpush1.msra.mxu0 0.0
      %6731 = vmatprep.subr.mxu0 0.0
      %6732 = vmatpush1.msra.mxu0 0.0
      %6733 = vmatprep.subr.mxu0 0.0
      %6734 = vmatpush1.msra.mxu0 0.0
      %6735 = vmatprep.subr.mxu0 0.0
      %6736 = vmatpush1.msra.mxu0 0.0
      %6737 = vmatprep.subr.mxu0 0.0
      %6738 = vmatpush1.msra.mxu0 0.0
      %6739 = vmatprep.subr.mxu0 0.0
      %6740 = vmatpush1.msra.mxu0 0.0
      %6741 = vmatprep.subr.mxu0 0.0
      %6742 = vmatpush1.msra.mxu0 0.0
      %6743 = vmatprep.subr.mxu0 0.0
      %6744 = vmatpush1.msra.mxu0 0.0
      %6745 = vmatprep.subr.mxu0 0.0
      %6746 = vmatpush1.msra.mxu0 0.0
      %6747 = vmatprep.subr.mxu0 0.0
      %6748 = vmatpush1.msra.mxu0 0.0
      %6749 = vmatprep.subr.mxu0 0.0
      %6750 = vmatpush1.msra.mxu0 0.0
      %6751 = vmatprep.subr.mxu0 0.0
      %6752 = vmatpush1.msra.mxu0 0.0
      %6753 = vmatprep.subr.mxu0 0.0
      %6754 = vmatpush1.msra.mxu0 0.0
      %6755 = vmatprep.subr.mxu0 0.0
      %6756 = vmatpush1.msra.mxu0 0.0
      %6757 = vmatprep.subr.mxu0 0.0
      %6758 = vmatpush1.msra.mxu0 0.0
      %6759 = vmatprep.subr.mxu0 0.0
      %6760 = vmatpush1.msra.mxu0 0.0
      %6761 = vmatprep.subr.mxu0 0.0
      %6762 = vmatpush1.msra.mxu0 0.0
      %6763 = vmatprep.subr.mxu0 0.0
      %6764 = vmatpush1.msra.mxu0 0.0
      %6765 = vmatprep.subr.mxu0 0.0
      %6766 = vmatpush1.msra.mxu0 0.0
      %6767 = vmatprep.subr.mxu0 0.0
      %6768 = vmatpush1.msra.mxu0 0.0
      %6769 = vmatprep.mubr.f32.mxu0 0.0
      %v6770 = vand.u32 %v374, 4294901760
      %v6771 = vsub.f32 %v374, %v6770
      %v6772 = vand.u32 %v6771, 4294901760
      %v6773 = vsub.f32 %v6771, %v6772
      %v6774 = vand.u32 %v6773, 4294901760
      %6775 = vmatmul.mubr.f32.gmra.mrb[0].mxu0 %v6774
      %v6776 = vpop.f32.mrb[0].mxu0
      %v6777 = vadd.f32 0.0, %v6776
      %v6778 = vpop.f32.mrb[0].mxu0
      %6779 = vdwg.mxu0
      %6780 = vmatprep.subr.mxu0 0.0
      %v6781 = vand.u32 %v6239, 4294901760
      %v6782 = vsub.f32 %v6239, %v6781
      %v6783 = vand.u32 %v6782, 4294901760
      %v6784 = vsub.f32 %v6782, %v6783
      %v6785 = vand.u32 %v6784, 4294901760
      %6786 = vmatpush1.msra.mxu0 %v6785
      %6787 = vmatprep.subr.mxu0 0.0
      %6788 = vmatpush1.msra.mxu0 0.0
      %6789 = vmatprep.subr.mxu0 0.0
      %6790 = vmatpush1.msra.mxu0 0.0
      %6791 = vmatprep.subr.mxu0 0.0
      %6792 = vmatpush1.msra.mxu0 0.0
      %6793 = vmatprep.subr.mxu0 0.0
      %6794 = vmatpush1.msra.mxu0 0.0
      %6795 = vmatprep.subr.mxu0 0.0
      %6796 = vmatpush1.msra.mxu0 0.0
      %6797 = vmatprep.subr.mxu0 0.0
      %6798 = vmatpush1.msra.mxu0 0.0
      %6799 = vmatprep.subr.mxu0 0.0
      %6800 = vmatpush1.msra.mxu0 0.0
      %6801 = vmatprep.subr.mxu0 0.0
      %6802 = vmatpush1.msra.mxu0 0.0
      %6803 = vmatprep.subr.mxu0 0.0
      %6804 = vmatpush1.msra.mxu0 0.0
      %6805 = vmatprep.subr.mxu0 0.0
      %6806 = vmatpush1.msra.mxu0 0.0
      %6807 = vmatprep.subr.mxu0 0.0
      %6808 = vmatpush1.msra.mxu0 0.0
      %6809 = vmatprep.subr.mxu0 0.0
      %6810 = vmatpush1.msra.mxu0 0.0
      %6811 = vmatprep.subr.mxu0 0.0
      %6812 = vmatpush1.msra.mxu0 0.0
      %6813 = vmatprep.subr.mxu0 0.0
      %6814 = vmatpush1.msra.mxu0 0.0
      %6815 = vmatprep.subr.mxu0 0.0
      %6816 = vmatpush1.msra.mxu0 0.0
      %6817 = vmatprep.subr.mxu0 0.0
      %6818 = vmatpush1.msra.mxu0 0.0
      %6819 = vmatprep.subr.mxu0 0.0
      %6820 = vmatpush1.msra.mxu0 0.0
      %6821 = vmatprep.subr.mxu0 0.0
      %6822 = vmatpush1.msra.mxu0 0.0
      %6823 = vmatprep.subr.mxu0 0.0
      %6824 = vmatpush1.msra.mxu0 0.0
      %6825 = vmatprep.subr.mxu0 0.0
      %6826 = vmatpush1.msra.mxu0 0.0
      %6827 = vmatprep.subr.mxu0 0.0
      %6828 = vmatpush1.msra.mxu0 0.0
      %6829 = vmatprep.subr.mxu0 0.0
      %6830 = vmatpush1.msra.mxu0 0.0
      %6831 = vmatprep.subr.mxu0 0.0
      %6832 = vmatpush1.msra.mxu0 0.0
      %6833 = vmatprep.subr.mxu0 0.0
      %6834 = vmatpush1.msra.mxu0 0.0
      %6835 = vmatprep.subr.mxu0 0.0
      %6836 = vmatpush1.msra.mxu0 0.0
      %6837 = vmatprep.subr.mxu0 0.0
      %6838 = vmatpush1.msra.mxu0 0.0
      %6839 = vmatprep.subr.mxu0 0.0
      %6840 = vmatpush1.msra.mxu0 0.0
      %6841 = vmatprep.subr.mxu0 0.0
      %6842 = vmatpush1.msra.mxu0 0.0
      %6843 = vmatprep.subr.mxu0 0.0
      %6844 = vmatpush1.msra.mxu0 0.0
      %6845 = vmatprep.subr.mxu0 0.0
      %6846 = vmatpush1.msra.mxu0 0.0
      %6847 = vmatprep.subr.mxu0 0.0
      %6848 = vmatpush1.msra.mxu0 0.0
      %6849 = vmatprep.mubr.f32.mxu0 0.0
      %v6850 = vand.u32 %v374, 4294901760
      %6851 = vmatmul.mubr.f32.gmra.mrb[0].mxu0 %v6850
      %v6852 = vpop.f32.mrb[0].mxu0
      %v6853 = vadd.f32 %v6777, %v6852
      %v6854 = vpop.f32.mrb[0].mxu0
      %6855 = vdwg.mxu0
      %6856 = vmatprep.subr.mxu0 0.0
      %v6857 = vand.u32 %v6239, 4294901760
      %v6858 = vsub.f32 %v6239, %v6857
      %6859 = vmatpush1.msra.mxu0 %v6858
      %6860 = vmatprep.subr.mxu0 0.0
      %6861 = vmatpush1.msra.mxu0 0.0
      %6862 = vmatprep.subr.mxu0 0.0
      %6863 = vmatpush1.msra.mxu0 0.0
      %6864 = vmatprep.subr.mxu0 0.0
      %6865 = vmatpush1.msra.mxu0 0.0
      %6866 = vmatprep.subr.mxu0 0.0
      %6867 = vmatpush1.msra.mxu0 0.0
      %6868 = vmatprep.subr.mxu0 0.0
      %6869 = vmatpush1.msra.mxu0 0.0
      %6870 = vmatprep.subr.mxu0 0.0
      %6871 = vmatpush1.msra.mxu0 0.0
      %6872 = vmatprep.subr.mxu0 0.0
      %6873 = vmatpush1.msra.mxu0 0.0
      %6874 = vmatprep.subr.mxu0 0.0
      %6875 = vmatpush1.msra.mxu0 0.0
      %6876 = vmatprep.subr.mxu0 0.0
      %6877 = vmatpush1.msra.mxu0 0.0
      %6878 = vmatprep.subr.mxu0 0.0
      %6879 = vmatpush1.msra.mxu0 0.0
      %6880 = vmatprep.subr.mxu0 0.0
      %6881 = vmatpush1.msra.mxu0 0.0
      %6882 = vmatprep.subr.mxu0 0.0
      %6883 = vmatpush1.msra.mxu0 0.0
      %6884 = vmatprep.subr.mxu0 0.0
      %6885 = vmatpush1.msra.mxu0 0.0
      %6886 = vmatprep.subr.mxu0 0.0
      %6887 = vmatpush1.msra.mxu0 0.0
      %6888 = vmatprep.subr.mxu0 0.0
      %6889 = vmatpush1.msra.mxu0 0.0
      %6890 = vmatprep.subr.mxu0 0.0
      %6891 = vmatpush1.msra.mxu0 0.0
      %6892 = vmatprep.subr.mxu0 0.0
      %6893 = vmatpush1.msra.mxu0 0.0
      %6894 = vmatprep.subr.mxu0 0.0
      %6895 = vmatpush1.msra.mxu0 0.0
      %6896 = vmatprep.subr.mxu0 0.0
      %6897 = vmatpush1.msra.mxu0 0.0
      %6898 = vmatprep.subr.mxu0 0.0
      %6899 = vmatpush1.msra.mxu0 0.0
      %6900 = vmatprep.subr.mxu0 0.0
      %6901 = vmatpush1.msra.mxu0 0.0
      %6902 = vmatprep.subr.mxu0 0.0
      %6903 = vmatpush1.msra.mxu0 0.0
      %6904 = vmatprep.subr.mxu0 0.0
      %6905 = vmatpush1.msra.mxu0 0.0
      %6906 = vmatprep.subr.mxu0 0.0
      %6907 = vmatpush1.msra.mxu0 0.0
      %6908 = vmatprep.subr.mxu0 0.0
      %6909 = vmatpush1.msra.mxu0 0.0
      %6910 = vmatprep.subr.mxu0 0.0
      %6911 = vmatpush1.msra.mxu0 0.0
      %6912 = vmatprep.subr.mxu0 0.0
      %6913 = vmatpush1.msra.mxu0 0.0
      %6914 = vmatprep.subr.mxu0 0.0
      %6915 = vmatpush1.msra.mxu0 0.0
      %6916 = vmatprep.subr.mxu0 0.0
      %6917 = vmatpush1.msra.mxu0 0.0
      %6918 = vmatprep.subr.mxu0 0.0
      %6919 = vmatpush1.msra.mxu0 0.0
      %6920 = vmatprep.subr.mxu0 0.0
      %6921 = vmatpush1.msra.mxu0 0.0
      %6922 = vmatprep.mubr.f32.mxu0 0.0
      %v6923 = vand.u32 %v374, 4294901760
      %v6924 = vsub.f32 %v374, %v6923
      %6925 = vmatmul.mubr.f32.gmra.mrb[0].mxu0 %v6924
      %v6926 = vpop.f32.mrb[0].mxu0
      %v6927 = vadd.f32 %v6853, %v6926
      %v6928 = vpop.f32.mrb[0].mxu0
      %6929 = vdwg.mxu0
      %6930 = vmatprep.subr.mxu0 0.0
      %v6931 = vand.u32 %v6239, 4294901760
      %6932 = vmatpush1.msra.mxu0 %v6931
      %6933 = vmatprep.subr.mxu0 0.0
      %6934 = vmatpush1.msra.mxu0 0.0
      %6935 = vmatprep.subr.mxu0 0.0
      %6936 = vmatpush1.msra.mxu0 0.0
      %6937 = vmatprep.subr.mxu0 0.0
      %6938 = vmatpush1.msra.mxu0 0.0
      %6939 = vmatprep.subr.mxu0 0.0
      %6940 = vmatpush1.msra.mxu0 0.0
      %6941 = vmatprep.subr.mxu0 0.0
      %6942 = vmatpush1.msra.mxu0 0.0
      %6943 = vmatprep.subr.mxu0 0.0
      %6944 = vmatpush1.msra.mxu0 0.0
      %6945 = vmatprep.subr.mxu0 0.0
      %6946 = vmatpush1.msra.mxu0 0.0
      %6947 = vmatprep.subr.mxu0 0.0
      %6948 = vmatpush1.msra.mxu0 0.0
      %6949 = vmatprep.subr.mxu0 0.0
      %6950 = vmatpush1.msra.mxu0 0.0
      %6951 = vmatprep.subr.mxu0 0.0
      %6952 = vmatpush1.msra.mxu0 0.0
      %6953 = vmatprep.subr.mxu0 0.0
      %6954 = vmatpush1.msra.mxu0 0.0
      %6955 = vmatprep.subr.mxu0 0.0
      %6956 = vmatpush1.msra.mxu0 0.0
      %6957 = vmatprep.subr.mxu0 0.0
      %6958 = vmatpush1.msra.mxu0 0.0
      %6959 = vmatprep.subr.mxu0 0.0
      %6960 = vmatpush1.msra.mxu0 0.0
      %6961 = vmatprep.subr.mxu0 0.0
      %6962 = vmatpush1.msra.mxu0 0.0
      %6963 = vmatprep.subr.mxu0 0.0
      %6964 = vmatpush1.msra.mxu0 0.0
      %6965 = vmatprep.subr.mxu0 0.0
      %6966 = vmatpush1.msra.mxu0 0.0
      %6967 = vmatprep.subr.mxu0 0.0
      %6968 = vmatpush1.msra.mxu0 0.0
      %6969 = vmatprep.subr.mxu0 0.0
      %6970 = vmatpush1.msra.mxu0 0.0
      %6971 = vmatprep.subr.mxu0 0.0
      %6972 = vmatpush1.msra.mxu0 0.0
      %6973 = vmatprep.subr.mxu0 0.0
      %6974 = vmatpush1.msra.mxu0 0.0
      %6975 = vmatprep.subr.mxu0 0.0
      %6976 = vmatpush1.msra.mxu0 0.0
      %6977 = vmatprep.subr.mxu0 0.0
      %6978 = vmatpush1.msra.mxu0 0.0
      %6979 = vmatprep.subr.mxu0 0.0
      %6980 = vmatpush1.msra.mxu0 0.0
      %6981 = vmatprep.subr.mxu0 0.0
      %6982 = vmatpush1.msra.mxu0 0.0
      %6983 = vmatprep.subr.mxu0 0.0
      %6984 = vmatpush1.msra.mxu0 0.0
      %6985 = vmatprep.subr.mxu0 0.0
      %6986 = vmatpush1.msra.mxu0 0.0
      %6987 = vmatprep.subr.mxu0 0.0
      %6988 = vmatpush1.msra.mxu0 0.0
      %6989 = vmatprep.subr.mxu0 0.0
      %6990 = vmatpush1.msra.mxu0 0.0
      %6991 = vmatprep.subr.mxu0 0.0
      %6992 = vmatpush1.msra.mxu0 0.0
      %6993 = vmatprep.subr.mxu0 0.0
      %6994 = vmatpush1.msra.mxu0 0.0
      %6995 = vmatprep.mubr.f32.mxu0 0.0
      %v6996 = vand.u32 %v374, 4294901760
      %v6997 = vsub.f32 %v374, %v6996
      %v6998 = vand.u32 %v6997, 4294901760
      %6999 = vmatmul.mubr.f32.gmra.mrb[0].mxu0 %v6998
      %v7000 = vpop.f32.mrb[0].mxu0
      %v7001 = vadd.f32 %v6927, %v7000
      %v7002 = vpop.f32.mrb[0].mxu0
      %7003 = vdwg.mxu0
      %7004 = vmatprep.subr.mxu0 0.0
      %v7005 = vand.u32 %v6239, 4294901760
      %v7006 = vsub.f32 %v6239, %v7005
      %v7007 = vand.u32 %v7006, 4294901760
      %7008 = vmatpush1.msra.mxu0 %v7007
      %7009 = vmatprep.subr.mxu0 0.0
      %7010 = vmatpush1.msra.mxu0 0.0
      %7011 = vmatprep.subr.mxu0 0.0
      %7012 = vmatpush1.msra.mxu0 0.0
      %7013 = vmatprep.subr.mxu0 0.0
      %7014 = vmatpush1.msra.mxu0 0.0
      %7015 = vmatprep.subr.mxu0 0.0
      %7016 = vmatpush1.msra.mxu0 0.0
      %7017 = vmatprep.subr.mxu0 0.0
      %7018 = vmatpush1.msra.mxu0 0.0
      %7019 = vmatprep.subr.mxu0 0.0
      %7020 = vmatpush1.msra.mxu0 0.0
      %7021 = vmatprep.subr.mxu0 0.0
      %7022 = vmatpush1.msra.mxu0 0.0
      %7023 = vmatprep.subr.mxu0 0.0
      %7024 = vmatpush1.msra.mxu0 0.0
      %7025 = vmatprep.subr.mxu0 0.0
      %7026 = vmatpush1.msra.mxu0 0.0
      %7027 = vmatprep.subr.mxu0 0.0
      %7028 = vmatpush1.msra.mxu0 0.0
      %7029 = vmatprep.subr.mxu0 0.0
      %7030 = vmatpush1.msra.mxu0 0.0
      %7031 = vmatprep.subr.mxu0 0.0
      %7032 = vmatpush1.msra.mxu0 0.0
      %7033 = vmatprep.subr.mxu0 0.0
      %7034 = vmatpush1.msra.mxu0 0.0
      %7035 = vmatprep.subr.mxu0 0.0
      %7036 = vmatpush1.msra.mxu0 0.0
      %7037 = vmatprep.subr.mxu0 0.0
      %7038 = vmatpush1.msra.mxu0 0.0
      %7039 = vmatprep.subr.mxu0 0.0
      %7040 = vmatpush1.msra.mxu0 0.0
      %7041 = vmatprep.subr.mxu0 0.0
      %7042 = vmatpush1.msra.mxu0 0.0
      %7043 = vmatprep.subr.mxu0 0.0
      %7044 = vmatpush1.msra.mxu0 0.0
      %7045 = vmatprep.subr.mxu0 0.0
      %7046 = vmatpush1.msra.mxu0 0.0
      %7047 = vmatprep.subr.mxu0 0.0
      %7048 = vmatpush1.msra.mxu0 0.0
      %7049 = vmatprep.subr.mxu0 0.0
      %7050 = vmatpush1.msra.mxu0 0.0
      %7051 = vmatprep.subr.mxu0 0.0
      %7052 = vmatpush1.msra.mxu0 0.0
      %7053 = vmatprep.subr.mxu0 0.0
      %7054 = vmatpush1.msra.mxu0 0.0
      %7055 = vmatprep.subr.mxu0 0.0
      %7056 = vmatpush1.msra.mxu0 0.0
      %7057 = vmatprep.subr.mxu0 0.0
      %7058 = vmatpush1.msra.mxu0 0.0
      %7059 = vmatprep.subr.mxu0 0.0
      %7060 = vmatpush1.msra.mxu0 0.0
      %7061 = vmatprep.subr.mxu0 0.0
      %7062 = vmatpush1.msra.mxu0 0.0
      %7063 = vmatprep.subr.mxu0 0.0
      %7064 = vmatpush1.msra.mxu0 0.0
      %7065 = vmatprep.subr.mxu0 0.0
      %7066 = vmatpush1.msra.mxu0 0.0
      %7067 = vmatprep.subr.mxu0 0.0
      %7068 = vmatpush1.msra.mxu0 0.0
      %7069 = vmatprep.subr.mxu0 0.0
      %7070 = vmatpush1.msra.mxu0 0.0
      %7071 = vmatprep.mubr.f32.mxu0 0.0
      %v7072 = vand.u32 %v374, 4294901760
      %7073 = vmatmul.mubr.f32.gmra.mrb[0].mxu0 %v7072
      %v7074 = vpop.f32.mrb[0].mxu0
      %v7075 = vadd.f32 %v7001, %v7074
      %v7076 = vpop.f32.mrb[0].mxu0
      %7077 = vdwg.mxu0
      %7078 = vmatprep.subr.mxu0 0.0
      %v7079 = vand.u32 %v6239, 4294901760
      %7080 = vmatpush1.msra.mxu0 %v7079
      %7081 = vmatprep.subr.mxu0 0.0
      %7082 = vmatpush1.msra.mxu0 0.0
      %7083 = vmatprep.subr.mxu0 0.0
      %7084 = vmatpush1.msra.mxu0 0.0
      %7085 = vmatprep.subr.mxu0 0.0
      %7086 = vmatpush1.msra.mxu0 0.0
      %7087 = vmatprep.subr.mxu0 0.0
      %7088 = vmatpush1.msra.mxu0 0.0
      %7089 = vmatprep.subr.mxu0 0.0
      %7090 = vmatpush1.msra.mxu0 0.0
      %7091 = vmatprep.subr.mxu0 0.0
      %7092 = vmatpush1.msra.mxu0 0.0
      %7093 = vmatprep.subr.mxu0 0.0
      %7094 = vmatpush1.msra.mxu0 0.0
      %7095 = vmatprep.subr.mxu0 0.0
      %7096 = vmatpush1.msra.mxu0 0.0
      %7097 = vmatprep.subr.mxu0 0.0
      %7098 = vmatpush1.msra.mxu0 0.0
      %7099 = vmatprep.subr.mxu0 0.0
      %7100 = vmatpush1.msra.mxu0 0.0
      %7101 = vmatprep.subr.mxu0 0.0
      %7102 = vmatpush1.msra.mxu0 0.0
      %7103 = vmatprep.subr.mxu0 0.0
      %7104 = vmatpush1.msra.mxu0 0.0
      %7105 = vmatprep.subr.mxu0 0.0
      %7106 = vmatpush1.msra.mxu0 0.0
      %7107 = vmatprep.subr.mxu0 0.0
      %7108 = vmatpush1.msra.mxu0 0.0
      %7109 = vmatprep.subr.mxu0 0.0
      %7110 = vmatpush1.msra.mxu0 0.0
      %7111 = vmatprep.subr.mxu0 0.0
      %7112 = vmatpush1.msra.mxu0 0.0
      %7113 = vmatprep.subr.mxu0 0.0
      %7114 = vmatpush1.msra.mxu0 0.0
      %7115 = vmatprep.subr.mxu0 0.0
      %7116 = vmatpush1.msra.mxu0 0.0
      %7117 = vmatprep.subr.mxu0 0.0
      %7118 = vmatpush1.msra.mxu0 0.0
      %7119 = vmatprep.subr.mxu0 0.0
      %7120 = vmatpush1.msra.mxu0 0.0
      %7121 = vmatprep.subr.mxu0 0.0
      %7122 = vmatpush1.msra.mxu0 0.0
      %7123 = vmatprep.subr.mxu0 0.0
      %7124 = vmatpush1.msra.mxu0 0.0
      %7125 = vmatprep.subr.mxu0 0.0
      %7126 = vmatpush1.msra.mxu0 0.0
      %7127 = vmatprep.subr.mxu0 0.0
      %7128 = vmatpush1.msra.mxu0 0.0
      %7129 = vmatprep.subr.mxu0 0.0
      %7130 = vmatpush1.msra.mxu0 0.0
      %7131 = vmatprep.subr.mxu0 0.0
      %7132 = vmatpush1.msra.mxu0 0.0
      %7133 = vmatprep.subr.mxu0 0.0
      %7134 = vmatpush1.msra.mxu0 0.0
      %7135 = vmatprep.subr.mxu0 0.0
      %7136 = vmatpush1.msra.mxu0 0.0
      %7137 = vmatprep.subr.mxu0 0.0
      %7138 = vmatpush1.msra.mxu0 0.0
      %7139 = vmatprep.subr.mxu0 0.0
      %7140 = vmatpush1.msra.mxu0 0.0
      %7141 = vmatprep.subr.mxu0 0.0
      %7142 = vmatpush1.msra.mxu0 0.0
      %7143 = vmatprep.mubr.f32.mxu0 0.0
      %v7144 = vand.u32 %v374, 4294901760
      %7145 = vmatmul.mubr.f32.gmra.mrb[0].mxu0 %v7144
      %v7146 = vpop.f32.mrb[0].mxu0
      %v7147 = vadd.f32 %v7075, %v7146
      %v7148 = vpop.f32.mrb[0].mxu0
      %7149 = vdwg.mxu0
      %v7150 = vmul.f32 %v6239, %v341
      %7151 = vmatprep.subr.mxu0 0.0
      %v7152 = vand.u32 %v7150, 4294901760
      %7153 = vmatpush1.msra.mxu0 %v7152
      %7154 = vmatprep.subr.mxu0 0.0
      %7155 = vmatpush1.msra.mxu0 0.0
      %7156 = vmatprep.subr.mxu0 0.0
      %7157 = vmatpush1.msra.mxu0 0.0
      %7158 = vmatprep.subr.mxu0 0.0
      %7159 = vmatpush1.msra.mxu0 0.0
      %7160 = vmatprep.subr.mxu0 0.0
      %7161 = vmatpush1.msra.mxu0 0.0
      %7162 = vmatprep.subr.mxu0 0.0
      %7163 = vmatpush1.msra.mxu0 0.0
      %7164 = vmatprep.subr.mxu0 0.0
      %7165 = vmatpush1.msra.mxu0 0.0
      %7166 = vmatprep.subr.mxu0 0.0
      %7167 = vmatpush1.msra.mxu0 0.0
      %7168 = vmatprep.subr.mxu0 0.0
      %7169 = vmatpush1.msra.mxu0 0.0
      %7170 = vmatprep.subr.mxu0 0.0
      %7171 = vmatpush1.msra.mxu0 0.0
      %7172 = vmatprep.subr.mxu0 0.0
      %7173 = vmatpush1.msra.mxu0 0.0
      %7174 = vmatprep.subr.mxu0 0.0
      %7175 = vmatpush1.msra.mxu0 0.0
      %7176 = vmatprep.subr.mxu0 0.0
      %7177 = vmatpush1.msra.mxu0 0.0
      %7178 = vmatprep.subr.mxu0 0.0
      %7179 = vmatpush1.msra.mxu0 0.0
      %7180 = vmatprep.subr.mxu0 0.0
      %7181 = vmatpush1.msra.mxu0 0.0
      %7182 = vmatprep.subr.mxu0 0.0
      %7183 = vmatpush1.msra.mxu0 0.0
      %7184 = vmatprep.subr.mxu0 0.0
      %7185 = vmatpush1.msra.mxu0 0.0
      %7186 = vmatprep.subr.mxu0 0.0
      %7187 = vmatpush1.msra.mxu0 0.0
      %7188 = vmatprep.subr.mxu0 0.0
      %7189 = vmatpush1.msra.mxu0 0.0
      %7190 = vmatprep.subr.mxu0 0.0
      %7191 = vmatpush1.msra.mxu0 0.0
      %7192 = vmatprep.subr.mxu0 0.0
      %7193 = vmatpush1.msra.mxu0 0.0
      %7194 = vmatprep.subr.mxu0 0.0
      %7195 = vmatpush1.msra.mxu0 0.0
      %7196 = vmatprep.subr.mxu0 0.0
      %7197 = vmatpush1.msra.mxu0 0.0
      %7198 = vmatprep.subr.mxu0 0.0
      %7199 = vmatpush1.msra.mxu0 0.0
      %7200 = vmatprep.subr.mxu0 0.0
      %7201 = vmatpush1.msra.mxu0 0.0
      %7202 = vmatprep.subr.mxu0 0.0
      %7203 = vmatpush1.msra.mxu0 0.0
      %7204 = vmatprep.subr.mxu0 0.0
      %7205 = vmatpush1.msra.mxu0 0.0
      %7206 = vmatprep.subr.mxu0 0.0
      %7207 = vmatpush1.msra.mxu0 0.0
      %7208 = vmatprep.subr.mxu0 0.0
      %7209 = vmatpush1.msra.mxu0 0.0
      %7210 = vmatprep.subr.mxu0 0.0
      %7211 = vmatpush1.msra.mxu0 0.0
      %7212 = vmatprep.subr.mxu0 0.0
      %7213 = vmatpush1.msra.mxu0 0.0
      %7214 = vmatprep.subr.mxu0 0.0
      %7215 = vmatpush1.msra.mxu0 0.0
      %7216 = vmatprep.mubr.f32.mxu0 0.0
      %v7217 = vand.u32 %v374, 4294901760
      %v7218 = vsub.f32 %v374, %v7217
      %v7219 = vand.u32 %v7218, 4294901760
      %v7220 = vsub.f32 %v7218, %v7219
      %v7221 = vand.u32 %v7220, 4294901760
      %7222 = vmatmul.mubr.f32.gmra.mrb[0].mxu0 %v7221
      %v7223 = vpop.f32.mrb[0].mxu0
      %v7224 = vadd.f32 0.0, %v7223
      %v7225 = vpop.f32.mrb[0].mxu0
      %7226 = vdwg.mxu0
      %7227 = vmatprep.subr.mxu0 0.0
      %v7228 = vand.u32 %v7150, 4294901760
      %v7229 = vsub.f32 %v7150, %v7228
      %v7230 = vand.u32 %v7229, 4294901760
      %v7231 = vsub.f32 %v7229, %v7230
      %v7232 = vand.u32 %v7231, 4294901760
      %7233 = vmatpush1.msra.mxu0 %v7232
      %7234 = vmatprep.subr.mxu0 0.0
      %7235 = vmatpush1.msra.mxu0 0.0
      %7236 = vmatprep.subr.mxu0 0.0
      %7237 = vmatpush1.msra.mxu0 0.0
      %7238 = vmatprep.subr.mxu0 0.0
      %7239 = vmatpush1.msra.mxu0 0.0
      %7240 = vmatprep.subr.mxu0 0.0
      %7241 = vmatpush1.msra.mxu0 0.0
      %7242 = vmatprep.subr.mxu0 0.0
      %7243 = vmatpush1.msra.mxu0 0.0
      %7244 = vmatprep.subr.mxu0 0.0
      %7245 = vmatpush1.msra.mxu0 0.0
      %7246 = vmatprep.subr.mxu0 0.0
      %7247 = vmatpush1.msra.mxu0 0.0
      %7248 = vmatprep.subr.mxu0 0.0
      %7249 = vmatpush1.msra.mxu0 0.0
      %7250 = vmatprep.subr.mxu0 0.0
      %7251 = vmatpush1.msra.mxu0 0.0
      %7252 = vmatprep.subr.mxu0 0.0
      %7253 = vmatpush1.msra.mxu0 0.0
      %7254 = vmatprep.subr.mxu0 0.0
      %7255 = vmatpush1.msra.mxu0 0.0
      %7256 = vmatprep.subr.mxu0 0.0
      %7257 = vmatpush1.msra.mxu0 0.0
      %7258 = vmatprep.subr.mxu0 0.0
      %7259 = vmatpush1.msra.mxu0 0.0
      %7260 = vmatprep.subr.mxu0 0.0
      %7261 = vmatpush1.msra.mxu0 0.0
      %7262 = vmatprep.subr.mxu0 0.0
      %7263 = vmatpush1.msra.mxu0 0.0
      %7264 = vmatprep.subr.mxu0 0.0
      %7265 = vmatpush1.msra.mxu0 0.0
      %7266 = vmatprep.subr.mxu0 0.0
      %7267 = vmatpush1.msra.mxu0 0.0
      %7268 = vmatprep.subr.mxu0 0.0
      %7269 = vmatpush1.msra.mxu0 0.0
      %7270 = vmatprep.subr.mxu0 0.0
      %7271 = vmatpush1.msra.mxu0 0.0
      %7272 = vmatprep.subr.mxu0 0.0
      %7273 = vmatpush1.msra.mxu0 0.0
      %7274 = vmatprep.subr.mxu0 0.0
      %7275 = vmatpush1.msra.mxu0 0.0
      %7276 = vmatprep.subr.mxu0 0.0
      %7277 = vmatpush1.msra.mxu0 0.0
      %7278 = vmatprep.subr.mxu0 0.0
      %7279 = vmatpush1.msra.mxu0 0.0
      %7280 = vmatprep.subr.mxu0 0.0
      %7281 = vmatpush1.msra.mxu0 0.0
      %7282 = vmatprep.subr.mxu0 0.0
      %7283 = vmatpush1.msra.mxu0 0.0
      %7284 = vmatprep.subr.mxu0 0.0
      %7285 = vmatpush1.msra.mxu0 0.0
      %7286 = vmatprep.subr.mxu0 0.0
      %7287 = vmatpush1.msra.mxu0 0.0
      %7288 = vmatprep.subr.mxu0 0.0
      %7289 = vmatpush1.msra.mxu0 0.0
      %7290 = vmatprep.subr.mxu0 0.0
      %7291 = vmatpush1.msra.mxu0 0.0
      %7292 = vmatprep.subr.mxu0 0.0
      %7293 = vmatpush1.msra.mxu0 0.0
      %7294 = vmatprep.subr.mxu0 0.0
      %7295 = vmatpush1.msra.mxu0 0.0
      %7296 = vmatprep.mubr.f32.mxu0 0.0
      %v7297 = vand.u32 %v374, 4294901760
      %7298 = vmatmul.mubr.f32.gmra.mrb[0].mxu0 %v7297
      %v7299 = vpop.f32.mrb[0].mxu0
      %v7300 = vadd.f32 %v7224, %v7299
      %v7301 = vpop.f32.mrb[0].mxu0
      %7302 = vdwg.mxu0
      %7303 = vmatprep.subr.mxu0 0.0
      %v7304 = vand.u32 %v7150, 4294901760
      %v7305 = vsub.f32 %v7150, %v7304
      %7306 = vmatpush1.msra.mxu0 %v7305
      %7307 = vmatprep.subr.mxu0 0.0
      %7308 = vmatpush1.msra.mxu0 0.0
      %7309 = vmatprep.subr.mxu0 0.0
      %7310 = vmatpush1.msra.mxu0 0.0
      %7311 = vmatprep.subr.mxu0 0.0
      %7312 = vmatpush1.msra.mxu0 0.0
      %7313 = vmatprep.subr.mxu0 0.0
      %7314 = vmatpush1.msra.mxu0 0.0
      %7315 = vmatprep.subr.mxu0 0.0
      %7316 = vmatpush1.msra.mxu0 0.0
      %7317 = vmatprep.subr.mxu0 0.0
      %7318 = vmatpush1.msra.mxu0 0.0
      %7319 = vmatprep.subr.mxu0 0.0
      %7320 = vmatpush1.msra.mxu0 0.0
      %7321 = vmatprep.subr.mxu0 0.0
      %7322 = vmatpush1.msra.mxu0 0.0
      %7323 = vmatprep.subr.mxu0 0.0
      %7324 = vmatpush1.msra.mxu0 0.0
      %7325 = vmatprep.subr.mxu0 0.0
      %7326 = vmatpush1.msra.mxu0 0.0
      %7327 = vmatprep.subr.mxu0 0.0
      %7328 = vmatpush1.msra.mxu0 0.0
      %7329 = vmatprep.subr.mxu0 0.0
      %7330 = vmatpush1.msra.mxu0 0.0
      %7331 = vmatprep.subr.mxu0 0.0
      %7332 = vmatpush1.msra.mxu0 0.0
      %7333 = vmatprep.subr.mxu0 0.0
      %7334 = vmatpush1.msra.mxu0 0.0
      %7335 = vmatprep.subr.mxu0 0.0
      %7336 = vmatpush1.msra.mxu0 0.0
      %7337 = vmatprep.subr.mxu0 0.0
      %7338 = vmatpush1.msra.mxu0 0.0
      %7339 = vmatprep.subr.mxu0 0.0
      %7340 = vmatpush1.msra.mxu0 0.0
      %7341 = vmatprep.subr.mxu0 0.0
      %7342 = vmatpush1.msra.mxu0 0.0
      %7343 = vmatprep.subr.mxu0 0.0
      %7344 = vmatpush1.msra.mxu0 0.0
      %7345 = vmatprep.subr.mxu0 0.0
      %7346 = vmatpush1.msra.mxu0 0.0
      %7347 = vmatprep.subr.mxu0 0.0
      %7348 = vmatpush1.msra.mxu0 0.0
      %7349 = vmatprep.subr.mxu0 0.0
      %7350 = vmatpush1.msra.mxu0 0.0
      %7351 = vmatprep.subr.mxu0 0.0
      %7352 = vmatpush1.msra.mxu0 0.0
      %7353 = vmatprep.subr.mxu0 0.0
      %7354 = vmatpush1.msra.mxu0 0.0
      %7355 = vmatprep.subr.mxu0 0.0
      %7356 = vmatpush1.msra.mxu0 0.0
      %7357 = vmatprep.subr.mxu0 0.0
      %7358 = vmatpush1.msra.mxu0 0.0
      %7359 = vmatprep.subr.mxu0 0.0
      %7360 = vmatpush1.msra.mxu0 0.0
      %7361 = vmatprep.subr.mxu0 0.0
      %7362 = vmatpush1.msra.mxu0 0.0
      %7363 = vmatprep.subr.mxu0 0.0
      %7364 = vmatpush1.msra.mxu0 0.0
      %7365 = vmatprep.subr.mxu0 0.0
      %7366 = vmatpush1.msra.mxu0 0.0
      %7367 = vmatprep.subr.mxu0 0.0
      %7368 = vmatpush1.msra.mxu0 0.0
      %7369 = vmatprep.mubr.f32.mxu0 0.0
      %v7370 = vand.u32 %v374, 4294901760
      %v7371 = vsub.f32 %v374, %v7370
      %7372 = vmatmul.mubr.f32.gmra.mrb[0].mxu0 %v7371
      %v7373 = vpop.f32.mrb[0].mxu0
      %v7374 = vadd.f32 %v7300, %v7373
      %v7375 = vpop.f32.mrb[0].mxu0
      %7376 = vdwg.mxu0
      %7377 = vmatprep.subr.mxu0 0.0
      %v7378 = vand.u32 %v7150, 4294901760
      %7379 = vmatpush1.msra.mxu0 %v7378
      %7380 = vmatprep.subr.mxu0 0.0
      %7381 = vmatpush1.msra.mxu0 0.0
      %7382 = vmatprep.subr.mxu0 0.0
      %7383 = vmatpush1.msra.mxu0 0.0
      %7384 = vmatprep.subr.mxu0 0.0
      %7385 = vmatpush1.msra.mxu0 0.0
      %7386 = vmatprep.subr.mxu0 0.0
      %7387 = vmatpush1.msra.mxu0 0.0
      %7388 = vmatprep.subr.mxu0 0.0
      %7389 = vmatpush1.msra.mxu0 0.0
      %7390 = vmatprep.subr.mxu0 0.0
      %7391 = vmatpush1.msra.mxu0 0.0
      %7392 = vmatprep.subr.mxu0 0.0
      %7393 = vmatpush1.msra.mxu0 0.0
      %7394 = vmatprep.subr.mxu0 0.0
      %7395 = vmatpush1.msra.mxu0 0.0
      %7396 = vmatprep.subr.mxu0 0.0
      %7397 = vmatpush1.msra.mxu0 0.0
      %7398 = vmatprep.subr.mxu0 0.0
      %7399 = vmatpush1.msra.mxu0 0.0
      %7400 = vmatprep.subr.mxu0 0.0
      %7401 = vmatpush1.msra.mxu0 0.0
      %7402 = vmatprep.subr.mxu0 0.0
      %7403 = vmatpush1.msra.mxu0 0.0
      %7404 = vmatprep.subr.mxu0 0.0
      %7405 = vmatpush1.msra.mxu0 0.0
      %7406 = vmatprep.subr.mxu0 0.0
      %7407 = vmatpush1.msra.mxu0 0.0
      %7408 = vmatprep.subr.mxu0 0.0
      %7409 = vmatpush1.msra.mxu0 0.0
      %7410 = vmatprep.subr.mxu0 0.0
      %7411 = vmatpush1.msra.mxu0 0.0
      %7412 = vmatprep.subr.mxu0 0.0
      %7413 = vmatpush1.msra.mxu0 0.0
      %7414 = vmatprep.subr.mxu0 0.0
      %7415 = vmatpush1.msra.mxu0 0.0
      %7416 = vmatprep.subr.mxu0 0.0
      %7417 = vmatpush1.msra.mxu0 0.0
      %7418 = vmatprep.subr.mxu0 0.0
      %7419 = vmatpush1.msra.mxu0 0.0
      %7420 = vmatprep.subr.mxu0 0.0
      %7421 = vmatpush1.msra.mxu0 0.0
      %7422 = vmatprep.subr.mxu0 0.0
      %7423 = vmatpush1.msra.mxu0 0.0
      %7424 = vmatprep.subr.mxu0 0.0
      %7425 = vmatpush1.msra.mxu0 0.0
      %7426 = vmatprep.subr.mxu0 0.0
      %7427 = vmatpush1.msra.mxu0 0.0
      %7428 = vmatprep.subr.mxu0 0.0
      %7429 = vmatpush1.msra.mxu0 0.0
      %7430 = vmatprep.subr.mxu0 0.0
      %7431 = vmatpush1.msra.mxu0 0.0
      %7432 = vmatprep.subr.mxu0 0.0
      %7433 = vmatpush1.msra.mxu0 0.0
      %7434 = vmatprep.subr.mxu0 0.0
      %7435 = vmatpush1.msra.mxu0 0.0
      %7436 = vmatprep.subr.mxu0 0.0
      %7437 = vmatpush1.msra.mxu0 0.0
      %7438 = vmatprep.subr.mxu0 0.0
      %7439 = vmatpush1.msra.mxu0 0.0
      %7440 = vmatprep.subr.mxu0 0.0
      %7441 = vmatpush1.msra.mxu0 0.0
      %7442 = vmatprep.mubr.f32.mxu0 0.0
      %v7443 = vand.u32 %v374, 4294901760
      %v7444 = vsub.f32 %v374, %v7443
      %v7445 = vand.u32 %v7444, 4294901760
      %7446 = vmatmul.mubr.f32.gmra.mrb[0].mxu0 %v7445
      %v7447 = vpop.f32.mrb[0].mxu0
      %v7448 = vadd.f32 %v7374, %v7447
      %v7449 = vpop.f32.mrb[0].mxu0
      %7450 = vdwg.mxu0
      %7451 = vmatprep.subr.mxu0 0.0
      %v7452 = vand.u32 %v7150, 4294901760
      %v7453 = vsub.f32 %v7150, %v7452
      %v7454 = vand.u32 %v7453, 4294901760
      %7455 = vmatpush1.msra.mxu0 %v7454
      %7456 = vmatprep.subr.mxu0 0.0
      %7457 = vmatpush1.msra.mxu0 0.0
      %7458 = vmatprep.subr.mxu0 0.0
      %7459 = vmatpush1.msra.mxu0 0.0
      %7460 = vmatprep.subr.mxu0 0.0
      %7461 = vmatpush1.msra.mxu0 0.0
      %7462 = vmatprep.subr.mxu0 0.0
      %7463 = vmatpush1.msra.mxu0 0.0
      %7464 = vmatprep.subr.mxu0 0.0
      %7465 = vmatpush1.msra.mxu0 0.0
      %7466 = vmatprep.subr.mxu0 0.0
      %7467 = vmatpush1.msra.mxu0 0.0
      %7468 = vmatprep.subr.mxu0 0.0
      %7469 = vmatpush1.msra.mxu0 0.0
      %7470 = vmatprep.subr.mxu0 0.0
      %7471 = vmatpush1.msra.mxu0 0.0
      %7472 = vmatprep.subr.mxu0 0.0
      %7473 = vmatpush1.msra.mxu0 0.0
      %7474 = vmatprep.subr.mxu0 0.0
      %7475 = vmatpush1.msra.mxu0 0.0
      %7476 = vmatprep.subr.mxu0 0.0
      %7477 = vmatpush1.msra.mxu0 0.0
      %7478 = vmatprep.subr.mxu0 0.0
      %7479 = vmatpush1.msra.mxu0 0.0
      %7480 = vmatprep.subr.mxu0 0.0
      %7481 = vmatpush1.msra.mxu0 0.0
      %7482 = vmatprep.subr.mxu0 0.0
      %7483 = vmatpush1.msra.mxu0 0.0
      %7484 = vmatprep.subr.mxu0 0.0
      %7485 = vmatpush1.msra.mxu0 0.0
      %7486 = vmatprep.subr.mxu0 0.0
      %7487 = vmatpush1.msra.mxu0 0.0
      %7488 = vmatprep.subr.mxu0 0.0
      %7489 = vmatpush1.msra.mxu0 0.0
      %7490 = vmatprep.subr.mxu0 0.0
      %7491 = vmatpush1.msra.mxu0 0.0
      %7492 = vmatprep.subr.mxu0 0.0
      %7493 = vmatpush1.msra.mxu0 0.0
      %7494 = vmatprep.subr.mxu0 0.0
      %7495 = vmatpush1.msra.mxu0 0.0
      %7496 = vmatprep.subr.mxu0 0.0
      %7497 = vmatpush1.msra.mxu0 0.0
      %7498 = vmatprep.subr.mxu0 0.0
      %7499 = vmatpush1.msra.mxu0 0.0
      %7500 = vmatprep.subr.mxu0 0.0
      %7501 = vmatpush1.msra.mxu0 0.0
      %7502 = vmatprep.subr.mxu0 0.0
      %7503 = vmatpush1.msra.mxu0 0.0
      %7504 = vmatprep.subr.mxu0 0.0
      %7505 = vmatpush1.msra.mxu0 0.0
      %7506 = vmatprep.subr.mxu0 0.0
      %7507 = vmatpush1.msra.mxu0 0.0
      %7508 = vmatprep.subr.mxu0 0.0
      %7509 = vmatpush1.msra.mxu0 0.0
      %7510 = vmatprep.subr.mxu0 0.0
      %7511 = vmatpush1.msra.mxu0 0.0
      %7512 = vmatprep.subr.mxu0 0.0
      %7513 = vmatpush1.msra.mxu0 0.0
      %7514 = vmatprep.subr.mxu0 0.0
      %7515 = vmatpush1.msra.mxu0 0.0
      %7516 = vmatprep.subr.mxu0 0.0
      %7517 = vmatpush1.msra.mxu0 0.0
      %7518 = vmatprep.mubr.f32.mxu0 0.0
      %v7519 = vand.u32 %v374, 4294901760
      %7520 = vmatmul.mubr.f32.gmra.mrb[0].mxu0 %v7519
      %v7521 = vpop.f32.mrb[0].mxu0
      %v7522 = vadd.f32 %v7448, %v7521
      %v7523 = vpop.f32.mrb[0].mxu0
      %7524 = vdwg.mxu0
      %7525 = vmatprep.subr.mxu0 0.0
      %v7526 = vand.u32 %v7150, 4294901760
      %7527 = vmatpush1.msra.mxu0 %v7526
      %7528 = vmatprep.subr.mxu0 0.0
      %7529 = vmatpush1.msra.mxu0 0.0
      %7530 = vmatprep.subr.mxu0 0.0
      %7531 = vmatpush1.msra.mxu0 0.0
      %7532 = vmatprep.subr.mxu0 0.0
      %7533 = vmatpush1.msra.mxu0 0.0
      %7534 = vmatprep.subr.mxu0 0.0
      %7535 = vmatpush1.msra.mxu0 0.0
      %7536 = vmatprep.subr.mxu0 0.0
      %7537 = vmatpush1.msra.mxu0 0.0
      %7538 = vmatprep.subr.mxu0 0.0
      %7539 = vmatpush1.msra.mxu0 0.0
      %7540 = vmatprep.subr.mxu0 0.0
      %7541 = vmatpush1.msra.mxu0 0.0
      %7542 = vmatprep.subr.mxu0 0.0
      %7543 = vmatpush1.msra.mxu0 0.0
      %7544 = vmatprep.subr.mxu0 0.0
      %7545 = vmatpush1.msra.mxu0 0.0
      %7546 = vmatprep.subr.mxu0 0.0
      %7547 = vmatpush1.msra.mxu0 0.0
      %7548 = vmatprep.subr.mxu0 0.0
      %7549 = vmatpush1.msra.mxu0 0.0
      %7550 = vmatprep.subr.mxu0 0.0
      %7551 = vmatpush1.msra.mxu0 0.0
      %7552 = vmatprep.subr.mxu0 0.0
      %7553 = vmatpush1.msra.mxu0 0.0
      %7554 = vmatprep.subr.mxu0 0.0
      %7555 = vmatpush1.msra.mxu0 0.0
      %7556 = vmatprep.subr.mxu0 0.0
      %7557 = vmatpush1.msra.mxu0 0.0
      %7558 = vmatprep.subr.mxu0 0.0
      %7559 = vmatpush1.msra.mxu0 0.0
      %7560 = vmatprep.subr.mxu0 0.0
      %7561 = vmatpush1.msra.mxu0 0.0
      %7562 = vmatprep.subr.mxu0 0.0
      %7563 = vmatpush1.msra.mxu0 0.0
      %7564 = vmatprep.subr.mxu0 0.0
      %7565 = vmatpush1.msra.mxu0 0.0
      %7566 = vmatprep.subr.mxu0 0.0
      %7567 = vmatpush1.msra.mxu0 0.0
      %7568 = vmatprep.subr.mxu0 0.0
      %7569 = vmatpush1.msra.mxu0 0.0
      %7570 = vmatprep.subr.mxu0 0.0
      %7571 = vmatpush1.msra.mxu0 0.0
      %7572 = vmatprep.subr.mxu0 0.0
      %7573 = vmatpush1.msra.mxu0 0.0
      %7574 = vmatprep.subr.mxu0 0.0
      %7575 = vmatpush1.msra.mxu0 0.0
      %7576 = vmatprep.subr.mxu0 0.0
      %7577 = vmatpush1.msra.mxu0 0.0
      %7578 = vmatprep.subr.mxu0 0.0
      %7579 = vmatpush1.msra.mxu0 0.0
      %7580 = vmatprep.subr.mxu0 0.0
      %7581 = vmatpush1.msra.mxu0 0.0
      %7582 = vmatprep.subr.mxu0 0.0
      %7583 = vmatpush1.msra.mxu0 0.0
      %7584 = vmatprep.subr.mxu0 0.0
      %7585 = vmatpush1.msra.mxu0 0.0
      %7586 = vmatprep.subr.mxu0 0.0
      %7587 = vmatpush1.msra.mxu0 0.0
      %7588 = vmatprep.subr.mxu0 0.0
      %7589 = vmatpush1.msra.mxu0 0.0
      %7590 = vmatprep.mubr.f32.mxu0 0.0
      %v7591 = vand.u32 %v374, 4294901760
      %7592 = vmatmul.mubr.f32.gmra.mrb[0].mxu0 %v7591
      %v7593 = vpop.f32.mrb[0].mxu0
      %v7594 = vadd.f32 %v7522, %v7593
      %v7595 = vpop.f32.mrb[0].mxu0
      %7596 = vdwg.mxu0
      %v7598 = vrot.slane %v1265, 7
      %v7601 = vrot.slane %v1711, 6
      %v7604 = vrot.slane %v2158, 5
      %v7607 = vrot.slane %v2624, 4
      %v7610 = vrot.slane %v3070, 3
      %v7613 = vrot.slane %v3517, 2
      %v7616 = vrot.slane %v3983, 1
      %v7619 = vrot.slane %v4876, 7
      %v7622 = vrot.slane %v5342, 6
      %v7625 = vrot.slane %v5788, 5
      %v7628 = vrot.slane %v6235, 4
      %v7631 = vrot.slane %v6701, 3
      %v7634 = vrot.slane %v7147, 2
      %v7637 = vrot.slane %v7594, 1
      %vm7639 = vcmask 1040384
      %v7640 = vsel %vm7639, %v819, %v7598
      %vm7641 = vcmask 1041408
      %v7642 = vsel %vm7641, %v7640, %v7601
      %vm7643 = vcmask 1042432
      %v7644 = vsel %vm7643, %v7642, %v7604
      %vm7645 = vcmask 1043456
      %v7646 = vsel %vm7645, %v7644, %v7607
      %vm7647 = vcmask 1044480
      %v7648 = vsel %vm7647, %v7646, %v7610
      %vm7649 = vcmask 1045504
      %v7650 = vsel %vm7649, %v7648, %v7613
      %vm7651 = vcmask 1046528
      %v7652 = vsel %vm7651, %v7650, %v7616
      %v7653 = vsel %vm7639, %v4429, %v7619
      %v7654 = vsel %vm7641, %v7653, %v7622
      %v7655 = vsel %vm7643, %v7654, %v7625
      %v7656 = vsel %vm7645, %v7655, %v7628
      %v7657 = vsel %vm7647, %v7656, %v7631
      %v7658 = vsel %vm7649, %v7657, %v7634
      %v7659 = vsel %vm7651, %v7658, %v7637
      %7660 = vst [vmem:[%s333] sm:$0xff] %v7652
      %7661 = vst [vmem:[%s333 + $0x8] sm:$0xff] %v7659
      %p7662 = scmp.lt.s32.totalorder %s17, 1
      %s7663 = scalar_select %p7662, %s17, 1
      %s7664 = smul.addr %s7663, 2
      %s7665 = smul.addr %s7664, 8
      %s7666 = scalar_lea.vmem %s6, %s7665
      // Predicated region
      $region45: #{segmentation_loss.1} parent=43 // pred_check
        %p7667 = pneg %p191
      $region46: #{segmentation_loss.1} parent=43 // pred_check_branch
        %7669 = sbr.rel (%p7667) target = $region48
      $region47: #{segmentation_loss.1} parent=43 // pred_region
        _
      $region48: #{segmentation_loss.1} parent=43 // pred_fallthru
        _
    $region44: #{segmentation_loss.1} parent=5 // pred_fallthru
      _
    %p7670 = scmp.le.s32.totalorder 2, %s12
    // Predicated region
    $region49: #{segmentation_loss.1} parent=5 // pred_check
      %p7671 = pneg %p7670
    $region50: #{segmentation_loss.1} parent=5 // pred_check_branch
      %7673 = sbr.rel (%p7671) target = $region52
    $region51: #{segmentation_loss.1} parent=5 // pred_region
      %s7674 = ssub.s32 %s12, 2
      // Predicated region
      $region53: #{segmentation_loss.1} parent=51 // pred_check
        %p7675 = pneg %p197
      $region54: #{segmentation_loss.1} parent=51 // pred_check_branch
        %7677 = sbr.rel (%p7675) target = $region56
      $region55: #{segmentation_loss.1} parent=51 // pred_region
        %p7678 = scmp.lt.s32.totalorder %s18, 1
        %s7679 = scalar_select %p7678, %s18, 1
        %s7680 = smul.addr %s7679, 2
        %s7681 = smul.addr %s7680, 8
        %s7682 = scalar_lea.vmem %s6, %s7681
      $region56: #{segmentation_loss.1} parent=51 // pred_fallthru
        _
    $region52: #{segmentation_loss.1} parent=5 // pred_fallthru
      _
  $region6: #{segmentation_loss.1} parent=0 // loop_footer
    %s16 = sadd.s32 1, %s12
  $region7: #{segmentation_loss.1} parent=0 // loop_footer_branch
    %11 = sbr.rel target = $region3
  $region8: #{segmentation_loss.1} parent=0 // loop_exit
    _

</llo_original>
